<compile_context>
chip_gen: v7x
topology: tpu7x:2x2x1
jax: 0.10.0
libtpu: 0.0.40
codegen_flags: <defaults>
</compile_context>

<pallas_src>
import functools

import jax
import jax.numpy as jnp
from jax.experimental import pallas as pl
from jax.experimental.pallas import tpu as pltpu

# conv_type='type_1' geometry
CONV_KS = [8, 4, 3]
CONV_CH = [32, 64, 64]
CONV_ST = [4, 2, 1]
MLP_HIDDEN = [512, 256]

APAD = 8    # action feature dim padded to 8 (zero rows/cols -> exact result)


def conv_out_hw(h, w):
    for k, s in zip(CONV_KS, CONV_ST):
        h = (h - k) // s + 1
        w = (w - k) // s + 1
    return h, w


def _pick_tb(batch):
    """Batch-tile: multiple of 16 (bf16 sublane tile), <=128, grid >= 2 when possible."""
    if batch <= 16:
        return 16
    half = ((batch + 1) // 2 + 15) // 16 * 16   # ceil(B/2) rounded up to mult of 16
    return min(128, half)


# ----------------------------------------------------------------------------
# Fused forward kernel: conv x3 (+ReLU) -> (feat, act) -> MLP 512/256/1
# ----------------------------------------------------------------------------
def _action_value_kernel(x_ref, a_ref,
                         w1_ref, b1_ref, w2_ref, b2_ref, w3_ref, b3_ref,
                         wf_ref, wa_ref, bm1_ref, wm2_ref, bm2_ref,
                         wm3_ref, bm3_ref, o_ref, *, tb):
    f32, bf16 = jnp.float32, jnp.bfloat16

    # ---- conv1: 8x8 kernel, stride 4 -> 8x8x32 ------------------------------
    # Input tile is packed (Hq=9, Wq=9, tb, 4*4*C) in bf16: the stride-4
    # intra-block offsets live in the lane dim, so each kernel-offset group
    # (ip, jp) in {0,1}^2 is one dense matmul over a static ref slice
    # (no full-tile materialisation).
    acc1 = jnp.zeros((8 * 8 * tb, 32), f32)
    for g, (ip, jp) in enumerate(((0, 0), (0, 1), (1, 0), (1, 1))):
        xs = x_ref[ip:ip + 8, jp:jp + 8]                   # (8, 8, tb, 16C) bf16
        xs = xs.reshape(8 * 8 * tb, xs.shape[-1])          # re-tiling only
        acc1 = acc1 + jnp.dot(xs, w1_ref[g], preferred_element_type=f32)
    y1 = jnp.maximum(acc1 + b1_ref[...], 0.0).astype(bf16)  # rows = (oy, ox, t)

    # ---- conv2: 4x4 kernel, stride 2 -> 3x3x64 (K-stacked: 4 dots, K=128) ----
    # View y1 with spatial dims split by the stride: (a_h, r_h, a_w, r_w, t, c).
    # For a fixed residual (r_h, r_w) the 4 block-offset groups (ip, jp) are
    # lane-concatenated into one K=128 operand; weights are packed to match
    # (group = r_h*2 + r_w, rows ordered (ip, jp, c_in)).
    x1 = y1.reshape(4, 2, 4, 2, tb, 32)
    acc2 = jnp.zeros((3 * 3 * tb, 64), f32)
    for ir in range(2):
        for jr in range(2):
            parts = [x1[ip:ip + 3, ir, jp:jp + 3, jr]       # each (3, 3, tb, 32)
                     for ip in range(2) for jp in range(2)]
            xs = jnp.concatenate(parts, axis=-1)            # (3, 3, tb, 128)
            xs = xs.reshape(3 * 3 * tb, 128)
            acc2 = acc2 + jnp.dot(xs, w2_ref[ir * 2 + jr],
                                  preferred_element_type=f32)
    y2 = jnp.maximum(acc2 + b2_ref[...], 0.0).astype(bf16)  # rows = (oy2, ox2, t)

    # ---- conv3: 3x3 kernel, stride 1 -> 1x1x64 ------------------------------
    acc3 = jnp.zeros((tb, 64), f32)
    for p in range(9):                                      # p = ky*3 + kx
        acc3 = acc3 + jnp.dot(y2[p * tb:(p + 1) * tb], w3_ref[p],
                              preferred_element_type=f32)
    feat = jnp.maximum(acc3 + b3_ref[...], 0.0).astype(bf16)  # (tb, 64)

    # ---- MLP head: [64 + act_dim, 512, 256, 1] ------------------------------
    # concat(feat, act) @ W1  ==  feat @ W_f + act @ W_a  (no in-kernel concat).
    h1 = jnp.dot(feat, wf_ref[...], preferred_element_type=f32)
    h1 = h1 + jnp.dot(a_ref[...], wa_ref[...], preferred_element_type=f32)
    h1 = jnp.maximum(h1 + bm1_ref[...], 0.0).astype(bf16)   # (tb, 512), hidden=ReLU
    h2 = jnp.dot(h1, wm2_ref[...], preferred_element_type=f32)
    h2 = jnp.maximum(h2 + bm2_ref[...], 0.0).astype(bf16)   # (tb, 256)
    # Final layer zero-padded to N=128 -> single lane-dense store (col 0 = Q).
    q = jnp.dot(h2, wm3_ref[...], preferred_element_type=f32)
    o_ref[...] = (q + bm3_ref[...]).astype(o_ref.dtype)     # output_act = Identity


def _const_spec(shape):
    zeros = (0,) * len(shape)
    return pl.BlockSpec(shape, lambda b: zeros)


def action_value_forward(obs, act, packed):
    """obs: (B, 36, 36, C) f32 NHWC, act: (B, act_dim) f32 -> Q: (B, 1) f32."""
    B, H, W, C = obs.shape
    assert (H, W) == (36, 36), "type_1 conv stack sized for 36x36 inputs here"
    A = act.shape[-1]
    assert A <= APAD

    TB = _pick_tb(B)
    b_pad = pl.cdiv(B, TB) * TB

    # bf16 inputs: halves the dominant HBM read; cast before the pack transpose
    # so the materialized packed copy is bf16 as well.
    obs_p = jnp.pad(obs.astype(jnp.bfloat16),
                    ((0, b_pad - B), (0, 0), (0, 0), (0, 0)))
    act_p = jnp.pad(act.astype(jnp.bfloat16),
                    ((0, b_pad - B), (0, APAD - A)))

    # Pack obs into the stride-4 space-to-depth layout: (Hq, Wq, B, hr*wr*C).
    xb = (obs_p.reshape(b_pad, 9, 4, 9, 4, C)
                .transpose(1, 3, 0, 2, 4, 5)
                .reshape(9, 9, b_pad, 16 * C))

    p = packed
    weight_args = (p["w1g"], p["b1"], p["w2g"], p["b2"], p["w3g"], p["b3"],
                   p["wf"], p["wa"], p["bm1"], p["wm2"], p["bm2"],
                   p["wm3"], p["bm3"])

    in_specs = [
        pl.BlockSpec((9, 9, TB, 16 * C), lambda b: (0, 0, b, 0)),   # packed obs
        pl.BlockSpec((TB, APAD), lambda b: (b, 0)),                 # action
    ] + [_const_spec(w.shape) for w in weight_args]                 # VMEM-resident

    kernel = functools.partial(_action_value_kernel, tb=TB)

    out = pl.pallas_call(
        kernel,
        out_shape=jax.ShapeDtypeStruct((b_pad, 128), jnp.float32),
        grid=(b_pad // TB,),
        in_specs=in_specs,
        out_specs=pl.BlockSpec((TB, 128), lambda b: (b, 0)),
        compiler_params=pltpu.CompilerParams(
            dimension_semantics=("parallel",),
            vmem_limit_bytes=48 * 1024 * 1024),
    )(xb, act_p, *weight_args)

    return out[:B, :1]


# ----------------------------------------------------------------------------
# Parameters: synthetic deterministic init (PyTorch-equivalent logical shapes)
# ----------------------------------------------------------------------------
def init_params(key, obs_dim, act_dim):
    H, W, C = obs_dim
    params = {"conv": [], "mlp": []}
    in_c = C
    for k, ch in zip(CONV_KS, CONV_CH):
        key, kw, kb = jax.random.split(key, 3)
        fan_in = k * k * in_c
        w = jax.random.normal(kw, (k, k, in_c, ch), jnp.float32) / jnp.sqrt(fan_in)
        b = 0.01 * jax.random.normal(kb, (ch,), jnp.float32)
        params["conv"].append((w, b))
        in_c = ch
    oh, ow = conv_out_hw(H, W)
    conv_num_dims = CONV_CH[-1] * oh * ow
    sizes = [conv_num_dims + act_dim] + MLP_HIDDEN + [1]
    for j in range(len(sizes) - 1):
        key, kw, kb = jax.random.split(key, 3)
        w = jax.random.normal(kw, (sizes[j], sizes[j + 1]),
                              jnp.float32) / jnp.sqrt(sizes[j])
        b = 0.01 * jax.random.normal(kb, (sizes[j + 1],), jnp.float32)
        params["mlp"].append((w, b))
    return params


def pack_params(params, act_dim):
    """Regroup weights for the fused kernel (bf16 matmul operands, f32 biases)."""
    bf16 = jnp.bfloat16
    (w1, b1), (w2, b2), (w3, b3) = params["conv"]
    C = w1.shape[2]
    # conv1 (8,8,C,32): group kernel offsets by (i//4, j//4); rows = (i%4, j%4, c).
    w1g = (w1.reshape(2, 4, 2, 4, C, 32)
             .transpose(0, 2, 1, 3, 4, 5)
             .reshape(4, 16 * C, 32)).astype(bf16)
    # conv2 (4,4,32,64): K-stack.  ki = 2*ip + ir, kj = 2*jp + jr.
    # group = ir*2 + jr; rows within a group ordered (ip, jp, c_in) -> K = 128.
    w2g = (w2.reshape(2, 2, 2, 2, 32, 64)
             .transpose(1, 3, 0, 2, 4, 5)
             .reshape(4, 2 * 2 * 32, 64)).astype(bf16)
    w3g = w3.reshape(9, 64, 64).astype(bf16)

    (wm1, bm1), (wm2, bm2), (wm3, bm3) = params["mlp"]
    d_feat = wm1.shape[0] - act_dim                       # 64
    wf = wm1[:d_feat].astype(bf16)                        # (64, 512)
    wa = jnp.zeros((APAD, wm1.shape[1]), jnp.float32)
    wa = wa.at[:act_dim].set(wm1[d_feat:]).astype(bf16)   # (8, 512) zero-padded
    wm3p = jnp.zeros((wm3.shape[0], 128), jnp.float32)
    wm3p = wm3p.at[:, :1].set(wm3).astype(bf16)           # (256, 128) lane-padded
    bm3p = jnp.zeros((1, 128), jnp.float32).at[:, :1].set(bm3.reshape(1, 1))
    return dict(
        w1g=w1g, b1=b1.reshape(1, -1),
        w2g=w2g, b2=b2.reshape(1, -1),
        w3g=w3g, b3=b3.reshape(1, -1),
        wf=wf, wa=wa, bm1=bm1.reshape(1, -1),
        wm2=wm2.astype(bf16), bm2=bm2.reshape(1, -1),
        wm3=wm3p, bm3=bm3p,
    )


# ----------------------------------------------------------------------------
# Pure-JAX f32 reference (matches the PyTorch module semantics)
# ----------------------------------------------------------------------------
def reference_forward(obs, act, params):
    x = obs
    for (w, b), s in zip(params["conv"], CONV_ST):
        x = jax.lax.conv_general_dilated(
            x, w, window_strides=(s, s), padding="VALID",
            dimension_numbers=("NHWC", "HWIO", "NHWC"))
        x = jnp.maximum(x + b, 0.0)
    # (B, 1, 1, 64): NCHW flatten == channel order for a 1x1 feature map.
    feat = x.reshape(x.shape[0], -1)
    h = jnp.concatenate([feat, act], axis=-1)
    (wm1, bm1), (wm2, bm2), (wm3, bm3) = params["mlp"]
    h = jnp.maximum(h @ wm1 + bm1, 0.0)
    h = jnp.maximum(h @ wm2 + bm2, 0.0)
    return h @ wm3 + bm3


# ----------------------------------------------------------------------------
if __name__ == "__main__":
    obs_dim = (36, 36, 4)   # minimal spatial size for the type_1 conv stack
    act_dim = 2
    batch = 20              # -> TB=16, b_pad=32, grid=2 (exercises padding + grid)

    key = jax.random.PRNGKey(0)
    k_obs, k_act, k_par = jax.random.split(key, 3)
    obs = jax.random.uniform(k_obs, (batch,) + obs_dim, jnp.float32)
    act = jax.random.uniform(k_act, (batch, act_dim), jnp.float32,
                             minval=-1.0, maxval=1.0)

    params = init_params(k_par, obs_dim, act_dim)
    packed = pack_params(params, act_dim)

    q = jax.block_until_ready(action_value_forward(obs, act, packed))

    assert q.shape == (batch, 1), q.shape
    assert q.dtype == jnp.float32
    assert bool(jnp.all(jnp.isfinite(q)))

    # Validate the fused bf16 kernel against the f32 pure-JAX reference.
    q_ref = jax.block_until_ready(reference_forward(obs, act, params))
    assert bool(jnp.allclose(q, q_ref, rtol=5e-2, atol=5e-2)), (q, q_ref)

    print("KERNEL_OK")
</pallas_src>

<mosaic_0001>
module attributes {stable_mosaic.version = 11 : i64} {
  func.func @_action_value_kernel(%arg0: i32, %arg1: memref<9x9x16x64xbf16, #tpu.memory_space<vmem>>, %arg2: memref<16x8xbf16, #tpu.memory_space<vmem>>, %arg3: memref<4x64x32xbf16, #tpu.memory_space<vmem>>, %arg4: memref<1x32xf32, #tpu.memory_space<vmem>>, %arg5: memref<4x128x64xbf16, #tpu.memory_space<vmem>>, %arg6: memref<1x64xf32, #tpu.memory_space<vmem>>, %arg7: memref<9x64x64xbf16, #tpu.memory_space<vmem>>, %arg8: memref<1x64xf32, #tpu.memory_space<vmem>>, %arg9: memref<64x512xbf16, #tpu.memory_space<vmem>>, %arg10: memref<8x512xbf16, #tpu.memory_space<vmem>>, %arg11: memref<1x512xf32, #tpu.memory_space<vmem>>, %arg12: memref<512x256xbf16, #tpu.memory_space<vmem>>, %arg13: memref<1x256xf32, #tpu.memory_space<vmem>>, %arg14: memref<256x128xbf16, #tpu.memory_space<vmem>>, %arg15: memref<1x128xf32, #tpu.memory_space<vmem>>, %arg16: memref<16x128xf32, #tpu.memory_space<vmem>>) attributes {dimension_semantics = [#tpu.dimension_semantics<parallel>], iteration_bounds = array<i64: 2>, scalar_prefetch = 0 : i64, scratch_operands = 0 : i64, tpu.core_type = #tpu.core_type<tc>, window_params = [{transform_indices = @transform_0, window_bounds = array<i64: 9, 9, 16, 64>}, {transform_indices = @transform_1, window_bounds = array<i64: 16, 8>}, {pipeline_mode = #tpu.pipeline_mode<synchronous>, transform_indices = @transform_2, window_bounds = array<i64: 4, 64, 32>}, {pipeline_mode = #tpu.pipeline_mode<synchronous>, transform_indices = @transform_3, window_bounds = array<i64: 1, 32>}, {pipeline_mode = #tpu.pipeline_mode<synchronous>, transform_indices = @transform_4, window_bounds = array<i64: 4, 128, 64>}, {pipeline_mode = #tpu.pipeline_mode<synchronous>, transform_indices = @transform_5, window_bounds = array<i64: 1, 64>}, {pipeline_mode = #tpu.pipeline_mode<synchronous>, transform_indices = @transform_6, window_bounds = array<i64: 9, 64, 64>}, {pipeline_mode = #tpu.pipeline_mode<synchronous>, transform_indices = @transform_7, window_bounds = array<i64: 1, 64>}, {pipeline_mode = #tpu.pipeline_mode<synchronous>, transform_indices = @transform_8, window_bounds = array<i64: 64, 512>}, {pipeline_mode = #tpu.pipeline_mode<synchronous>, transform_indices = @transform_9, window_bounds = array<i64: 8, 512>}, {pipeline_mode = #tpu.pipeline_mode<synchronous>, transform_indices = @transform_10, window_bounds = array<i64: 1, 512>}, {pipeline_mode = #tpu.pipeline_mode<synchronous>, transform_indices = @transform_11, window_bounds = array<i64: 512, 256>}, {pipeline_mode = #tpu.pipeline_mode<synchronous>, transform_indices = @transform_12, window_bounds = array<i64: 1, 256>}, {pipeline_mode = #tpu.pipeline_mode<synchronous>, transform_indices = @transform_13, window_bounds = array<i64: 256, 128>}, {pipeline_mode = #tpu.pipeline_mode<synchronous>, transform_indices = @transform_14, window_bounds = array<i64: 1, 128>}, {transform_indices = @transform_15, window_bounds = array<i64: 16, 128>}]} {
    %cst = arith.constant 0.000000e+00 : f32
    %0 = vector.broadcast %cst : f32 to vector<1024x32xf32>
    %c0 = arith.constant 0 : index
    %c0_0 = arith.constant 0 : index
    %c0_1 = arith.constant 0 : index
    %c0_2 = arith.constant 0 : index
    %1 = vector.load %arg1[%c0, %c0_0, %c0_1, %c0_2] : memref<9x9x16x64xbf16, #tpu.memory_space<vmem>>, vector<8x8x16x64xbf16>
    %2 = vector.shape_cast %1 : vector<8x8x16x64xbf16> to vector<1024x64xbf16>
    %c0_3 = arith.constant 0 : index
    %c0_4 = arith.constant 0 : index
    %c0_5 = arith.constant 0 : index
    %3 = vector.load %arg3[%c0_3, %c0_4, %c0_5] : memref<4x64x32xbf16, #tpu.memory_space<vmem>>, vector<1x64x32xbf16>
    %4 = vector.shape_cast %3 : vector<1x64x32xbf16> to vector<64x32xbf16>
    %cst_6 = arith.constant dense<0.000000e+00> : vector<1024x32xf32>
    %5 = tpu.matmul %2, %4, %cst_6 {dimension_numbers = #tpu.dot_dimension_numbers<[1], [0], [0], [1], [0, 0, 1, 1], [], []>} : vector<1024x64xbf16>, vector<64x32xbf16>, vector<1024x32xf32> -> vector<1024x32xf32>
    %6 = arith.addf %0, %5 : vector<1024x32xf32>
    %c0_7 = arith.constant 0 : index
    %c1 = arith.constant 1 : index
    %c0_8 = arith.constant 0 : index
    %c0_9 = arith.constant 0 : index
    %7 = vector.load %arg1[%c0_7, %c1, %c0_8, %c0_9] : memref<9x9x16x64xbf16, #tpu.memory_space<vmem>>, vector<8x8x16x64xbf16>
    %8 = vector.shape_cast %7 : vector<8x8x16x64xbf16> to vector<1024x64xbf16>
    %c1_10 = arith.constant 1 : index
    %c0_11 = arith.constant 0 : index
    %c0_12 = arith.constant 0 : index
    %9 = vector.load %arg3[%c1_10, %c0_11, %c0_12] : memref<4x64x32xbf16, #tpu.memory_space<vmem>>, vector<1x64x32xbf16>
    %10 = vector.shape_cast %9 : vector<1x64x32xbf16> to vector<64x32xbf16>
    %cst_13 = arith.constant dense<0.000000e+00> : vector<1024x32xf32>
    %11 = tpu.matmul %8, %10, %cst_13 {dimension_numbers = #tpu.dot_dimension_numbers<[1], [0], [0], [1], [0, 0, 1, 1], [], []>} : vector<1024x64xbf16>, vector<64x32xbf16>, vector<1024x32xf32> -> vector<1024x32xf32>
    %12 = arith.addf %6, %11 : vector<1024x32xf32>
    %c1_14 = arith.constant 1 : index
    %c0_15 = arith.constant 0 : index
    %c0_16 = arith.constant 0 : index
    %c0_17 = arith.constant 0 : index
    %13 = vector.load %arg1[%c1_14, %c0_15, %c0_16, %c0_17] : memref<9x9x16x64xbf16, #tpu.memory_space<vmem>>, vector<8x8x16x64xbf16>
    %14 = vector.shape_cast %13 : vector<8x8x16x64xbf16> to vector<1024x64xbf16>
    %c2 = arith.constant 2 : index
    %c0_18 = arith.constant 0 : index
    %c0_19 = arith.constant 0 : index
    %15 = vector.load %arg3[%c2, %c0_18, %c0_19] : memref<4x64x32xbf16, #tpu.memory_space<vmem>>, vector<1x64x32xbf16>
    %16 = vector.shape_cast %15 : vector<1x64x32xbf16> to vector<64x32xbf16>
    %cst_20 = arith.constant dense<0.000000e+00> : vector<1024x32xf32>
    %17 = tpu.matmul %14, %16, %cst_20 {dimension_numbers = #tpu.dot_dimension_numbers<[1], [0], [0], [1], [0, 0, 1, 1], [], []>} : vector<1024x64xbf16>, vector<64x32xbf16>, vector<1024x32xf32> -> vector<1024x32xf32>
    %18 = arith.addf %12, %17 : vector<1024x32xf32>
    %c1_21 = arith.constant 1 : index
    %c1_22 = arith.constant 1 : index
    %c0_23 = arith.constant 0 : index
    %c0_24 = arith.constant 0 : index
    %19 = vector.load %arg1[%c1_21, %c1_22, %c0_23, %c0_24] : memref<9x9x16x64xbf16, #tpu.memory_space<vmem>>, vector<8x8x16x64xbf16>
    %20 = vector.shape_cast %19 : vector<8x8x16x64xbf16> to vector<1024x64xbf16>
    %c3 = arith.constant 3 : index
    %c0_25 = arith.constant 0 : index
    %c0_26 = arith.constant 0 : index
    %21 = vector.load %arg3[%c3, %c0_25, %c0_26] : memref<4x64x32xbf16, #tpu.memory_space<vmem>>, vector<1x64x32xbf16>
    %22 = vector.shape_cast %21 : vector<1x64x32xbf16> to vector<64x32xbf16>
    %cst_27 = arith.constant dense<0.000000e+00> : vector<1024x32xf32>
    %23 = tpu.matmul %20, %22, %cst_27 {dimension_numbers = #tpu.dot_dimension_numbers<[1], [0], [0], [1], [0, 0, 1, 1], [], []>} : vector<1024x64xbf16>, vector<64x32xbf16>, vector<1024x32xf32> -> vector<1024x32xf32>
    %24 = arith.addf %18, %23 : vector<1024x32xf32>
    %c0_28 = arith.constant 0 : index
    %c0_29 = arith.constant 0 : index
    %25 = vector.load %arg4[%c0_28, %c0_29] : memref<1x32xf32, #tpu.memory_space<vmem>>, vector<1x32xf32>
    %26 = vector.broadcast %25 : vector<1x32xf32> to vector<1024x32xf32>
    %27 = arith.addf %24, %26 : vector<1024x32xf32>
    %cst_30 = arith.constant 0.000000e+00 : f32
    %28 = vector.broadcast %cst_30 : f32 to vector<1024x32xf32>
    %29 = arith.maximumf %27, %28 : vector<1024x32xf32>
    %30 = arith.truncf %29 : vector<1024x32xf32> to vector<1024x32xbf16>
    %31 = vector.shape_cast %30 : vector<1024x32xbf16> to vector<4x2x4x2x16x32xbf16>
    %cst_31 = arith.constant 0.000000e+00 : f32
    %32 = vector.broadcast %cst_31 : f32 to vector<144x64xf32>
    %33 = vector.extract_strided_slice %31 {offsets = [0, 0, 0, 0, 0, 0], sizes = [3, 1, 3, 1, 16, 32], strides = [1, 1, 1, 1, 1, 1]} : vector<4x2x4x2x16x32xbf16> to vector<3x1x3x1x16x32xbf16>
    %34 = vector.shape_cast %33 : vector<3x1x3x1x16x32xbf16> to vector<3x3x16x32xbf16>
    %35 = vector.extract_strided_slice %31 {offsets = [0, 0, 1, 0, 0, 0], sizes = [3, 1, 3, 1, 16, 32], strides = [1, 1, 1, 1, 1, 1]} : vector<4x2x4x2x16x32xbf16> to vector<3x1x3x1x16x32xbf16>
    %36 = vector.shape_cast %35 : vector<3x1x3x1x16x32xbf16> to vector<3x3x16x32xbf16>
    %37 = vector.extract_strided_slice %31 {offsets = [1, 0, 0, 0, 0, 0], sizes = [3, 1, 3, 1, 16, 32], strides = [1, 1, 1, 1, 1, 1]} : vector<4x2x4x2x16x32xbf16> to vector<3x1x3x1x16x32xbf16>
    %38 = vector.shape_cast %37 : vector<3x1x3x1x16x32xbf16> to vector<3x3x16x32xbf16>
    %39 = vector.extract_strided_slice %31 {offsets = [1, 0, 1, 0, 0, 0], sizes = [3, 1, 3, 1, 16, 32], strides = [1, 1, 1, 1, 1, 1]} : vector<4x2x4x2x16x32xbf16> to vector<3x1x3x1x16x32xbf16>
    %40 = vector.shape_cast %39 : vector<3x1x3x1x16x32xbf16> to vector<3x3x16x32xbf16>
    %41 = tpu.concatenate %34, %36, %38, %40 in 3 : vector<3x3x16x32xbf16>, vector<3x3x16x32xbf16>, vector<3x3x16x32xbf16>, vector<3x3x16x32xbf16> -> vector<3x3x16x128xbf16>
    %42 = vector.shape_cast %41 : vector<3x3x16x128xbf16> to vector<144x128xbf16>
    %c0_32 = arith.constant 0 : index
    %c0_33 = arith.constant 0 : index
    %c0_34 = arith.constant 0 : index
    %43 = vector.load %arg5[%c0_32, %c0_33, %c0_34] : memref<4x128x64xbf16, #tpu.memory_space<vmem>>, vector<1x128x64xbf16>
    %44 = vector.shape_cast %43 : vector<1x128x64xbf16> to vector<128x64xbf16>
    %cst_35 = arith.constant dense<0.000000e+00> : vector<144x64xf32>
    %45 = tpu.matmul %42, %44, %cst_35 {dimension_numbers = #tpu.dot_dimension_numbers<[1], [0], [0], [1], [0, 0, 1, 1], [], []>} : vector<144x128xbf16>, vector<128x64xbf16>, vector<144x64xf32> -> vector<144x64xf32>
    %46 = arith.addf %32, %45 : vector<144x64xf32>
    %47 = vector.extract_strided_slice %31 {offsets = [0, 0, 0, 1, 0, 0], sizes = [3, 1, 3, 1, 16, 32], strides = [1, 1, 1, 1, 1, 1]} : vector<4x2x4x2x16x32xbf16> to vector<3x1x3x1x16x32xbf16>
    %48 = vector.shape_cast %47 : vector<3x1x3x1x16x32xbf16> to vector<3x3x16x32xbf16>
    %49 = vector.extract_strided_slice %31 {offsets = [0, 0, 1, 1, 0, 0], sizes = [3, 1, 3, 1, 16, 32], strides = [1, 1, 1, 1, 1, 1]} : vector<4x2x4x2x16x32xbf16> to vector<3x1x3x1x16x32xbf16>
    %50 = vector.shape_cast %49 : vector<3x1x3x1x16x32xbf16> to vector<3x3x16x32xbf16>
    %51 = vector.extract_strided_slice %31 {offsets = [1, 0, 0, 1, 0, 0], sizes = [3, 1, 3, 1, 16, 32], strides = [1, 1, 1, 1, 1, 1]} : vector<4x2x4x2x16x32xbf16> to vector<3x1x3x1x16x32xbf16>
    %52 = vector.shape_cast %51 : vector<3x1x3x1x16x32xbf16> to vector<3x3x16x32xbf16>
    %53 = vector.extract_strided_slice %31 {offsets = [1, 0, 1, 1, 0, 0], sizes = [3, 1, 3, 1, 16, 32], strides = [1, 1, 1, 1, 1, 1]} : vector<4x2x4x2x16x32xbf16> to vector<3x1x3x1x16x32xbf16>
    %54 = vector.shape_cast %53 : vector<3x1x3x1x16x32xbf16> to vector<3x3x16x32xbf16>
    %55 = tpu.concatenate %48, %50, %52, %54 in 3 : vector<3x3x16x32xbf16>, vector<3x3x16x32xbf16>, vector<3x3x16x32xbf16>, vector<3x3x16x32xbf16> -> vector<3x3x16x128xbf16>
    %56 = vector.shape_cast %55 : vector<3x3x16x128xbf16> to vector<144x128xbf16>
    %c1_36 = arith.constant 1 : index
    %c0_37 = arith.constant 0 : index
    %c0_38 = arith.constant 0 : index
    %57 = vector.load %arg5[%c1_36, %c0_37, %c0_38] : memref<4x128x64xbf16, #tpu.memory_space<vmem>>, vector<1x128x64xbf16>
    %58 = vector.shape_cast %57 : vector<1x128x64xbf16> to vector<128x64xbf16>
    %cst_39 = arith.constant dense<0.000000e+00> : vector<144x64xf32>
    %59 = tpu.matmul %56, %58, %cst_39 {dimension_numbers = #tpu.dot_dimension_numbers<[1], [0], [0], [1], [0, 0, 1, 1], [], []>} : vector<144x128xbf16>, vector<128x64xbf16>, vector<144x64xf32> -> vector<144x64xf32>
    %60 = arith.addf %46, %59 : vector<144x64xf32>
    %61 = vector.extract_strided_slice %31 {offsets = [0, 1, 0, 0, 0, 0], sizes = [3, 1, 3, 1, 16, 32], strides = [1, 1, 1, 1, 1, 1]} : vector<4x2x4x2x16x32xbf16> to vector<3x1x3x1x16x32xbf16>
    %62 = vector.shape_cast %61 : vector<3x1x3x1x16x32xbf16> to vector<3x3x16x32xbf16>
    %63 = vector.extract_strided_slice %31 {offsets = [0, 1, 1, 0, 0, 0], sizes = [3, 1, 3, 1, 16, 32], strides = [1, 1, 1, 1, 1, 1]} : vector<4x2x4x2x16x32xbf16> to vector<3x1x3x1x16x32xbf16>
    %64 = vector.shape_cast %63 : vector<3x1x3x1x16x32xbf16> to vector<3x3x16x32xbf16>
    %65 = vector.extract_strided_slice %31 {offsets = [1, 1, 0, 0, 0, 0], sizes = [3, 1, 3, 1, 16, 32], strides = [1, 1, 1, 1, 1, 1]} : vector<4x2x4x2x16x32xbf16> to vector<3x1x3x1x16x32xbf16>
    %66 = vector.shape_cast %65 : vector<3x1x3x1x16x32xbf16> to vector<3x3x16x32xbf16>
    %67 = vector.extract_strided_slice %31 {offsets = [1, 1, 1, 0, 0, 0], sizes = [3, 1, 3, 1, 16, 32], strides = [1, 1, 1, 1, 1, 1]} : vector<4x2x4x2x16x32xbf16> to vector<3x1x3x1x16x32xbf16>
    %68 = vector.shape_cast %67 : vector<3x1x3x1x16x32xbf16> to vector<3x3x16x32xbf16>
    %69 = tpu.concatenate %62, %64, %66, %68 in 3 : vector<3x3x16x32xbf16>, vector<3x3x16x32xbf16>, vector<3x3x16x32xbf16>, vector<3x3x16x32xbf16> -> vector<3x3x16x128xbf16>
    %70 = vector.shape_cast %69 : vector<3x3x16x128xbf16> to vector<144x128xbf16>
    %c2_40 = arith.constant 2 : index
    %c0_41 = arith.constant 0 : index
    %c0_42 = arith.constant 0 : index
    %71 = vector.load %arg5[%c2_40, %c0_41, %c0_42] : memref<4x128x64xbf16, #tpu.memory_space<vmem>>, vector<1x128x64xbf16>
    %72 = vector.shape_cast %71 : vector<1x128x64xbf16> to vector<128x64xbf16>
    %cst_43 = arith.constant dense<0.000000e+00> : vector<144x64xf32>
    %73 = tpu.matmul %70, %72, %cst_43 {dimension_numbers = #tpu.dot_dimension_numbers<[1], [0], [0], [1], [0, 0, 1, 1], [], []>} : vector<144x128xbf16>, vector<128x64xbf16>, vector<144x64xf32> -> vector<144x64xf32>
    %74 = arith.addf %60, %73 : vector<144x64xf32>
    %75 = vector.extract_strided_slice %31 {offsets = [0, 1, 0, 1, 0, 0], sizes = [3, 1, 3, 1, 16, 32], strides = [1, 1, 1, 1, 1, 1]} : vector<4x2x4x2x16x32xbf16> to vector<3x1x3x1x16x32xbf16>
    %76 = vector.shape_cast %75 : vector<3x1x3x1x16x32xbf16> to vector<3x3x16x32xbf16>
    %77 = vector.extract_strided_slice %31 {offsets = [0, 1, 1, 1, 0, 0], sizes = [3, 1, 3, 1, 16, 32], strides = [1, 1, 1, 1, 1, 1]} : vector<4x2x4x2x16x32xbf16> to vector<3x1x3x1x16x32xbf16>
    %78 = vector.shape_cast %77 : vector<3x1x3x1x16x32xbf16> to vector<3x3x16x32xbf16>
    %79 = vector.extract_strided_slice %31 {offsets = [1, 1, 0, 1, 0, 0], sizes = [3, 1, 3, 1, 16, 32], strides = [1, 1, 1, 1, 1, 1]} : vector<4x2x4x2x16x32xbf16> to vector<3x1x3x1x16x32xbf16>
    %80 = vector.shape_cast %79 : vector<3x1x3x1x16x32xbf16> to vector<3x3x16x32xbf16>
    %81 = vector.extract_strided_slice %31 {offsets = [1, 1, 1, 1, 0, 0], sizes = [3, 1, 3, 1, 16, 32], strides = [1, 1, 1, 1, 1, 1]} : vector<4x2x4x2x16x32xbf16> to vector<3x1x3x1x16x32xbf16>
    %82 = vector.shape_cast %81 : vector<3x1x3x1x16x32xbf16> to vector<3x3x16x32xbf16>
    %83 = tpu.concatenate %76, %78, %80, %82 in 3 : vector<3x3x16x32xbf16>, vector<3x3x16x32xbf16>, vector<3x3x16x32xbf16>, vector<3x3x16x32xbf16> -> vector<3x3x16x128xbf16>
    %84 = vector.shape_cast %83 : vector<3x3x16x128xbf16> to vector<144x128xbf16>
    %c3_44 = arith.constant 3 : index
    %c0_45 = arith.constant 0 : index
    %c0_46 = arith.constant 0 : index
    %85 = vector.load %arg5[%c3_44, %c0_45, %c0_46] : memref<4x128x64xbf16, #tpu.memory_space<vmem>>, vector<1x128x64xbf16>
    %86 = vector.shape_cast %85 : vector<1x128x64xbf16> to vector<128x64xbf16>
    %cst_47 = arith.constant dense<0.000000e+00> : vector<144x64xf32>
    %87 = tpu.matmul %84, %86, %cst_47 {dimension_numbers = #tpu.dot_dimension_numbers<[1], [0], [0], [1], [0, 0, 1, 1], [], []>} : vector<144x128xbf16>, vector<128x64xbf16>, vector<144x64xf32> -> vector<144x64xf32>
    %88 = arith.addf %74, %87 : vector<144x64xf32>
    %c0_48 = arith.constant 0 : index
    %c0_49 = arith.constant 0 : index
    %89 = vector.load %arg6[%c0_48, %c0_49] : memref<1x64xf32, #tpu.memory_space<vmem>>, vector<1x64xf32>
    %90 = vector.broadcast %89 : vector<1x64xf32> to vector<144x64xf32>
    %91 = arith.addf %88, %90 : vector<144x64xf32>
    %cst_50 = arith.constant 0.000000e+00 : f32
    %92 = vector.broadcast %cst_50 : f32 to vector<144x64xf32>
    %93 = arith.maximumf %91, %92 : vector<144x64xf32>
    %94 = arith.truncf %93 : vector<144x64xf32> to vector<144x64xbf16>
    %cst_51 = arith.constant 0.000000e+00 : f32
    %95 = vector.broadcast %cst_51 : f32 to vector<16x64xf32>
    %96 = vector.extract_strided_slice %94 {offsets = [0, 0], sizes = [16, 64], strides = [1, 1]} : vector<144x64xbf16> to vector<16x64xbf16>
    %c0_52 = arith.constant 0 : index
    %c0_53 = arith.constant 0 : index
    %c0_54 = arith.constant 0 : index
    %97 = vector.load %arg7[%c0_52, %c0_53, %c0_54] : memref<9x64x64xbf16, #tpu.memory_space<vmem>>, vector<1x64x64xbf16>
    %98 = vector.shape_cast %97 : vector<1x64x64xbf16> to vector<64x64xbf16>
    %cst_55 = arith.constant dense<0.000000e+00> : vector<16x64xf32>
    %99 = tpu.matmul %96, %98, %cst_55 {dimension_numbers = #tpu.dot_dimension_numbers<[1], [0], [0], [1], [0, 0, 1, 1], [], []>} : vector<16x64xbf16>, vector<64x64xbf16>, vector<16x64xf32> -> vector<16x64xf32>
    %100 = arith.addf %95, %99 : vector<16x64xf32>
    %101 = vector.extract_strided_slice %94 {offsets = [16, 0], sizes = [16, 64], strides = [1, 1]} : vector<144x64xbf16> to vector<16x64xbf16>
    %c1_56 = arith.constant 1 : index
    %c0_57 = arith.constant 0 : index
    %c0_58 = arith.constant 0 : index
    %102 = vector.load %arg7[%c1_56, %c0_57, %c0_58] : memref<9x64x64xbf16, #tpu.memory_space<vmem>>, vector<1x64x64xbf16>
    %103 = vector.shape_cast %102 : vector<1x64x64xbf16> to vector<64x64xbf16>
    %cst_59 = arith.constant dense<0.000000e+00> : vector<16x64xf32>
    %104 = tpu.matmul %101, %103, %cst_59 {dimension_numbers = #tpu.dot_dimension_numbers<[1], [0], [0], [1], [0, 0, 1, 1], [], []>} : vector<16x64xbf16>, vector<64x64xbf16>, vector<16x64xf32> -> vector<16x64xf32>
    %105 = arith.addf %100, %104 : vector<16x64xf32>
    %106 = vector.extract_strided_slice %94 {offsets = [32, 0], sizes = [16, 64], strides = [1, 1]} : vector<144x64xbf16> to vector<16x64xbf16>
    %c2_60 = arith.constant 2 : index
    %c0_61 = arith.constant 0 : index
    %c0_62 = arith.constant 0 : index
    %107 = vector.load %arg7[%c2_60, %c0_61, %c0_62] : memref<9x64x64xbf16, #tpu.memory_space<vmem>>, vector<1x64x64xbf16>
    %108 = vector.shape_cast %107 : vector<1x64x64xbf16> to vector<64x64xbf16>
    %cst_63 = arith.constant dense<0.000000e+00> : vector<16x64xf32>
    %109 = tpu.matmul %106, %108, %cst_63 {dimension_numbers = #tpu.dot_dimension_numbers<[1], [0], [0], [1], [0, 0, 1, 1], [], []>} : vector<16x64xbf16>, vector<64x64xbf16>, vector<16x64xf32> -> vector<16x64xf32>
    %110 = arith.addf %105, %109 : vector<16x64xf32>
    %111 = vector.extract_strided_slice %94 {offsets = [48, 0], sizes = [16, 64], strides = [1, 1]} : vector<144x64xbf16> to vector<16x64xbf16>
    %c3_64 = arith.constant 3 : index
    %c0_65 = arith.constant 0 : index
    %c0_66 = arith.constant 0 : index
    %112 = vector.load %arg7[%c3_64, %c0_65, %c0_66] : memref<9x64x64xbf16, #tpu.memory_space<vmem>>, vector<1x64x64xbf16>
    %113 = vector.shape_cast %112 : vector<1x64x64xbf16> to vector<64x64xbf16>
    %cst_67 = arith.constant dense<0.000000e+00> : vector<16x64xf32>
    %114 = tpu.matmul %111, %113, %cst_67 {dimension_numbers = #tpu.dot_dimension_numbers<[1], [0], [0], [1], [0, 0, 1, 1], [], []>} : vector<16x64xbf16>, vector<64x64xbf16>, vector<16x64xf32> -> vector<16x64xf32>
    %115 = arith.addf %110, %114 : vector<16x64xf32>
    %116 = vector.extract_strided_slice %94 {offsets = [64, 0], sizes = [16, 64], strides = [1, 1]} : vector<144x64xbf16> to vector<16x64xbf16>
    %c4 = arith.constant 4 : index
    %c0_68 = arith.constant 0 : index
    %c0_69 = arith.constant 0 : index
    %117 = vector.load %arg7[%c4, %c0_68, %c0_69] : memref<9x64x64xbf16, #tpu.memory_space<vmem>>, vector<1x64x64xbf16>
    %118 = vector.shape_cast %117 : vector<1x64x64xbf16> to vector<64x64xbf16>
    %cst_70 = arith.constant dense<0.000000e+00> : vector<16x64xf32>
    %119 = tpu.matmul %116, %118, %cst_70 {dimension_numbers = #tpu.dot_dimension_numbers<[1], [0], [0], [1], [0, 0, 1, 1], [], []>} : vector<16x64xbf16>, vector<64x64xbf16>, vector<16x64xf32> -> vector<16x64xf32>
    %120 = arith.addf %115, %119 : vector<16x64xf32>
    %121 = vector.extract_strided_slice %94 {offsets = [80, 0], sizes = [16, 64], strides = [1, 1]} : vector<144x64xbf16> to vector<16x64xbf16>
    %c5 = arith.constant 5 : index
    %c0_71 = arith.constant 0 : index
    %c0_72 = arith.constant 0 : index
    %122 = vector.load %arg7[%c5, %c0_71, %c0_72] : memref<9x64x64xbf16, #tpu.memory_space<vmem>>, vector<1x64x64xbf16>
    %123 = vector.shape_cast %122 : vector<1x64x64xbf16> to vector<64x64xbf16>
    %cst_73 = arith.constant dense<0.000000e+00> : vector<16x64xf32>
    %124 = tpu.matmul %121, %123, %cst_73 {dimension_numbers = #tpu.dot_dimension_numbers<[1], [0], [0], [1], [0, 0, 1, 1], [], []>} : vector<16x64xbf16>, vector<64x64xbf16>, vector<16x64xf32> -> vector<16x64xf32>
    %125 = arith.addf %120, %124 : vector<16x64xf32>
    %126 = vector.extract_strided_slice %94 {offsets = [96, 0], sizes = [16, 64], strides = [1, 1]} : vector<144x64xbf16> to vector<16x64xbf16>
    %c6 = arith.constant 6 : index
    %c0_74 = arith.constant 0 : index
    %c0_75 = arith.constant 0 : index
    %127 = vector.load %arg7[%c6, %c0_74, %c0_75] : memref<9x64x64xbf16, #tpu.memory_space<vmem>>, vector<1x64x64xbf16>
    %128 = vector.shape_cast %127 : vector<1x64x64xbf16> to vector<64x64xbf16>
    %cst_76 = arith.constant dense<0.000000e+00> : vector<16x64xf32>
    %129 = tpu.matmul %126, %128, %cst_76 {dimension_numbers = #tpu.dot_dimension_numbers<[1], [0], [0], [1], [0, 0, 1, 1], [], []>} : vector<16x64xbf16>, vector<64x64xbf16>, vector<16x64xf32> -> vector<16x64xf32>
    %130 = arith.addf %125, %129 : vector<16x64xf32>
    %131 = vector.extract_strided_slice %94 {offsets = [112, 0], sizes = [16, 64], strides = [1, 1]} : vector<144x64xbf16> to vector<16x64xbf16>
    %c7 = arith.constant 7 : index
    %c0_77 = arith.constant 0 : index
    %c0_78 = arith.constant 0 : index
    %132 = vector.load %arg7[%c7, %c0_77, %c0_78] : memref<9x64x64xbf16, #tpu.memory_space<vmem>>, vector<1x64x64xbf16>
    %133 = vector.shape_cast %132 : vector<1x64x64xbf16> to vector<64x64xbf16>
    %cst_79 = arith.constant dense<0.000000e+00> : vector<16x64xf32>
    %134 = tpu.matmul %131, %133, %cst_79 {dimension_numbers = #tpu.dot_dimension_numbers<[1], [0], [0], [1], [0, 0, 1, 1], [], []>} : vector<16x64xbf16>, vector<64x64xbf16>, vector<16x64xf32> -> vector<16x64xf32>
    %135 = arith.addf %130, %134 : vector<16x64xf32>
    %136 = vector.extract_strided_slice %94 {offsets = [128, 0], sizes = [16, 64], strides = [1, 1]} : vector<144x64xbf16> to vector<16x64xbf16>
    %c8 = arith.constant 8 : index
    %c0_80 = arith.constant 0 : index
    %c0_81 = arith.constant 0 : index
    %137 = vector.load %arg7[%c8, %c0_80, %c0_81] : memref<9x64x64xbf16, #tpu.memory_space<vmem>>, vector<1x64x64xbf16>
    %138 = vector.shape_cast %137 : vector<1x64x64xbf16> to vector<64x64xbf16>
    %cst_82 = arith.constant dense<0.000000e+00> : vector<16x64xf32>
    %139 = tpu.matmul %136, %138, %cst_82 {dimension_numbers = #tpu.dot_dimension_numbers<[1], [0], [0], [1], [0, 0, 1, 1], [], []>} : vector<16x64xbf16>, vector<64x64xbf16>, vector<16x64xf32> -> vector<16x64xf32>
    %140 = arith.addf %135, %139 : vector<16x64xf32>
    %c0_83 = arith.constant 0 : index
    %c0_84 = arith.constant 0 : index
    %141 = vector.load %arg8[%c0_83, %c0_84] : memref<1x64xf32, #tpu.memory_space<vmem>>, vector<1x64xf32>
    %142 = vector.broadcast %141 : vector<1x64xf32> to vector<16x64xf32>
    %143 = arith.addf %140, %142 : vector<16x64xf32>
    %cst_85 = arith.constant 0.000000e+00 : f32
    %144 = vector.broadcast %cst_85 : f32 to vector<16x64xf32>
    %145 = arith.maximumf %143, %144 : vector<16x64xf32>
    %146 = arith.truncf %145 : vector<16x64xf32> to vector<16x64xbf16>
    %c0_86 = arith.constant 0 : index
    %c0_87 = arith.constant 0 : index
    %147 = vector.load %arg9[%c0_86, %c0_87] : memref<64x512xbf16, #tpu.memory_space<vmem>>, vector<64x512xbf16>
    %cst_88 = arith.constant dense<0.000000e+00> : vector<16x512xf32>
    %148 = tpu.matmul %146, %147, %cst_88 {dimension_numbers = #tpu.dot_dimension_numbers<[1], [0], [0], [1], [0, 0, 1, 1], [], []>} : vector<16x64xbf16>, vector<64x512xbf16>, vector<16x512xf32> -> vector<16x512xf32>
    %c0_89 = arith.constant 0 : index
    %c0_90 = arith.constant 0 : index
    %149 = vector.load %arg2[%c0_89, %c0_90] : memref<16x8xbf16, #tpu.memory_space<vmem>>, vector<16x8xbf16>
    %c0_91 = arith.constant 0 : index
    %c0_92 = arith.constant 0 : index
    %150 = vector.load %arg10[%c0_91, %c0_92] : memref<8x512xbf16, #tpu.memory_space<vmem>>, vector<8x512xbf16>
    %cst_93 = arith.constant dense<0.000000e+00> : vector<16x512xf32>
    %151 = tpu.matmul %149, %150, %cst_93 {dimension_numbers = #tpu.dot_dimension_numbers<[1], [0], [0], [1], [0, 0, 1, 1], [], []>} : vector<16x8xbf16>, vector<8x512xbf16>, vector<16x512xf32> -> vector<16x512xf32>
    %152 = arith.addf %148, %151 : vector<16x512xf32>
    %c0_94 = arith.constant 0 : index
    %c0_95 = arith.constant 0 : index
    %153 = vector.load %arg11[%c0_94, %c0_95] : memref<1x512xf32, #tpu.memory_space<vmem>>, vector<1x512xf32>
    %154 = vector.broadcast %153 : vector<1x512xf32> to vector<16x512xf32>
    %155 = arith.addf %152, %154 : vector<16x512xf32>
    %cst_96 = arith.constant 0.000000e+00 : f32
    %156 = vector.broadcast %cst_96 : f32 to vector<16x512xf32>
    %157 = arith.maximumf %155, %156 : vector<16x512xf32>
    %158 = arith.truncf %157 : vector<16x512xf32> to vector<16x512xbf16>
    %c0_97 = arith.constant 0 : index
    %c0_98 = arith.constant 0 : index
    %159 = vector.load %arg12[%c0_97, %c0_98] : memref<512x256xbf16, #tpu.memory_space<vmem>>, vector<512x256xbf16>
    %cst_99 = arith.constant dense<0.000000e+00> : vector<16x256xf32>
    %160 = tpu.matmul %158, %159, %cst_99 {dimension_numbers = #tpu.dot_dimension_numbers<[1], [0], [0], [1], [0, 0, 1, 1], [], []>} : vector<16x512xbf16>, vector<512x256xbf16>, vector<16x256xf32> -> vector<16x256xf32>
    %c0_100 = arith.constant 0 : index
    %c0_101 = arith.constant 0 : index
    %161 = vector.load %arg13[%c0_100, %c0_101] : memref<1x256xf32, #tpu.memory_space<vmem>>, vector<1x256xf32>
    %162 = vector.broadcast %161 : vector<1x256xf32> to vector<16x256xf32>
    %163 = arith.addf %160, %162 : vector<16x256xf32>
    %cst_102 = arith.constant 0.000000e+00 : f32
    %164 = vector.broadcast %cst_102 : f32 to vector<16x256xf32>
    %165 = arith.maximumf %163, %164 : vector<16x256xf32>
    %166 = arith.truncf %165 : vector<16x256xf32> to vector<16x256xbf16>
    %c0_103 = arith.constant 0 : index
    %c0_104 = arith.constant 0 : index
    %167 = vector.load %arg14[%c0_103, %c0_104] : memref<256x128xbf16, #tpu.memory_space<vmem>>, vector<256x128xbf16>
    %cst_105 = arith.constant dense<0.000000e+00> : vector<16x128xf32>
    %168 = tpu.matmul %166, %167, %cst_105 {dimension_numbers = #tpu.dot_dimension_numbers<[1], [0], [0], [1], [0, 0, 1, 1], [], []>} : vector<16x256xbf16>, vector<256x128xbf16>, vector<16x128xf32> -> vector<16x128xf32>
    %c0_106 = arith.constant 0 : index
    %c0_107 = arith.constant 0 : index
    %169 = vector.load %arg15[%c0_106, %c0_107] : memref<1x128xf32, #tpu.memory_space<vmem>>, vector<1x128xf32>
    %170 = vector.broadcast %169 : vector<1x128xf32> to vector<16x128xf32>
    %171 = arith.addf %168, %170 : vector<16x128xf32>
    %c0_108 = arith.constant 0 : index
    %c0_109 = arith.constant 0 : index
    %172 = vector.load %arg16[%c0_108, %c0_109] : memref<16x128xf32, #tpu.memory_space<vmem>>, vector<16x128xf32>
    tpu.vector_store %arg16[%c0_108, %c0_109], %171 {strides = array<i32>} : memref<16x128xf32, #tpu.memory_space<vmem>>, vector<16x128xf32>,
    return
  }
  func.func @transform_0(%arg0: i32) -> (i32, i32, i32, i32) {
    %c0_i32 = arith.constant 0 : i32
    %c0_i32_0 = arith.constant 0 : i32
    %c0_i32_1 = arith.constant 0 : i32
    %c0_i32_2 = arith.constant 0 : i32
    return %c0_i32, %c0_i32_0, %arg0, %c0_i32_1 : i32, i32, i32, i32
  }
  func.func @transform_1(%arg0: i32) -> (i32, i32) {
    %c0_i32 = arith.constant 0 : i32
    %c0_i32_0 = arith.constant 0 : i32
    return %arg0, %c0_i32 : i32, i32
  }
  func.func @transform_2(%arg0: i32) -> (i32, i32, i32) {
    %c0_i32 = arith.constant 0 : i32
    %c0_i32_0 = arith.constant 0 : i32
    %c0_i32_1 = arith.constant 0 : i32
    %c0_i32_2 = arith.constant 0 : i32
    return %c0_i32, %c0_i32_0, %c0_i32_1 : i32, i32, i32
  }
  func.func @transform_3(%arg0: i32) -> (i32, i32) {
    %c0_i32 = arith.constant 0 : i32
    %c0_i32_0 = arith.constant 0 : i32
    %c0_i32_1 = arith.constant 0 : i32
    return %c0_i32, %c0_i32_0 : i32, i32
  }
  func.func @transform_4(%arg0: i32) -> (i32, i32, i32) {
    %c0_i32 = arith.constant 0 : i32
    %c0_i32_0 = arith.constant 0 : i32
    %c0_i32_1 = arith.constant 0 : i32
    %c0_i32_2 = arith.constant 0 : i32
    return %c0_i32, %c0_i32_0, %c0_i32_1 : i32, i32, i32
  }
  func.func @transform_5(%arg0: i32) -> (i32, i32) {
    %c0_i32 = arith.constant 0 : i32
    %c0_i32_0 = arith.constant 0 : i32
    %c0_i32_1 = arith.constant 0 : i32
    return %c0_i32, %c0_i32_0 : i32, i32
  }
  func.func @transform_6(%arg0: i32) -> (i32, i32, i32) {
    %c0_i32 = arith.constant 0 : i32
    %c0_i32_0 = arith.constant 0 : i32
    %c0_i32_1 = arith.constant 0 : i32
    %c0_i32_2 = arith.constant 0 : i32
    return %c0_i32, %c0_i32_0, %c0_i32_1 : i32, i32, i32
  }
  func.func @transform_7(%arg0: i32) -> (i32, i32) {
    %c0_i32 = arith.constant 0 : i32
    %c0_i32_0 = arith.constant 0 : i32
    %c0_i32_1 = arith.constant 0 : i32
    return %c0_i32, %c0_i32_0 : i32, i32
  }
  func.func @transform_8(%arg0: i32) -> (i32, i32) {
    %c0_i32 = arith.constant 0 : i32
    %c0_i32_0 = arith.constant 0 : i32
    %c0_i32_1 = arith.constant 0 : i32
    return %c0_i32, %c0_i32_0 : i32, i32
  }
  func.func @transform_9(%arg0: i32) -> (i32, i32) {
    %c0_i32 = arith.constant 0 : i32
    %c0_i32_0 = arith.constant 0 : i32
    %c0_i32_1 = arith.constant 0 : i32
    return %c0_i32, %c0_i32_0 : i32, i32
  }
  func.func @transform_10(%arg0: i32) -> (i32, i32) {
    %c0_i32 = arith.constant 0 : i32
    %c0_i32_0 = arith.constant 0 : i32
    %c0_i32_1 = arith.constant 0 : i32
    return %c0_i32, %c0_i32_0 : i32, i32
  }
  func.func @transform_11(%arg0: i32) -> (i32, i32) {
    %c0_i32 = arith.constant 0 : i32
    %c0_i32_0 = arith.constant 0 : i32
    %c0_i32_1 = arith.constant 0 : i32
    return %c0_i32, %c0_i32_0 : i32, i32
  }
  func.func @transform_12(%arg0: i32) -> (i32, i32) {
    %c0_i32 = arith.constant 0 : i32
    %c0_i32_0 = arith.constant 0 : i32
    %c0_i32_1 = arith.constant 0 : i32
    return %c0_i32, %c0_i32_0 : i32, i32
  }
  func.func @transform_13(%arg0: i32) -> (i32, i32) {
    %c0_i32 = arith.constant 0 : i32
    %c0_i32_0 = arith.constant 0 : i32
    %c0_i32_1 = arith.constant 0 : i32
    return %c0_i32, %c0_i32_0 : i32, i32
  }
  func.func @transform_14(%arg0: i32) -> (i32, i32) {
    %c0_i32 = arith.constant 0 : i32
    %c0_i32_0 = arith.constant 0 : i32
    %c0_i32_1 = arith.constant 0 : i32
    return %c0_i32, %c0_i32_0 : i32, i32
  }
  func.func @transform_15(%arg0: i32) -> (i32, i32) {
    %c0_i32 = arith.constant 0 : i32
    %c0_i32_0 = arith.constant 0 : i32
    return %arg0, %c0_i32 : i32, i32
  }
}

</mosaic_0001>

<llo_original>
// kernel: tpu_custom_call.1
$region0: #{tpu_custom_call.1}
  #allocation0 [shape = 'u32[]', space=smem, size = 0x4, offset = 0x4, fixed_abs, tag = 'smem constant byte address 0x4 - core index']
  #allocation1 [shape = 'u32[144,128]{1,0:T(1,128)}', space=vmem, size = 0x12000, scoped, tag = 'internal scratch']
  #allocation17 [shape = 's32[]', space=sflag, size = 0x4, offset = 0, fixed_abs, tag = 'sflag constant byte address 0x0 - dummy sync flag']
  %s0 = inlined_call_operand.hbm [shape: bf16[9,9,32,64], index: 0, kind: input, shape index: {}]
  %s1 = inlined_call_operand.vmem [shape: bf16[32,8], index: 1, kind: input, shape index: {}]
  %s2 = inlined_call_operand.vmem [shape: bf16[4,64,32], index: 2, kind: input, shape index: {}]
  %s3 = inlined_call_operand.vmem [shape: f32[1,32], index: 3, kind: input, shape index: {}]
  %s4 = inlined_call_operand.vmem [shape: bf16[4,128,64], index: 4, kind: input, shape index: {}]
  %s5 = inlined_call_operand.hbm [shape: f32[1,64], index: 5, kind: input, shape index: {}]
  %s6 = inlined_call_operand.hbm [shape: bf16[9,64,64], index: 6, kind: input, shape index: {}]
  %s7 = inlined_call_operand.hbm [shape: f32[1,64], index: 7, kind: input, shape index: {}]
  %s8 = inlined_call_operand.hbm [shape: bf16[64,512], index: 8, kind: input, shape index: {}]
  %s9 = inlined_call_operand.hbm [shape: bf16[8,512], index: 9, kind: input, shape index: {}]
  %s10 = inlined_call_operand.hbm [shape: f32[1,512], index: 10, kind: input, shape index: {}]
  %s11 = inlined_call_operand.vmem [shape: bf16[512,256], index: 11, kind: input, shape index: {}]
  %s12 = inlined_call_operand.hbm [shape: f32[1,256], index: 12, kind: input, shape index: {}]
  %s13 = inlined_call_operand.vmem [shape: bf16[256,128], index: 13, kind: input, shape index: {}]
  %s14 = inlined_call_operand.vmem [shape: f32[1,128], index: 14, kind: input, shape index: {}]
  %s15 = inlined_call_operand.hbm [shape: f32[32,128], index: 15, kind: output, shape index: {}]
  %s16 = sld [smem:[#allocation0]]
  $region125: #{tpu_custom_call.1} parent=0
    _
  %s18 = ssub.s32 1, %s16
  %s19 = scalar_select 0, %s18, %s16
  $region1: #{tpu_custom_call.1} parent=0
    #allocation2 [shape = 'u8[663552]{0}', space=vmem, size = 0xa2000, scoped, tag = 'input window, operand 0']
    #allocation3 [shape = 's32[2]{0}', space=sflag, size = 0x8, scoped, tag = 'scoped memory for tpu_custom_call.1']
    #allocation4 [shape = 's32[2]{0}', space=sflag, size = 0x8, scoped, tag = 'scoped memory for tpu_custom_call.1']
    #allocation5 [shape = 'u8[512]{0}', space=vmem, size = 0x400, scoped, tag = 'input window, operand 5, single buffered']
    #allocation6 [shape = 's32[1]{0}', space=sflag, size = 0x4, scoped, tag = 'scoped memory for tpu_custom_call.1']
    #allocation7 [shape = 'u8[147456]{0}', space=vmem, size = 0x24000, scoped, tag = 'input window, operand 6, single buffered']
    #allocation8 [shape = 'u8[512]{0}', space=vmem, size = 0x400, scoped, tag = 'input window, operand 7, single buffered']
    #allocation9 [shape = 's32[1]{0}', space=sflag, size = 0x4, scoped, tag = 'scoped memory for tpu_custom_call.1']
    #allocation10 [shape = 'u8[65536]{0}', space=vmem, size = 0x10000, scoped, tag = 'input window, operand 8, single buffered']
    #allocation11 [shape = 'u8[8192]{0}', space=vmem, size = 0x2000, scoped, tag = 'input window, operand 9, single buffered']
    #allocation12 [shape = 's32[1]{0}', space=sflag, size = 0x4, scoped, tag = 'scoped memory for tpu_custom_call.1']
    #allocation13 [shape = 'u8[2048]{0}', space=vmem, size = 0x800, scoped, tag = 'input window, operand 10, single buffered']
    #allocation14 [shape = 'u8[1024]{0}', space=vmem, size = 0x400, scoped, tag = 'input window, operand 12, single buffered']
    #allocation15 [shape = 's32[1]{0}', space=sflag, size = 0x4, scoped, tag = 'scoped memory for tpu_custom_call.1']
    #allocation16 [shape = 'u8[16384]{0}', space=vmem, size = 0x4000, scoped, tag = 'output window, operand 0']
    %20 = vsyncpa [#allocation3], 0
    %s21 = scalar_lea.sflag [#allocation3], 1
    %22 = vsyncpa %s21, 0
    %23 = vsyncpa [#allocation6], 0
    %24 = vsyncpa [#allocation9], 0
    %25 = vsyncpa [#allocation12], 0
    %26 = vsyncpa [#allocation15], 0
    %27 = vsyncpa [#allocation4], 0
    %s28 = scalar_lea.sflag [#allocation4], 1
    %29 = vsyncpa %s28, 0
    loop: start=0, step=1, limit=4
    $region2: #{tpu_custom_call.1} parent=1 // loop_pre_header
      _
    $region3: #{tpu_custom_call.1} parent=1 // loop_header
      %s31 = sphi 0, %s35
      %p32 = scmp.ge.s32.totalorder %s31, 4
      %s41 = sphi 0, %s43
      %s44 = sphi 0, %s41
      %s45 = sphi 0, %s44
      %s61 = sphi 0, %s45
      %s67 = sphi 0, %s69
      %s70 = sphi 0, %s67
      %s71 = sphi 0, %s70
      %s87 = sphi 0, %s71
      %s91 = sphi 0, %s91
      %s93 = sphi 0, %s91
      %s94 = sphi 0, %s93
      %s108 = sphi 0, %s94
      %s112 = sphi 0, %s112
      %s114 = sphi 0, %s112
      %s115 = sphi 0, %s114
      %s129 = sphi 0, %s115
      %s133 = sphi 0, %s133
      %s135 = sphi 0, %s133
      %s136 = sphi 0, %s135
      %s150 = sphi 0, %s136
      %s154 = sphi 0, %s154
      %s156 = sphi 0, %s154
      %s157 = sphi 0, %s156
      %s171 = sphi 0, %s157
      %s175 = sphi 0, %s175
      %s177 = sphi 0, %s175
      %s178 = sphi 0, %s177
      %s192 = sphi 0, %s178
      %s196 = sphi 0, %s196
      %s198 = sphi 0, %s196
      %s199 = sphi 0, %s198
      %s213 = sphi 0, %s199
      %s217 = sphi 0, %s217
      %s219 = sphi 0, %s217
      %s220 = sphi 0, %s219
      %s234 = sphi 0, %s220
      %s238 = sphi 0, %s238
      %s240 = sphi 0, %s238
      %s241 = sphi 0, %s240
      %s255 = sphi 0, %s241
      %s259 = sphi 0, %s259
      %s261 = sphi 0, %s259
      %s262 = sphi 0, %s261
      %s276 = sphi 0, %s262
      %s280 = sphi 0, %s280
      %s282 = sphi 0, %s280
      %s283 = sphi 0, %s282
      %s297 = sphi 0, %s283
      %s301 = sphi 0, %s301
      %s303 = sphi 0, %s301
      %s304 = sphi 0, %s303
      %s318 = sphi 0, %s304
      %s322 = sphi 0, %s322
      %s324 = sphi 0, %s322
      %s325 = sphi 0, %s324
      %s339 = sphi 0, %s325
      %s343 = sphi 0, %s343
      %s345 = sphi 0, %s343
      %s346 = sphi 0, %s345
      %s360 = sphi 0, %s346
      %s366 = sphi 0, %s368
      %s369 = sphi 0, %s366
      %s370 = sphi 0, %s369
      %s386 = sphi 0, %s370
    $region4: #{tpu_custom_call.1} parent=1 // loop_header_branch
      %34 = sbr.rel (%p32) target = $region8
    $region5: #{tpu_custom_call.1} parent=1 // loop_body
      %s36 = ssub.s32 %s31, 1
      %s37 = ssub.s32 %s31, 2
      %s38 = sadd.s32 %s31, 1
      %s39 = ssub.s32 %s31, %s38
      %p40 = scmp.eq.s32.totalorder %s39, 0
      %s42 = sadd.s32 %s41, 1
      %s43 = scalar_select %p40, %s41, %s42
      %p46 = pneg %p40
      %p47 = scmp.eq.s32.totalorder %s31, 1
      %p48 = por %p46, %p47
      %p49 = scmp.ne.s32.totalorder %s41, %s44
      %p50 = scmp.eq.s32.totalorder %s31, 0
      %p51 = por %p49, %p50
      %p52 = scmp.ne.s32.totalorder %s41, %s44
      %p53 = scmp.eq.s32.totalorder %s36, 1
      %p54 = por %p52, %p53
      %p55 = scmp.ne.s32.totalorder %s44, %s45
      %p56 = scmp.eq.s32.totalorder %s36, 0
      %p57 = por %p55, %p56
      %p58 = scmp.ne.s32.totalorder %s44, %s45
      %p59 = scmp.eq.s32.totalorder %s37, 1
      %p60 = por %p58, %p59
      %p62 = scmp.ne.s32.totalorder %s45, %s61
      %p63 = scmp.eq.s32.totalorder %s37, 0
      %p64 = por %p62, %p63
      %s65 = ssub.s32 %s31, %s38
      %p66 = scmp.eq.s32.totalorder %s65, 0
      %s68 = sadd.s32 %s67, 1
      %s69 = scalar_select %p66, %s67, %s68
      %p72 = pneg %p66
      %p73 = scmp.eq.s32.totalorder %s31, 1
      %p74 = por %p72, %p73
      %p75 = scmp.ne.s32.totalorder %s67, %s70
      %p76 = scmp.eq.s32.totalorder %s31, 0
      %p77 = por %p75, %p76
      %p78 = scmp.ne.s32.totalorder %s67, %s70
      %p79 = scmp.eq.s32.totalorder %s36, 1
      %p80 = por %p78, %p79
      %p81 = scmp.ne.s32.totalorder %s70, %s71
      %p82 = scmp.eq.s32.totalorder %s36, 0
      %p83 = por %p81, %p82
      %p84 = scmp.ne.s32.totalorder %s70, %s71
      %p85 = scmp.eq.s32.totalorder %s37, 1
      %p86 = por %p84, %p85
      %p88 = scmp.ne.s32.totalorder %s71, %s87
      %p89 = scmp.eq.s32.totalorder %s37, 0
      %p90 = por %p88, %p89
      %s92 = sadd.s32 %s91, 1
      %p95 = scmp.eq.s32.totalorder %s31, 1
      %p96 = scmp.ne.s32.totalorder %s91, %s93
      %p97 = scmp.eq.s32.totalorder %s31, 0
      %p98 = por %p96, %p97
      %p99 = scmp.ne.s32.totalorder %s91, %s93
      %p100 = scmp.eq.s32.totalorder %s36, 1
      %p101 = por %p99, %p100
      %p102 = scmp.ne.s32.totalorder %s93, %s94
      %p103 = scmp.eq.s32.totalorder %s36, 0
      %p104 = por %p102, %p103
      %p105 = scmp.ne.s32.totalorder %s93, %s94
      %p106 = scmp.eq.s32.totalorder %s37, 1
      %p107 = por %p105, %p106
      %p109 = scmp.ne.s32.totalorder %s94, %s108
      %p110 = scmp.eq.s32.totalorder %s37, 0
      %p111 = por %p109, %p110
      %s113 = sadd.s32 %s112, 1
      %p116 = scmp.eq.s32.totalorder %s31, 1
      %p117 = scmp.ne.s32.totalorder %s112, %s114
      %p118 = scmp.eq.s32.totalorder %s31, 0
      %p119 = por %p117, %p118
      %p120 = scmp.ne.s32.totalorder %s112, %s114
      %p121 = scmp.eq.s32.totalorder %s36, 1
      %p122 = por %p120, %p121
      %p123 = scmp.ne.s32.totalorder %s114, %s115
      %p124 = scmp.eq.s32.totalorder %s36, 0
      %p125 = por %p123, %p124
      %p126 = scmp.ne.s32.totalorder %s114, %s115
      %p127 = scmp.eq.s32.totalorder %s37, 1
      %p128 = por %p126, %p127
      %p130 = scmp.ne.s32.totalorder %s115, %s129
      %p131 = scmp.eq.s32.totalorder %s37, 0
      %p132 = por %p130, %p131
      %s134 = sadd.s32 %s133, 1
      %p137 = scmp.eq.s32.totalorder %s31, 1
      %p138 = scmp.ne.s32.totalorder %s133, %s135
      %p139 = scmp.eq.s32.totalorder %s31, 0
      %p140 = por %p138, %p139
      %p141 = scmp.ne.s32.totalorder %s133, %s135
      %p142 = scmp.eq.s32.totalorder %s36, 1
      %p143 = por %p141, %p142
      %p144 = scmp.ne.s32.totalorder %s135, %s136
      %p145 = scmp.eq.s32.totalorder %s36, 0
      %p146 = por %p144, %p145
      %p147 = scmp.ne.s32.totalorder %s135, %s136
      %p148 = scmp.eq.s32.totalorder %s37, 1
      %p149 = por %p147, %p148
      %p151 = scmp.ne.s32.totalorder %s136, %s150
      %p152 = scmp.eq.s32.totalorder %s37, 0
      %p153 = por %p151, %p152
      %s155 = sadd.s32 %s154, 1
      %p158 = scmp.eq.s32.totalorder %s31, 1
      %p159 = scmp.ne.s32.totalorder %s154, %s156
      %p160 = scmp.eq.s32.totalorder %s31, 0
      %p161 = por %p159, %p160
      %p162 = scmp.ne.s32.totalorder %s154, %s156
      %p163 = scmp.eq.s32.totalorder %s36, 1
      %p164 = por %p162, %p163
      %p165 = scmp.ne.s32.totalorder %s156, %s157
      %p166 = scmp.eq.s32.totalorder %s36, 0
      %p167 = por %p165, %p166
      %p168 = scmp.ne.s32.totalorder %s156, %s157
      %p169 = scmp.eq.s32.totalorder %s37, 1
      %p170 = por %p168, %p169
      %p172 = scmp.ne.s32.totalorder %s157, %s171
      %p173 = scmp.eq.s32.totalorder %s37, 0
      %p174 = por %p172, %p173
      %s176 = sadd.s32 %s175, 1
      %p179 = scmp.eq.s32.totalorder %s31, 1
      %p180 = scmp.ne.s32.totalorder %s175, %s177
      %p181 = scmp.eq.s32.totalorder %s31, 0
      %p182 = por %p180, %p181
      %p183 = scmp.ne.s32.totalorder %s175, %s177
      %p184 = scmp.eq.s32.totalorder %s36, 1
      %p185 = por %p183, %p184
      %p186 = scmp.ne.s32.totalorder %s177, %s178
      %p187 = scmp.eq.s32.totalorder %s36, 0
      %p188 = por %p186, %p187
      %p189 = scmp.ne.s32.totalorder %s177, %s178
      %p190 = scmp.eq.s32.totalorder %s37, 1
      %p191 = por %p189, %p190
      %p193 = scmp.ne.s32.totalorder %s178, %s192
      %p194 = scmp.eq.s32.totalorder %s37, 0
      %p195 = por %p193, %p194
      %s197 = sadd.s32 %s196, 1
      %p200 = scmp.eq.s32.totalorder %s31, 1
      %p201 = scmp.ne.s32.totalorder %s196, %s198
      %p202 = scmp.eq.s32.totalorder %s31, 0
      %p203 = por %p201, %p202
      %p204 = scmp.ne.s32.totalorder %s196, %s198
      %p205 = scmp.eq.s32.totalorder %s36, 1
      %p206 = por %p204, %p205
      %p207 = scmp.ne.s32.totalorder %s198, %s199
      %p208 = scmp.eq.s32.totalorder %s36, 0
      %p209 = por %p207, %p208
      %p210 = scmp.ne.s32.totalorder %s198, %s199
      %p211 = scmp.eq.s32.totalorder %s37, 1
      %p212 = por %p210, %p211
      %p214 = scmp.ne.s32.totalorder %s199, %s213
      %p215 = scmp.eq.s32.totalorder %s37, 0
      %p216 = por %p214, %p215
      %s218 = sadd.s32 %s217, 1
      %p221 = scmp.eq.s32.totalorder %s31, 1
      %p222 = scmp.ne.s32.totalorder %s217, %s219
      %p223 = scmp.eq.s32.totalorder %s31, 0
      %p224 = por %p222, %p223
      %p225 = scmp.ne.s32.totalorder %s217, %s219
      %p226 = scmp.eq.s32.totalorder %s36, 1
      %p227 = por %p225, %p226
      %p228 = scmp.ne.s32.totalorder %s219, %s220
      %p229 = scmp.eq.s32.totalorder %s36, 0
      %p230 = por %p228, %p229
      %p231 = scmp.ne.s32.totalorder %s219, %s220
      %p232 = scmp.eq.s32.totalorder %s37, 1
      %p233 = por %p231, %p232
      %p235 = scmp.ne.s32.totalorder %s220, %s234
      %p236 = scmp.eq.s32.totalorder %s37, 0
      %p237 = por %p235, %p236
      %s239 = sadd.s32 %s238, 1
      %p242 = scmp.eq.s32.totalorder %s31, 1
      %p243 = scmp.ne.s32.totalorder %s238, %s240
      %p244 = scmp.eq.s32.totalorder %s31, 0
      %p245 = por %p243, %p244
      %p246 = scmp.ne.s32.totalorder %s238, %s240
      %p247 = scmp.eq.s32.totalorder %s36, 1
      %p248 = por %p246, %p247
      %p249 = scmp.ne.s32.totalorder %s240, %s241
      %p250 = scmp.eq.s32.totalorder %s36, 0
      %p251 = por %p249, %p250
      %p252 = scmp.ne.s32.totalorder %s240, %s241
      %p253 = scmp.eq.s32.totalorder %s37, 1
      %p254 = por %p252, %p253
      %p256 = scmp.ne.s32.totalorder %s241, %s255
      %p257 = scmp.eq.s32.totalorder %s37, 0
      %p258 = por %p256, %p257
      %s260 = sadd.s32 %s259, 1
      %p263 = scmp.eq.s32.totalorder %s31, 1
      %p264 = scmp.ne.s32.totalorder %s259, %s261
      %p265 = scmp.eq.s32.totalorder %s31, 0
      %p266 = por %p264, %p265
      %p267 = scmp.ne.s32.totalorder %s259, %s261
      %p268 = scmp.eq.s32.totalorder %s36, 1
      %p269 = por %p267, %p268
      %p270 = scmp.ne.s32.totalorder %s261, %s262
      %p271 = scmp.eq.s32.totalorder %s36, 0
      %p272 = por %p270, %p271
      %p273 = scmp.ne.s32.totalorder %s261, %s262
      %p274 = scmp.eq.s32.totalorder %s37, 1
      %p275 = por %p273, %p274
      %p277 = scmp.ne.s32.totalorder %s262, %s276
      %p278 = scmp.eq.s32.totalorder %s37, 0
      %p279 = por %p277, %p278
      %s281 = sadd.s32 %s280, 1
      %p284 = scmp.eq.s32.totalorder %s31, 1
      %p285 = scmp.ne.s32.totalorder %s280, %s282
      %p286 = scmp.eq.s32.totalorder %s31, 0
      %p287 = por %p285, %p286
      %p288 = scmp.ne.s32.totalorder %s280, %s282
      %p289 = scmp.eq.s32.totalorder %s36, 1
      %p290 = por %p288, %p289
      %p291 = scmp.ne.s32.totalorder %s282, %s283
      %p292 = scmp.eq.s32.totalorder %s36, 0
      %p293 = por %p291, %p292
      %p294 = scmp.ne.s32.totalorder %s282, %s283
      %p295 = scmp.eq.s32.totalorder %s37, 1
      %p296 = por %p294, %p295
      %p298 = scmp.ne.s32.totalorder %s283, %s297
      %p299 = scmp.eq.s32.totalorder %s37, 0
      %p300 = por %p298, %p299
      %s302 = sadd.s32 %s301, 1
      %p305 = scmp.eq.s32.totalorder %s31, 1
      %p306 = scmp.ne.s32.totalorder %s301, %s303
      %p307 = scmp.eq.s32.totalorder %s31, 0
      %p308 = por %p306, %p307
      %p309 = scmp.ne.s32.totalorder %s301, %s303
      %p310 = scmp.eq.s32.totalorder %s36, 1
      %p311 = por %p309, %p310
      %p312 = scmp.ne.s32.totalorder %s303, %s304
      %p313 = scmp.eq.s32.totalorder %s36, 0
      %p314 = por %p312, %p313
      %p315 = scmp.ne.s32.totalorder %s303, %s304
      %p316 = scmp.eq.s32.totalorder %s37, 1
      %p317 = por %p315, %p316
      %p319 = scmp.ne.s32.totalorder %s304, %s318
      %p320 = scmp.eq.s32.totalorder %s37, 0
      %p321 = por %p319, %p320
      %s323 = sadd.s32 %s322, 1
      %p326 = scmp.eq.s32.totalorder %s31, 1
      %p327 = scmp.ne.s32.totalorder %s322, %s324
      %p328 = scmp.eq.s32.totalorder %s31, 0
      %p329 = por %p327, %p328
      %p330 = scmp.ne.s32.totalorder %s322, %s324
      %p331 = scmp.eq.s32.totalorder %s36, 1
      %p332 = por %p330, %p331
      %p333 = scmp.ne.s32.totalorder %s324, %s325
      %p334 = scmp.eq.s32.totalorder %s36, 0
      %p335 = por %p333, %p334
      %p336 = scmp.ne.s32.totalorder %s324, %s325
      %p337 = scmp.eq.s32.totalorder %s37, 1
      %p338 = por %p336, %p337
      %p340 = scmp.ne.s32.totalorder %s325, %s339
      %p341 = scmp.eq.s32.totalorder %s37, 0
      %p342 = por %p340, %p341
      %s344 = sadd.s32 %s343, 1
      %p347 = scmp.eq.s32.totalorder %s31, 1
      %p348 = scmp.ne.s32.totalorder %s343, %s345
      %p349 = scmp.eq.s32.totalorder %s31, 0
      %p350 = por %p348, %p349
      %p351 = scmp.ne.s32.totalorder %s343, %s345
      %p352 = scmp.eq.s32.totalorder %s36, 1
      %p353 = por %p351, %p352
      %p354 = scmp.ne.s32.totalorder %s345, %s346
      %p355 = scmp.eq.s32.totalorder %s36, 0
      %p356 = por %p354, %p355
      %p357 = scmp.ne.s32.totalorder %s345, %s346
      %p358 = scmp.eq.s32.totalorder %s37, 1
      %p359 = por %p357, %p358
      %p361 = scmp.ne.s32.totalorder %s346, %s360
      %p362 = scmp.eq.s32.totalorder %s37, 0
      %p363 = por %p361, %p362
      %s364 = ssub.s32 %s31, %s38
      %p365 = scmp.eq.s32.totalorder %s364, 0
      %s367 = sadd.s32 %s366, 1
      %s368 = scalar_select %p365, %s366, %s367
      %p371 = pneg %p365
      %p372 = scmp.eq.s32.totalorder %s31, 1
      %p373 = por %p371, %p372
      %p374 = scmp.ne.s32.totalorder %s366, %s369
      %p375 = scmp.eq.s32.totalorder %s31, 0
      %p376 = por %p374, %p375
      %p377 = scmp.ne.s32.totalorder %s366, %s369
      %p378 = scmp.eq.s32.totalorder %s36, 1
      %p379 = por %p377, %p378
      %p380 = scmp.ne.s32.totalorder %s369, %s370
      %p381 = scmp.eq.s32.totalorder %s36, 0
      %p382 = por %p380, %p381
      %p383 = scmp.ne.s32.totalorder %s369, %s370
      %p384 = scmp.eq.s32.totalorder %s37, 1
      %p385 = por %p383, %p384
      %p387 = scmp.ne.s32.totalorder %s370, %s386
      %p388 = scmp.eq.s32.totalorder %s37, 0
      %p389 = por %p387, %p388
      %p390 = scmp.le.s32.totalorder 1, %s31
      %p391 = scmp.lt.s32.totalorder %s31, 3
      %p392 = pnand %p390, %p391
      %p393 = pneg %p392
      // Predicated region
      $region9: #{tpu_custom_call.1} parent=5 // pred_check
        _
      $region10: #{tpu_custom_call.1} parent=5 // pred_check_branch
        %395 = sbr.rel (%p392) target = $region12
      $region11: #{tpu_custom_call.1} parent=5 // pred_region
        %s396 = ssub.s32 %s31, 1
        // Predicated region
        $region13: #{tpu_custom_call.1} parent=11 // pred_check
          %p397 = pneg %p104
        $region14: #{tpu_custom_call.1} parent=11 // pred_check_branch
          %399 = sbr.rel (%p397) target = $region16
        $region15: #{tpu_custom_call.1} parent=11 // pred_region
          _
        $region16: #{tpu_custom_call.1} parent=11 // pred_fallthru
          _
        // Predicated region
        $region17: #{tpu_custom_call.1} parent=11 // pred_check
          %p400 = pneg %p125
        $region18: #{tpu_custom_call.1} parent=11 // pred_check_branch
          %402 = sbr.rel (%p400) target = $region20
        $region19: #{tpu_custom_call.1} parent=11 // pred_region
          _
        $region20: #{tpu_custom_call.1} parent=11 // pred_fallthru
          _
        // Predicated region
        $region21: #{tpu_custom_call.1} parent=11 // pred_check
          %p403 = pneg %p146
        $region22: #{tpu_custom_call.1} parent=11 // pred_check_branch
          %405 = sbr.rel (%p403) target = $region24
        $region23: #{tpu_custom_call.1} parent=11 // pred_region
          _
        $region24: #{tpu_custom_call.1} parent=11 // pred_fallthru
          _
        // Predicated region
        $region25: #{tpu_custom_call.1} parent=11 // pred_check
          %p406 = pneg %p167
        $region26: #{tpu_custom_call.1} parent=11 // pred_check_branch
          %408 = sbr.rel (%p406) target = $region28
        $region27: #{tpu_custom_call.1} parent=11 // pred_region
          %s410 = ssub.s32 16, 16
          %411 = vsyncadd [#allocation6], %s410
          %s413 = sshll.u32 [#allocation5], 4
          %s414 = int_to_ptr.vmem [resolvable:$true] %s413
          %416 = dma.hbm_to_vmem [thread:$0]  %s5, 16, %s414, [#allocation6]
        $region28: #{tpu_custom_call.1} parent=11 // pred_fallthru
          _
        // Predicated region
        $region29: #{tpu_custom_call.1} parent=11 // pred_check
          %p417 = pneg %p188
        $region30: #{tpu_custom_call.1} parent=11 // pred_check_branch
          %419 = sbr.rel (%p417) target = $region32
        $region31: #{tpu_custom_call.1} parent=11 // pred_region
          %s421 = ssub.s32 4608, 4608
          %422 = vsyncadd [#allocation6], %s421
          %s423 = sshll.u32 [#allocation7], 4
          %s424 = int_to_ptr.vmem [resolvable:$true] %s423
          %429 = dma.hbm_to_vmem [thread:$0]  %s6, 4608, %s424, [#allocation6], 64, 64, 4
        $region32: #{tpu_custom_call.1} parent=11 // pred_fallthru
          _
        // Predicated region
        $region33: #{tpu_custom_call.1} parent=11 // pred_check
          %p430 = pneg %p209
        $region34: #{tpu_custom_call.1} parent=11 // pred_check_branch
          %432 = sbr.rel (%p430) target = $region36
        $region35: #{tpu_custom_call.1} parent=11 // pred_region
          %s434 = ssub.s32 16, 16
          %435 = vsyncadd [#allocation9], %s434
          %s437 = sshll.u32 [#allocation8], 4
          %s438 = int_to_ptr.vmem [resolvable:$true] %s437
          %440 = dma.hbm_to_vmem [thread:$0]  %s7, 16, %s438, [#allocation9]
        $region36: #{tpu_custom_call.1} parent=11 // pred_fallthru
          _
        // Predicated region
        $region37: #{tpu_custom_call.1} parent=11 // pred_check
          %p441 = pneg %p230
        $region38: #{tpu_custom_call.1} parent=11 // pred_check_branch
          %443 = sbr.rel (%p441) target = $region40
        $region39: #{tpu_custom_call.1} parent=11 // pred_region
          %s445 = ssub.s32 2048, 2048
          %446 = vsyncadd [#allocation9], %s445
          %s447 = sshll.u32 [#allocation10], 4
          %s448 = int_to_ptr.vmem [resolvable:$true] %s447
          %453 = dma.hbm_to_vmem [thread:$0]  %s8, 2048, %s448, [#allocation9], 256, 256, 16
        $region40: #{tpu_custom_call.1} parent=11 // pred_fallthru
          _
        // Predicated region
        $region41: #{tpu_custom_call.1} parent=11 // pred_check
          %p454 = pneg %p251
        $region42: #{tpu_custom_call.1} parent=11 // pred_check_branch
          %456 = sbr.rel (%p454) target = $region44
        $region43: #{tpu_custom_call.1} parent=11 // pred_region
          %s458 = ssub.s32 256, 256
          %459 = vsyncadd [#allocation12], %s458
          %s461 = sshll.u32 [#allocation11], 4
          %s462 = int_to_ptr.vmem [resolvable:$true] %s461
          %464 = dma.hbm_to_vmem [thread:$0]  %s9, 256, %s462, [#allocation12]
        $region44: #{tpu_custom_call.1} parent=11 // pred_fallthru
          _
        // Predicated region
        $region45: #{tpu_custom_call.1} parent=11 // pred_check
          %p465 = pneg %p272
        $region46: #{tpu_custom_call.1} parent=11 // pred_check_branch
          %467 = sbr.rel (%p465) target = $region48
        $region47: #{tpu_custom_call.1} parent=11 // pred_region
          %s469 = ssub.s32 64, 64
          %470 = vsyncadd [#allocation12], %s469
          %s472 = sshll.u32 [#allocation13], 4
          %s473 = int_to_ptr.vmem [resolvable:$true] %s472
          %475 = dma.hbm_to_vmem [thread:$0]  %s10, 64, %s473, [#allocation12]
        $region48: #{tpu_custom_call.1} parent=11 // pred_fallthru
          _
        // Predicated region
        $region49: #{tpu_custom_call.1} parent=11 // pred_check
          %p476 = pneg %p293
        $region50: #{tpu_custom_call.1} parent=11 // pred_check_branch
          %478 = sbr.rel (%p476) target = $region52
        $region51: #{tpu_custom_call.1} parent=11 // pred_region
          _
        $region52: #{tpu_custom_call.1} parent=11 // pred_fallthru
          _
        // Predicated region
        $region53: #{tpu_custom_call.1} parent=11 // pred_check
          %p479 = pneg %p314
        $region54: #{tpu_custom_call.1} parent=11 // pred_check_branch
          %481 = sbr.rel (%p479) target = $region56
        $region55: #{tpu_custom_call.1} parent=11 // pred_region
          %s483 = ssub.s32 32, 32
          %484 = vsyncadd [#allocation15], %s483
          %s486 = sshll.u32 [#allocation14], 4
          %s487 = int_to_ptr.vmem [resolvable:$true] %s486
          %489 = dma.hbm_to_vmem [thread:$0]  %s12, 32, %s487, [#allocation15]
        $region56: #{tpu_custom_call.1} parent=11 // pred_fallthru
          _
        // Predicated region
        $region57: #{tpu_custom_call.1} parent=11 // pred_check
          %p490 = pneg %p335
        $region58: #{tpu_custom_call.1} parent=11 // pred_check_branch
          %492 = sbr.rel (%p490) target = $region60
        $region59: #{tpu_custom_call.1} parent=11 // pred_region
          _
        $region60: #{tpu_custom_call.1} parent=11 // pred_fallthru
          _
        // Predicated region
        $region61: #{tpu_custom_call.1} parent=11 // pred_check
          %p493 = pneg %p356
        $region62: #{tpu_custom_call.1} parent=11 // pred_check_branch
          %495 = sbr.rel (%p493) target = $region64
        $region63: #{tpu_custom_call.1} parent=11 // pred_region
          _
        $region64: #{tpu_custom_call.1} parent=11 // pred_fallthru
          _
      $region12: #{tpu_custom_call.1} parent=5 // pred_fallthru
        _
      %p496 = scmp.lt.s32.totalorder %s31, 2
      // Predicated region
      $region65: #{tpu_custom_call.1} parent=5 // pred_check
        %p497 = pneg %p496
      $region66: #{tpu_custom_call.1} parent=5 // pred_check_branch
        %499 = sbr.rel (%p497) target = $region68
      $region67: #{tpu_custom_call.1} parent=5 // pred_region
        // Predicated region
        $region69: #{tpu_custom_call.1} parent=67 // pred_check
          %p500 = pneg %p51
        $region70: #{tpu_custom_call.1} parent=67 // pred_check_branch
          %502 = sbr.rel (%p500) target = $region72
        $region71: #{tpu_custom_call.1} parent=67 // pred_region
          #allocation18 [shape = 'u32[6]{0}', space=smem, size = 0x18, scoped, tag = 'DMA stride descriptor']
          %s503 = sand.u32 %s41, 1
          %s504 = scalar_lea.sflag [#allocation3], %s503
          %s505 = sand.u32 %s41, 1
          %s506 = smul.addr %s505, 648
          %s507 = scalar_lea.vmem [#allocation2], %s506
          %s508 = smul.u32 2, %s31
          %s510 = ssub.s32 10368, 10368
          %511 = vsyncadd %s504, %s510
          %s512 = smul.addr %s508, 64
          %s513 = scalar_lea.hbm %s0, %s512
          %s515 = sshll.u32 1, 14
          %s516 = sxor.u32 4294967295, %s515
          %s518 = sld [smem:[#allocation0]]
          %s519 = sadd.s32 2, %s518
          %s521 = sshll.u32 7, 26
          %s522 = sxor.u32 4294967295, %s521
          %s523 = sand.u32 0, %s522
          %s524 = sshll.u32 %s519, 26
          %s525 = sor.u32 %s523, %s524
          %s526 = sshll.u32 %s507, 4
          %s527 = int_to_ptr.vmem [resolvable:$true] %s526
          %533 = sst [smem:[#allocation18]] 256
          %s534 = scalar_lea.smem [#allocation18], 1
          %535 = sst [smem:[%s534]] 128
          %s536 = scalar_lea.smem [#allocation18], 2
          %537 = sst [smem:[%s536]] 2
          %s538 = scalar_lea.smem [#allocation18], 3
          %539 = sst [smem:[%s538]] 64
          %s540 = scalar_lea.smem [#allocation18], 4
          %541 = sst [smem:[%s540]] 64
          %s542 = scalar_lea.smem [#allocation18], 5
          %543 = sst [smem:[%s542]] 4
          %545 = dma.general %s513, 10368, %s527, %s504, [#allocation17], [#allocation18], %s525, 0
        $region72: #{tpu_custom_call.1} parent=67 // pred_fallthru
          _
        // Predicated region
        $region73: #{tpu_custom_call.1} parent=67 // pred_check
          %p546 = pneg %p77
        $region74: #{tpu_custom_call.1} parent=67 // pred_check_branch
          %548 = sbr.rel (%p546) target = $region76
        $region75: #{tpu_custom_call.1} parent=67 // pred_region
          %s549 = smul.u32 2, %s31
          %p550 = scmp.lt.s32.totalorder %s549, 3
          %s551 = scalar_select %p550, %s549, 3
          %s552 = smul.addr %s551, 4
          %s553 = scalar_lea.vmem %s1, %s552
          %s554 = smul.u32 2, %s31
        $region76: #{tpu_custom_call.1} parent=67 // pred_fallthru
          _
      $region68: #{tpu_custom_call.1} parent=5 // pred_fallthru
        _
      %p555 = scmp.le.s32.totalorder 1, %s31
      %p556 = scmp.lt.s32.totalorder %s31, 3
      %p557 = pnand %p555, %p556
      %p558 = pneg %p557
      // Predicated region
      $region77: #{tpu_custom_call.1} parent=5 // pred_check
        _
      $region78: #{tpu_custom_call.1} parent=5 // pred_check_branch
        %560 = sbr.rel (%p557) target = $region80
      $region79: #{tpu_custom_call.1} parent=5 // pred_region
        %s561 = ssub.s32 %s31, 1
        %s562 = sand.u32 %s44, 1
        %s563 = scalar_lea.sflag [#allocation3], %s562
        %s564 = sand.u32 %s44, 1
        %s565 = smul.addr %s564, 648
        %s566 = scalar_lea.vmem [#allocation2], %s565
        // Predicated region
        $region81: #{tpu_custom_call.1} parent=79 // pred_check
          %p567 = pneg %p57
        $region82: #{tpu_custom_call.1} parent=79 // pred_check_branch
          %569 = sbr.rel (%p567) target = $region84
        $region83: #{tpu_custom_call.1} parent=79 // pred_region
          %570 = dma.done %s563, 10368
        $region84: #{tpu_custom_call.1} parent=79 // pred_fallthru
          _
        // Predicated region
        $region85: #{tpu_custom_call.1} parent=79 // pred_check
          %p571 = pneg %p167
        $region86: #{tpu_custom_call.1} parent=79 // pred_check_branch
          %573 = sbr.rel (%p571) target = $region88
        $region87: #{tpu_custom_call.1} parent=79 // pred_region
          %574 = dma.done [#allocation6], 16
        $region88: #{tpu_custom_call.1} parent=79 // pred_fallthru
          _
        // Predicated region
        $region89: #{tpu_custom_call.1} parent=79 // pred_check
          %p575 = pneg %p188
        $region90: #{tpu_custom_call.1} parent=79 // pred_check_branch
          %577 = sbr.rel (%p575) target = $region92
        $region91: #{tpu_custom_call.1} parent=79 // pred_region
          %578 = dma.done [#allocation6], 4608
        $region92: #{tpu_custom_call.1} parent=79 // pred_fallthru
          _
        // Predicated region
        $region93: #{tpu_custom_call.1} parent=79 // pred_check
          %p579 = pneg %p209
        $region94: #{tpu_custom_call.1} parent=79 // pred_check_branch
          %581 = sbr.rel (%p579) target = $region96
        $region95: #{tpu_custom_call.1} parent=79 // pred_region
          %582 = dma.done [#allocation9], 16
        $region96: #{tpu_custom_call.1} parent=79 // pred_fallthru
          _
        // Predicated region
        $region97: #{tpu_custom_call.1} parent=79 // pred_check
          %p583 = pneg %p230
        $region98: #{tpu_custom_call.1} parent=79 // pred_check_branch
          %585 = sbr.rel (%p583) target = $region100
        $region99: #{tpu_custom_call.1} parent=79 // pred_region
          %586 = dma.done [#allocation9], 2048
        $region100: #{tpu_custom_call.1} parent=79 // pred_fallthru
          _
        // Predicated region
        $region101: #{tpu_custom_call.1} parent=79 // pred_check
          %p587 = pneg %p251
        $region102: #{tpu_custom_call.1} parent=79 // pred_check_branch
          %589 = sbr.rel (%p587) target = $region104
        $region103: #{tpu_custom_call.1} parent=79 // pred_region
          %590 = dma.done [#allocation12], 256
        $region104: #{tpu_custom_call.1} parent=79 // pred_fallthru
          _
        // Predicated region
        $region105: #{tpu_custom_call.1} parent=79 // pred_check
          %p591 = pneg %p272
        $region106: #{tpu_custom_call.1} parent=79 // pred_check_branch
          %593 = sbr.rel (%p591) target = $region108
        $region107: #{tpu_custom_call.1} parent=79 // pred_region
          %594 = dma.done [#allocation12], 64
        $region108: #{tpu_custom_call.1} parent=79 // pred_fallthru
          _
        // Predicated region
        $region109: #{tpu_custom_call.1} parent=79 // pred_check
          %p595 = pneg %p314
        $region110: #{tpu_custom_call.1} parent=79 // pred_check_branch
          %597 = sbr.rel (%p595) target = $region112
        $region111: #{tpu_custom_call.1} parent=79 // pred_region
          %598 = dma.done [#allocation15], 32
        $region112: #{tpu_custom_call.1} parent=79 // pred_fallthru
          _
        %s599 = sand.u32 %s44, 1
        %s600 = scalar_lea.sflag [#allocation3], %s599
        %s601 = sand.u32 %s44, 1
        %s602 = smul.addr %s601, 648
        %s603 = scalar_lea.vmem [#allocation2], %s602
        %p604 = pneg %p57
        %p605 = pneg %p54
        %s606 = smul.u32 2, %s36
        %p607 = scmp.lt.s32.totalorder %s606, 3
        %s608 = scalar_select %p607, %s606, 3
        %s609 = smul.addr %s608, 4
        %s610 = scalar_lea.vmem %s1, %s609
        %p611 = pneg %p83
        %p612 = pneg %p80
        %p613 = pneg %p104
        %p614 = pneg %p101
        %p615 = pneg %p125
        %p616 = pneg %p122
        %p617 = pneg %p146
        %p618 = pneg %p143
        %p619 = pneg %p167
        %p620 = pneg %p164
        %p621 = pneg %p188
        %p622 = pneg %p185
        %p623 = pneg %p209
        %p624 = pneg %p206
        %p625 = pneg %p230
        %p626 = pneg %p227
        %p627 = pneg %p251
        %p628 = pneg %p248
        %p629 = pneg %p272
        %p630 = pneg %p269
        %p631 = pneg %p293
        %p632 = pneg %p290
        %p633 = pneg %p314
        %p634 = pneg %p311
        %p635 = pneg %p335
        %p636 = pneg %p332
        %p637 = pneg %p356
        %p638 = pneg %p353
        %p639 = pneg %p382
        %p640 = pneg %p379
        %s641 = sand.u32 %s369, 1
        %s642 = scalar_lea.sflag [#allocation4], %s641
        %s643 = sand.u32 %s369, 1
        %s644 = smul.addr %s643, 16
        %s645 = scalar_lea.vmem [#allocation16], %s644
        %s646 = smul.u32 2, %s36
        %s647 = smul.u32 2, %s36
        %p648 = scmp.lt.s32.totalorder %s647, 3
        %s649 = scalar_select %p648, %s647, 3
        %s650 = smul.addr %s649, 4
        %s651 = scalar_lea.vmem %s1, %s650
        %s652 = smul.u32 2, %s36
        %s653 = smul.u32 2, %s36
        %v655 = vld [vmem:[%s566] sm:$0xf]
        %v656 = vld [vmem:[%s566 + $0x4] sm:$0xf]
        %v657 = vld [vmem:[%s566 + $0x8] sm:$0xf]
        %v658 = vld [vmem:[%s566 + $0xc] sm:$0xf]
        %v659 = vld [vmem:[%s566 + $0x10] sm:$0xf]
        %v660 = vld [vmem:[%s566 + $0x14] sm:$0xf]
        %v661 = vld [vmem:[%s566 + $0x18] sm:$0xf]
        %v662 = vld [vmem:[%s566 + $0x1c] sm:$0xf]
        %v663 = vld [vmem:[%s566 + $0x20] sm:$0xf]
        %v664 = vld [vmem:[%s566 + $0x24] sm:$0xf]
        %v665 = vld [vmem:[%s566 + $0x28] sm:$0xf]
        %v666 = vld [vmem:[%s566 + $0x2c] sm:$0xf]
        %v667 = vld [vmem:[%s566 + $0x30] sm:$0xf]
        %v668 = vld [vmem:[%s566 + $0x34] sm:$0xf]
        %v669 = vld [vmem:[%s566 + $0x38] sm:$0xf]
        %v670 = vld [vmem:[%s566 + $0x3c] sm:$0xf]
        %v671 = vld [vmem:[%s566 + $0x48] sm:$0xf]
        %v672 = vld [vmem:[%s566 + $0x4c] sm:$0xf]
        %v673 = vld [vmem:[%s566 + $0x50] sm:$0xf]
        %v674 = vld [vmem:[%s566 + $0x54] sm:$0xf]
        %v675 = vld [vmem:[%s566 + $0x58] sm:$0xf]
        %v676 = vld [vmem:[%s566 + $0x5c] sm:$0xf]
        %v677 = vld [vmem:[%s566 + $0x60] sm:$0xf]
        %v678 = vld [vmem:[%s566 + $0x64] sm:$0xf]
        %v679 = vld [vmem:[%s566 + $0x68] sm:$0xf]
        %v680 = vld [vmem:[%s566 + $0x6c] sm:$0xf]
        %v681 = vld [vmem:[%s566 + $0x70] sm:$0xf]
        %v682 = vld [vmem:[%s566 + $0x74] sm:$0xf]
        %v683 = vld [vmem:[%s566 + $0x78] sm:$0xf]
        %v684 = vld [vmem:[%s566 + $0x7c] sm:$0xf]
        %v685 = vld [vmem:[%s566 + $0x80] sm:$0xf]
        %v686 = vld [vmem:[%s566 + $0x84] sm:$0xf]
        %v687 = vld [vmem:[%s566 + $0x90] sm:$0xf]
        %v688 = vld [vmem:[%s566 + $0x94] sm:$0xf]
        %v689 = vld [vmem:[%s566 + $0x98] sm:$0xf]
        %v690 = vld [vmem:[%s566 + $0x9c] sm:$0xf]
        %v691 = vld [vmem:[%s566 + $0xa0] sm:$0xf]
        %v692 = vld [vmem:[%s566 + $0xa4] sm:$0xf]
        %v693 = vld [vmem:[%s566 + $0xa8] sm:$0xf]
        %v694 = vld [vmem:[%s566 + $0xac] sm:$0xf]
        %v695 = vld [vmem:[%s566 + $0xb0] sm:$0xf]
        %v696 = vld [vmem:[%s566 + $0xb4] sm:$0xf]
        %v697 = vld [vmem:[%s566 + $0xb8] sm:$0xf]
        %v698 = vld [vmem:[%s566 + $0xbc] sm:$0xf]
        %v699 = vld [vmem:[%s566 + $0xc0] sm:$0xf]
        %v700 = vld [vmem:[%s566 + $0xc4] sm:$0xf]
        %v701 = vld [vmem:[%s566 + $0xc8] sm:$0xf]
        %v702 = vld [vmem:[%s566 + $0xcc] sm:$0xf]
        %v703 = vld [vmem:[%s566 + $0xd8] sm:$0xf]
        %v704 = vld [vmem:[%s566 + $0xdc] sm:$0xf]
        %v705 = vld [vmem:[%s566 + $0xe0] sm:$0xf]
        %v706 = vld [vmem:[%s566 + $0xe4] sm:$0xf]
        %v707 = vld [vmem:[%s566 + $0xe8] sm:$0xf]
        %v708 = vld [vmem:[%s566 + $0xec] sm:$0xf]
        %v709 = vld [vmem:[%s566 + $0xf0] sm:$0xf]
        %v710 = vld [vmem:[%s566 + $0xf4] sm:$0xf]
        %v711 = vld [vmem:[%s566 + $0xf8] sm:$0xf]
        %v712 = vld [vmem:[%s566 + $0xfc] sm:$0xf]
        %v713 = vld [vmem:[%s566 + $0x100] sm:$0xf]
        %v714 = vld [vmem:[%s566 + $0x104] sm:$0xf]
        %v715 = vld [vmem:[%s566 + $0x108] sm:$0xf]
        %v716 = vld [vmem:[%s566 + $0x10c] sm:$0xf]
        %v717 = vld [vmem:[%s566 + $0x110] sm:$0xf]
        %v718 = vld [vmem:[%s566 + $0x114] sm:$0xf]
        %v719 = vld [vmem:[%s566 + $0x120] sm:$0xf]
        %v720 = vld [vmem:[%s566 + $0x124] sm:$0xf]
        %v721 = vld [vmem:[%s566 + $0x128] sm:$0xf]
        %v722 = vld [vmem:[%s566 + $0x12c] sm:$0xf]
        %v723 = vld [vmem:[%s566 + $0x130] sm:$0xf]
        %v724 = vld [vmem:[%s566 + $0x134] sm:$0xf]
        %v725 = vld [vmem:[%s566 + $0x138] sm:$0xf]
        %v726 = vld [vmem:[%s566 + $0x13c] sm:$0xf]
        %v727 = vld [vmem:[%s566 + $0x140] sm:$0xf]
        %v728 = vld [vmem:[%s566 + $0x144] sm:$0xf]
        %v729 = vld [vmem:[%s566 + $0x148] sm:$0xf]
        %v730 = vld [vmem:[%s566 + $0x14c] sm:$0xf]
        %v731 = vld [vmem:[%s566 + $0x150] sm:$0xf]
        %v732 = vld [vmem:[%s566 + $0x154] sm:$0xf]
        %v733 = vld [vmem:[%s566 + $0x158] sm:$0xf]
        %v734 = vld [vmem:[%s566 + $0x15c] sm:$0xf]
        %v735 = vld [vmem:[%s566 + $0x168] sm:$0xf]
        %v736 = vld [vmem:[%s566 + $0x16c] sm:$0xf]
        %v737 = vld [vmem:[%s566 + $0x170] sm:$0xf]
        %v738 = vld [vmem:[%s566 + $0x174] sm:$0xf]
        %v739 = vld [vmem:[%s566 + $0x178] sm:$0xf]
        %v740 = vld [vmem:[%s566 + $0x17c] sm:$0xf]
        %v741 = vld [vmem:[%s566 + $0x180] sm:$0xf]
        %v742 = vld [vmem:[%s566 + $0x184] sm:$0xf]
        %v743 = vld [vmem:[%s566 + $0x188] sm:$0xf]
        %v744 = vld [vmem:[%s566 + $0x18c] sm:$0xf]
        %v745 = vld [vmem:[%s566 + $0x190] sm:$0xf]
        %v746 = vld [vmem:[%s566 + $0x194] sm:$0xf]
        %v747 = vld [vmem:[%s566 + $0x198] sm:$0xf]
        %v748 = vld [vmem:[%s566 + $0x19c] sm:$0xf]
        %v749 = vld [vmem:[%s566 + $0x1a0] sm:$0xf]
        %v750 = vld [vmem:[%s566 + $0x1a4] sm:$0xf]
        %v751 = vld [vmem:[%s566 + $0x1b0] sm:$0xf]
        %v752 = vld [vmem:[%s566 + $0x1b4] sm:$0xf]
        %v753 = vld [vmem:[%s566 + $0x1b8] sm:$0xf]
        %v754 = vld [vmem:[%s566 + $0x1bc] sm:$0xf]
        %v755 = vld [vmem:[%s566 + $0x1c0] sm:$0xf]
        %v756 = vld [vmem:[%s566 + $0x1c4] sm:$0xf]
        %v757 = vld [vmem:[%s566 + $0x1c8] sm:$0xf]
        %v758 = vld [vmem:[%s566 + $0x1cc] sm:$0xf]
        %v759 = vld [vmem:[%s566 + $0x1d0] sm:$0xf]
        %v760 = vld [vmem:[%s566 + $0x1d4] sm:$0xf]
        %v761 = vld [vmem:[%s566 + $0x1d8] sm:$0xf]
        %v762 = vld [vmem:[%s566 + $0x1dc] sm:$0xf]
        %v763 = vld [vmem:[%s566 + $0x1e0] sm:$0xf]
        %v764 = vld [vmem:[%s566 + $0x1e4] sm:$0xf]
        %v765 = vld [vmem:[%s566 + $0x1e8] sm:$0xf]
        %v766 = vld [vmem:[%s566 + $0x1ec] sm:$0xf]
        %v767 = vld [vmem:[%s566 + $0x1f8] sm:$0xf]
        %v768 = vld [vmem:[%s566 + $0x1fc] sm:$0xf]
        %v769 = vld [vmem:[%s566 + $0x200] sm:$0xf]
        %v770 = vld [vmem:[%s566 + $0x204] sm:$0xf]
        %v771 = vld [vmem:[%s566 + $0x208] sm:$0xf]
        %v772 = vld [vmem:[%s566 + $0x20c] sm:$0xf]
        %v773 = vld [vmem:[%s566 + $0x210] sm:$0xf]
        %v774 = vld [vmem:[%s566 + $0x214] sm:$0xf]
        %v775 = vld [vmem:[%s566 + $0x218] sm:$0xf]
        %v776 = vld [vmem:[%s566 + $0x21c] sm:$0xf]
        %v777 = vld [vmem:[%s566 + $0x220] sm:$0xf]
        %v778 = vld [vmem:[%s566 + $0x224] sm:$0xf]
        %v779 = vld [vmem:[%s566 + $0x228] sm:$0xf]
        %v780 = vld [vmem:[%s566 + $0x22c] sm:$0xf]
        %v781 = vld [vmem:[%s566 + $0x230] sm:$0xf]
        %v782 = vld [vmem:[%s566 + $0x234] sm:$0xf]
        %v783 = vld [vmem:[%s2] sm:$0xf]
        %v784 = vld [vmem:[%s2 + $0x4] sm:$0xf]
        %v785 = vld [vmem:[%s2 + $0x8] sm:$0xf]
        %v786 = vld [vmem:[%s2 + $0xc] sm:$0xf]
        %v787 = vld [vmem:[%s2 + $0x10] sm:$0xf]
        %v788 = vld [vmem:[%s2 + $0x14] sm:$0xf]
        %v789 = vld [vmem:[%s2 + $0x18] sm:$0xf]
        %v790 = vld [vmem:[%s2 + $0x1c] sm:$0xf]
        %s791 = scalar_lea.vmem %s566, 8 [#allocation2]
        %v792 = vld [vmem:[%s791] sm:$0xf]
        %v793 = vld [vmem:[%s791 + $0x4] sm:$0xf]
        %v794 = vld [vmem:[%s791 + $0x8] sm:$0xf]
        %v795 = vld [vmem:[%s791 + $0xc] sm:$0xf]
        %v796 = vld [vmem:[%s791 + $0x10] sm:$0xf]
        %v797 = vld [vmem:[%s791 + $0x14] sm:$0xf]
        %v798 = vld [vmem:[%s791 + $0x18] sm:$0xf]
        %v799 = vld [vmem:[%s791 + $0x1c] sm:$0xf]
        %v800 = vld [vmem:[%s791 + $0x20] sm:$0xf]
        %v801 = vld [vmem:[%s791 + $0x24] sm:$0xf]
        %v802 = vld [vmem:[%s791 + $0x28] sm:$0xf]
        %v803 = vld [vmem:[%s791 + $0x2c] sm:$0xf]
        %v804 = vld [vmem:[%s791 + $0x30] sm:$0xf]
        %v805 = vld [vmem:[%s791 + $0x34] sm:$0xf]
        %v806 = vld [vmem:[%s791 + $0x38] sm:$0xf]
        %v807 = vld [vmem:[%s791 + $0x3c] sm:$0xf]
        %v808 = vld [vmem:[%s791 + $0x48] sm:$0xf]
        %v809 = vld [vmem:[%s791 + $0x4c] sm:$0xf]
        %v810 = vld [vmem:[%s791 + $0x50] sm:$0xf]
        %v811 = vld [vmem:[%s791 + $0x54] sm:$0xf]
        %v812 = vld [vmem:[%s791 + $0x58] sm:$0xf]
        %v813 = vld [vmem:[%s791 + $0x5c] sm:$0xf]
        %v814 = vld [vmem:[%s791 + $0x60] sm:$0xf]
        %v815 = vld [vmem:[%s791 + $0x64] sm:$0xf]
        %v816 = vld [vmem:[%s791 + $0x68] sm:$0xf]
        %v817 = vld [vmem:[%s791 + $0x6c] sm:$0xf]
        %v818 = vld [vmem:[%s791 + $0x70] sm:$0xf]
        %v819 = vld [vmem:[%s791 + $0x74] sm:$0xf]
        %v820 = vld [vmem:[%s791 + $0x78] sm:$0xf]
        %v821 = vld [vmem:[%s791 + $0x7c] sm:$0xf]
        %v822 = vld [vmem:[%s791 + $0x80] sm:$0xf]
        %v823 = vld [vmem:[%s791 + $0x84] sm:$0xf]
        %v824 = vld [vmem:[%s791 + $0x90] sm:$0xf]
        %v825 = vld [vmem:[%s791 + $0x94] sm:$0xf]
        %v826 = vld [vmem:[%s791 + $0x98] sm:$0xf]
        %v827 = vld [vmem:[%s791 + $0x9c] sm:$0xf]
        %v828 = vld [vmem:[%s791 + $0xa0] sm:$0xf]
        %v829 = vld [vmem:[%s791 + $0xa4] sm:$0xf]
        %v830 = vld [vmem:[%s791 + $0xa8] sm:$0xf]
        %v831 = vld [vmem:[%s791 + $0xac] sm:$0xf]
        %v832 = vld [vmem:[%s791 + $0xb0] sm:$0xf]
        %v833 = vld [vmem:[%s791 + $0xb4] sm:$0xf]
        %v834 = vld [vmem:[%s791 + $0xb8] sm:$0xf]
        %v835 = vld [vmem:[%s791 + $0xbc] sm:$0xf]
        %v836 = vld [vmem:[%s791 + $0xc0] sm:$0xf]
        %v837 = vld [vmem:[%s791 + $0xc4] sm:$0xf]
        %v838 = vld [vmem:[%s791 + $0xc8] sm:$0xf]
        %v839 = vld [vmem:[%s791 + $0xcc] sm:$0xf]
        %v840 = vld [vmem:[%s791 + $0xd8] sm:$0xf]
        %v841 = vld [vmem:[%s791 + $0xdc] sm:$0xf]
        %v842 = vld [vmem:[%s791 + $0xe0] sm:$0xf]
        %v843 = vld [vmem:[%s791 + $0xe4] sm:$0xf]
        %v844 = vld [vmem:[%s791 + $0xe8] sm:$0xf]
        %v845 = vld [vmem:[%s791 + $0xec] sm:$0xf]
        %v846 = vld [vmem:[%s791 + $0xf0] sm:$0xf]
        %v847 = vld [vmem:[%s791 + $0xf4] sm:$0xf]
        %v848 = vld [vmem:[%s791 + $0xf8] sm:$0xf]
        %v849 = vld [vmem:[%s791 + $0xfc] sm:$0xf]
        %v850 = vld [vmem:[%s791 + $0x100] sm:$0xf]
        %v851 = vld [vmem:[%s791 + $0x104] sm:$0xf]
        %v852 = vld [vmem:[%s791 + $0x108] sm:$0xf]
        %v853 = vld [vmem:[%s791 + $0x10c] sm:$0xf]
        %v854 = vld [vmem:[%s791 + $0x110] sm:$0xf]
        %v855 = vld [vmem:[%s791 + $0x114] sm:$0xf]
        %v856 = vld [vmem:[%s791 + $0x120] sm:$0xf]
        %v857 = vld [vmem:[%s791 + $0x124] sm:$0xf]
        %v858 = vld [vmem:[%s791 + $0x128] sm:$0xf]
        %v859 = vld [vmem:[%s791 + $0x12c] sm:$0xf]
        %v860 = vld [vmem:[%s791 + $0x130] sm:$0xf]
        %v861 = vld [vmem:[%s791 + $0x134] sm:$0xf]
        %v862 = vld [vmem:[%s791 + $0x138] sm:$0xf]
        %v863 = vld [vmem:[%s791 + $0x13c] sm:$0xf]
        %v864 = vld [vmem:[%s791 + $0x140] sm:$0xf]
        %v865 = vld [vmem:[%s791 + $0x144] sm:$0xf]
        %v866 = vld [vmem:[%s791 + $0x148] sm:$0xf]
        %v867 = vld [vmem:[%s791 + $0x14c] sm:$0xf]
        %v868 = vld [vmem:[%s791 + $0x150] sm:$0xf]
        %v869 = vld [vmem:[%s791 + $0x154] sm:$0xf]
        %v870 = vld [vmem:[%s791 + $0x158] sm:$0xf]
        %v871 = vld [vmem:[%s791 + $0x15c] sm:$0xf]
        %v872 = vld [vmem:[%s791 + $0x168] sm:$0xf]
        %v873 = vld [vmem:[%s791 + $0x16c] sm:$0xf]
        %v874 = vld [vmem:[%s791 + $0x170] sm:$0xf]
        %v875 = vld [vmem:[%s791 + $0x174] sm:$0xf]
        %v876 = vld [vmem:[%s791 + $0x178] sm:$0xf]
        %v877 = vld [vmem:[%s791 + $0x17c] sm:$0xf]
        %v878 = vld [vmem:[%s791 + $0x180] sm:$0xf]
        %v879 = vld [vmem:[%s791 + $0x184] sm:$0xf]
        %v880 = vld [vmem:[%s791 + $0x188] sm:$0xf]
        %v881 = vld [vmem:[%s791 + $0x18c] sm:$0xf]
        %v882 = vld [vmem:[%s791 + $0x190] sm:$0xf]
        %v883 = vld [vmem:[%s791 + $0x194] sm:$0xf]
        %v884 = vld [vmem:[%s791 + $0x198] sm:$0xf]
        %v885 = vld [vmem:[%s791 + $0x19c] sm:$0xf]
        %v886 = vld [vmem:[%s791 + $0x1a0] sm:$0xf]
        %v887 = vld [vmem:[%s791 + $0x1a4] sm:$0xf]
        %v888 = vld [vmem:[%s791 + $0x1b0] sm:$0xf]
        %v889 = vld [vmem:[%s791 + $0x1b4] sm:$0xf]
        %v890 = vld [vmem:[%s791 + $0x1b8] sm:$0xf]
        %v891 = vld [vmem:[%s791 + $0x1bc] sm:$0xf]
        %v892 = vld [vmem:[%s791 + $0x1c0] sm:$0xf]
        %v893 = vld [vmem:[%s791 + $0x1c4] sm:$0xf]
        %v894 = vld [vmem:[%s791 + $0x1c8] sm:$0xf]
        %v895 = vld [vmem:[%s791 + $0x1cc] sm:$0xf]
        %v896 = vld [vmem:[%s791 + $0x1d0] sm:$0xf]
        %v897 = vld [vmem:[%s791 + $0x1d4] sm:$0xf]
        %v898 = vld [vmem:[%s791 + $0x1d8] sm:$0xf]
        %v899 = vld [vmem:[%s791 + $0x1dc] sm:$0xf]
        %v900 = vld [vmem:[%s791 + $0x1e0] sm:$0xf]
        %v901 = vld [vmem:[%s791 + $0x1e4] sm:$0xf]
        %v902 = vld [vmem:[%s791 + $0x1e8] sm:$0xf]
        %v903 = vld [vmem:[%s791 + $0x1ec] sm:$0xf]
        %v904 = vld [vmem:[%s791 + $0x1f8] sm:$0xf]
        %v905 = vld [vmem:[%s791 + $0x1fc] sm:$0xf]
        %v906 = vld [vmem:[%s791 + $0x200] sm:$0xf]
        %v907 = vld [vmem:[%s791 + $0x204] sm:$0xf]
        %v908 = vld [vmem:[%s791 + $0x208] sm:$0xf]
        %v909 = vld [vmem:[%s791 + $0x20c] sm:$0xf]
        %v910 = vld [vmem:[%s791 + $0x210] sm:$0xf]
        %v911 = vld [vmem:[%s791 + $0x214] sm:$0xf]
        %v912 = vld [vmem:[%s791 + $0x218] sm:$0xf]
        %v913 = vld [vmem:[%s791 + $0x21c] sm:$0xf]
        %v914 = vld [vmem:[%s791 + $0x220] sm:$0xf]
        %v915 = vld [vmem:[%s791 + $0x224] sm:$0xf]
        %v916 = vld [vmem:[%s791 + $0x228] sm:$0xf]
        %v917 = vld [vmem:[%s791 + $0x22c] sm:$0xf]
        %v918 = vld [vmem:[%s791 + $0x230] sm:$0xf]
        %v919 = vld [vmem:[%s791 + $0x234] sm:$0xf]
        %s920 = scalar_lea.vmem %s2, 32
        %v921 = vld [vmem:[%s920] sm:$0xf]
        %v922 = vld [vmem:[%s920 + $0x4] sm:$0xf]
        %v923 = vld [vmem:[%s920 + $0x8] sm:$0xf]
        %v924 = vld [vmem:[%s920 + $0xc] sm:$0xf]
        %v925 = vld [vmem:[%s920 + $0x10] sm:$0xf]
        %v926 = vld [vmem:[%s920 + $0x14] sm:$0xf]
        %v927 = vld [vmem:[%s920 + $0x18] sm:$0xf]
        %v928 = vld [vmem:[%s920 + $0x1c] sm:$0xf]
        %v1057 = vunpack.c.l.b16 %v792
        %v1058 = vunpack.c.l.b16 %v793
        %v1059 = vunpack.c.l.b16 %v794
        %v1060 = vunpack.c.l.b16 %v795
        %v1061 = vunpack.c.l.b16 %v796
        %v1062 = vunpack.c.l.b16 %v797
        %v1063 = vunpack.c.l.b16 %v798
        %v1064 = vunpack.c.l.b16 %v799
        %v1065 = vunpack.c.l.b16 %v800
        %v1066 = vunpack.c.l.b16 %v801
        %v1067 = vunpack.c.l.b16 %v802
        %v1068 = vunpack.c.l.b16 %v803
        %v1069 = vunpack.c.l.b16 %v804
        %v1070 = vunpack.c.l.b16 %v805
        %v1071 = vunpack.c.l.b16 %v806
        %v1072 = vunpack.c.l.b16 %v807
        %v1073 = vunpack.c.l.b16 %v808
        %v1074 = vunpack.c.l.b16 %v809
        %v1075 = vunpack.c.l.b16 %v810
        %v1076 = vunpack.c.l.b16 %v811
        %v1077 = vunpack.c.l.b16 %v812
        %v1078 = vunpack.c.l.b16 %v813
        %v1079 = vunpack.c.l.b16 %v814
        %v1080 = vunpack.c.l.b16 %v815
        %v1081 = vunpack.c.l.b16 %v816
        %v1082 = vunpack.c.l.b16 %v817
        %v1083 = vunpack.c.l.b16 %v818
        %v1084 = vunpack.c.l.b16 %v819
        %v1085 = vunpack.c.l.b16 %v820
        %v1086 = vunpack.c.l.b16 %v821
        %v1087 = vunpack.c.l.b16 %v822
        %v1088 = vunpack.c.l.b16 %v823
        %v1089 = vunpack.c.l.b16 %v824
        %v1090 = vunpack.c.l.b16 %v825
        %v1091 = vunpack.c.l.b16 %v826
        %v1092 = vunpack.c.l.b16 %v827
        %v1093 = vunpack.c.l.b16 %v828
        %v1094 = vunpack.c.l.b16 %v829
        %v1095 = vunpack.c.l.b16 %v830
        %v1096 = vunpack.c.l.b16 %v831
        %v1097 = vunpack.c.l.b16 %v832
        %v1098 = vunpack.c.l.b16 %v833
        %v1099 = vunpack.c.l.b16 %v834
        %v1100 = vunpack.c.l.b16 %v835
        %v1101 = vunpack.c.l.b16 %v836
        %v1102 = vunpack.c.l.b16 %v837
        %v1103 = vunpack.c.l.b16 %v838
        %v1104 = vunpack.c.l.b16 %v839
        %v1105 = vunpack.c.l.b16 %v840
        %v1106 = vunpack.c.l.b16 %v841
        %v1107 = vunpack.c.l.b16 %v842
        %v1108 = vunpack.c.l.b16 %v843
        %v1109 = vunpack.c.l.b16 %v844
        %v1110 = vunpack.c.l.b16 %v845
        %v1111 = vunpack.c.l.b16 %v846
        %v1112 = vunpack.c.l.b16 %v847
        %v1113 = vunpack.c.l.b16 %v848
        %v1114 = vunpack.c.l.b16 %v849
        %v1115 = vunpack.c.l.b16 %v850
        %v1116 = vunpack.c.l.b16 %v851
        %v1117 = vunpack.c.l.b16 %v852
        %v1118 = vunpack.c.l.b16 %v853
        %v1119 = vunpack.c.l.b16 %v854
        %v1120 = vunpack.c.l.b16 %v855
        %v1121 = vunpack.c.l.b16 %v856
        %v1122 = vunpack.c.l.b16 %v857
        %v1123 = vunpack.c.l.b16 %v858
        %v1124 = vunpack.c.l.b16 %v859
        %v1125 = vunpack.c.l.b16 %v860
        %v1126 = vunpack.c.l.b16 %v861
        %v1127 = vunpack.c.l.b16 %v862
        %v1128 = vunpack.c.l.b16 %v863
        %v1129 = vunpack.c.l.b16 %v864
        %v1130 = vunpack.c.l.b16 %v865
        %v1131 = vunpack.c.l.b16 %v866
        %v1132 = vunpack.c.l.b16 %v867
        %v1133 = vunpack.c.l.b16 %v868
        %v1134 = vunpack.c.l.b16 %v869
        %v1135 = vunpack.c.l.b16 %v870
        %v1136 = vunpack.c.l.b16 %v871
        %v1137 = vunpack.c.l.b16 %v872
        %v1138 = vunpack.c.l.b16 %v873
        %v1139 = vunpack.c.l.b16 %v874
        %v1140 = vunpack.c.l.b16 %v875
        %v1141 = vunpack.c.l.b16 %v876
        %v1142 = vunpack.c.l.b16 %v877
        %v1143 = vunpack.c.l.b16 %v878
        %v1144 = vunpack.c.l.b16 %v879
        %v1145 = vunpack.c.l.b16 %v880
        %v1146 = vunpack.c.l.b16 %v881
        %v1147 = vunpack.c.l.b16 %v882
        %v1148 = vunpack.c.l.b16 %v883
        %v1149 = vunpack.c.l.b16 %v884
        %v1150 = vunpack.c.l.b16 %v885
        %v1151 = vunpack.c.l.b16 %v886
        %v1152 = vunpack.c.l.b16 %v887
        %v1153 = vunpack.c.l.b16 %v888
        %v1154 = vunpack.c.l.b16 %v889
        %v1155 = vunpack.c.l.b16 %v890
        %v1156 = vunpack.c.l.b16 %v891
        %v1157 = vunpack.c.l.b16 %v892
        %v1158 = vunpack.c.l.b16 %v893
        %v1159 = vunpack.c.l.b16 %v894
        %v1160 = vunpack.c.l.b16 %v895
        %v1161 = vunpack.c.l.b16 %v896
        %v1162 = vunpack.c.l.b16 %v897
        %v1163 = vunpack.c.l.b16 %v898
        %v1164 = vunpack.c.l.b16 %v899
        %v1165 = vunpack.c.l.b16 %v900
        %v1166 = vunpack.c.l.b16 %v901
        %v1167 = vunpack.c.l.b16 %v902
        %v1168 = vunpack.c.l.b16 %v903
        %v1169 = vunpack.c.l.b16 %v904
        %v1170 = vunpack.c.l.b16 %v905
        %v1171 = vunpack.c.l.b16 %v906
        %v1172 = vunpack.c.l.b16 %v907
        %v1173 = vunpack.c.l.b16 %v908
        %v1174 = vunpack.c.l.b16 %v909
        %v1175 = vunpack.c.l.b16 %v910
        %v1176 = vunpack.c.l.b16 %v911
        %v1177 = vunpack.c.l.b16 %v912
        %v1178 = vunpack.c.l.b16 %v913
        %v1179 = vunpack.c.l.b16 %v914
        %v1180 = vunpack.c.l.b16 %v915
        %v1181 = vunpack.c.l.b16 %v916
        %v1182 = vunpack.c.l.b16 %v917
        %v1183 = vunpack.c.l.b16 %v918
        %v1184 = vunpack.c.l.b16 %v919
        %v1185 = vpack.c.b16 %v1058, %v1057
        %v1186 = vpack.c.b16 %v1060, %v1059
        %v1187 = vpack.c.b16 %v1062, %v1061
        %v1188 = vpack.c.b16 %v1064, %v1063
        %v1189 = vpack.c.b16 %v1066, %v1065
        %v1190 = vpack.c.b16 %v1068, %v1067
        %v1191 = vpack.c.b16 %v1070, %v1069
        %v1192 = vpack.c.b16 %v1072, %v1071
        %v1193 = vpack.c.b16 %v1074, %v1073
        %v1194 = vpack.c.b16 %v1076, %v1075
        %v1195 = vpack.c.b16 %v1078, %v1077
        %v1196 = vpack.c.b16 %v1080, %v1079
        %v1197 = vpack.c.b16 %v1082, %v1081
        %v1198 = vpack.c.b16 %v1084, %v1083
        %v1199 = vpack.c.b16 %v1086, %v1085
        %v1200 = vpack.c.b16 %v1088, %v1087
        %v1201 = vpack.c.b16 %v1090, %v1089
        %v1202 = vpack.c.b16 %v1092, %v1091
        %v1203 = vpack.c.b16 %v1094, %v1093
        %v1204 = vpack.c.b16 %v1096, %v1095
        %v1205 = vpack.c.b16 %v1098, %v1097
        %v1206 = vpack.c.b16 %v1100, %v1099
        %v1207 = vpack.c.b16 %v1102, %v1101
        %v1208 = vpack.c.b16 %v1104, %v1103
        %v1209 = vpack.c.b16 %v1106, %v1105
        %v1210 = vpack.c.b16 %v1108, %v1107
        %v1211 = vpack.c.b16 %v1110, %v1109
        %v1212 = vpack.c.b16 %v1112, %v1111
        %v1213 = vpack.c.b16 %v1114, %v1113
        %v1214 = vpack.c.b16 %v1116, %v1115
        %v1215 = vpack.c.b16 %v1118, %v1117
        %v1216 = vpack.c.b16 %v1120, %v1119
        %v1217 = vpack.c.b16 %v1122, %v1121
        %v1218 = vpack.c.b16 %v1124, %v1123
        %v1219 = vpack.c.b16 %v1126, %v1125
        %v1220 = vpack.c.b16 %v1128, %v1127
        %v1221 = vpack.c.b16 %v1130, %v1129
        %v1222 = vpack.c.b16 %v1132, %v1131
        %v1223 = vpack.c.b16 %v1134, %v1133
        %v1224 = vpack.c.b16 %v1136, %v1135
        %v1225 = vpack.c.b16 %v1138, %v1137
        %v1226 = vpack.c.b16 %v1140, %v1139
        %v1227 = vpack.c.b16 %v1142, %v1141
        %v1228 = vpack.c.b16 %v1144, %v1143
        %v1229 = vpack.c.b16 %v1146, %v1145
        %v1230 = vpack.c.b16 %v1148, %v1147
        %v1231 = vpack.c.b16 %v1150, %v1149
        %v1232 = vpack.c.b16 %v1152, %v1151
        %v1233 = vpack.c.b16 %v1154, %v1153
        %v1234 = vpack.c.b16 %v1156, %v1155
        %v1235 = vpack.c.b16 %v1158, %v1157
        %v1236 = vpack.c.b16 %v1160, %v1159
        %v1237 = vpack.c.b16 %v1162, %v1161
        %v1238 = vpack.c.b16 %v1164, %v1163
        %v1239 = vpack.c.b16 %v1166, %v1165
        %v1240 = vpack.c.b16 %v1168, %v1167
        %v1241 = vpack.c.b16 %v1170, %v1169
        %v1242 = vpack.c.b16 %v1172, %v1171
        %v1243 = vpack.c.b16 %v1174, %v1173
        %v1244 = vpack.c.b16 %v1176, %v1175
        %v1245 = vpack.c.b16 %v1178, %v1177
        %v1246 = vpack.c.b16 %v1180, %v1179
        %v1247 = vpack.c.b16 %v1182, %v1181
        %v1248 = vpack.c.b16 %v1184, %v1183
        %v1257 = vunpack.c.l.b16 %v921
        %v1258 = vunpack.c.l.b16 %v922
        %v1259 = vunpack.c.l.b16 %v923
        %v1260 = vunpack.c.l.b16 %v924
        %v1261 = vunpack.c.l.b16 %v925
        %v1262 = vunpack.c.l.b16 %v926
        %v1263 = vunpack.c.l.b16 %v927
        %v1264 = vunpack.c.l.b16 %v928
        %v1265 = vpack.c.b16 %v1258, %v1257
        %v1266 = vpack.c.b16 %v1260, %v1259
        %v1267 = vpack.c.b16 %v1262, %v1261
        %v1268 = vpack.c.b16 %v1264, %v1263
        %vm1273 = vcmask 523264
        %v1275 = vsel %vm1273, %v1185, 0
        %v1278 = vsel %vm1273, %v1186, 0
        %v1281 = vsel %vm1273, %v1187, 0
        %v1284 = vsel %vm1273, %v1188, 0
        %v1287 = vsel %vm1273, %v1189, 0
        %v1290 = vsel %vm1273, %v1190, 0
        %v1293 = vsel %vm1273, %v1191, 0
        %v1296 = vsel %vm1273, %v1192, 0
        %v1299 = vsel %vm1273, %v1193, 0
        %v1302 = vsel %vm1273, %v1194, 0
        %v1305 = vsel %vm1273, %v1195, 0
        %v1308 = vsel %vm1273, %v1196, 0
        %v1311 = vsel %vm1273, %v1197, 0
        %v1314 = vsel %vm1273, %v1198, 0
        %v1317 = vsel %vm1273, %v1199, 0
        %v1320 = vsel %vm1273, %v1200, 0
        %v1323 = vsel %vm1273, %v1201, 0
        %v1326 = vsel %vm1273, %v1202, 0
        %v1329 = vsel %vm1273, %v1203, 0
        %v1332 = vsel %vm1273, %v1204, 0
        %v1335 = vsel %vm1273, %v1205, 0
        %v1338 = vsel %vm1273, %v1206, 0
        %v1341 = vsel %vm1273, %v1207, 0
        %v1344 = vsel %vm1273, %v1208, 0
        %v1347 = vsel %vm1273, %v1209, 0
        %v1350 = vsel %vm1273, %v1210, 0
        %v1353 = vsel %vm1273, %v1211, 0
        %v1356 = vsel %vm1273, %v1212, 0
        %v1359 = vsel %vm1273, %v1213, 0
        %v1362 = vsel %vm1273, %v1214, 0
        %v1365 = vsel %vm1273, %v1215, 0
        %v1368 = vsel %vm1273, %v1216, 0
        %v1371 = vsel %vm1273, %v1217, 0
        %v1374 = vsel %vm1273, %v1218, 0
        %v1377 = vsel %vm1273, %v1219, 0
        %v1380 = vsel %vm1273, %v1220, 0
        %v1383 = vsel %vm1273, %v1221, 0
        %v1386 = vsel %vm1273, %v1222, 0
        %v1389 = vsel %vm1273, %v1223, 0
        %v1392 = vsel %vm1273, %v1224, 0
        %v1395 = vsel %vm1273, %v1225, 0
        %v1398 = vsel %vm1273, %v1226, 0
        %v1401 = vsel %vm1273, %v1227, 0
        %v1404 = vsel %vm1273, %v1228, 0
        %v1407 = vsel %vm1273, %v1229, 0
        %v1410 = vsel %vm1273, %v1230, 0
        %v1413 = vsel %vm1273, %v1231, 0
        %v1416 = vsel %vm1273, %v1232, 0
        %v1419 = vsel %vm1273, %v1233, 0
        %v1422 = vsel %vm1273, %v1234, 0
        %v1425 = vsel %vm1273, %v1235, 0
        %v1428 = vsel %vm1273, %v1236, 0
        %v1431 = vsel %vm1273, %v1237, 0
        %v1434 = vsel %vm1273, %v1238, 0
        %v1437 = vsel %vm1273, %v1239, 0
        %v1440 = vsel %vm1273, %v1240, 0
        %v1443 = vsel %vm1273, %v1241, 0
        %v1446 = vsel %vm1273, %v1242, 0
        %v1449 = vsel %vm1273, %v1243, 0
        %v1452 = vsel %vm1273, %v1244, 0
        %v1455 = vsel %vm1273, %v1245, 0
        %v1458 = vsel %vm1273, %v1246, 0
        %v1461 = vsel %vm1273, %v1247, 0
        %v1464 = vsel %vm1273, %v1248, 0
        %1466 = vmatprep.subr.bf16.mxu0 0
        %1467 = vmatpush1.bf16.msra.mxu0 %v1265
        %1468 = vmatprep.subr.bf16.mxu0 0
        %1469 = vmatpush1.bf16.msra.mxu0 %v1266
        %1470 = vmatprep.subr.bf16.mxu0 0
        %1471 = vmatpush1.bf16.msra.mxu0 %v1267
        %1472 = vmatprep.subr.bf16.mxu0 0
        %1473 = vmatpush1.bf16.msra.mxu0 %v1268
        %1474 = vmatprep.subr.bf16.mxu0 0
        %1475 = vmatpush1.bf16.msra.mxu0 0
        %1476 = vmatprep.subr.bf16.mxu0 0
        %1477 = vmatpush1.bf16.msra.mxu0 0
        %1478 = vmatprep.subr.bf16.mxu0 0
        %1479 = vmatpush1.bf16.msra.mxu0 0
        %1480 = vmatprep.subr.bf16.mxu0 0
        %1481 = vmatpush1.bf16.msra.mxu0 0
        %1482 = vmatprep.subr.bf16.mxu0 0
        %1483 = vmatpush1.bf16.msra.mxu0 0
        %1484 = vmatprep.subr.bf16.mxu0 0
        %1485 = vmatpush1.bf16.msra.mxu0 0
        %1486 = vmatprep.subr.bf16.mxu0 0
        %1487 = vmatpush1.bf16.msra.mxu0 0
        %1488 = vmatprep.subr.bf16.mxu0 0
        %1489 = vmatpush1.bf16.msra.mxu0 0
        %1490 = vmatprep.subr.bf16.mxu0 0
        %1491 = vmatpush1.bf16.msra.mxu0 0
        %1492 = vmatprep.subr.bf16.mxu0 0
        %1493 = vmatpush1.bf16.msra.mxu0 0
        %1494 = vmatprep.subr.bf16.mxu0 0
        %1495 = vmatpush1.bf16.msra.mxu0 0
        %1496 = vmatprep.subr.bf16.mxu0 0
        %1497 = vmatpush1.bf16.msra.mxu0 0
        %1498 = vmatprep.mubr.bf16.mxu0 0
        %1499 = vmatmul.mubr.bf16.gmra.mrb[0].mxu0 %v1275
        %v1500 = vpop.f32.mrb[0].mxu0
        %v1501 = vadd.f32 0.0, %v1500
        %v1502 = vpop.f32.mrb[0].mxu0
        %v1503 = vpop.f32.mrb[0].mxu0
        %v1504 = vadd.f32 0.0, %v1503
        %v1505 = vpop.f32.mrb[0].mxu0
        %1506 = vmatprep.mubr.bf16.mxu0 0
        %1507 = vmatmul.mubr.bf16.gmra.mrb[0].mxu0 %v1278
        %v1508 = vpop.f32.mrb[0].mxu0
        %v1509 = vadd.f32 0.0, %v1508
        %v1510 = vpop.f32.mrb[0].mxu0
        %v1511 = vpop.f32.mrb[0].mxu0
        %v1512 = vadd.f32 0.0, %v1511
        %v1513 = vpop.f32.mrb[0].mxu0
        %1514 = vmatprep.mubr.bf16.mxu0 0
        %1515 = vmatmul.mubr.bf16.gmra.mrb[0].mxu0 %v1281
        %v1516 = vpop.f32.mrb[0].mxu0
        %v1517 = vadd.f32 0.0, %v1516
        %v1518 = vpop.f32.mrb[0].mxu0
        %v1519 = vpop.f32.mrb[0].mxu0
        %v1520 = vadd.f32 0.0, %v1519
        %v1521 = vpop.f32.mrb[0].mxu0
        %1522 = vmatprep.mubr.bf16.mxu0 0
        %1523 = vmatmul.mubr.bf16.gmra.mrb[0].mxu0 %v1284
        %v1524 = vpop.f32.mrb[0].mxu0
        %v1525 = vadd.f32 0.0, %v1524
        %v1526 = vpop.f32.mrb[0].mxu0
        %v1527 = vpop.f32.mrb[0].mxu0
        %v1528 = vadd.f32 0.0, %v1527
        %v1529 = vpop.f32.mrb[0].mxu0
        %1530 = vmatprep.mubr.bf16.mxu0 0
        %1531 = vmatmul.mubr.bf16.gmra.mrb[0].mxu0 %v1287
        %v1532 = vpop.f32.mrb[0].mxu0
        %v1533 = vadd.f32 0.0, %v1532
        %v1534 = vpop.f32.mrb[0].mxu0
        %v1535 = vpop.f32.mrb[0].mxu0
        %v1536 = vadd.f32 0.0, %v1535
        %v1537 = vpop.f32.mrb[0].mxu0
        %1538 = vmatprep.mubr.bf16.mxu0 0
        %1539 = vmatmul.mubr.bf16.gmra.mrb[0].mxu0 %v1290
        %v1540 = vpop.f32.mrb[0].mxu0
        %v1541 = vadd.f32 0.0, %v1540
        %v1542 = vpop.f32.mrb[0].mxu0
        %v1543 = vpop.f32.mrb[0].mxu0
        %v1544 = vadd.f32 0.0, %v1543
        %v1545 = vpop.f32.mrb[0].mxu0
        %1546 = vmatprep.mubr.bf16.mxu0 0
        %1547 = vmatmul.mubr.bf16.gmra.mrb[0].mxu0 %v1293
        %v1548 = vpop.f32.mrb[0].mxu0
        %v1549 = vadd.f32 0.0, %v1548
        %v1550 = vpop.f32.mrb[0].mxu0
        %v1551 = vpop.f32.mrb[0].mxu0
        %v1552 = vadd.f32 0.0, %v1551
        %v1553 = vpop.f32.mrb[0].mxu0
        %1554 = vmatprep.mubr.bf16.mxu0 0
        %1555 = vmatmul.mubr.bf16.gmra.mrb[0].mxu0 %v1296
        %v1556 = vpop.f32.mrb[0].mxu0
        %v1557 = vadd.f32 0.0, %v1556
        %v1558 = vpop.f32.mrb[0].mxu0
        %v1559 = vpop.f32.mrb[0].mxu0
        %v1560 = vadd.f32 0.0, %v1559
        %v1561 = vpop.f32.mrb[0].mxu0
        %1562 = vmatprep.mubr.bf16.mxu0 0
        %1563 = vmatmul.mubr.bf16.gmra.mrb[0].mxu0 %v1299
        %v1564 = vpop.f32.mrb[0].mxu0
        %v1565 = vadd.f32 0.0, %v1564
        %v1566 = vpop.f32.mrb[0].mxu0
        %v1567 = vpop.f32.mrb[0].mxu0
        %v1568 = vadd.f32 0.0, %v1567
        %v1569 = vpop.f32.mrb[0].mxu0
        %1570 = vmatprep.mubr.bf16.mxu0 0
        %1571 = vmatmul.mubr.bf16.gmra.mrb[0].mxu0 %v1302
        %v1572 = vpop.f32.mrb[0].mxu0
        %v1573 = vadd.f32 0.0, %v1572
        %v1574 = vpop.f32.mrb[0].mxu0
        %v1575 = vpop.f32.mrb[0].mxu0
        %v1576 = vadd.f32 0.0, %v1575
        %v1577 = vpop.f32.mrb[0].mxu0
        %1578 = vmatprep.mubr.bf16.mxu0 0
        %1579 = vmatmul.mubr.bf16.gmra.mrb[0].mxu0 %v1305
        %v1580 = vpop.f32.mrb[0].mxu0
        %v1581 = vadd.f32 0.0, %v1580
        %v1582 = vpop.f32.mrb[0].mxu0
        %v1583 = vpop.f32.mrb[0].mxu0
        %v1584 = vadd.f32 0.0, %v1583
        %v1585 = vpop.f32.mrb[0].mxu0
        %1586 = vmatprep.mubr.bf16.mxu0 0
        %1587 = vmatmul.mubr.bf16.gmra.mrb[0].mxu0 %v1308
        %v1588 = vpop.f32.mrb[0].mxu0
        %v1589 = vadd.f32 0.0, %v1588
        %v1590 = vpop.f32.mrb[0].mxu0
        %v1591 = vpop.f32.mrb[0].mxu0
        %v1592 = vadd.f32 0.0, %v1591
        %v1593 = vpop.f32.mrb[0].mxu0
        %1594 = vmatprep.mubr.bf16.mxu0 0
        %1595 = vmatmul.mubr.bf16.gmra.mrb[0].mxu0 %v1311
        %v1596 = vpop.f32.mrb[0].mxu0
        %v1597 = vadd.f32 0.0, %v1596
        %v1598 = vpop.f32.mrb[0].mxu0
        %v1599 = vpop.f32.mrb[0].mxu0
        %v1600 = vadd.f32 0.0, %v1599
        %v1601 = vpop.f32.mrb[0].mxu0
        %1602 = vmatprep.mubr.bf16.mxu0 0
        %1603 = vmatmul.mubr.bf16.gmra.mrb[0].mxu0 %v1314
        %v1604 = vpop.f32.mrb[0].mxu0
        %v1605 = vadd.f32 0.0, %v1604
        %v1606 = vpop.f32.mrb[0].mxu0
        %v1607 = vpop.f32.mrb[0].mxu0
        %v1608 = vadd.f32 0.0, %v1607
        %v1609 = vpop.f32.mrb[0].mxu0
        %1610 = vmatprep.mubr.bf16.mxu0 0
        %1611 = vmatmul.mubr.bf16.gmra.mrb[0].mxu0 %v1317
        %v1612 = vpop.f32.mrb[0].mxu0
        %v1613 = vadd.f32 0.0, %v1612
        %v1614 = vpop.f32.mrb[0].mxu0
        %v1615 = vpop.f32.mrb[0].mxu0
        %v1616 = vadd.f32 0.0, %v1615
        %v1617 = vpop.f32.mrb[0].mxu0
        %1618 = vmatprep.mubr.bf16.mxu0 0
        %1619 = vmatmul.mubr.bf16.gmra.mrb[0].mxu0 %v1320
        %v1620 = vpop.f32.mrb[0].mxu0
        %v1621 = vadd.f32 0.0, %v1620
        %v1622 = vpop.f32.mrb[0].mxu0
        %v1623 = vpop.f32.mrb[0].mxu0
        %v1624 = vadd.f32 0.0, %v1623
        %v1625 = vpop.f32.mrb[0].mxu0
        %1626 = vmatprep.mubr.bf16.mxu0 0
        %1627 = vmatmul.mubr.bf16.gmra.mrb[0].mxu0 %v1323
        %v1628 = vpop.f32.mrb[0].mxu0
        %v1629 = vadd.f32 0.0, %v1628
        %v1630 = vpop.f32.mrb[0].mxu0
        %v1631 = vpop.f32.mrb[0].mxu0
        %v1632 = vadd.f32 0.0, %v1631
        %v1633 = vpop.f32.mrb[0].mxu0
        %1634 = vmatprep.mubr.bf16.mxu0 0
        %1635 = vmatmul.mubr.bf16.gmra.mrb[0].mxu0 %v1326
        %v1636 = vpop.f32.mrb[0].mxu0
        %v1637 = vadd.f32 0.0, %v1636
        %v1638 = vpop.f32.mrb[0].mxu0
        %v1639 = vpop.f32.mrb[0].mxu0
        %v1640 = vadd.f32 0.0, %v1639
        %v1641 = vpop.f32.mrb[0].mxu0
        %1642 = vmatprep.mubr.bf16.mxu0 0
        %1643 = vmatmul.mubr.bf16.gmra.mrb[0].mxu0 %v1329
        %v1644 = vpop.f32.mrb[0].mxu0
        %v1645 = vadd.f32 0.0, %v1644
        %v1646 = vpop.f32.mrb[0].mxu0
        %v1647 = vpop.f32.mrb[0].mxu0
        %v1648 = vadd.f32 0.0, %v1647
        %v1649 = vpop.f32.mrb[0].mxu0
        %1650 = vmatprep.mubr.bf16.mxu0 0
        %1651 = vmatmul.mubr.bf16.gmra.mrb[0].mxu0 %v1332
        %v1652 = vpop.f32.mrb[0].mxu0
        %v1653 = vadd.f32 0.0, %v1652
        %v1654 = vpop.f32.mrb[0].mxu0
        %v1655 = vpop.f32.mrb[0].mxu0
        %v1656 = vadd.f32 0.0, %v1655
        %v1657 = vpop.f32.mrb[0].mxu0
        %1658 = vmatprep.mubr.bf16.mxu0 0
        %1659 = vmatmul.mubr.bf16.gmra.mrb[0].mxu0 %v1335
        %v1660 = vpop.f32.mrb[0].mxu0
        %v1661 = vadd.f32 0.0, %v1660
        %v1662 = vpop.f32.mrb[0].mxu0
        %v1663 = vpop.f32.mrb[0].mxu0
        %v1664 = vadd.f32 0.0, %v1663
        %v1665 = vpop.f32.mrb[0].mxu0
        %1666 = vmatprep.mubr.bf16.mxu0 0
        %1667 = vmatmul.mubr.bf16.gmra.mrb[0].mxu0 %v1338
        %v1668 = vpop.f32.mrb[0].mxu0
        %v1669 = vadd.f32 0.0, %v1668
        %v1670 = vpop.f32.mrb[0].mxu0
        %v1671 = vpop.f32.mrb[0].mxu0
        %v1672 = vadd.f32 0.0, %v1671
        %v1673 = vpop.f32.mrb[0].mxu0
        %1674 = vmatprep.mubr.bf16.mxu0 0
        %1675 = vmatmul.mubr.bf16.gmra.mrb[0].mxu0 %v1341
        %v1676 = vpop.f32.mrb[0].mxu0
        %v1677 = vadd.f32 0.0, %v1676
        %v1678 = vpop.f32.mrb[0].mxu0
        %v1679 = vpop.f32.mrb[0].mxu0
        %v1680 = vadd.f32 0.0, %v1679
        %v1681 = vpop.f32.mrb[0].mxu0
        %1682 = vmatprep.mubr.bf16.mxu0 0
        %1683 = vmatmul.mubr.bf16.gmra.mrb[0].mxu0 %v1344
        %v1684 = vpop.f32.mrb[0].mxu0
        %v1685 = vadd.f32 0.0, %v1684
        %v1686 = vpop.f32.mrb[0].mxu0
        %v1687 = vpop.f32.mrb[0].mxu0
        %v1688 = vadd.f32 0.0, %v1687
        %v1689 = vpop.f32.mrb[0].mxu0
        %1690 = vmatprep.mubr.bf16.mxu0 0
        %1691 = vmatmul.mubr.bf16.gmra.mrb[0].mxu0 %v1347
        %v1692 = vpop.f32.mrb[0].mxu0
        %v1693 = vadd.f32 0.0, %v1692
        %v1694 = vpop.f32.mrb[0].mxu0
        %v1695 = vpop.f32.mrb[0].mxu0
        %v1696 = vadd.f32 0.0, %v1695
        %v1697 = vpop.f32.mrb[0].mxu0
        %1698 = vmatprep.mubr.bf16.mxu0 0
        %1699 = vmatmul.mubr.bf16.gmra.mrb[0].mxu0 %v1350
        %v1700 = vpop.f32.mrb[0].mxu0
        %v1701 = vadd.f32 0.0, %v1700
        %v1702 = vpop.f32.mrb[0].mxu0
        %v1703 = vpop.f32.mrb[0].mxu0
        %v1704 = vadd.f32 0.0, %v1703
        %v1705 = vpop.f32.mrb[0].mxu0
        %1706 = vmatprep.mubr.bf16.mxu0 0
        %1707 = vmatmul.mubr.bf16.gmra.mrb[0].mxu0 %v1353
        %v1708 = vpop.f32.mrb[0].mxu0
        %v1709 = vadd.f32 0.0, %v1708
        %v1710 = vpop.f32.mrb[0].mxu0
        %v1711 = vpop.f32.mrb[0].mxu0
        %v1712 = vadd.f32 0.0, %v1711
        %v1713 = vpop.f32.mrb[0].mxu0
        %1714 = vmatprep.mubr.bf16.mxu0 0
        %1715 = vmatmul.mubr.bf16.gmra.mrb[0].mxu0 %v1356
        %v1716 = vpop.f32.mrb[0].mxu0
        %v1717 = vadd.f32 0.0, %v1716
        %v1718 = vpop.f32.mrb[0].mxu0
        %v1719 = vpop.f32.mrb[0].mxu0
        %v1720 = vadd.f32 0.0, %v1719
        %v1721 = vpop.f32.mrb[0].mxu0
        %1722 = vmatprep.mubr.bf16.mxu0 0
        %1723 = vmatmul.mubr.bf16.gmra.mrb[0].mxu0 %v1359
        %v1724 = vpop.f32.mrb[0].mxu0
        %v1725 = vadd.f32 0.0, %v1724
        %v1726 = vpop.f32.mrb[0].mxu0
        %v1727 = vpop.f32.mrb[0].mxu0
        %v1728 = vadd.f32 0.0, %v1727
        %v1729 = vpop.f32.mrb[0].mxu0
        %1730 = vmatprep.mubr.bf16.mxu0 0
        %1731 = vmatmul.mubr.bf16.gmra.mrb[0].mxu0 %v1362
        %v1732 = vpop.f32.mrb[0].mxu0
        %v1733 = vadd.f32 0.0, %v1732
        %v1734 = vpop.f32.mrb[0].mxu0
        %v1735 = vpop.f32.mrb[0].mxu0
        %v1736 = vadd.f32 0.0, %v1735
        %v1737 = vpop.f32.mrb[0].mxu0
        %1738 = vmatprep.mubr.bf16.mxu0 0
        %1739 = vmatmul.mubr.bf16.gmra.mrb[0].mxu0 %v1365
        %v1740 = vpop.f32.mrb[0].mxu0
        %v1741 = vadd.f32 0.0, %v1740
        %v1742 = vpop.f32.mrb[0].mxu0
        %v1743 = vpop.f32.mrb[0].mxu0
        %v1744 = vadd.f32 0.0, %v1743
        %v1745 = vpop.f32.mrb[0].mxu0
        %1746 = vmatprep.mubr.bf16.mxu0 0
        %1747 = vmatmul.mubr.bf16.gmra.mrb[0].mxu0 %v1368
        %v1748 = vpop.f32.mrb[0].mxu0
        %v1749 = vadd.f32 0.0, %v1748
        %v1750 = vpop.f32.mrb[0].mxu0
        %v1751 = vpop.f32.mrb[0].mxu0
        %v1752 = vadd.f32 0.0, %v1751
        %v1753 = vpop.f32.mrb[0].mxu0
        %1754 = vmatprep.mubr.bf16.mxu0 0
        %1755 = vmatmul.mubr.bf16.gmra.mrb[0].mxu0 %v1371
        %v1756 = vpop.f32.mrb[0].mxu0
        %v1757 = vadd.f32 0.0, %v1756
        %v1758 = vpop.f32.mrb[0].mxu0
        %v1759 = vpop.f32.mrb[0].mxu0
        %v1760 = vadd.f32 0.0, %v1759
        %v1761 = vpop.f32.mrb[0].mxu0
        %1762 = vmatprep.mubr.bf16.mxu0 0
        %1763 = vmatmul.mubr.bf16.gmra.mrb[0].mxu0 %v1374
        %v1764 = vpop.f32.mrb[0].mxu0
        %v1765 = vadd.f32 0.0, %v1764
        %v1766 = vpop.f32.mrb[0].mxu0
        %v1767 = vpop.f32.mrb[0].mxu0
        %v1768 = vadd.f32 0.0, %v1767
        %v1769 = vpop.f32.mrb[0].mxu0
        %1770 = vmatprep.mubr.bf16.mxu0 0
        %1771 = vmatmul.mubr.bf16.gmra.mrb[0].mxu0 %v1377
        %v1772 = vpop.f32.mrb[0].mxu0
        %v1773 = vadd.f32 0.0, %v1772
        %v1774 = vpop.f32.mrb[0].mxu0
        %v1775 = vpop.f32.mrb[0].mxu0
        %v1776 = vadd.f32 0.0, %v1775
        %v1777 = vpop.f32.mrb[0].mxu0
        %1778 = vmatprep.mubr.bf16.mxu0 0
        %1779 = vmatmul.mubr.bf16.gmra.mrb[0].mxu0 %v1380
        %v1780 = vpop.f32.mrb[0].mxu0
        %v1781 = vadd.f32 0.0, %v1780
        %v1782 = vpop.f32.mrb[0].mxu0
        %v1783 = vpop.f32.mrb[0].mxu0
        %v1784 = vadd.f32 0.0, %v1783
        %v1785 = vpop.f32.mrb[0].mxu0
        %1786 = vmatprep.mubr.bf16.mxu0 0
        %1787 = vmatmul.mubr.bf16.gmra.mrb[0].mxu0 %v1383
        %v1788 = vpop.f32.mrb[0].mxu0
        %v1789 = vadd.f32 0.0, %v1788
        %v1790 = vpop.f32.mrb[0].mxu0
        %v1791 = vpop.f32.mrb[0].mxu0
        %v1792 = vadd.f32 0.0, %v1791
        %v1793 = vpop.f32.mrb[0].mxu0
        %1794 = vmatprep.mubr.bf16.mxu0 0
        %1795 = vmatmul.mubr.bf16.gmra.mrb[0].mxu0 %v1386
        %v1796 = vpop.f32.mrb[0].mxu0
        %v1797 = vadd.f32 0.0, %v1796
        %v1798 = vpop.f32.mrb[0].mxu0
        %v1799 = vpop.f32.mrb[0].mxu0
        %v1800 = vadd.f32 0.0, %v1799
        %v1801 = vpop.f32.mrb[0].mxu0
        %1802 = vmatprep.mubr.bf16.mxu0 0
        %1803 = vmatmul.mubr.bf16.gmra.mrb[0].mxu0 %v1389
        %v1804 = vpop.f32.mrb[0].mxu0
        %v1805 = vadd.f32 0.0, %v1804
        %v1806 = vpop.f32.mrb[0].mxu0
        %v1807 = vpop.f32.mrb[0].mxu0
        %v1808 = vadd.f32 0.0, %v1807
        %v1809 = vpop.f32.mrb[0].mxu0
        %1810 = vmatprep.mubr.bf16.mxu0 0
        %1811 = vmatmul.mubr.bf16.gmra.mrb[0].mxu0 %v1392
        %v1812 = vpop.f32.mrb[0].mxu0
        %v1813 = vadd.f32 0.0, %v1812
        %v1814 = vpop.f32.mrb[0].mxu0
        %v1815 = vpop.f32.mrb[0].mxu0
        %v1816 = vadd.f32 0.0, %v1815
        %v1817 = vpop.f32.mrb[0].mxu0
        %1818 = vmatprep.mubr.bf16.mxu0 0
        %1819 = vmatmul.mubr.bf16.gmra.mrb[0].mxu0 %v1395
        %v1820 = vpop.f32.mrb[0].mxu0
        %v1821 = vadd.f32 0.0, %v1820
        %v1822 = vpop.f32.mrb[0].mxu0
        %v1823 = vpop.f32.mrb[0].mxu0
        %v1824 = vadd.f32 0.0, %v1823
        %v1825 = vpop.f32.mrb[0].mxu0
        %1826 = vmatprep.mubr.bf16.mxu0 0
        %1827 = vmatmul.mubr.bf16.gmra.mrb[0].mxu0 %v1398
        %v1828 = vpop.f32.mrb[0].mxu0
        %v1829 = vadd.f32 0.0, %v1828
        %v1830 = vpop.f32.mrb[0].mxu0
        %v1831 = vpop.f32.mrb[0].mxu0
        %v1832 = vadd.f32 0.0, %v1831
        %v1833 = vpop.f32.mrb[0].mxu0
        %1834 = vmatprep.mubr.bf16.mxu0 0
        %1835 = vmatmul.mubr.bf16.gmra.mrb[0].mxu0 %v1401
        %v1836 = vpop.f32.mrb[0].mxu0
        %v1837 = vadd.f32 0.0, %v1836
        %v1838 = vpop.f32.mrb[0].mxu0
        %v1839 = vpop.f32.mrb[0].mxu0
        %v1840 = vadd.f32 0.0, %v1839
        %v1841 = vpop.f32.mrb[0].mxu0
        %1842 = vmatprep.mubr.bf16.mxu0 0
        %1843 = vmatmul.mubr.bf16.gmra.mrb[0].mxu0 %v1404
        %v1844 = vpop.f32.mrb[0].mxu0
        %v1845 = vadd.f32 0.0, %v1844
        %v1846 = vpop.f32.mrb[0].mxu0
        %v1847 = vpop.f32.mrb[0].mxu0
        %v1848 = vadd.f32 0.0, %v1847
        %v1849 = vpop.f32.mrb[0].mxu0
        %1850 = vmatprep.mubr.bf16.mxu0 0
        %1851 = vmatmul.mubr.bf16.gmra.mrb[0].mxu0 %v1407
        %v1852 = vpop.f32.mrb[0].mxu0
        %v1853 = vadd.f32 0.0, %v1852
        %v1854 = vpop.f32.mrb[0].mxu0
        %v1855 = vpop.f32.mrb[0].mxu0
        %v1856 = vadd.f32 0.0, %v1855
        %v1857 = vpop.f32.mrb[0].mxu0
        %1858 = vmatprep.mubr.bf16.mxu0 0
        %1859 = vmatmul.mubr.bf16.gmra.mrb[0].mxu0 %v1410
        %v1860 = vpop.f32.mrb[0].mxu0
        %v1861 = vadd.f32 0.0, %v1860
        %v1862 = vpop.f32.mrb[0].mxu0
        %v1863 = vpop.f32.mrb[0].mxu0
        %v1864 = vadd.f32 0.0, %v1863
        %v1865 = vpop.f32.mrb[0].mxu0
        %1866 = vmatprep.mubr.bf16.mxu0 0
        %1867 = vmatmul.mubr.bf16.gmra.mrb[0].mxu0 %v1413
        %v1868 = vpop.f32.mrb[0].mxu0
        %v1869 = vadd.f32 0.0, %v1868
        %v1870 = vpop.f32.mrb[0].mxu0
        %v1871 = vpop.f32.mrb[0].mxu0
        %v1872 = vadd.f32 0.0, %v1871
        %v1873 = vpop.f32.mrb[0].mxu0
        %1874 = vmatprep.mubr.bf16.mxu0 0
        %1875 = vmatmul.mubr.bf16.gmra.mrb[0].mxu0 %v1416
        %v1876 = vpop.f32.mrb[0].mxu0
        %v1877 = vadd.f32 0.0, %v1876
        %v1878 = vpop.f32.mrb[0].mxu0
        %v1879 = vpop.f32.mrb[0].mxu0
        %v1880 = vadd.f32 0.0, %v1879
        %v1881 = vpop.f32.mrb[0].mxu0
        %1882 = vmatprep.mubr.bf16.mxu0 0
        %1883 = vmatmul.mubr.bf16.gmra.mrb[0].mxu0 %v1419
        %v1884 = vpop.f32.mrb[0].mxu0
        %v1885 = vadd.f32 0.0, %v1884
        %v1886 = vpop.f32.mrb[0].mxu0
        %v1887 = vpop.f32.mrb[0].mxu0
        %v1888 = vadd.f32 0.0, %v1887
        %v1889 = vpop.f32.mrb[0].mxu0
        %1890 = vmatprep.mubr.bf16.mxu0 0
        %1891 = vmatmul.mubr.bf16.gmra.mrb[0].mxu0 %v1422
        %v1892 = vpop.f32.mrb[0].mxu0
        %v1893 = vadd.f32 0.0, %v1892
        %v1894 = vpop.f32.mrb[0].mxu0
        %v1895 = vpop.f32.mrb[0].mxu0
        %v1896 = vadd.f32 0.0, %v1895
        %v1897 = vpop.f32.mrb[0].mxu0
        %1898 = vmatprep.mubr.bf16.mxu0 0
        %1899 = vmatmul.mubr.bf16.gmra.mrb[0].mxu0 %v1425
        %v1900 = vpop.f32.mrb[0].mxu0
        %v1901 = vadd.f32 0.0, %v1900
        %v1902 = vpop.f32.mrb[0].mxu0
        %v1903 = vpop.f32.mrb[0].mxu0
        %v1904 = vadd.f32 0.0, %v1903
        %v1905 = vpop.f32.mrb[0].mxu0
        %1906 = vmatprep.mubr.bf16.mxu0 0
        %1907 = vmatmul.mubr.bf16.gmra.mrb[0].mxu0 %v1428
        %v1908 = vpop.f32.mrb[0].mxu0
        %v1909 = vadd.f32 0.0, %v1908
        %v1910 = vpop.f32.mrb[0].mxu0
        %v1911 = vpop.f32.mrb[0].mxu0
        %v1912 = vadd.f32 0.0, %v1911
        %v1913 = vpop.f32.mrb[0].mxu0
        %1914 = vmatprep.mubr.bf16.mxu0 0
        %1915 = vmatmul.mubr.bf16.gmra.mrb[0].mxu0 %v1431
        %v1916 = vpop.f32.mrb[0].mxu0
        %v1917 = vadd.f32 0.0, %v1916
        %v1918 = vpop.f32.mrb[0].mxu0
        %v1919 = vpop.f32.mrb[0].mxu0
        %v1920 = vadd.f32 0.0, %v1919
        %v1921 = vpop.f32.mrb[0].mxu0
        %1922 = vmatprep.mubr.bf16.mxu0 0
        %1923 = vmatmul.mubr.bf16.gmra.mrb[0].mxu0 %v1434
        %v1924 = vpop.f32.mrb[0].mxu0
        %v1925 = vadd.f32 0.0, %v1924
        %v1926 = vpop.f32.mrb[0].mxu0
        %v1927 = vpop.f32.mrb[0].mxu0
        %v1928 = vadd.f32 0.0, %v1927
        %v1929 = vpop.f32.mrb[0].mxu0
        %1930 = vmatprep.mubr.bf16.mxu0 0
        %1931 = vmatmul.mubr.bf16.gmra.mrb[0].mxu0 %v1437
        %v1932 = vpop.f32.mrb[0].mxu0
        %v1933 = vadd.f32 0.0, %v1932
        %v1934 = vpop.f32.mrb[0].mxu0
        %v1935 = vpop.f32.mrb[0].mxu0
        %v1936 = vadd.f32 0.0, %v1935
        %v1937 = vpop.f32.mrb[0].mxu0
        %1938 = vmatprep.mubr.bf16.mxu0 0
        %1939 = vmatmul.mubr.bf16.gmra.mrb[0].mxu0 %v1440
        %v1940 = vpop.f32.mrb[0].mxu0
        %v1941 = vadd.f32 0.0, %v1940
        %v1942 = vpop.f32.mrb[0].mxu0
        %v1943 = vpop.f32.mrb[0].mxu0
        %v1944 = vadd.f32 0.0, %v1943
        %v1945 = vpop.f32.mrb[0].mxu0
        %1946 = vmatprep.mubr.bf16.mxu0 0
        %1947 = vmatmul.mubr.bf16.gmra.mrb[0].mxu0 %v1443
        %v1948 = vpop.f32.mrb[0].mxu0
        %v1949 = vadd.f32 0.0, %v1948
        %v1950 = vpop.f32.mrb[0].mxu0
        %v1951 = vpop.f32.mrb[0].mxu0
        %v1952 = vadd.f32 0.0, %v1951
        %v1953 = vpop.f32.mrb[0].mxu0
        %1954 = vmatprep.mubr.bf16.mxu0 0
        %1955 = vmatmul.mubr.bf16.gmra.mrb[0].mxu0 %v1446
        %v1956 = vpop.f32.mrb[0].mxu0
        %v1957 = vadd.f32 0.0, %v1956
        %v1958 = vpop.f32.mrb[0].mxu0
        %v1959 = vpop.f32.mrb[0].mxu0
        %v1960 = vadd.f32 0.0, %v1959
        %v1961 = vpop.f32.mrb[0].mxu0
        %1962 = vmatprep.mubr.bf16.mxu0 0
        %1963 = vmatmul.mubr.bf16.gmra.mrb[0].mxu0 %v1449
        %v1964 = vpop.f32.mrb[0].mxu0
        %v1965 = vadd.f32 0.0, %v1964
        %v1966 = vpop.f32.mrb[0].mxu0
        %v1967 = vpop.f32.mrb[0].mxu0
        %v1968 = vadd.f32 0.0, %v1967
        %v1969 = vpop.f32.mrb[0].mxu0
        %1970 = vmatprep.mubr.bf16.mxu0 0
        %1971 = vmatmul.mubr.bf16.gmra.mrb[0].mxu0 %v1452
        %v1972 = vpop.f32.mrb[0].mxu0
        %v1973 = vadd.f32 0.0, %v1972
        %v1974 = vpop.f32.mrb[0].mxu0
        %v1975 = vpop.f32.mrb[0].mxu0
        %v1976 = vadd.f32 0.0, %v1975
        %v1977 = vpop.f32.mrb[0].mxu0
        %1978 = vmatprep.mubr.bf16.mxu0 0
        %1979 = vmatmul.mubr.bf16.gmra.mrb[0].mxu0 %v1455
        %v1980 = vpop.f32.mrb[0].mxu0
        %v1981 = vadd.f32 0.0, %v1980
        %v1982 = vpop.f32.mrb[0].mxu0
        %v1983 = vpop.f32.mrb[0].mxu0
        %v1984 = vadd.f32 0.0, %v1983
        %v1985 = vpop.f32.mrb[0].mxu0
        %1986 = vmatprep.mubr.bf16.mxu0 0
        %1987 = vmatmul.mubr.bf16.gmra.mrb[0].mxu0 %v1458
        %v1988 = vpop.f32.mrb[0].mxu0
        %v1989 = vadd.f32 0.0, %v1988
        %v1990 = vpop.f32.mrb[0].mxu0
        %v1991 = vpop.f32.mrb[0].mxu0
        %v1992 = vadd.f32 0.0, %v1991
        %v1993 = vpop.f32.mrb[0].mxu0
        %1994 = vmatprep.mubr.bf16.mxu0 0
        %1995 = vmatmul.mubr.bf16.gmra.mrb[0].mxu0 %v1461
        %v1996 = vpop.f32.mrb[0].mxu0
        %v1997 = vadd.f32 0.0, %v1996
        %v1998 = vpop.f32.mrb[0].mxu0
        %v1999 = vpop.f32.mrb[0].mxu0
        %v2000 = vadd.f32 0.0, %v1999
        %v2001 = vpop.f32.mrb[0].mxu0
        %2002 = vmatprep.mubr.bf16.mxu0 0
        %2003 = vmatmul.mubr.bf16.gmra.mrb[0].mxu0 %v1464
        %v2004 = vpop.f32.mrb[0].mxu0
        %v2005 = vadd.f32 0.0, %v2004
        %v2006 = vpop.f32.mrb[0].mxu0
        %v2007 = vpop.f32.mrb[0].mxu0
        %v2008 = vadd.f32 0.0, %v2007
        %v2009 = vpop.f32.mrb[0].mxu0
        %2010 = vdwg.mxu0
        %v2139 = vunpack.c.l.b16 %v655
        %v2140 = vunpack.c.l.b16 %v656
        %v2141 = vunpack.c.l.b16 %v657
        %v2142 = vunpack.c.l.b16 %v658
        %v2143 = vunpack.c.l.b16 %v659
        %v2144 = vunpack.c.l.b16 %v660
        %v2145 = vunpack.c.l.b16 %v661
        %v2146 = vunpack.c.l.b16 %v662
        %v2147 = vunpack.c.l.b16 %v663
        %v2148 = vunpack.c.l.b16 %v664
        %v2149 = vunpack.c.l.b16 %v665
        %v2150 = vunpack.c.l.b16 %v666
        %v2151 = vunpack.c.l.b16 %v667
        %v2152 = vunpack.c.l.b16 %v668
        %v2153 = vunpack.c.l.b16 %v669
        %v2154 = vunpack.c.l.b16 %v670
        %v2155 = vunpack.c.l.b16 %v671
        %v2156 = vunpack.c.l.b16 %v672
        %v2157 = vunpack.c.l.b16 %v673
        %v2158 = vunpack.c.l.b16 %v674
        %v2159 = vunpack.c.l.b16 %v675
        %v2160 = vunpack.c.l.b16 %v676
        %v2161 = vunpack.c.l.b16 %v677
        %v2162 = vunpack.c.l.b16 %v678
        %v2163 = vunpack.c.l.b16 %v679
        %v2164 = vunpack.c.l.b16 %v680
        %v2165 = vunpack.c.l.b16 %v681
        %v2166 = vunpack.c.l.b16 %v682
        %v2167 = vunpack.c.l.b16 %v683
        %v2168 = vunpack.c.l.b16 %v684
        %v2169 = vunpack.c.l.b16 %v685
        %v2170 = vunpack.c.l.b16 %v686
        %v2171 = vunpack.c.l.b16 %v687
        %v2172 = vunpack.c.l.b16 %v688
        %v2173 = vunpack.c.l.b16 %v689
        %v2174 = vunpack.c.l.b16 %v690
        %v2175 = vunpack.c.l.b16 %v691
        %v2176 = vunpack.c.l.b16 %v692
        %v2177 = vunpack.c.l.b16 %v693
        %v2178 = vunpack.c.l.b16 %v694
        %v2179 = vunpack.c.l.b16 %v695
        %v2180 = vunpack.c.l.b16 %v696
        %v2181 = vunpack.c.l.b16 %v697
        %v2182 = vunpack.c.l.b16 %v698
        %v2183 = vunpack.c.l.b16 %v699
        %v2184 = vunpack.c.l.b16 %v700
        %v2185 = vunpack.c.l.b16 %v701
        %v2186 = vunpack.c.l.b16 %v702
        %v2187 = vunpack.c.l.b16 %v703
        %v2188 = vunpack.c.l.b16 %v704
        %v2189 = vunpack.c.l.b16 %v705
        %v2190 = vunpack.c.l.b16 %v706
        %v2191 = vunpack.c.l.b16 %v707
        %v2192 = vunpack.c.l.b16 %v708
        %v2193 = vunpack.c.l.b16 %v709
        %v2194 = vunpack.c.l.b16 %v710
        %v2195 = vunpack.c.l.b16 %v711
        %v2196 = vunpack.c.l.b16 %v712
        %v2197 = vunpack.c.l.b16 %v713
        %v2198 = vunpack.c.l.b16 %v714
        %v2199 = vunpack.c.l.b16 %v715
        %v2200 = vunpack.c.l.b16 %v716
        %v2201 = vunpack.c.l.b16 %v717
        %v2202 = vunpack.c.l.b16 %v718
        %v2203 = vunpack.c.l.b16 %v719
        %v2204 = vunpack.c.l.b16 %v720
        %v2205 = vunpack.c.l.b16 %v721
        %v2206 = vunpack.c.l.b16 %v722
        %v2207 = vunpack.c.l.b16 %v723
        %v2208 = vunpack.c.l.b16 %v724
        %v2209 = vunpack.c.l.b16 %v725
        %v2210 = vunpack.c.l.b16 %v726
        %v2211 = vunpack.c.l.b16 %v727
        %v2212 = vunpack.c.l.b16 %v728
        %v2213 = vunpack.c.l.b16 %v729
        %v2214 = vunpack.c.l.b16 %v730
        %v2215 = vunpack.c.l.b16 %v731
        %v2216 = vunpack.c.l.b16 %v732
        %v2217 = vunpack.c.l.b16 %v733
        %v2218 = vunpack.c.l.b16 %v734
        %v2219 = vunpack.c.l.b16 %v735
        %v2220 = vunpack.c.l.b16 %v736
        %v2221 = vunpack.c.l.b16 %v737
        %v2222 = vunpack.c.l.b16 %v738
        %v2223 = vunpack.c.l.b16 %v739
        %v2224 = vunpack.c.l.b16 %v740
        %v2225 = vunpack.c.l.b16 %v741
        %v2226 = vunpack.c.l.b16 %v742
        %v2227 = vunpack.c.l.b16 %v743
        %v2228 = vunpack.c.l.b16 %v744
        %v2229 = vunpack.c.l.b16 %v745
        %v2230 = vunpack.c.l.b16 %v746
        %v2231 = vunpack.c.l.b16 %v747
        %v2232 = vunpack.c.l.b16 %v748
        %v2233 = vunpack.c.l.b16 %v749
        %v2234 = vunpack.c.l.b16 %v750
        %v2235 = vunpack.c.l.b16 %v751
        %v2236 = vunpack.c.l.b16 %v752
        %v2237 = vunpack.c.l.b16 %v753
        %v2238 = vunpack.c.l.b16 %v754
        %v2239 = vunpack.c.l.b16 %v755
        %v2240 = vunpack.c.l.b16 %v756
        %v2241 = vunpack.c.l.b16 %v757
        %v2242 = vunpack.c.l.b16 %v758
        %v2243 = vunpack.c.l.b16 %v759
        %v2244 = vunpack.c.l.b16 %v760
        %v2245 = vunpack.c.l.b16 %v761
        %v2246 = vunpack.c.l.b16 %v762
        %v2247 = vunpack.c.l.b16 %v763
        %v2248 = vunpack.c.l.b16 %v764
        %v2249 = vunpack.c.l.b16 %v765
        %v2250 = vunpack.c.l.b16 %v766
        %v2251 = vunpack.c.l.b16 %v767
        %v2252 = vunpack.c.l.b16 %v768
        %v2253 = vunpack.c.l.b16 %v769
        %v2254 = vunpack.c.l.b16 %v770
        %v2255 = vunpack.c.l.b16 %v771
        %v2256 = vunpack.c.l.b16 %v772
        %v2257 = vunpack.c.l.b16 %v773
        %v2258 = vunpack.c.l.b16 %v774
        %v2259 = vunpack.c.l.b16 %v775
        %v2260 = vunpack.c.l.b16 %v776
        %v2261 = vunpack.c.l.b16 %v777
        %v2262 = vunpack.c.l.b16 %v778
        %v2263 = vunpack.c.l.b16 %v779
        %v2264 = vunpack.c.l.b16 %v780
        %v2265 = vunpack.c.l.b16 %v781
        %v2266 = vunpack.c.l.b16 %v782
        %v2267 = vpack.c.b16 %v2140, %v2139
        %v2268 = vpack.c.b16 %v2142, %v2141
        %v2269 = vpack.c.b16 %v2144, %v2143
        %v2270 = vpack.c.b16 %v2146, %v2145
        %v2271 = vpack.c.b16 %v2148, %v2147
        %v2272 = vpack.c.b16 %v2150, %v2149
        %v2273 = vpack.c.b16 %v2152, %v2151
        %v2274 = vpack.c.b16 %v2154, %v2153
        %v2275 = vpack.c.b16 %v2156, %v2155
        %v2276 = vpack.c.b16 %v2158, %v2157
        %v2277 = vpack.c.b16 %v2160, %v2159
        %v2278 = vpack.c.b16 %v2162, %v2161
        %v2279 = vpack.c.b16 %v2164, %v2163
        %v2280 = vpack.c.b16 %v2166, %v2165
        %v2281 = vpack.c.b16 %v2168, %v2167
        %v2282 = vpack.c.b16 %v2170, %v2169
        %v2283 = vpack.c.b16 %v2172, %v2171
        %v2284 = vpack.c.b16 %v2174, %v2173
        %v2285 = vpack.c.b16 %v2176, %v2175
        %v2286 = vpack.c.b16 %v2178, %v2177
        %v2287 = vpack.c.b16 %v2180, %v2179
        %v2288 = vpack.c.b16 %v2182, %v2181
        %v2289 = vpack.c.b16 %v2184, %v2183
        %v2290 = vpack.c.b16 %v2186, %v2185
        %v2291 = vpack.c.b16 %v2188, %v2187
        %v2292 = vpack.c.b16 %v2190, %v2189
        %v2293 = vpack.c.b16 %v2192, %v2191
        %v2294 = vpack.c.b16 %v2194, %v2193
        %v2295 = vpack.c.b16 %v2196, %v2195
        %v2296 = vpack.c.b16 %v2198, %v2197
        %v2297 = vpack.c.b16 %v2200, %v2199
        %v2298 = vpack.c.b16 %v2202, %v2201
        %v2299 = vpack.c.b16 %v2204, %v2203
        %v2300 = vpack.c.b16 %v2206, %v2205
        %v2301 = vpack.c.b16 %v2208, %v2207
        %v2302 = vpack.c.b16 %v2210, %v2209
        %v2303 = vpack.c.b16 %v2212, %v2211
        %v2304 = vpack.c.b16 %v2214, %v2213
        %v2305 = vpack.c.b16 %v2216, %v2215
        %v2306 = vpack.c.b16 %v2218, %v2217
        %v2307 = vpack.c.b16 %v2220, %v2219
        %v2308 = vpack.c.b16 %v2222, %v2221
        %v2309 = vpack.c.b16 %v2224, %v2223
        %v2310 = vpack.c.b16 %v2226, %v2225
        %v2311 = vpack.c.b16 %v2228, %v2227
        %v2312 = vpack.c.b16 %v2230, %v2229
        %v2313 = vpack.c.b16 %v2232, %v2231
        %v2314 = vpack.c.b16 %v2234, %v2233
        %v2315 = vpack.c.b16 %v2236, %v2235
        %v2316 = vpack.c.b16 %v2238, %v2237
        %v2317 = vpack.c.b16 %v2240, %v2239
        %v2318 = vpack.c.b16 %v2242, %v2241
        %v2319 = vpack.c.b16 %v2244, %v2243
        %v2320 = vpack.c.b16 %v2246, %v2245
        %v2321 = vpack.c.b16 %v2248, %v2247
        %v2322 = vpack.c.b16 %v2250, %v2249
        %v2323 = vpack.c.b16 %v2252, %v2251
        %v2324 = vpack.c.b16 %v2254, %v2253
        %v2325 = vpack.c.b16 %v2256, %v2255
        %v2326 = vpack.c.b16 %v2258, %v2257
        %v2327 = vpack.c.b16 %v2260, %v2259
        %v2328 = vpack.c.b16 %v2262, %v2261
        %v2329 = vpack.c.b16 %v2264, %v2263
        %v2330 = vpack.c.b16 %v2266, %v2265
        %v2339 = vunpack.c.l.b16 %v783
        %v2340 = vunpack.c.l.b16 %v784
        %v2341 = vunpack.c.l.b16 %v785
        %v2342 = vunpack.c.l.b16 %v786
        %v2343 = vunpack.c.l.b16 %v787
        %v2344 = vunpack.c.l.b16 %v788
        %v2345 = vunpack.c.l.b16 %v789
        %v2346 = vunpack.c.l.b16 %v790
        %v2347 = vpack.c.b16 %v2340, %v2339
        %v2348 = vpack.c.b16 %v2342, %v2341
        %v2349 = vpack.c.b16 %v2344, %v2343
        %v2350 = vpack.c.b16 %v2346, %v2345
        %v2356 = vsel %vm1273, %v2267, 0
        %v2359 = vsel %vm1273, %v2268, 0
        %v2362 = vsel %vm1273, %v2269, 0
        %v2365 = vsel %vm1273, %v2270, 0
        %v2368 = vsel %vm1273, %v2271, 0
        %v2371 = vsel %vm1273, %v2272, 0
        %v2374 = vsel %vm1273, %v2273, 0
        %v2377 = vsel %vm1273, %v2274, 0
        %v2380 = vsel %vm1273, %v2275, 0
        %v2383 = vsel %vm1273, %v2276, 0
        %v2386 = vsel %vm1273, %v2277, 0
        %v2389 = vsel %vm1273, %v2278, 0
        %v2392 = vsel %vm1273, %v2279, 0
        %v2395 = vsel %vm1273, %v2280, 0
        %v2398 = vsel %vm1273, %v2281, 0
        %v2401 = vsel %vm1273, %v2282, 0
        %v2404 = vsel %vm1273, %v2283, 0
        %v2407 = vsel %vm1273, %v2284, 0
        %v2410 = vsel %vm1273, %v2285, 0
        %v2413 = vsel %vm1273, %v2286, 0
        %v2416 = vsel %vm1273, %v2287, 0
        %v2419 = vsel %vm1273, %v2288, 0
        %v2422 = vsel %vm1273, %v2289, 0
        %v2425 = vsel %vm1273, %v2290, 0
        %v2428 = vsel %vm1273, %v2291, 0
        %v2431 = vsel %vm1273, %v2292, 0
        %v2434 = vsel %vm1273, %v2293, 0
        %v2437 = vsel %vm1273, %v2294, 0
        %v2440 = vsel %vm1273, %v2295, 0
        %v2443 = vsel %vm1273, %v2296, 0
        %v2446 = vsel %vm1273, %v2297, 0
        %v2449 = vsel %vm1273, %v2298, 0
        %v2452 = vsel %vm1273, %v2299, 0
        %v2455 = vsel %vm1273, %v2300, 0
        %v2458 = vsel %vm1273, %v2301, 0
        %v2461 = vsel %vm1273, %v2302, 0
        %v2464 = vsel %vm1273, %v2303, 0
        %v2467 = vsel %vm1273, %v2304, 0
        %v2470 = vsel %vm1273, %v2305, 0
        %v2473 = vsel %vm1273, %v2306, 0
        %v2476 = vsel %vm1273, %v2307, 0
        %v2479 = vsel %vm1273, %v2308, 0
        %v2482 = vsel %vm1273, %v2309, 0
        %v2485 = vsel %vm1273, %v2310, 0
        %v2488 = vsel %vm1273, %v2311, 0
        %v2491 = vsel %vm1273, %v2312, 0
        %v2494 = vsel %vm1273, %v2313, 0
        %v2497 = vsel %vm1273, %v2314, 0
        %v2500 = vsel %vm1273, %v2315, 0
        %v2503 = vsel %vm1273, %v2316, 0
        %v2506 = vsel %vm1273, %v2317, 0
        %v2509 = vsel %vm1273, %v2318, 0
        %v2512 = vsel %vm1273, %v2319, 0
        %v2515 = vsel %vm1273, %v2320, 0
        %v2518 = vsel %vm1273, %v2321, 0
        %v2521 = vsel %vm1273, %v2322, 0
        %v2524 = vsel %vm1273, %v2323, 0
        %v2527 = vsel %vm1273, %v2324, 0
        %v2530 = vsel %vm1273, %v2325, 0
        %v2533 = vsel %vm1273, %v2326, 0
        %v2536 = vsel %vm1273, %v2327, 0
        %v2539 = vsel %vm1273, %v2328, 0
        %v2542 = vsel %vm1273, %v2329, 0
        %v2545 = vsel %vm1273, %v2330, 0
        %2547 = vmatprep.subr.bf16.mxu0 0
        %2548 = vmatpush1.bf16.msra.mxu0 %v2347
        %2549 = vmatprep.subr.bf16.mxu0 0
        %2550 = vmatpush1.bf16.msra.mxu0 %v2348
        %2551 = vmatprep.subr.bf16.mxu0 0
        %2552 = vmatpush1.bf16.msra.mxu0 %v2349
        %2553 = vmatprep.subr.bf16.mxu0 0
        %2554 = vmatpush1.bf16.msra.mxu0 %v2350
        %2555 = vmatprep.subr.bf16.mxu0 0
        %2556 = vmatpush1.bf16.msra.mxu0 0
        %2557 = vmatprep.subr.bf16.mxu0 0
        %2558 = vmatpush1.bf16.msra.mxu0 0
        %2559 = vmatprep.subr.bf16.mxu0 0
        %2560 = vmatpush1.bf16.msra.mxu0 0
        %2561 = vmatprep.subr.bf16.mxu0 0
        %2562 = vmatpush1.bf16.msra.mxu0 0
        %2563 = vmatprep.subr.bf16.mxu0 0
        %2564 = vmatpush1.bf16.msra.mxu0 0
        %2565 = vmatprep.subr.bf16.mxu0 0
        %2566 = vmatpush1.bf16.msra.mxu0 0
        %2567 = vmatprep.subr.bf16.mxu0 0
        %2568 = vmatpush1.bf16.msra.mxu0 0
        %2569 = vmatprep.subr.bf16.mxu0 0
        %2570 = vmatpush1.bf16.msra.mxu0 0
        %2571 = vmatprep.subr.bf16.mxu0 0
        %2572 = vmatpush1.bf16.msra.mxu0 0
        %2573 = vmatprep.subr.bf16.mxu0 0
        %2574 = vmatpush1.bf16.msra.mxu0 0
        %2575 = vmatprep.subr.bf16.mxu0 0
        %2576 = vmatpush1.bf16.msra.mxu0 0
        %2577 = vmatprep.subr.bf16.mxu0 0
        %2578 = vmatpush1.bf16.msra.mxu0 0
        %2579 = vmatprep.mubr.bf16.mxu0 0
        %2580 = vmatmul.mubr.bf16.gmra.mrb[0].mxu0 %v2356
        %v2581 = vpop.f32.mrb[0].mxu0
        %v2582 = vadd.f32 %v1501, %v2581
        %v2583 = vpop.f32.mrb[0].mxu0
        %v2584 = vpop.f32.mrb[0].mxu0
        %v2585 = vadd.f32 %v1504, %v2584
        %v2586 = vpop.f32.mrb[0].mxu0
        %2587 = vmatprep.mubr.bf16.mxu0 0
        %2588 = vmatmul.mubr.bf16.gmra.mrb[0].mxu0 %v2359
        %v2589 = vpop.f32.mrb[0].mxu0
        %v2590 = vadd.f32 %v1509, %v2589
        %v2591 = vpop.f32.mrb[0].mxu0
        %v2592 = vpop.f32.mrb[0].mxu0
        %v2593 = vadd.f32 %v1512, %v2592
        %v2594 = vpop.f32.mrb[0].mxu0
        %2595 = vmatprep.mubr.bf16.mxu0 0
        %2596 = vmatmul.mubr.bf16.gmra.mrb[0].mxu0 %v2362
        %v2597 = vpop.f32.mrb[0].mxu0
        %v2598 = vadd.f32 %v1517, %v2597
        %v2599 = vpop.f32.mrb[0].mxu0
        %v2600 = vpop.f32.mrb[0].mxu0
        %v2601 = vadd.f32 %v1520, %v2600
        %v2602 = vpop.f32.mrb[0].mxu0
        %2603 = vmatprep.mubr.bf16.mxu0 0
        %2604 = vmatmul.mubr.bf16.gmra.mrb[0].mxu0 %v2365
        %v2605 = vpop.f32.mrb[0].mxu0
        %v2606 = vadd.f32 %v1525, %v2605
        %v2607 = vpop.f32.mrb[0].mxu0
        %v2608 = vpop.f32.mrb[0].mxu0
        %v2609 = vadd.f32 %v1528, %v2608
        %v2610 = vpop.f32.mrb[0].mxu0
        %2611 = vmatprep.mubr.bf16.mxu0 0
        %2612 = vmatmul.mubr.bf16.gmra.mrb[0].mxu0 %v2368
        %v2613 = vpop.f32.mrb[0].mxu0
        %v2614 = vadd.f32 %v1533, %v2613
        %v2615 = vpop.f32.mrb[0].mxu0
        %v2616 = vpop.f32.mrb[0].mxu0
        %v2617 = vadd.f32 %v1536, %v2616
        %v2618 = vpop.f32.mrb[0].mxu0
        %2619 = vmatprep.mubr.bf16.mxu0 0
        %2620 = vmatmul.mubr.bf16.gmra.mrb[0].mxu0 %v2371
        %v2621 = vpop.f32.mrb[0].mxu0
        %v2622 = vadd.f32 %v1541, %v2621
        %v2623 = vpop.f32.mrb[0].mxu0
        %v2624 = vpop.f32.mrb[0].mxu0
        %v2625 = vadd.f32 %v1544, %v2624
        %v2626 = vpop.f32.mrb[0].mxu0
        %2627 = vmatprep.mubr.bf16.mxu0 0
        %2628 = vmatmul.mubr.bf16.gmra.mrb[0].mxu0 %v2374
        %v2629 = vpop.f32.mrb[0].mxu0
        %v2630 = vadd.f32 %v1549, %v2629
        %v2631 = vpop.f32.mrb[0].mxu0
        %v2632 = vpop.f32.mrb[0].mxu0
        %v2633 = vadd.f32 %v1552, %v2632
        %v2634 = vpop.f32.mrb[0].mxu0
        %2635 = vmatprep.mubr.bf16.mxu0 0
        %2636 = vmatmul.mubr.bf16.gmra.mrb[0].mxu0 %v2377
        %v2637 = vpop.f32.mrb[0].mxu0
        %v2638 = vadd.f32 %v1557, %v2637
        %v2639 = vpop.f32.mrb[0].mxu0
        %v2640 = vpop.f32.mrb[0].mxu0
        %v2641 = vadd.f32 %v1560, %v2640
        %v2642 = vpop.f32.mrb[0].mxu0
        %2643 = vmatprep.mubr.bf16.mxu0 0
        %2644 = vmatmul.mubr.bf16.gmra.mrb[0].mxu0 %v2380
        %v2645 = vpop.f32.mrb[0].mxu0
        %v2646 = vadd.f32 %v1565, %v2645
        %v2647 = vpop.f32.mrb[0].mxu0
        %v2648 = vpop.f32.mrb[0].mxu0
        %v2649 = vadd.f32 %v1568, %v2648
        %v2650 = vpop.f32.mrb[0].mxu0
        %2651 = vmatprep.mubr.bf16.mxu0 0
        %2652 = vmatmul.mubr.bf16.gmra.mrb[0].mxu0 %v2383
        %v2653 = vpop.f32.mrb[0].mxu0
        %v2654 = vadd.f32 %v1573, %v2653
        %v2655 = vpop.f32.mrb[0].mxu0
        %v2656 = vpop.f32.mrb[0].mxu0
        %v2657 = vadd.f32 %v1576, %v2656
        %v2658 = vpop.f32.mrb[0].mxu0
        %2659 = vmatprep.mubr.bf16.mxu0 0
        %2660 = vmatmul.mubr.bf16.gmra.mrb[0].mxu0 %v2386
        %v2661 = vpop.f32.mrb[0].mxu0
        %v2662 = vadd.f32 %v1581, %v2661
        %v2663 = vpop.f32.mrb[0].mxu0
        %v2664 = vpop.f32.mrb[0].mxu0
        %v2665 = vadd.f32 %v1584, %v2664
        %v2666 = vpop.f32.mrb[0].mxu0
        %2667 = vmatprep.mubr.bf16.mxu0 0
        %2668 = vmatmul.mubr.bf16.gmra.mrb[0].mxu0 %v2389
        %v2669 = vpop.f32.mrb[0].mxu0
        %v2670 = vadd.f32 %v1589, %v2669
        %v2671 = vpop.f32.mrb[0].mxu0
        %v2672 = vpop.f32.mrb[0].mxu0
        %v2673 = vadd.f32 %v1592, %v2672
        %v2674 = vpop.f32.mrb[0].mxu0
        %2675 = vmatprep.mubr.bf16.mxu0 0
        %2676 = vmatmul.mubr.bf16.gmra.mrb[0].mxu0 %v2392
        %v2677 = vpop.f32.mrb[0].mxu0
        %v2678 = vadd.f32 %v1597, %v2677
        %v2679 = vpop.f32.mrb[0].mxu0
        %v2680 = vpop.f32.mrb[0].mxu0
        %v2681 = vadd.f32 %v1600, %v2680
        %v2682 = vpop.f32.mrb[0].mxu0
        %2683 = vmatprep.mubr.bf16.mxu0 0
        %2684 = vmatmul.mubr.bf16.gmra.mrb[0].mxu0 %v2395
        %v2685 = vpop.f32.mrb[0].mxu0
        %v2686 = vadd.f32 %v1605, %v2685
        %v2687 = vpop.f32.mrb[0].mxu0
        %v2688 = vpop.f32.mrb[0].mxu0
        %v2689 = vadd.f32 %v1608, %v2688
        %v2690 = vpop.f32.mrb[0].mxu0
        %2691 = vmatprep.mubr.bf16.mxu0 0
        %2692 = vmatmul.mubr.bf16.gmra.mrb[0].mxu0 %v2398
        %v2693 = vpop.f32.mrb[0].mxu0
        %v2694 = vadd.f32 %v1613, %v2693
        %v2695 = vpop.f32.mrb[0].mxu0
        %v2696 = vpop.f32.mrb[0].mxu0
        %v2697 = vadd.f32 %v1616, %v2696
        %v2698 = vpop.f32.mrb[0].mxu0
        %2699 = vmatprep.mubr.bf16.mxu0 0
        %2700 = vmatmul.mubr.bf16.gmra.mrb[0].mxu0 %v2401
        %v2701 = vpop.f32.mrb[0].mxu0
        %v2702 = vadd.f32 %v1621, %v2701
        %v2703 = vpop.f32.mrb[0].mxu0
        %v2704 = vpop.f32.mrb[0].mxu0
        %v2705 = vadd.f32 %v1624, %v2704
        %v2706 = vpop.f32.mrb[0].mxu0
        %2707 = vmatprep.mubr.bf16.mxu0 0
        %2708 = vmatmul.mubr.bf16.gmra.mrb[0].mxu0 %v2404
        %v2709 = vpop.f32.mrb[0].mxu0
        %v2710 = vadd.f32 %v1629, %v2709
        %v2711 = vpop.f32.mrb[0].mxu0
        %v2712 = vpop.f32.mrb[0].mxu0
        %v2713 = vadd.f32 %v1632, %v2712
        %v2714 = vpop.f32.mrb[0].mxu0
        %2715 = vmatprep.mubr.bf16.mxu0 0
        %2716 = vmatmul.mubr.bf16.gmra.mrb[0].mxu0 %v2407
        %v2717 = vpop.f32.mrb[0].mxu0
        %v2718 = vadd.f32 %v1637, %v2717
        %v2719 = vpop.f32.mrb[0].mxu0
        %v2720 = vpop.f32.mrb[0].mxu0
        %v2721 = vadd.f32 %v1640, %v2720
        %v2722 = vpop.f32.mrb[0].mxu0
        %2723 = vmatprep.mubr.bf16.mxu0 0
        %2724 = vmatmul.mubr.bf16.gmra.mrb[0].mxu0 %v2410
        %v2725 = vpop.f32.mrb[0].mxu0
        %v2726 = vadd.f32 %v1645, %v2725
        %v2727 = vpop.f32.mrb[0].mxu0
        %v2728 = vpop.f32.mrb[0].mxu0
        %v2729 = vadd.f32 %v1648, %v2728
        %v2730 = vpop.f32.mrb[0].mxu0
        %2731 = vmatprep.mubr.bf16.mxu0 0
        %2732 = vmatmul.mubr.bf16.gmra.mrb[0].mxu0 %v2413
        %v2733 = vpop.f32.mrb[0].mxu0
        %v2734 = vadd.f32 %v1653, %v2733
        %v2735 = vpop.f32.mrb[0].mxu0
        %v2736 = vpop.f32.mrb[0].mxu0
        %v2737 = vadd.f32 %v1656, %v2736
        %v2738 = vpop.f32.mrb[0].mxu0
        %2739 = vmatprep.mubr.bf16.mxu0 0
        %2740 = vmatmul.mubr.bf16.gmra.mrb[0].mxu0 %v2416
        %v2741 = vpop.f32.mrb[0].mxu0
        %v2742 = vadd.f32 %v1661, %v2741
        %v2743 = vpop.f32.mrb[0].mxu0
        %v2744 = vpop.f32.mrb[0].mxu0
        %v2745 = vadd.f32 %v1664, %v2744
        %v2746 = vpop.f32.mrb[0].mxu0
        %2747 = vmatprep.mubr.bf16.mxu0 0
        %2748 = vmatmul.mubr.bf16.gmra.mrb[0].mxu0 %v2419
        %v2749 = vpop.f32.mrb[0].mxu0
        %v2750 = vadd.f32 %v1669, %v2749
        %v2751 = vpop.f32.mrb[0].mxu0
        %v2752 = vpop.f32.mrb[0].mxu0
        %v2753 = vadd.f32 %v1672, %v2752
        %v2754 = vpop.f32.mrb[0].mxu0
        %2755 = vmatprep.mubr.bf16.mxu0 0
        %2756 = vmatmul.mubr.bf16.gmra.mrb[0].mxu0 %v2422
        %v2757 = vpop.f32.mrb[0].mxu0
        %v2758 = vadd.f32 %v1677, %v2757
        %v2759 = vpop.f32.mrb[0].mxu0
        %v2760 = vpop.f32.mrb[0].mxu0
        %v2761 = vadd.f32 %v1680, %v2760
        %v2762 = vpop.f32.mrb[0].mxu0
        %2763 = vmatprep.mubr.bf16.mxu0 0
        %2764 = vmatmul.mubr.bf16.gmra.mrb[0].mxu0 %v2425
        %v2765 = vpop.f32.mrb[0].mxu0
        %v2766 = vadd.f32 %v1685, %v2765
        %v2767 = vpop.f32.mrb[0].mxu0
        %v2768 = vpop.f32.mrb[0].mxu0
        %v2769 = vadd.f32 %v1688, %v2768
        %v2770 = vpop.f32.mrb[0].mxu0
        %2771 = vmatprep.mubr.bf16.mxu0 0
        %2772 = vmatmul.mubr.bf16.gmra.mrb[0].mxu0 %v2428
        %v2773 = vpop.f32.mrb[0].mxu0
        %v2774 = vadd.f32 %v1693, %v2773
        %v2775 = vpop.f32.mrb[0].mxu0
        %v2776 = vpop.f32.mrb[0].mxu0
        %v2777 = vadd.f32 %v1696, %v2776
        %v2778 = vpop.f32.mrb[0].mxu0
        %2779 = vmatprep.mubr.bf16.mxu0 0
        %2780 = vmatmul.mubr.bf16.gmra.mrb[0].mxu0 %v2431
        %v2781 = vpop.f32.mrb[0].mxu0
        %v2782 = vadd.f32 %v1701, %v2781
        %v2783 = vpop.f32.mrb[0].mxu0
        %v2784 = vpop.f32.mrb[0].mxu0
        %v2785 = vadd.f32 %v1704, %v2784
        %v2786 = vpop.f32.mrb[0].mxu0
        %2787 = vmatprep.mubr.bf16.mxu0 0
        %2788 = vmatmul.mubr.bf16.gmra.mrb[0].mxu0 %v2434
        %v2789 = vpop.f32.mrb[0].mxu0
        %v2790 = vadd.f32 %v1709, %v2789
        %v2791 = vpop.f32.mrb[0].mxu0
        %v2792 = vpop.f32.mrb[0].mxu0
        %v2793 = vadd.f32 %v1712, %v2792
        %v2794 = vpop.f32.mrb[0].mxu0
        %2795 = vmatprep.mubr.bf16.mxu0 0
        %2796 = vmatmul.mubr.bf16.gmra.mrb[0].mxu0 %v2437
        %v2797 = vpop.f32.mrb[0].mxu0
        %v2798 = vadd.f32 %v1717, %v2797
        %v2799 = vpop.f32.mrb[0].mxu0
        %v2800 = vpop.f32.mrb[0].mxu0
        %v2801 = vadd.f32 %v1720, %v2800
        %v2802 = vpop.f32.mrb[0].mxu0
        %2803 = vmatprep.mubr.bf16.mxu0 0
        %2804 = vmatmul.mubr.bf16.gmra.mrb[0].mxu0 %v2440
        %v2805 = vpop.f32.mrb[0].mxu0
        %v2806 = vadd.f32 %v1725, %v2805
        %v2807 = vpop.f32.mrb[0].mxu0
        %v2808 = vpop.f32.mrb[0].mxu0
        %v2809 = vadd.f32 %v1728, %v2808
        %v2810 = vpop.f32.mrb[0].mxu0
        %2811 = vmatprep.mubr.bf16.mxu0 0
        %2812 = vmatmul.mubr.bf16.gmra.mrb[0].mxu0 %v2443
        %v2813 = vpop.f32.mrb[0].mxu0
        %v2814 = vadd.f32 %v1733, %v2813
        %v2815 = vpop.f32.mrb[0].mxu0
        %v2816 = vpop.f32.mrb[0].mxu0
        %v2817 = vadd.f32 %v1736, %v2816
        %v2818 = vpop.f32.mrb[0].mxu0
        %2819 = vmatprep.mubr.bf16.mxu0 0
        %2820 = vmatmul.mubr.bf16.gmra.mrb[0].mxu0 %v2446
        %v2821 = vpop.f32.mrb[0].mxu0
        %v2822 = vadd.f32 %v1741, %v2821
        %v2823 = vpop.f32.mrb[0].mxu0
        %v2824 = vpop.f32.mrb[0].mxu0
        %v2825 = vadd.f32 %v1744, %v2824
        %v2826 = vpop.f32.mrb[0].mxu0
        %2827 = vmatprep.mubr.bf16.mxu0 0
        %2828 = vmatmul.mubr.bf16.gmra.mrb[0].mxu0 %v2449
        %v2829 = vpop.f32.mrb[0].mxu0
        %v2830 = vadd.f32 %v1749, %v2829
        %v2831 = vpop.f32.mrb[0].mxu0
        %v2832 = vpop.f32.mrb[0].mxu0
        %v2833 = vadd.f32 %v1752, %v2832
        %v2834 = vpop.f32.mrb[0].mxu0
        %2835 = vmatprep.mubr.bf16.mxu0 0
        %2836 = vmatmul.mubr.bf16.gmra.mrb[0].mxu0 %v2452
        %v2837 = vpop.f32.mrb[0].mxu0
        %v2838 = vadd.f32 %v1757, %v2837
        %v2839 = vpop.f32.mrb[0].mxu0
        %v2840 = vpop.f32.mrb[0].mxu0
        %v2841 = vadd.f32 %v1760, %v2840
        %v2842 = vpop.f32.mrb[0].mxu0
        %2843 = vmatprep.mubr.bf16.mxu0 0
        %2844 = vmatmul.mubr.bf16.gmra.mrb[0].mxu0 %v2455
        %v2845 = vpop.f32.mrb[0].mxu0
        %v2846 = vadd.f32 %v1765, %v2845
        %v2847 = vpop.f32.mrb[0].mxu0
        %v2848 = vpop.f32.mrb[0].mxu0
        %v2849 = vadd.f32 %v1768, %v2848
        %v2850 = vpop.f32.mrb[0].mxu0
        %2851 = vmatprep.mubr.bf16.mxu0 0
        %2852 = vmatmul.mubr.bf16.gmra.mrb[0].mxu0 %v2458
        %v2853 = vpop.f32.mrb[0].mxu0
        %v2854 = vadd.f32 %v1773, %v2853
        %v2855 = vpop.f32.mrb[0].mxu0
        %v2856 = vpop.f32.mrb[0].mxu0
        %v2857 = vadd.f32 %v1776, %v2856
        %v2858 = vpop.f32.mrb[0].mxu0
        %2859 = vmatprep.mubr.bf16.mxu0 0
        %2860 = vmatmul.mubr.bf16.gmra.mrb[0].mxu0 %v2461
        %v2861 = vpop.f32.mrb[0].mxu0
        %v2862 = vadd.f32 %v1781, %v2861
        %v2863 = vpop.f32.mrb[0].mxu0
        %v2864 = vpop.f32.mrb[0].mxu0
        %v2865 = vadd.f32 %v1784, %v2864
        %v2866 = vpop.f32.mrb[0].mxu0
        %2867 = vmatprep.mubr.bf16.mxu0 0
        %2868 = vmatmul.mubr.bf16.gmra.mrb[0].mxu0 %v2464
        %v2869 = vpop.f32.mrb[0].mxu0
        %v2870 = vadd.f32 %v1789, %v2869
        %v2871 = vpop.f32.mrb[0].mxu0
        %v2872 = vpop.f32.mrb[0].mxu0
        %v2873 = vadd.f32 %v1792, %v2872
        %v2874 = vpop.f32.mrb[0].mxu0
        %2875 = vmatprep.mubr.bf16.mxu0 0
        %2876 = vmatmul.mubr.bf16.gmra.mrb[0].mxu0 %v2467
        %v2877 = vpop.f32.mrb[0].mxu0
        %v2878 = vadd.f32 %v1797, %v2877
        %v2879 = vpop.f32.mrb[0].mxu0
        %v2880 = vpop.f32.mrb[0].mxu0
        %v2881 = vadd.f32 %v1800, %v2880
        %v2882 = vpop.f32.mrb[0].mxu0
        %2883 = vmatprep.mubr.bf16.mxu0 0
        %2884 = vmatmul.mubr.bf16.gmra.mrb[0].mxu0 %v2470
        %v2885 = vpop.f32.mrb[0].mxu0
        %v2886 = vadd.f32 %v1805, %v2885
        %v2887 = vpop.f32.mrb[0].mxu0
        %v2888 = vpop.f32.mrb[0].mxu0
        %v2889 = vadd.f32 %v1808, %v2888
        %v2890 = vpop.f32.mrb[0].mxu0
        %2891 = vmatprep.mubr.bf16.mxu0 0
        %2892 = vmatmul.mubr.bf16.gmra.mrb[0].mxu0 %v2473
        %v2893 = vpop.f32.mrb[0].mxu0
        %v2894 = vadd.f32 %v1813, %v2893
        %v2895 = vpop.f32.mrb[0].mxu0
        %v2896 = vpop.f32.mrb[0].mxu0
        %v2897 = vadd.f32 %v1816, %v2896
        %v2898 = vpop.f32.mrb[0].mxu0
        %2899 = vmatprep.mubr.bf16.mxu0 0
        %2900 = vmatmul.mubr.bf16.gmra.mrb[0].mxu0 %v2476
        %v2901 = vpop.f32.mrb[0].mxu0
        %v2902 = vadd.f32 %v1821, %v2901
        %v2903 = vpop.f32.mrb[0].mxu0
        %v2904 = vpop.f32.mrb[0].mxu0
        %v2905 = vadd.f32 %v1824, %v2904
        %v2906 = vpop.f32.mrb[0].mxu0
        %2907 = vmatprep.mubr.bf16.mxu0 0
        %2908 = vmatmul.mubr.bf16.gmra.mrb[0].mxu0 %v2479
        %v2909 = vpop.f32.mrb[0].mxu0
        %v2910 = vadd.f32 %v1829, %v2909
        %v2911 = vpop.f32.mrb[0].mxu0
        %v2912 = vpop.f32.mrb[0].mxu0
        %v2913 = vadd.f32 %v1832, %v2912
        %v2914 = vpop.f32.mrb[0].mxu0
        %2915 = vmatprep.mubr.bf16.mxu0 0
        %2916 = vmatmul.mubr.bf16.gmra.mrb[0].mxu0 %v2482
        %v2917 = vpop.f32.mrb[0].mxu0
        %v2918 = vadd.f32 %v1837, %v2917
        %v2919 = vpop.f32.mrb[0].mxu0
        %v2920 = vpop.f32.mrb[0].mxu0
        %v2921 = vadd.f32 %v1840, %v2920
        %v2922 = vpop.f32.mrb[0].mxu0
        %2923 = vmatprep.mubr.bf16.mxu0 0
        %2924 = vmatmul.mubr.bf16.gmra.mrb[0].mxu0 %v2485
        %v2925 = vpop.f32.mrb[0].mxu0
        %v2926 = vadd.f32 %v1845, %v2925
        %v2927 = vpop.f32.mrb[0].mxu0
        %v2928 = vpop.f32.mrb[0].mxu0
        %v2929 = vadd.f32 %v1848, %v2928
        %v2930 = vpop.f32.mrb[0].mxu0
        %2931 = vmatprep.mubr.bf16.mxu0 0
        %2932 = vmatmul.mubr.bf16.gmra.mrb[0].mxu0 %v2488
        %v2933 = vpop.f32.mrb[0].mxu0
        %v2934 = vadd.f32 %v1853, %v2933
        %v2935 = vpop.f32.mrb[0].mxu0
        %v2936 = vpop.f32.mrb[0].mxu0
        %v2937 = vadd.f32 %v1856, %v2936
        %v2938 = vpop.f32.mrb[0].mxu0
        %2939 = vmatprep.mubr.bf16.mxu0 0
        %2940 = vmatmul.mubr.bf16.gmra.mrb[0].mxu0 %v2491
        %v2941 = vpop.f32.mrb[0].mxu0
        %v2942 = vadd.f32 %v1861, %v2941
        %v2943 = vpop.f32.mrb[0].mxu0
        %v2944 = vpop.f32.mrb[0].mxu0
        %v2945 = vadd.f32 %v1864, %v2944
        %v2946 = vpop.f32.mrb[0].mxu0
        %2947 = vmatprep.mubr.bf16.mxu0 0
        %2948 = vmatmul.mubr.bf16.gmra.mrb[0].mxu0 %v2494
        %v2949 = vpop.f32.mrb[0].mxu0
        %v2950 = vadd.f32 %v1869, %v2949
        %v2951 = vpop.f32.mrb[0].mxu0
        %v2952 = vpop.f32.mrb[0].mxu0
        %v2953 = vadd.f32 %v1872, %v2952
        %v2954 = vpop.f32.mrb[0].mxu0
        %2955 = vmatprep.mubr.bf16.mxu0 0
        %2956 = vmatmul.mubr.bf16.gmra.mrb[0].mxu0 %v2497
        %v2957 = vpop.f32.mrb[0].mxu0
        %v2958 = vadd.f32 %v1877, %v2957
        %v2959 = vpop.f32.mrb[0].mxu0
        %v2960 = vpop.f32.mrb[0].mxu0
        %v2961 = vadd.f32 %v1880, %v2960
        %v2962 = vpop.f32.mrb[0].mxu0
        %2963 = vmatprep.mubr.bf16.mxu0 0
        %2964 = vmatmul.mubr.bf16.gmra.mrb[0].mxu0 %v2500
        %v2965 = vpop.f32.mrb[0].mxu0
        %v2966 = vadd.f32 %v1885, %v2965
        %v2967 = vpop.f32.mrb[0].mxu0
        %v2968 = vpop.f32.mrb[0].mxu0
        %v2969 = vadd.f32 %v1888, %v2968
        %v2970 = vpop.f32.mrb[0].mxu0
        %2971 = vmatprep.mubr.bf16.mxu0 0
        %2972 = vmatmul.mubr.bf16.gmra.mrb[0].mxu0 %v2503
        %v2973 = vpop.f32.mrb[0].mxu0
        %v2974 = vadd.f32 %v1893, %v2973
        %v2975 = vpop.f32.mrb[0].mxu0
        %v2976 = vpop.f32.mrb[0].mxu0
        %v2977 = vadd.f32 %v1896, %v2976
        %v2978 = vpop.f32.mrb[0].mxu0
        %2979 = vmatprep.mubr.bf16.mxu0 0
        %2980 = vmatmul.mubr.bf16.gmra.mrb[0].mxu0 %v2506
        %v2981 = vpop.f32.mrb[0].mxu0
        %v2982 = vadd.f32 %v1901, %v2981
        %v2983 = vpop.f32.mrb[0].mxu0
        %v2984 = vpop.f32.mrb[0].mxu0
        %v2985 = vadd.f32 %v1904, %v2984
        %v2986 = vpop.f32.mrb[0].mxu0
        %2987 = vmatprep.mubr.bf16.mxu0 0
        %2988 = vmatmul.mubr.bf16.gmra.mrb[0].mxu0 %v2509
        %v2989 = vpop.f32.mrb[0].mxu0
        %v2990 = vadd.f32 %v1909, %v2989
        %v2991 = vpop.f32.mrb[0].mxu0
        %v2992 = vpop.f32.mrb[0].mxu0
        %v2993 = vadd.f32 %v1912, %v2992
        %v2994 = vpop.f32.mrb[0].mxu0
        %2995 = vmatprep.mubr.bf16.mxu0 0
        %2996 = vmatmul.mubr.bf16.gmra.mrb[0].mxu0 %v2512
        %v2997 = vpop.f32.mrb[0].mxu0
        %v2998 = vadd.f32 %v1917, %v2997
        %v2999 = vpop.f32.mrb[0].mxu0
        %v3000 = vpop.f32.mrb[0].mxu0
        %v3001 = vadd.f32 %v1920, %v3000
        %v3002 = vpop.f32.mrb[0].mxu0
        %3003 = vmatprep.mubr.bf16.mxu0 0
        %3004 = vmatmul.mubr.bf16.gmra.mrb[0].mxu0 %v2515
        %v3005 = vpop.f32.mrb[0].mxu0
        %v3006 = vadd.f32 %v1925, %v3005
        %v3007 = vpop.f32.mrb[0].mxu0
        %v3008 = vpop.f32.mrb[0].mxu0
        %v3009 = vadd.f32 %v1928, %v3008
        %v3010 = vpop.f32.mrb[0].mxu0
        %3011 = vmatprep.mubr.bf16.mxu0 0
        %3012 = vmatmul.mubr.bf16.gmra.mrb[0].mxu0 %v2518
        %v3013 = vpop.f32.mrb[0].mxu0
        %v3014 = vadd.f32 %v1933, %v3013
        %v3015 = vpop.f32.mrb[0].mxu0
        %v3016 = vpop.f32.mrb[0].mxu0
        %v3017 = vadd.f32 %v1936, %v3016
        %v3018 = vpop.f32.mrb[0].mxu0
        %3019 = vmatprep.mubr.bf16.mxu0 0
        %3020 = vmatmul.mubr.bf16.gmra.mrb[0].mxu0 %v2521
        %v3021 = vpop.f32.mrb[0].mxu0
        %v3022 = vadd.f32 %v1941, %v3021
        %v3023 = vpop.f32.mrb[0].mxu0
        %v3024 = vpop.f32.mrb[0].mxu0
        %v3025 = vadd.f32 %v1944, %v3024
        %v3026 = vpop.f32.mrb[0].mxu0
        %3027 = vmatprep.mubr.bf16.mxu0 0
        %3028 = vmatmul.mubr.bf16.gmra.mrb[0].mxu0 %v2524
        %v3029 = vpop.f32.mrb[0].mxu0
        %v3030 = vadd.f32 %v1949, %v3029
        %v3031 = vpop.f32.mrb[0].mxu0
        %v3032 = vpop.f32.mrb[0].mxu0
        %v3033 = vadd.f32 %v1952, %v3032
        %v3034 = vpop.f32.mrb[0].mxu0
        %3035 = vmatprep.mubr.bf16.mxu0 0
        %3036 = vmatmul.mubr.bf16.gmra.mrb[0].mxu0 %v2527
        %v3037 = vpop.f32.mrb[0].mxu0
        %v3038 = vadd.f32 %v1957, %v3037
        %v3039 = vpop.f32.mrb[0].mxu0
        %v3040 = vpop.f32.mrb[0].mxu0
        %v3041 = vadd.f32 %v1960, %v3040
        %v3042 = vpop.f32.mrb[0].mxu0
        %3043 = vmatprep.mubr.bf16.mxu0 0
        %3044 = vmatmul.mubr.bf16.gmra.mrb[0].mxu0 %v2530
        %v3045 = vpop.f32.mrb[0].mxu0
        %v3046 = vadd.f32 %v1965, %v3045
        %v3047 = vpop.f32.mrb[0].mxu0
        %v3048 = vpop.f32.mrb[0].mxu0
        %v3049 = vadd.f32 %v1968, %v3048
        %v3050 = vpop.f32.mrb[0].mxu0
        %3051 = vmatprep.mubr.bf16.mxu0 0
        %3052 = vmatmul.mubr.bf16.gmra.mrb[0].mxu0 %v2533
        %v3053 = vpop.f32.mrb[0].mxu0
        %v3054 = vadd.f32 %v1973, %v3053
        %v3055 = vpop.f32.mrb[0].mxu0
        %v3056 = vpop.f32.mrb[0].mxu0
        %v3057 = vadd.f32 %v1976, %v3056
        %v3058 = vpop.f32.mrb[0].mxu0
        %3059 = vmatprep.mubr.bf16.mxu0 0
        %3060 = vmatmul.mubr.bf16.gmra.mrb[0].mxu0 %v2536
        %v3061 = vpop.f32.mrb[0].mxu0
        %v3062 = vadd.f32 %v1981, %v3061
        %v3063 = vpop.f32.mrb[0].mxu0
        %v3064 = vpop.f32.mrb[0].mxu0
        %v3065 = vadd.f32 %v1984, %v3064
        %v3066 = vpop.f32.mrb[0].mxu0
        %3067 = vmatprep.mubr.bf16.mxu0 0
        %3068 = vmatmul.mubr.bf16.gmra.mrb[0].mxu0 %v2539
        %v3069 = vpop.f32.mrb[0].mxu0
        %v3070 = vadd.f32 %v1989, %v3069
        %v3071 = vpop.f32.mrb[0].mxu0
        %v3072 = vpop.f32.mrb[0].mxu0
        %v3073 = vadd.f32 %v1992, %v3072
        %v3074 = vpop.f32.mrb[0].mxu0
        %3075 = vmatprep.mubr.bf16.mxu0 0
        %3076 = vmatmul.mubr.bf16.gmra.mrb[0].mxu0 %v2542
        %v3077 = vpop.f32.mrb[0].mxu0
        %v3078 = vadd.f32 %v1997, %v3077
        %v3079 = vpop.f32.mrb[0].mxu0
        %v3080 = vpop.f32.mrb[0].mxu0
        %v3081 = vadd.f32 %v2000, %v3080
        %v3082 = vpop.f32.mrb[0].mxu0
        %3083 = vmatprep.mubr.bf16.mxu0 0
        %3084 = vmatmul.mubr.bf16.gmra.mrb[0].mxu0 %v2545
        %v3085 = vpop.f32.mrb[0].mxu0
        %v3086 = vadd.f32 %v2005, %v3085
        %v3087 = vpop.f32.mrb[0].mxu0
        %v3088 = vpop.f32.mrb[0].mxu0
        %v3089 = vadd.f32 %v2008, %v3088
        %v3090 = vpop.f32.mrb[0].mxu0
        %3091 = vdwg.mxu0
        %s3092 = scalar_lea.vmem %s566, 72 [#allocation2]
        %v3093 = vld [vmem:[%s3092] sm:$0xf]
        %v3094 = vld [vmem:[%s3092 + $0x4] sm:$0xf]
        %v3095 = vld [vmem:[%s3092 + $0x8] sm:$0xf]
        %v3096 = vld [vmem:[%s3092 + $0xc] sm:$0xf]
        %v3097 = vld [vmem:[%s3092 + $0x10] sm:$0xf]
        %v3098 = vld [vmem:[%s3092 + $0x14] sm:$0xf]
        %v3099 = vld [vmem:[%s3092 + $0x18] sm:$0xf]
        %v3100 = vld [vmem:[%s3092 + $0x1c] sm:$0xf]
        %v3101 = vld [vmem:[%s3092 + $0x20] sm:$0xf]
        %v3102 = vld [vmem:[%s3092 + $0x24] sm:$0xf]
        %v3103 = vld [vmem:[%s3092 + $0x28] sm:$0xf]
        %v3104 = vld [vmem:[%s3092 + $0x2c] sm:$0xf]
        %v3105 = vld [vmem:[%s3092 + $0x30] sm:$0xf]
        %v3106 = vld [vmem:[%s3092 + $0x34] sm:$0xf]
        %v3107 = vld [vmem:[%s3092 + $0x38] sm:$0xf]
        %v3108 = vld [vmem:[%s3092 + $0x3c] sm:$0xf]
        %v3109 = vld [vmem:[%s3092 + $0x48] sm:$0xf]
        %v3110 = vld [vmem:[%s3092 + $0x4c] sm:$0xf]
        %v3111 = vld [vmem:[%s3092 + $0x50] sm:$0xf]
        %v3112 = vld [vmem:[%s3092 + $0x54] sm:$0xf]
        %v3113 = vld [vmem:[%s3092 + $0x58] sm:$0xf]
        %v3114 = vld [vmem:[%s3092 + $0x5c] sm:$0xf]
        %v3115 = vld [vmem:[%s3092 + $0x60] sm:$0xf]
        %v3116 = vld [vmem:[%s3092 + $0x64] sm:$0xf]
        %v3117 = vld [vmem:[%s3092 + $0x68] sm:$0xf]
        %v3118 = vld [vmem:[%s3092 + $0x6c] sm:$0xf]
        %v3119 = vld [vmem:[%s3092 + $0x70] sm:$0xf]
        %v3120 = vld [vmem:[%s3092 + $0x74] sm:$0xf]
        %v3121 = vld [vmem:[%s3092 + $0x78] sm:$0xf]
        %v3122 = vld [vmem:[%s3092 + $0x7c] sm:$0xf]
        %v3123 = vld [vmem:[%s3092 + $0x80] sm:$0xf]
        %v3124 = vld [vmem:[%s3092 + $0x84] sm:$0xf]
        %v3125 = vld [vmem:[%s3092 + $0x90] sm:$0xf]
        %v3126 = vld [vmem:[%s3092 + $0x94] sm:$0xf]
        %v3127 = vld [vmem:[%s3092 + $0x98] sm:$0xf]
        %v3128 = vld [vmem:[%s3092 + $0x9c] sm:$0xf]
        %v3129 = vld [vmem:[%s3092 + $0xa0] sm:$0xf]
        %v3130 = vld [vmem:[%s3092 + $0xa4] sm:$0xf]
        %v3131 = vld [vmem:[%s3092 + $0xa8] sm:$0xf]
        %v3132 = vld [vmem:[%s3092 + $0xac] sm:$0xf]
        %v3133 = vld [vmem:[%s3092 + $0xb0] sm:$0xf]
        %v3134 = vld [vmem:[%s3092 + $0xb4] sm:$0xf]
        %v3135 = vld [vmem:[%s3092 + $0xb8] sm:$0xf]
        %v3136 = vld [vmem:[%s3092 + $0xbc] sm:$0xf]
        %v3137 = vld [vmem:[%s3092 + $0xc0] sm:$0xf]
        %v3138 = vld [vmem:[%s3092 + $0xc4] sm:$0xf]
        %v3139 = vld [vmem:[%s3092 + $0xc8] sm:$0xf]
        %v3140 = vld [vmem:[%s3092 + $0xcc] sm:$0xf]
        %v3141 = vld [vmem:[%s3092 + $0xd8] sm:$0xf]
        %v3142 = vld [vmem:[%s3092 + $0xdc] sm:$0xf]
        %v3143 = vld [vmem:[%s3092 + $0xe0] sm:$0xf]
        %v3144 = vld [vmem:[%s3092 + $0xe4] sm:$0xf]
        %v3145 = vld [vmem:[%s3092 + $0xe8] sm:$0xf]
        %v3146 = vld [vmem:[%s3092 + $0xec] sm:$0xf]
        %v3147 = vld [vmem:[%s3092 + $0xf0] sm:$0xf]
        %v3148 = vld [vmem:[%s3092 + $0xf4] sm:$0xf]
        %v3149 = vld [vmem:[%s3092 + $0xf8] sm:$0xf]
        %v3150 = vld [vmem:[%s3092 + $0xfc] sm:$0xf]
        %v3151 = vld [vmem:[%s3092 + $0x100] sm:$0xf]
        %v3152 = vld [vmem:[%s3092 + $0x104] sm:$0xf]
        %v3153 = vld [vmem:[%s3092 + $0x108] sm:$0xf]
        %v3154 = vld [vmem:[%s3092 + $0x10c] sm:$0xf]
        %v3155 = vld [vmem:[%s3092 + $0x110] sm:$0xf]
        %v3156 = vld [vmem:[%s3092 + $0x114] sm:$0xf]
        %v3157 = vld [vmem:[%s3092 + $0x120] sm:$0xf]
        %v3158 = vld [vmem:[%s3092 + $0x124] sm:$0xf]
        %v3159 = vld [vmem:[%s3092 + $0x128] sm:$0xf]
        %v3160 = vld [vmem:[%s3092 + $0x12c] sm:$0xf]
        %v3161 = vld [vmem:[%s3092 + $0x130] sm:$0xf]
        %v3162 = vld [vmem:[%s3092 + $0x134] sm:$0xf]
        %v3163 = vld [vmem:[%s3092 + $0x138] sm:$0xf]
        %v3164 = vld [vmem:[%s3092 + $0x13c] sm:$0xf]
        %v3165 = vld [vmem:[%s3092 + $0x140] sm:$0xf]
        %v3166 = vld [vmem:[%s3092 + $0x144] sm:$0xf]
        %v3167 = vld [vmem:[%s3092 + $0x148] sm:$0xf]
        %v3168 = vld [vmem:[%s3092 + $0x14c] sm:$0xf]
        %v3169 = vld [vmem:[%s3092 + $0x150] sm:$0xf]
        %v3170 = vld [vmem:[%s3092 + $0x154] sm:$0xf]
        %v3171 = vld [vmem:[%s3092 + $0x158] sm:$0xf]
        %v3172 = vld [vmem:[%s3092 + $0x15c] sm:$0xf]
        %v3173 = vld [vmem:[%s3092 + $0x168] sm:$0xf]
        %v3174 = vld [vmem:[%s3092 + $0x16c] sm:$0xf]
        %v3175 = vld [vmem:[%s3092 + $0x170] sm:$0xf]
        %v3176 = vld [vmem:[%s3092 + $0x174] sm:$0xf]
        %v3177 = vld [vmem:[%s3092 + $0x178] sm:$0xf]
        %v3178 = vld [vmem:[%s3092 + $0x17c] sm:$0xf]
        %v3179 = vld [vmem:[%s3092 + $0x180] sm:$0xf]
        %v3180 = vld [vmem:[%s3092 + $0x184] sm:$0xf]
        %v3181 = vld [vmem:[%s3092 + $0x188] sm:$0xf]
        %v3182 = vld [vmem:[%s3092 + $0x18c] sm:$0xf]
        %v3183 = vld [vmem:[%s3092 + $0x190] sm:$0xf]
        %v3184 = vld [vmem:[%s3092 + $0x194] sm:$0xf]
        %v3185 = vld [vmem:[%s3092 + $0x198] sm:$0xf]
        %v3186 = vld [vmem:[%s3092 + $0x19c] sm:$0xf]
        %v3187 = vld [vmem:[%s3092 + $0x1a0] sm:$0xf]
        %v3188 = vld [vmem:[%s3092 + $0x1a4] sm:$0xf]
        %v3189 = vld [vmem:[%s3092 + $0x1b0] sm:$0xf]
        %v3190 = vld [vmem:[%s3092 + $0x1b4] sm:$0xf]
        %v3191 = vld [vmem:[%s3092 + $0x1b8] sm:$0xf]
        %v3192 = vld [vmem:[%s3092 + $0x1bc] sm:$0xf]
        %v3193 = vld [vmem:[%s3092 + $0x1c0] sm:$0xf]
        %v3194 = vld [vmem:[%s3092 + $0x1c4] sm:$0xf]
        %v3195 = vld [vmem:[%s3092 + $0x1c8] sm:$0xf]
        %v3196 = vld [vmem:[%s3092 + $0x1cc] sm:$0xf]
        %v3197 = vld [vmem:[%s3092 + $0x1d0] sm:$0xf]
        %v3198 = vld [vmem:[%s3092 + $0x1d4] sm:$0xf]
        %v3199 = vld [vmem:[%s3092 + $0x1d8] sm:$0xf]
        %v3200 = vld [vmem:[%s3092 + $0x1dc] sm:$0xf]
        %v3201 = vld [vmem:[%s3092 + $0x1e0] sm:$0xf]
        %v3202 = vld [vmem:[%s3092 + $0x1e4] sm:$0xf]
        %v3203 = vld [vmem:[%s3092 + $0x1e8] sm:$0xf]
        %v3204 = vld [vmem:[%s3092 + $0x1ec] sm:$0xf]
        %v3205 = vld [vmem:[%s3092 + $0x1f8] sm:$0xf]
        %v3206 = vld [vmem:[%s3092 + $0x1fc] sm:$0xf]
        %v3207 = vld [vmem:[%s3092 + $0x200] sm:$0xf]
        %v3208 = vld [vmem:[%s3092 + $0x204] sm:$0xf]
        %v3209 = vld [vmem:[%s3092 + $0x208] sm:$0xf]
        %v3210 = vld [vmem:[%s3092 + $0x20c] sm:$0xf]
        %v3211 = vld [vmem:[%s3092 + $0x210] sm:$0xf]
        %v3212 = vld [vmem:[%s3092 + $0x214] sm:$0xf]
        %v3213 = vld [vmem:[%s3092 + $0x218] sm:$0xf]
        %v3214 = vld [vmem:[%s3092 + $0x21c] sm:$0xf]
        %v3215 = vld [vmem:[%s3092 + $0x220] sm:$0xf]
        %v3216 = vld [vmem:[%s3092 + $0x224] sm:$0xf]
        %v3217 = vld [vmem:[%s3092 + $0x228] sm:$0xf]
        %v3218 = vld [vmem:[%s3092 + $0x22c] sm:$0xf]
        %v3219 = vld [vmem:[%s3092 + $0x230] sm:$0xf]
        %v3220 = vld [vmem:[%s3092 + $0x234] sm:$0xf]
        %s3221 = scalar_lea.vmem %s2, 64
        %v3222 = vld [vmem:[%s3221] sm:$0xf]
        %v3223 = vld [vmem:[%s3221 + $0x4] sm:$0xf]
        %v3224 = vld [vmem:[%s3221 + $0x8] sm:$0xf]
        %v3225 = vld [vmem:[%s3221 + $0xc] sm:$0xf]
        %v3226 = vld [vmem:[%s3221 + $0x10] sm:$0xf]
        %v3227 = vld [vmem:[%s3221 + $0x14] sm:$0xf]
        %v3228 = vld [vmem:[%s3221 + $0x18] sm:$0xf]
        %v3229 = vld [vmem:[%s3221 + $0x1c] sm:$0xf]
        %v3358 = vunpack.c.l.b16 %v3093
        %v3359 = vunpack.c.l.b16 %v3094
        %v3360 = vunpack.c.l.b16 %v3095
        %v3361 = vunpack.c.l.b16 %v3096
        %v3362 = vunpack.c.l.b16 %v3097
        %v3363 = vunpack.c.l.b16 %v3098
        %v3364 = vunpack.c.l.b16 %v3099
        %v3365 = vunpack.c.l.b16 %v3100
        %v3366 = vunpack.c.l.b16 %v3101
        %v3367 = vunpack.c.l.b16 %v3102
        %v3368 = vunpack.c.l.b16 %v3103
        %v3369 = vunpack.c.l.b16 %v3104
        %v3370 = vunpack.c.l.b16 %v3105
        %v3371 = vunpack.c.l.b16 %v3106
        %v3372 = vunpack.c.l.b16 %v3107
        %v3373 = vunpack.c.l.b16 %v3108
        %v3374 = vunpack.c.l.b16 %v3109
        %v3375 = vunpack.c.l.b16 %v3110
        %v3376 = vunpack.c.l.b16 %v3111
        %v3377 = vunpack.c.l.b16 %v3112
        %v3378 = vunpack.c.l.b16 %v3113
        %v3379 = vunpack.c.l.b16 %v3114
        %v3380 = vunpack.c.l.b16 %v3115
        %v3381 = vunpack.c.l.b16 %v3116
        %v3382 = vunpack.c.l.b16 %v3117
        %v3383 = vunpack.c.l.b16 %v3118
        %v3384 = vunpack.c.l.b16 %v3119
        %v3385 = vunpack.c.l.b16 %v3120
        %v3386 = vunpack.c.l.b16 %v3121
        %v3387 = vunpack.c.l.b16 %v3122
        %v3388 = vunpack.c.l.b16 %v3123
        %v3389 = vunpack.c.l.b16 %v3124
        %v3390 = vunpack.c.l.b16 %v3125
        %v3391 = vunpack.c.l.b16 %v3126
        %v3392 = vunpack.c.l.b16 %v3127
        %v3393 = vunpack.c.l.b16 %v3128
        %v3394 = vunpack.c.l.b16 %v3129
        %v3395 = vunpack.c.l.b16 %v3130
        %v3396 = vunpack.c.l.b16 %v3131
        %v3397 = vunpack.c.l.b16 %v3132
        %v3398 = vunpack.c.l.b16 %v3133
        %v3399 = vunpack.c.l.b16 %v3134
        %v3400 = vunpack.c.l.b16 %v3135
        %v3401 = vunpack.c.l.b16 %v3136
        %v3402 = vunpack.c.l.b16 %v3137
        %v3403 = vunpack.c.l.b16 %v3138
        %v3404 = vunpack.c.l.b16 %v3139
        %v3405 = vunpack.c.l.b16 %v3140
        %v3406 = vunpack.c.l.b16 %v3141
        %v3407 = vunpack.c.l.b16 %v3142
        %v3408 = vunpack.c.l.b16 %v3143
        %v3409 = vunpack.c.l.b16 %v3144
        %v3410 = vunpack.c.l.b16 %v3145
        %v3411 = vunpack.c.l.b16 %v3146
        %v3412 = vunpack.c.l.b16 %v3147
        %v3413 = vunpack.c.l.b16 %v3148
        %v3414 = vunpack.c.l.b16 %v3149
        %v3415 = vunpack.c.l.b16 %v3150
        %v3416 = vunpack.c.l.b16 %v3151
        %v3417 = vunpack.c.l.b16 %v3152
        %v3418 = vunpack.c.l.b16 %v3153
        %v3419 = vunpack.c.l.b16 %v3154
        %v3420 = vunpack.c.l.b16 %v3155
        %v3421 = vunpack.c.l.b16 %v3156
        %v3422 = vunpack.c.l.b16 %v3157
        %v3423 = vunpack.c.l.b16 %v3158
        %v3424 = vunpack.c.l.b16 %v3159
        %v3425 = vunpack.c.l.b16 %v3160
        %v3426 = vunpack.c.l.b16 %v3161
        %v3427 = vunpack.c.l.b16 %v3162
        %v3428 = vunpack.c.l.b16 %v3163
        %v3429 = vunpack.c.l.b16 %v3164
        %v3430 = vunpack.c.l.b16 %v3165
        %v3431 = vunpack.c.l.b16 %v3166
        %v3432 = vunpack.c.l.b16 %v3167
        %v3433 = vunpack.c.l.b16 %v3168
        %v3434 = vunpack.c.l.b16 %v3169
        %v3435 = vunpack.c.l.b16 %v3170
        %v3436 = vunpack.c.l.b16 %v3171
        %v3437 = vunpack.c.l.b16 %v3172
        %v3438 = vunpack.c.l.b16 %v3173
        %v3439 = vunpack.c.l.b16 %v3174
        %v3440 = vunpack.c.l.b16 %v3175
        %v3441 = vunpack.c.l.b16 %v3176
        %v3442 = vunpack.c.l.b16 %v3177
        %v3443 = vunpack.c.l.b16 %v3178
        %v3444 = vunpack.c.l.b16 %v3179
        %v3445 = vunpack.c.l.b16 %v3180
        %v3446 = vunpack.c.l.b16 %v3181
        %v3447 = vunpack.c.l.b16 %v3182
        %v3448 = vunpack.c.l.b16 %v3183
        %v3449 = vunpack.c.l.b16 %v3184
        %v3450 = vunpack.c.l.b16 %v3185
        %v3451 = vunpack.c.l.b16 %v3186
        %v3452 = vunpack.c.l.b16 %v3187
        %v3453 = vunpack.c.l.b16 %v3188
        %v3454 = vunpack.c.l.b16 %v3189
        %v3455 = vunpack.c.l.b16 %v3190
        %v3456 = vunpack.c.l.b16 %v3191
        %v3457 = vunpack.c.l.b16 %v3192
        %v3458 = vunpack.c.l.b16 %v3193
        %v3459 = vunpack.c.l.b16 %v3194
        %v3460 = vunpack.c.l.b16 %v3195
        %v3461 = vunpack.c.l.b16 %v3196
        %v3462 = vunpack.c.l.b16 %v3197
        %v3463 = vunpack.c.l.b16 %v3198
        %v3464 = vunpack.c.l.b16 %v3199
        %v3465 = vunpack.c.l.b16 %v3200
        %v3466 = vunpack.c.l.b16 %v3201
        %v3467 = vunpack.c.l.b16 %v3202
        %v3468 = vunpack.c.l.b16 %v3203
        %v3469 = vunpack.c.l.b16 %v3204
        %v3470 = vunpack.c.l.b16 %v3205
        %v3471 = vunpack.c.l.b16 %v3206
        %v3472 = vunpack.c.l.b16 %v3207
        %v3473 = vunpack.c.l.b16 %v3208
        %v3474 = vunpack.c.l.b16 %v3209
        %v3475 = vunpack.c.l.b16 %v3210
        %v3476 = vunpack.c.l.b16 %v3211
        %v3477 = vunpack.c.l.b16 %v3212
        %v3478 = vunpack.c.l.b16 %v3213
        %v3479 = vunpack.c.l.b16 %v3214
        %v3480 = vunpack.c.l.b16 %v3215
        %v3481 = vunpack.c.l.b16 %v3216
        %v3482 = vunpack.c.l.b16 %v3217
        %v3483 = vunpack.c.l.b16 %v3218
        %v3484 = vunpack.c.l.b16 %v3219
        %v3485 = vunpack.c.l.b16 %v3220
        %v3486 = vpack.c.b16 %v3359, %v3358
        %v3487 = vpack.c.b16 %v3361, %v3360
        %v3488 = vpack.c.b16 %v3363, %v3362
        %v3489 = vpack.c.b16 %v3365, %v3364
        %v3490 = vpack.c.b16 %v3367, %v3366
        %v3491 = vpack.c.b16 %v3369, %v3368
        %v3492 = vpack.c.b16 %v3371, %v3370
        %v3493 = vpack.c.b16 %v3373, %v3372
        %v3494 = vpack.c.b16 %v3375, %v3374
        %v3495 = vpack.c.b16 %v3377, %v3376
        %v3496 = vpack.c.b16 %v3379, %v3378
        %v3497 = vpack.c.b16 %v3381, %v3380
        %v3498 = vpack.c.b16 %v3383, %v3382
        %v3499 = vpack.c.b16 %v3385, %v3384
        %v3500 = vpack.c.b16 %v3387, %v3386
        %v3501 = vpack.c.b16 %v3389, %v3388
        %v3502 = vpack.c.b16 %v3391, %v3390
        %v3503 = vpack.c.b16 %v3393, %v3392
        %v3504 = vpack.c.b16 %v3395, %v3394
        %v3505 = vpack.c.b16 %v3397, %v3396
        %v3506 = vpack.c.b16 %v3399, %v3398
        %v3507 = vpack.c.b16 %v3401, %v3400
        %v3508 = vpack.c.b16 %v3403, %v3402
        %v3509 = vpack.c.b16 %v3405, %v3404
        %v3510 = vpack.c.b16 %v3407, %v3406
        %v3511 = vpack.c.b16 %v3409, %v3408
        %v3512 = vpack.c.b16 %v3411, %v3410
        %v3513 = vpack.c.b16 %v3413, %v3412
        %v3514 = vpack.c.b16 %v3415, %v3414
        %v3515 = vpack.c.b16 %v3417, %v3416
        %v3516 = vpack.c.b16 %v3419, %v3418
        %v3517 = vpack.c.b16 %v3421, %v3420
        %v3518 = vpack.c.b16 %v3423, %v3422
        %v3519 = vpack.c.b16 %v3425, %v3424
        %v3520 = vpack.c.b16 %v3427, %v3426
        %v3521 = vpack.c.b16 %v3429, %v3428
        %v3522 = vpack.c.b16 %v3431, %v3430
        %v3523 = vpack.c.b16 %v3433, %v3432
        %v3524 = vpack.c.b16 %v3435, %v3434
        %v3525 = vpack.c.b16 %v3437, %v3436
        %v3526 = vpack.c.b16 %v3439, %v3438
        %v3527 = vpack.c.b16 %v3441, %v3440
        %v3528 = vpack.c.b16 %v3443, %v3442
        %v3529 = vpack.c.b16 %v3445, %v3444
        %v3530 = vpack.c.b16 %v3447, %v3446
        %v3531 = vpack.c.b16 %v3449, %v3448
        %v3532 = vpack.c.b16 %v3451, %v3450
        %v3533 = vpack.c.b16 %v3453, %v3452
        %v3534 = vpack.c.b16 %v3455, %v3454
        %v3535 = vpack.c.b16 %v3457, %v3456
        %v3536 = vpack.c.b16 %v3459, %v3458
        %v3537 = vpack.c.b16 %v3461, %v3460
        %v3538 = vpack.c.b16 %v3463, %v3462
        %v3539 = vpack.c.b16 %v3465, %v3464
        %v3540 = vpack.c.b16 %v3467, %v3466
        %v3541 = vpack.c.b16 %v3469, %v3468
        %v3542 = vpack.c.b16 %v3471, %v3470
        %v3543 = vpack.c.b16 %v3473, %v3472
        %v3544 = vpack.c.b16 %v3475, %v3474
        %v3545 = vpack.c.b16 %v3477, %v3476
        %v3546 = vpack.c.b16 %v3479, %v3478
        %v3547 = vpack.c.b16 %v3481, %v3480
        %v3548 = vpack.c.b16 %v3483, %v3482
        %v3549 = vpack.c.b16 %v3485, %v3484
        %v3558 = vunpack.c.l.b16 %v3222
        %v3559 = vunpack.c.l.b16 %v3223
        %v3560 = vunpack.c.l.b16 %v3224
        %v3561 = vunpack.c.l.b16 %v3225
        %v3562 = vunpack.c.l.b16 %v3226
        %v3563 = vunpack.c.l.b16 %v3227
        %v3564 = vunpack.c.l.b16 %v3228
        %v3565 = vunpack.c.l.b16 %v3229
        %v3566 = vpack.c.b16 %v3559, %v3558
        %v3567 = vpack.c.b16 %v3561, %v3560
        %v3568 = vpack.c.b16 %v3563, %v3562
        %v3569 = vpack.c.b16 %v3565, %v3564
        %v3575 = vsel %vm1273, %v3486, 0
        %v3578 = vsel %vm1273, %v3487, 0
        %v3581 = vsel %vm1273, %v3488, 0
        %v3584 = vsel %vm1273, %v3489, 0
        %v3587 = vsel %vm1273, %v3490, 0
        %v3590 = vsel %vm1273, %v3491, 0
        %v3593 = vsel %vm1273, %v3492, 0
        %v3596 = vsel %vm1273, %v3493, 0
        %v3599 = vsel %vm1273, %v3494, 0
        %v3602 = vsel %vm1273, %v3495, 0
        %v3605 = vsel %vm1273, %v3496, 0
        %v3608 = vsel %vm1273, %v3497, 0
        %v3611 = vsel %vm1273, %v3498, 0
        %v3614 = vsel %vm1273, %v3499, 0
        %v3617 = vsel %vm1273, %v3500, 0
        %v3620 = vsel %vm1273, %v3501, 0
        %v3623 = vsel %vm1273, %v3502, 0
        %v3626 = vsel %vm1273, %v3503, 0
        %v3629 = vsel %vm1273, %v3504, 0
        %v3632 = vsel %vm1273, %v3505, 0
        %v3635 = vsel %vm1273, %v3506, 0
        %v3638 = vsel %vm1273, %v3507, 0
        %v3641 = vsel %vm1273, %v3508, 0
        %v3644 = vsel %vm1273, %v3509, 0
        %v3647 = vsel %vm1273, %v3510, 0
        %v3650 = vsel %vm1273, %v3511, 0
        %v3653 = vsel %vm1273, %v3512, 0
        %v3656 = vsel %vm1273, %v3513, 0
        %v3659 = vsel %vm1273, %v3514, 0
        %v3662 = vsel %vm1273, %v3515, 0
        %v3665 = vsel %vm1273, %v3516, 0
        %v3668 = vsel %vm1273, %v3517, 0
        %v3671 = vsel %vm1273, %v3518, 0
        %v3674 = vsel %vm1273, %v3519, 0
        %v3677 = vsel %vm1273, %v3520, 0
        %v3680 = vsel %vm1273, %v3521, 0
        %v3683 = vsel %vm1273, %v3522, 0
        %v3686 = vsel %vm1273, %v3523, 0
        %v3689 = vsel %vm1273, %v3524, 0
        %v3692 = vsel %vm1273, %v3525, 0
        %v3695 = vsel %vm1273, %v3526, 0
        %v3698 = vsel %vm1273, %v3527, 0
        %v3701 = vsel %vm1273, %v3528, 0
        %v3704 = vsel %vm1273, %v3529, 0
        %v3707 = vsel %vm1273, %v3530, 0
        %v3710 = vsel %vm1273, %v3531, 0
        %v3713 = vsel %vm1273, %v3532, 0
        %v3716 = vsel %vm1273, %v3533, 0
        %v3719 = vsel %vm1273, %v3534, 0
        %v3722 = vsel %vm1273, %v3535, 0
        %v3725 = vsel %vm1273, %v3536, 0
        %v3728 = vsel %vm1273, %v3537, 0
        %v3731 = vsel %vm1273, %v3538, 0
        %v3734 = vsel %vm1273, %v3539, 0
        %v3737 = vsel %vm1273, %v3540, 0
        %v3740 = vsel %vm1273, %v3541, 0
        %v3743 = vsel %vm1273, %v3542, 0
        %v3746 = vsel %vm1273, %v3543, 0
        %v3749 = vsel %vm1273, %v3544, 0
        %v3752 = vsel %vm1273, %v3545, 0
        %v3755 = vsel %vm1273, %v3546, 0
        %v3758 = vsel %vm1273, %v3547, 0
        %v3761 = vsel %vm1273, %v3548, 0
        %v3764 = vsel %vm1273, %v3549, 0
        %3766 = vmatprep.subr.bf16.mxu0 0
        %3767 = vmatpush1.bf16.msra.mxu0 %v3566
        %3768 = vmatprep.subr.bf16.mxu0 0
        %3769 = vmatpush1.bf16.msra.mxu0 %v3567
        %3770 = vmatprep.subr.bf16.mxu0 0
        %3771 = vmatpush1.bf16.msra.mxu0 %v3568
        %3772 = vmatprep.subr.bf16.mxu0 0
        %3773 = vmatpush1.bf16.msra.mxu0 %v3569
        %3774 = vmatprep.subr.bf16.mxu0 0
        %3775 = vmatpush1.bf16.msra.mxu0 0
        %3776 = vmatprep.subr.bf16.mxu0 0
        %3777 = vmatpush1.bf16.msra.mxu0 0
        %3778 = vmatprep.subr.bf16.mxu0 0
        %3779 = vmatpush1.bf16.msra.mxu0 0
        %3780 = vmatprep.subr.bf16.mxu0 0
        %3781 = vmatpush1.bf16.msra.mxu0 0
        %3782 = vmatprep.subr.bf16.mxu0 0
        %3783 = vmatpush1.bf16.msra.mxu0 0
        %3784 = vmatprep.subr.bf16.mxu0 0
        %3785 = vmatpush1.bf16.msra.mxu0 0
        %3786 = vmatprep.subr.bf16.mxu0 0
        %3787 = vmatpush1.bf16.msra.mxu0 0
        %3788 = vmatprep.subr.bf16.mxu0 0
        %3789 = vmatpush1.bf16.msra.mxu0 0
        %3790 = vmatprep.subr.bf16.mxu0 0
        %3791 = vmatpush1.bf16.msra.mxu0 0
        %3792 = vmatprep.subr.bf16.mxu0 0
        %3793 = vmatpush1.bf16.msra.mxu0 0
        %3794 = vmatprep.subr.bf16.mxu0 0
        %3795 = vmatpush1.bf16.msra.mxu0 0
        %3796 = vmatprep.subr.bf16.mxu0 0
        %3797 = vmatpush1.bf16.msra.mxu0 0
        %3798 = vmatprep.mubr.bf16.mxu0 0
        %3799 = vmatmul.mubr.bf16.gmra.mrb[0].mxu0 %v3575
        %v3800 = vpop.f32.mrb[0].mxu0
        %v3801 = vadd.f32 0.0, %v3800
        %v3802 = vpop.f32.mrb[0].mxu0
        %v3803 = vpop.f32.mrb[0].mxu0
        %v3804 = vadd.f32 0.0, %v3803
        %v3805 = vpop.f32.mrb[0].mxu0
        %3806 = vmatprep.mubr.bf16.mxu0 0
        %3807 = vmatmul.mubr.bf16.gmra.mrb[0].mxu0 %v3578
        %v3808 = vpop.f32.mrb[0].mxu0
        %v3809 = vadd.f32 0.0, %v3808
        %v3810 = vpop.f32.mrb[0].mxu0
        %v3811 = vpop.f32.mrb[0].mxu0
        %v3812 = vadd.f32 0.0, %v3811
        %v3813 = vpop.f32.mrb[0].mxu0
        %3814 = vmatprep.mubr.bf16.mxu0 0
        %3815 = vmatmul.mubr.bf16.gmra.mrb[0].mxu0 %v3581
        %v3816 = vpop.f32.mrb[0].mxu0
        %v3817 = vadd.f32 0.0, %v3816
        %v3818 = vpop.f32.mrb[0].mxu0
        %v3819 = vpop.f32.mrb[0].mxu0
        %v3820 = vadd.f32 0.0, %v3819
        %v3821 = vpop.f32.mrb[0].mxu0
        %3822 = vmatprep.mubr.bf16.mxu0 0
        %3823 = vmatmul.mubr.bf16.gmra.mrb[0].mxu0 %v3584
        %v3824 = vpop.f32.mrb[0].mxu0
        %v3825 = vadd.f32 0.0, %v3824
        %v3826 = vpop.f32.mrb[0].mxu0
        %v3827 = vpop.f32.mrb[0].mxu0
        %v3828 = vadd.f32 0.0, %v3827
        %v3829 = vpop.f32.mrb[0].mxu0
        %3830 = vmatprep.mubr.bf16.mxu0 0
        %3831 = vmatmul.mubr.bf16.gmra.mrb[0].mxu0 %v3587
        %v3832 = vpop.f32.mrb[0].mxu0
        %v3833 = vadd.f32 0.0, %v3832
        %v3834 = vpop.f32.mrb[0].mxu0
        %v3835 = vpop.f32.mrb[0].mxu0
        %v3836 = vadd.f32 0.0, %v3835
        %v3837 = vpop.f32.mrb[0].mxu0
        %3838 = vmatprep.mubr.bf16.mxu0 0
        %3839 = vmatmul.mubr.bf16.gmra.mrb[0].mxu0 %v3590
        %v3840 = vpop.f32.mrb[0].mxu0
        %v3841 = vadd.f32 0.0, %v3840
        %v3842 = vpop.f32.mrb[0].mxu0
        %v3843 = vpop.f32.mrb[0].mxu0
        %v3844 = vadd.f32 0.0, %v3843
        %v3845 = vpop.f32.mrb[0].mxu0
        %3846 = vmatprep.mubr.bf16.mxu0 0
        %3847 = vmatmul.mubr.bf16.gmra.mrb[0].mxu0 %v3593
        %v3848 = vpop.f32.mrb[0].mxu0
        %v3849 = vadd.f32 0.0, %v3848
        %v3850 = vpop.f32.mrb[0].mxu0
        %v3851 = vpop.f32.mrb[0].mxu0
        %v3852 = vadd.f32 0.0, %v3851
        %v3853 = vpop.f32.mrb[0].mxu0
        %3854 = vmatprep.mubr.bf16.mxu0 0
        %3855 = vmatmul.mubr.bf16.gmra.mrb[0].mxu0 %v3596
        %v3856 = vpop.f32.mrb[0].mxu0
        %v3857 = vadd.f32 0.0, %v3856
        %v3858 = vpop.f32.mrb[0].mxu0
        %v3859 = vpop.f32.mrb[0].mxu0
        %v3860 = vadd.f32 0.0, %v3859
        %v3861 = vpop.f32.mrb[0].mxu0
        %3862 = vmatprep.mubr.bf16.mxu0 0
        %3863 = vmatmul.mubr.bf16.gmra.mrb[0].mxu0 %v3599
        %v3864 = vpop.f32.mrb[0].mxu0
        %v3865 = vadd.f32 0.0, %v3864
        %v3866 = vpop.f32.mrb[0].mxu0
        %v3867 = vpop.f32.mrb[0].mxu0
        %v3868 = vadd.f32 0.0, %v3867
        %v3869 = vpop.f32.mrb[0].mxu0
        %3870 = vmatprep.mubr.bf16.mxu0 0
        %3871 = vmatmul.mubr.bf16.gmra.mrb[0].mxu0 %v3602
        %v3872 = vpop.f32.mrb[0].mxu0
        %v3873 = vadd.f32 0.0, %v3872
        %v3874 = vpop.f32.mrb[0].mxu0
        %v3875 = vpop.f32.mrb[0].mxu0
        %v3876 = vadd.f32 0.0, %v3875
        %v3877 = vpop.f32.mrb[0].mxu0
        %3878 = vmatprep.mubr.bf16.mxu0 0
        %3879 = vmatmul.mubr.bf16.gmra.mrb[0].mxu0 %v3605
        %v3880 = vpop.f32.mrb[0].mxu0
        %v3881 = vadd.f32 0.0, %v3880
        %v3882 = vpop.f32.mrb[0].mxu0
        %v3883 = vpop.f32.mrb[0].mxu0
        %v3884 = vadd.f32 0.0, %v3883
        %v3885 = vpop.f32.mrb[0].mxu0
        %3886 = vmatprep.mubr.bf16.mxu0 0
        %3887 = vmatmul.mubr.bf16.gmra.mrb[0].mxu0 %v3608
        %v3888 = vpop.f32.mrb[0].mxu0
        %v3889 = vadd.f32 0.0, %v3888
        %v3890 = vpop.f32.mrb[0].mxu0
        %v3891 = vpop.f32.mrb[0].mxu0
        %v3892 = vadd.f32 0.0, %v3891
        %v3893 = vpop.f32.mrb[0].mxu0
        %3894 = vmatprep.mubr.bf16.mxu0 0
        %3895 = vmatmul.mubr.bf16.gmra.mrb[0].mxu0 %v3611
        %v3896 = vpop.f32.mrb[0].mxu0
        %v3897 = vadd.f32 0.0, %v3896
        %v3898 = vpop.f32.mrb[0].mxu0
        %v3899 = vpop.f32.mrb[0].mxu0
        %v3900 = vadd.f32 0.0, %v3899
        %v3901 = vpop.f32.mrb[0].mxu0
        %3902 = vmatprep.mubr.bf16.mxu0 0
        %3903 = vmatmul.mubr.bf16.gmra.mrb[0].mxu0 %v3614
        %v3904 = vpop.f32.mrb[0].mxu0
        %v3905 = vadd.f32 0.0, %v3904
        %v3906 = vpop.f32.mrb[0].mxu0
        %v3907 = vpop.f32.mrb[0].mxu0
        %v3908 = vadd.f32 0.0, %v3907
        %v3909 = vpop.f32.mrb[0].mxu0
        %3910 = vmatprep.mubr.bf16.mxu0 0
        %3911 = vmatmul.mubr.bf16.gmra.mrb[0].mxu0 %v3617
        %v3912 = vpop.f32.mrb[0].mxu0
        %v3913 = vadd.f32 0.0, %v3912
        %v3914 = vpop.f32.mrb[0].mxu0
        %v3915 = vpop.f32.mrb[0].mxu0
        %v3916 = vadd.f32 0.0, %v3915
        %v3917 = vpop.f32.mrb[0].mxu0
        %3918 = vmatprep.mubr.bf16.mxu0 0
        %3919 = vmatmul.mubr.bf16.gmra.mrb[0].mxu0 %v3620
        %v3920 = vpop.f32.mrb[0].mxu0
        %v3921 = vadd.f32 0.0, %v3920
        %v3922 = vpop.f32.mrb[0].mxu0
        %v3923 = vpop.f32.mrb[0].mxu0
        %v3924 = vadd.f32 0.0, %v3923
        %v3925 = vpop.f32.mrb[0].mxu0
        %3926 = vmatprep.mubr.bf16.mxu0 0
        %3927 = vmatmul.mubr.bf16.gmra.mrb[0].mxu0 %v3623
        %v3928 = vpop.f32.mrb[0].mxu0
        %v3929 = vadd.f32 0.0, %v3928
        %v3930 = vpop.f32.mrb[0].mxu0
        %v3931 = vpop.f32.mrb[0].mxu0
        %v3932 = vadd.f32 0.0, %v3931
        %v3933 = vpop.f32.mrb[0].mxu0
        %3934 = vmatprep.mubr.bf16.mxu0 0
        %3935 = vmatmul.mubr.bf16.gmra.mrb[0].mxu0 %v3626
        %v3936 = vpop.f32.mrb[0].mxu0
        %v3937 = vadd.f32 0.0, %v3936
        %v3938 = vpop.f32.mrb[0].mxu0
        %v3939 = vpop.f32.mrb[0].mxu0
        %v3940 = vadd.f32 0.0, %v3939
        %v3941 = vpop.f32.mrb[0].mxu0
        %3942 = vmatprep.mubr.bf16.mxu0 0
        %3943 = vmatmul.mubr.bf16.gmra.mrb[0].mxu0 %v3629
        %v3944 = vpop.f32.mrb[0].mxu0
        %v3945 = vadd.f32 0.0, %v3944
        %v3946 = vpop.f32.mrb[0].mxu0
        %v3947 = vpop.f32.mrb[0].mxu0
        %v3948 = vadd.f32 0.0, %v3947
        %v3949 = vpop.f32.mrb[0].mxu0
        %3950 = vmatprep.mubr.bf16.mxu0 0
        %3951 = vmatmul.mubr.bf16.gmra.mrb[0].mxu0 %v3632
        %v3952 = vpop.f32.mrb[0].mxu0
        %v3953 = vadd.f32 0.0, %v3952
        %v3954 = vpop.f32.mrb[0].mxu0
        %v3955 = vpop.f32.mrb[0].mxu0
        %v3956 = vadd.f32 0.0, %v3955
        %v3957 = vpop.f32.mrb[0].mxu0
        %3958 = vmatprep.mubr.bf16.mxu0 0
        %3959 = vmatmul.mubr.bf16.gmra.mrb[0].mxu0 %v3635
        %v3960 = vpop.f32.mrb[0].mxu0
        %v3961 = vadd.f32 0.0, %v3960
        %v3962 = vpop.f32.mrb[0].mxu0
        %v3963 = vpop.f32.mrb[0].mxu0
        %v3964 = vadd.f32 0.0, %v3963
        %v3965 = vpop.f32.mrb[0].mxu0
        %3966 = vmatprep.mubr.bf16.mxu0 0
        %3967 = vmatmul.mubr.bf16.gmra.mrb[0].mxu0 %v3638
        %v3968 = vpop.f32.mrb[0].mxu0
        %v3969 = vadd.f32 0.0, %v3968
        %v3970 = vpop.f32.mrb[0].mxu0
        %v3971 = vpop.f32.mrb[0].mxu0
        %v3972 = vadd.f32 0.0, %v3971
        %v3973 = vpop.f32.mrb[0].mxu0
        %3974 = vmatprep.mubr.bf16.mxu0 0
        %3975 = vmatmul.mubr.bf16.gmra.mrb[0].mxu0 %v3641
        %v3976 = vpop.f32.mrb[0].mxu0
        %v3977 = vadd.f32 0.0, %v3976
        %v3978 = vpop.f32.mrb[0].mxu0
        %v3979 = vpop.f32.mrb[0].mxu0
        %v3980 = vadd.f32 0.0, %v3979
        %v3981 = vpop.f32.mrb[0].mxu0
        %3982 = vmatprep.mubr.bf16.mxu0 0
        %3983 = vmatmul.mubr.bf16.gmra.mrb[0].mxu0 %v3644
        %v3984 = vpop.f32.mrb[0].mxu0
        %v3985 = vadd.f32 0.0, %v3984
        %v3986 = vpop.f32.mrb[0].mxu0
        %v3987 = vpop.f32.mrb[0].mxu0
        %v3988 = vadd.f32 0.0, %v3987
        %v3989 = vpop.f32.mrb[0].mxu0
        %3990 = vmatprep.mubr.bf16.mxu0 0
        %3991 = vmatmul.mubr.bf16.gmra.mrb[0].mxu0 %v3647
        %v3992 = vpop.f32.mrb[0].mxu0
        %v3993 = vadd.f32 0.0, %v3992
        %v3994 = vpop.f32.mrb[0].mxu0
        %v3995 = vpop.f32.mrb[0].mxu0
        %v3996 = vadd.f32 0.0, %v3995
        %v3997 = vpop.f32.mrb[0].mxu0
        %3998 = vmatprep.mubr.bf16.mxu0 0
        %3999 = vmatmul.mubr.bf16.gmra.mrb[0].mxu0 %v3650
        %v4000 = vpop.f32.mrb[0].mxu0
        %v4001 = vadd.f32 0.0, %v4000
        %v4002 = vpop.f32.mrb[0].mxu0
        %v4003 = vpop.f32.mrb[0].mxu0
        %v4004 = vadd.f32 0.0, %v4003
        %v4005 = vpop.f32.mrb[0].mxu0
        %4006 = vmatprep.mubr.bf16.mxu0 0
        %4007 = vmatmul.mubr.bf16.gmra.mrb[0].mxu0 %v3653
        %v4008 = vpop.f32.mrb[0].mxu0
        %v4009 = vadd.f32 0.0, %v4008
        %v4010 = vpop.f32.mrb[0].mxu0
        %v4011 = vpop.f32.mrb[0].mxu0
        %v4012 = vadd.f32 0.0, %v4011
        %v4013 = vpop.f32.mrb[0].mxu0
        %4014 = vmatprep.mubr.bf16.mxu0 0
        %4015 = vmatmul.mubr.bf16.gmra.mrb[0].mxu0 %v3656
        %v4016 = vpop.f32.mrb[0].mxu0
        %v4017 = vadd.f32 0.0, %v4016
        %v4018 = vpop.f32.mrb[0].mxu0
        %v4019 = vpop.f32.mrb[0].mxu0
        %v4020 = vadd.f32 0.0, %v4019
        %v4021 = vpop.f32.mrb[0].mxu0
        %4022 = vmatprep.mubr.bf16.mxu0 0
        %4023 = vmatmul.mubr.bf16.gmra.mrb[0].mxu0 %v3659
        %v4024 = vpop.f32.mrb[0].mxu0
        %v4025 = vadd.f32 0.0, %v4024
        %v4026 = vpop.f32.mrb[0].mxu0
        %v4027 = vpop.f32.mrb[0].mxu0
        %v4028 = vadd.f32 0.0, %v4027
        %v4029 = vpop.f32.mrb[0].mxu0
        %4030 = vmatprep.mubr.bf16.mxu0 0
        %4031 = vmatmul.mubr.bf16.gmra.mrb[0].mxu0 %v3662
        %v4032 = vpop.f32.mrb[0].mxu0
        %v4033 = vadd.f32 0.0, %v4032
        %v4034 = vpop.f32.mrb[0].mxu0
        %v4035 = vpop.f32.mrb[0].mxu0
        %v4036 = vadd.f32 0.0, %v4035
        %v4037 = vpop.f32.mrb[0].mxu0
        %4038 = vmatprep.mubr.bf16.mxu0 0
        %4039 = vmatmul.mubr.bf16.gmra.mrb[0].mxu0 %v3665
        %v4040 = vpop.f32.mrb[0].mxu0
        %v4041 = vadd.f32 0.0, %v4040
        %v4042 = vpop.f32.mrb[0].mxu0
        %v4043 = vpop.f32.mrb[0].mxu0
        %v4044 = vadd.f32 0.0, %v4043
        %v4045 = vpop.f32.mrb[0].mxu0
        %4046 = vmatprep.mubr.bf16.mxu0 0
        %4047 = vmatmul.mubr.bf16.gmra.mrb[0].mxu0 %v3668
        %v4048 = vpop.f32.mrb[0].mxu0
        %v4049 = vadd.f32 0.0, %v4048
        %v4050 = vpop.f32.mrb[0].mxu0
        %v4051 = vpop.f32.mrb[0].mxu0
        %v4052 = vadd.f32 0.0, %v4051
        %v4053 = vpop.f32.mrb[0].mxu0
        %4054 = vmatprep.mubr.bf16.mxu0 0
        %4055 = vmatmul.mubr.bf16.gmra.mrb[0].mxu0 %v3671
        %v4056 = vpop.f32.mrb[0].mxu0
        %v4057 = vadd.f32 0.0, %v4056
        %v4058 = vpop.f32.mrb[0].mxu0
        %v4059 = vpop.f32.mrb[0].mxu0
        %v4060 = vadd.f32 0.0, %v4059
        %v4061 = vpop.f32.mrb[0].mxu0
        %4062 = vmatprep.mubr.bf16.mxu0 0
        %4063 = vmatmul.mubr.bf16.gmra.mrb[0].mxu0 %v3674
        %v4064 = vpop.f32.mrb[0].mxu0
        %v4065 = vadd.f32 0.0, %v4064
        %v4066 = vpop.f32.mrb[0].mxu0
        %v4067 = vpop.f32.mrb[0].mxu0
        %v4068 = vadd.f32 0.0, %v4067
        %v4069 = vpop.f32.mrb[0].mxu0
        %4070 = vmatprep.mubr.bf16.mxu0 0
        %4071 = vmatmul.mubr.bf16.gmra.mrb[0].mxu0 %v3677
        %v4072 = vpop.f32.mrb[0].mxu0
        %v4073 = vadd.f32 0.0, %v4072
        %v4074 = vpop.f32.mrb[0].mxu0
        %v4075 = vpop.f32.mrb[0].mxu0
        %v4076 = vadd.f32 0.0, %v4075
        %v4077 = vpop.f32.mrb[0].mxu0
        %4078 = vmatprep.mubr.bf16.mxu0 0
        %4079 = vmatmul.mubr.bf16.gmra.mrb[0].mxu0 %v3680
        %v4080 = vpop.f32.mrb[0].mxu0
        %v4081 = vadd.f32 0.0, %v4080
        %v4082 = vpop.f32.mrb[0].mxu0
        %v4083 = vpop.f32.mrb[0].mxu0
        %v4084 = vadd.f32 0.0, %v4083
        %v4085 = vpop.f32.mrb[0].mxu0
        %4086 = vmatprep.mubr.bf16.mxu0 0
        %4087 = vmatmul.mubr.bf16.gmra.mrb[0].mxu0 %v3683
        %v4088 = vpop.f32.mrb[0].mxu0
        %v4089 = vadd.f32 0.0, %v4088
        %v4090 = vpop.f32.mrb[0].mxu0
        %v4091 = vpop.f32.mrb[0].mxu0
        %v4092 = vadd.f32 0.0, %v4091
        %v4093 = vpop.f32.mrb[0].mxu0
        %4094 = vmatprep.mubr.bf16.mxu0 0
        %4095 = vmatmul.mubr.bf16.gmra.mrb[0].mxu0 %v3686
        %v4096 = vpop.f32.mrb[0].mxu0
        %v4097 = vadd.f32 0.0, %v4096
        %v4098 = vpop.f32.mrb[0].mxu0
        %v4099 = vpop.f32.mrb[0].mxu0
        %v4100 = vadd.f32 0.0, %v4099
        %v4101 = vpop.f32.mrb[0].mxu0
        %4102 = vmatprep.mubr.bf16.mxu0 0
        %4103 = vmatmul.mubr.bf16.gmra.mrb[0].mxu0 %v3689
        %v4104 = vpop.f32.mrb[0].mxu0
        %v4105 = vadd.f32 0.0, %v4104
        %v4106 = vpop.f32.mrb[0].mxu0
        %v4107 = vpop.f32.mrb[0].mxu0
        %v4108 = vadd.f32 0.0, %v4107
        %v4109 = vpop.f32.mrb[0].mxu0
        %4110 = vmatprep.mubr.bf16.mxu0 0
        %4111 = vmatmul.mubr.bf16.gmra.mrb[0].mxu0 %v3692
        %v4112 = vpop.f32.mrb[0].mxu0
        %v4113 = vadd.f32 0.0, %v4112
        %v4114 = vpop.f32.mrb[0].mxu0
        %v4115 = vpop.f32.mrb[0].mxu0
        %v4116 = vadd.f32 0.0, %v4115
        %v4117 = vpop.f32.mrb[0].mxu0
        %4118 = vmatprep.mubr.bf16.mxu0 0
        %4119 = vmatmul.mubr.bf16.gmra.mrb[0].mxu0 %v3695
        %v4120 = vpop.f32.mrb[0].mxu0
        %v4121 = vadd.f32 0.0, %v4120
        %v4122 = vpop.f32.mrb[0].mxu0
        %v4123 = vpop.f32.mrb[0].mxu0
        %v4124 = vadd.f32 0.0, %v4123
        %v4125 = vpop.f32.mrb[0].mxu0
        %4126 = vmatprep.mubr.bf16.mxu0 0
        %4127 = vmatmul.mubr.bf16.gmra.mrb[0].mxu0 %v3698
        %v4128 = vpop.f32.mrb[0].mxu0
        %v4129 = vadd.f32 0.0, %v4128
        %v4130 = vpop.f32.mrb[0].mxu0
        %v4131 = vpop.f32.mrb[0].mxu0
        %v4132 = vadd.f32 0.0, %v4131
        %v4133 = vpop.f32.mrb[0].mxu0
        %4134 = vmatprep.mubr.bf16.mxu0 0
        %4135 = vmatmul.mubr.bf16.gmra.mrb[0].mxu0 %v3701
        %v4136 = vpop.f32.mrb[0].mxu0
        %v4137 = vadd.f32 0.0, %v4136
        %v4138 = vpop.f32.mrb[0].mxu0
        %v4139 = vpop.f32.mrb[0].mxu0
        %v4140 = vadd.f32 0.0, %v4139
        %v4141 = vpop.f32.mrb[0].mxu0
        %4142 = vmatprep.mubr.bf16.mxu0 0
        %4143 = vmatmul.mubr.bf16.gmra.mrb[0].mxu0 %v3704
        %v4144 = vpop.f32.mrb[0].mxu0
        %v4145 = vadd.f32 0.0, %v4144
        %v4146 = vpop.f32.mrb[0].mxu0
        %v4147 = vpop.f32.mrb[0].mxu0
        %v4148 = vadd.f32 0.0, %v4147
        %v4149 = vpop.f32.mrb[0].mxu0
        %4150 = vmatprep.mubr.bf16.mxu0 0
        %4151 = vmatmul.mubr.bf16.gmra.mrb[0].mxu0 %v3707
        %v4152 = vpop.f32.mrb[0].mxu0
        %v4153 = vadd.f32 0.0, %v4152
        %v4154 = vpop.f32.mrb[0].mxu0
        %v4155 = vpop.f32.mrb[0].mxu0
        %v4156 = vadd.f32 0.0, %v4155
        %v4157 = vpop.f32.mrb[0].mxu0
        %4158 = vmatprep.mubr.bf16.mxu0 0
        %4159 = vmatmul.mubr.bf16.gmra.mrb[0].mxu0 %v3710
        %v4160 = vpop.f32.mrb[0].mxu0
        %v4161 = vadd.f32 0.0, %v4160
        %v4162 = vpop.f32.mrb[0].mxu0
        %v4163 = vpop.f32.mrb[0].mxu0
        %v4164 = vadd.f32 0.0, %v4163
        %v4165 = vpop.f32.mrb[0].mxu0
        %4166 = vmatprep.mubr.bf16.mxu0 0
        %4167 = vmatmul.mubr.bf16.gmra.mrb[0].mxu0 %v3713
        %v4168 = vpop.f32.mrb[0].mxu0
        %v4169 = vadd.f32 0.0, %v4168
        %v4170 = vpop.f32.mrb[0].mxu0
        %v4171 = vpop.f32.mrb[0].mxu0
        %v4172 = vadd.f32 0.0, %v4171
        %v4173 = vpop.f32.mrb[0].mxu0
        %4174 = vmatprep.mubr.bf16.mxu0 0
        %4175 = vmatmul.mubr.bf16.gmra.mrb[0].mxu0 %v3716
        %v4176 = vpop.f32.mrb[0].mxu0
        %v4177 = vadd.f32 0.0, %v4176
        %v4178 = vpop.f32.mrb[0].mxu0
        %v4179 = vpop.f32.mrb[0].mxu0
        %v4180 = vadd.f32 0.0, %v4179
        %v4181 = vpop.f32.mrb[0].mxu0
        %4182 = vmatprep.mubr.bf16.mxu0 0
        %4183 = vmatmul.mubr.bf16.gmra.mrb[0].mxu0 %v3719
        %v4184 = vpop.f32.mrb[0].mxu0
        %v4185 = vadd.f32 0.0, %v4184
        %v4186 = vpop.f32.mrb[0].mxu0
        %v4187 = vpop.f32.mrb[0].mxu0
        %v4188 = vadd.f32 0.0, %v4187
        %v4189 = vpop.f32.mrb[0].mxu0
        %4190 = vmatprep.mubr.bf16.mxu0 0
        %4191 = vmatmul.mubr.bf16.gmra.mrb[0].mxu0 %v3722
        %v4192 = vpop.f32.mrb[0].mxu0
        %v4193 = vadd.f32 0.0, %v4192
        %v4194 = vpop.f32.mrb[0].mxu0
        %v4195 = vpop.f32.mrb[0].mxu0
        %v4196 = vadd.f32 0.0, %v4195
        %v4197 = vpop.f32.mrb[0].mxu0
        %4198 = vmatprep.mubr.bf16.mxu0 0
        %4199 = vmatmul.mubr.bf16.gmra.mrb[0].mxu0 %v3725
        %v4200 = vpop.f32.mrb[0].mxu0
        %v4201 = vadd.f32 0.0, %v4200
        %v4202 = vpop.f32.mrb[0].mxu0
        %v4203 = vpop.f32.mrb[0].mxu0
        %v4204 = vadd.f32 0.0, %v4203
        %v4205 = vpop.f32.mrb[0].mxu0
        %4206 = vmatprep.mubr.bf16.mxu0 0
        %4207 = vmatmul.mubr.bf16.gmra.mrb[0].mxu0 %v3728
        %v4208 = vpop.f32.mrb[0].mxu0
        %v4209 = vadd.f32 0.0, %v4208
        %v4210 = vpop.f32.mrb[0].mxu0
        %v4211 = vpop.f32.mrb[0].mxu0
        %v4212 = vadd.f32 0.0, %v4211
        %v4213 = vpop.f32.mrb[0].mxu0
        %4214 = vmatprep.mubr.bf16.mxu0 0
        %4215 = vmatmul.mubr.bf16.gmra.mrb[0].mxu0 %v3731
        %v4216 = vpop.f32.mrb[0].mxu0
        %v4217 = vadd.f32 0.0, %v4216
        %v4218 = vpop.f32.mrb[0].mxu0
        %v4219 = vpop.f32.mrb[0].mxu0
        %v4220 = vadd.f32 0.0, %v4219
        %v4221 = vpop.f32.mrb[0].mxu0
        %4222 = vmatprep.mubr.bf16.mxu0 0
        %4223 = vmatmul.mubr.bf16.gmra.mrb[0].mxu0 %v3734
        %v4224 = vpop.f32.mrb[0].mxu0
        %v4225 = vadd.f32 0.0, %v4224
        %v4226 = vpop.f32.mrb[0].mxu0
        %v4227 = vpop.f32.mrb[0].mxu0
        %v4228 = vadd.f32 0.0, %v4227
        %v4229 = vpop.f32.mrb[0].mxu0
        %4230 = vmatprep.mubr.bf16.mxu0 0
        %4231 = vmatmul.mubr.bf16.gmra.mrb[0].mxu0 %v3737
        %v4232 = vpop.f32.mrb[0].mxu0
        %v4233 = vadd.f32 0.0, %v4232
        %v4234 = vpop.f32.mrb[0].mxu0
        %v4235 = vpop.f32.mrb[0].mxu0
        %v4236 = vadd.f32 0.0, %v4235
        %v4237 = vpop.f32.mrb[0].mxu0
        %4238 = vmatprep.mubr.bf16.mxu0 0
        %4239 = vmatmul.mubr.bf16.gmra.mrb[0].mxu0 %v3740
        %v4240 = vpop.f32.mrb[0].mxu0
        %v4241 = vadd.f32 0.0, %v4240
        %v4242 = vpop.f32.mrb[0].mxu0
        %v4243 = vpop.f32.mrb[0].mxu0
        %v4244 = vadd.f32 0.0, %v4243
        %v4245 = vpop.f32.mrb[0].mxu0
        %4246 = vmatprep.mubr.bf16.mxu0 0
        %4247 = vmatmul.mubr.bf16.gmra.mrb[0].mxu0 %v3743
        %v4248 = vpop.f32.mrb[0].mxu0
        %v4249 = vadd.f32 0.0, %v4248
        %v4250 = vpop.f32.mrb[0].mxu0
        %v4251 = vpop.f32.mrb[0].mxu0
        %v4252 = vadd.f32 0.0, %v4251
        %v4253 = vpop.f32.mrb[0].mxu0
        %4254 = vmatprep.mubr.bf16.mxu0 0
        %4255 = vmatmul.mubr.bf16.gmra.mrb[0].mxu0 %v3746
        %v4256 = vpop.f32.mrb[0].mxu0
        %v4257 = vadd.f32 0.0, %v4256
        %v4258 = vpop.f32.mrb[0].mxu0
        %v4259 = vpop.f32.mrb[0].mxu0
        %v4260 = vadd.f32 0.0, %v4259
        %v4261 = vpop.f32.mrb[0].mxu0
        %4262 = vmatprep.mubr.bf16.mxu0 0
        %4263 = vmatmul.mubr.bf16.gmra.mrb[0].mxu0 %v3749
        %v4264 = vpop.f32.mrb[0].mxu0
        %v4265 = vadd.f32 0.0, %v4264
        %v4266 = vpop.f32.mrb[0].mxu0
        %v4267 = vpop.f32.mrb[0].mxu0
        %v4268 = vadd.f32 0.0, %v4267
        %v4269 = vpop.f32.mrb[0].mxu0
        %4270 = vmatprep.mubr.bf16.mxu0 0
        %4271 = vmatmul.mubr.bf16.gmra.mrb[0].mxu0 %v3752
        %v4272 = vpop.f32.mrb[0].mxu0
        %v4273 = vadd.f32 0.0, %v4272
        %v4274 = vpop.f32.mrb[0].mxu0
        %v4275 = vpop.f32.mrb[0].mxu0
        %v4276 = vadd.f32 0.0, %v4275
        %v4277 = vpop.f32.mrb[0].mxu0
        %4278 = vmatprep.mubr.bf16.mxu0 0
        %4279 = vmatmul.mubr.bf16.gmra.mrb[0].mxu0 %v3755
        %v4280 = vpop.f32.mrb[0].mxu0
        %v4281 = vadd.f32 0.0, %v4280
        %v4282 = vpop.f32.mrb[0].mxu0
        %v4283 = vpop.f32.mrb[0].mxu0
        %v4284 = vadd.f32 0.0, %v4283
        %v4285 = vpop.f32.mrb[0].mxu0
        %4286 = vmatprep.mubr.bf16.mxu0 0
        %4287 = vmatmul.mubr.bf16.gmra.mrb[0].mxu0 %v3758
        %v4288 = vpop.f32.mrb[0].mxu0
        %v4289 = vadd.f32 0.0, %v4288
        %v4290 = vpop.f32.mrb[0].mxu0
        %v4291 = vpop.f32.mrb[0].mxu0
        %v4292 = vadd.f32 0.0, %v4291
        %v4293 = vpop.f32.mrb[0].mxu0
        %4294 = vmatprep.mubr.bf16.mxu0 0
        %4295 = vmatmul.mubr.bf16.gmra.mrb[0].mxu0 %v3761
        %v4296 = vpop.f32.mrb[0].mxu0
        %v4297 = vadd.f32 0.0, %v4296
        %v4298 = vpop.f32.mrb[0].mxu0
        %v4299 = vpop.f32.mrb[0].mxu0
        %v4300 = vadd.f32 0.0, %v4299
        %v4301 = vpop.f32.mrb[0].mxu0
        %4302 = vmatprep.mubr.bf16.mxu0 0
        %4303 = vmatmul.mubr.bf16.gmra.mrb[0].mxu0 %v3764
        %v4304 = vpop.f32.mrb[0].mxu0
        %v4305 = vadd.f32 0.0, %v4304
        %v4306 = vpop.f32.mrb[0].mxu0
        %v4307 = vpop.f32.mrb[0].mxu0
        %v4308 = vadd.f32 0.0, %v4307
        %v4309 = vpop.f32.mrb[0].mxu0
        %4310 = vdwg.mxu0
        %v4311 = vadd.f32 %v2582, %v3801
        %v4312 = vadd.f32 %v2585, %v3804
        %v4313 = vadd.f32 %v2590, %v3809
        %v4314 = vadd.f32 %v2593, %v3812
        %v4315 = vadd.f32 %v2598, %v3817
        %v4316 = vadd.f32 %v2601, %v3820
        %v4317 = vadd.f32 %v2606, %v3825
        %v4318 = vadd.f32 %v2609, %v3828
        %v4319 = vadd.f32 %v2614, %v3833
        %v4320 = vadd.f32 %v2617, %v3836
        %v4321 = vadd.f32 %v2622, %v3841
        %v4322 = vadd.f32 %v2625, %v3844
        %v4323 = vadd.f32 %v2630, %v3849
        %v4324 = vadd.f32 %v2633, %v3852
        %v4325 = vadd.f32 %v2638, %v3857
        %v4326 = vadd.f32 %v2641, %v3860
        %v4327 = vadd.f32 %v2646, %v3865
        %v4328 = vadd.f32 %v2649, %v3868
        %v4329 = vadd.f32 %v2654, %v3873
        %v4330 = vadd.f32 %v2657, %v3876
        %v4331 = vadd.f32 %v2662, %v3881
        %v4332 = vadd.f32 %v2665, %v3884
        %v4333 = vadd.f32 %v2670, %v3889
        %v4334 = vadd.f32 %v2673, %v3892
        %v4335 = vadd.f32 %v2678, %v3897
        %v4336 = vadd.f32 %v2681, %v3900
        %v4337 = vadd.f32 %v2686, %v3905
        %v4338 = vadd.f32 %v2689, %v3908
        %v4339 = vadd.f32 %v2694, %v3913
        %v4340 = vadd.f32 %v2697, %v3916
        %v4341 = vadd.f32 %v2702, %v3921
        %v4342 = vadd.f32 %v2705, %v3924
        %v4343 = vadd.f32 %v2710, %v3929
        %v4344 = vadd.f32 %v2713, %v3932
        %v4345 = vadd.f32 %v2718, %v3937
        %v4346 = vadd.f32 %v2721, %v3940
        %v4347 = vadd.f32 %v2726, %v3945
        %v4348 = vadd.f32 %v2729, %v3948
        %v4349 = vadd.f32 %v2734, %v3953
        %v4350 = vadd.f32 %v2737, %v3956
        %v4351 = vadd.f32 %v2742, %v3961
        %v4352 = vadd.f32 %v2745, %v3964
        %v4353 = vadd.f32 %v2750, %v3969
        %v4354 = vadd.f32 %v2753, %v3972
        %v4355 = vadd.f32 %v2758, %v3977
        %v4356 = vadd.f32 %v2761, %v3980
        %v4357 = vadd.f32 %v2766, %v3985
        %v4358 = vadd.f32 %v2769, %v3988
        %v4359 = vadd.f32 %v2774, %v3993
        %v4360 = vadd.f32 %v2777, %v3996
        %v4361 = vadd.f32 %v2782, %v4001
        %v4362 = vadd.f32 %v2785, %v4004
        %v4363 = vadd.f32 %v2790, %v4009
        %v4364 = vadd.f32 %v2793, %v4012
        %v4365 = vadd.f32 %v2798, %v4017
        %v4366 = vadd.f32 %v2801, %v4020
        %v4367 = vadd.f32 %v2806, %v4025
        %v4368 = vadd.f32 %v2809, %v4028
        %v4369 = vadd.f32 %v2814, %v4033
        %v4370 = vadd.f32 %v2817, %v4036
        %v4371 = vadd.f32 %v2822, %v4041
        %v4372 = vadd.f32 %v2825, %v4044
        %v4373 = vadd.f32 %v2830, %v4049
        %v4374 = vadd.f32 %v2833, %v4052
        %v4375 = vadd.f32 %v2838, %v4057
        %v4376 = vadd.f32 %v2841, %v4060
        %v4377 = vadd.f32 %v2846, %v4065
        %v4378 = vadd.f32 %v2849, %v4068
        %v4379 = vadd.f32 %v2854, %v4073
        %v4380 = vadd.f32 %v2857, %v4076
        %v4381 = vadd.f32 %v2862, %v4081
        %v4382 = vadd.f32 %v2865, %v4084
        %v4383 = vadd.f32 %v2870, %v4089
        %v4384 = vadd.f32 %v2873, %v4092
        %v4385 = vadd.f32 %v2878, %v4097
        %v4386 = vadd.f32 %v2881, %v4100
        %v4387 = vadd.f32 %v2886, %v4105
        %v4388 = vadd.f32 %v2889, %v4108
        %v4389 = vadd.f32 %v2894, %v4113
        %v4390 = vadd.f32 %v2897, %v4116
        %v4391 = vadd.f32 %v2902, %v4121
        %v4392 = vadd.f32 %v2905, %v4124
        %v4393 = vadd.f32 %v2910, %v4129
        %v4394 = vadd.f32 %v2913, %v4132
        %v4395 = vadd.f32 %v2918, %v4137
        %v4396 = vadd.f32 %v2921, %v4140
        %v4397 = vadd.f32 %v2926, %v4145
        %v4398 = vadd.f32 %v2929, %v4148
        %v4399 = vadd.f32 %v2934, %v4153
        %v4400 = vadd.f32 %v2937, %v4156
        %v4401 = vadd.f32 %v2942, %v4161
        %v4402 = vadd.f32 %v2945, %v4164
        %v4403 = vadd.f32 %v2950, %v4169
        %v4404 = vadd.f32 %v2953, %v4172
        %v4405 = vadd.f32 %v2958, %v4177
        %v4406 = vadd.f32 %v2961, %v4180
        %v4407 = vadd.f32 %v2966, %v4185
        %v4408 = vadd.f32 %v2969, %v4188
        %v4409 = vadd.f32 %v2974, %v4193
        %v4410 = vadd.f32 %v2977, %v4196
        %v4411 = vadd.f32 %v2982, %v4201
        %v4412 = vadd.f32 %v2985, %v4204
        %v4413 = vadd.f32 %v2990, %v4209
        %v4414 = vadd.f32 %v2993, %v4212
        %v4415 = vadd.f32 %v2998, %v4217
        %v4416 = vadd.f32 %v3001, %v4220
        %v4417 = vadd.f32 %v3006, %v4225
        %v4418 = vadd.f32 %v3009, %v4228
        %v4419 = vadd.f32 %v3014, %v4233
        %v4420 = vadd.f32 %v3017, %v4236
        %v4421 = vadd.f32 %v3022, %v4241
        %v4422 = vadd.f32 %v3025, %v4244
        %v4423 = vadd.f32 %v3030, %v4249
        %v4424 = vadd.f32 %v3033, %v4252
        %v4425 = vadd.f32 %v3038, %v4257
        %v4426 = vadd.f32 %v3041, %v4260
        %v4427 = vadd.f32 %v3046, %v4265
        %v4428 = vadd.f32 %v3049, %v4268
        %v4429 = vadd.f32 %v3054, %v4273
        %v4430 = vadd.f32 %v3057, %v4276
        %v4431 = vadd.f32 %v3062, %v4281
        %v4432 = vadd.f32 %v3065, %v4284
        %v4433 = vadd.f32 %v3070, %v4289
        %v4434 = vadd.f32 %v3073, %v4292
        %v4435 = vadd.f32 %v3078, %v4297
        %v4436 = vadd.f32 %v3081, %v4300
        %v4437 = vadd.f32 %v3086, %v4305
        %v4438 = vadd.f32 %v3089, %v4308
        %s4439 = scalar_lea.vmem %s566, 80 [#allocation2]
        %v4440 = vld [vmem:[%s4439] sm:$0xf]
        %v4441 = vld [vmem:[%s4439 + $0x4] sm:$0xf]
        %v4442 = vld [vmem:[%s4439 + $0x8] sm:$0xf]
        %v4443 = vld [vmem:[%s4439 + $0xc] sm:$0xf]
        %v4444 = vld [vmem:[%s4439 + $0x10] sm:$0xf]
        %v4445 = vld [vmem:[%s4439 + $0x14] sm:$0xf]
        %v4446 = vld [vmem:[%s4439 + $0x18] sm:$0xf]
        %v4447 = vld [vmem:[%s4439 + $0x1c] sm:$0xf]
        %v4448 = vld [vmem:[%s4439 + $0x20] sm:$0xf]
        %v4449 = vld [vmem:[%s4439 + $0x24] sm:$0xf]
        %v4450 = vld [vmem:[%s4439 + $0x28] sm:$0xf]
        %v4451 = vld [vmem:[%s4439 + $0x2c] sm:$0xf]
        %v4452 = vld [vmem:[%s4439 + $0x30] sm:$0xf]
        %v4453 = vld [vmem:[%s4439 + $0x34] sm:$0xf]
        %v4454 = vld [vmem:[%s4439 + $0x38] sm:$0xf]
        %v4455 = vld [vmem:[%s4439 + $0x3c] sm:$0xf]
        %v4456 = vld [vmem:[%s4439 + $0x48] sm:$0xf]
        %v4457 = vld [vmem:[%s4439 + $0x4c] sm:$0xf]
        %v4458 = vld [vmem:[%s4439 + $0x50] sm:$0xf]
        %v4459 = vld [vmem:[%s4439 + $0x54] sm:$0xf]
        %v4460 = vld [vmem:[%s4439 + $0x58] sm:$0xf]
        %v4461 = vld [vmem:[%s4439 + $0x5c] sm:$0xf]
        %v4462 = vld [vmem:[%s4439 + $0x60] sm:$0xf]
        %v4463 = vld [vmem:[%s4439 + $0x64] sm:$0xf]
        %v4464 = vld [vmem:[%s4439 + $0x68] sm:$0xf]
        %v4465 = vld [vmem:[%s4439 + $0x6c] sm:$0xf]
        %v4466 = vld [vmem:[%s4439 + $0x70] sm:$0xf]
        %v4467 = vld [vmem:[%s4439 + $0x74] sm:$0xf]
        %v4468 = vld [vmem:[%s4439 + $0x78] sm:$0xf]
        %v4469 = vld [vmem:[%s4439 + $0x7c] sm:$0xf]
        %v4470 = vld [vmem:[%s4439 + $0x80] sm:$0xf]
        %v4471 = vld [vmem:[%s4439 + $0x84] sm:$0xf]
        %v4472 = vld [vmem:[%s4439 + $0x90] sm:$0xf]
        %v4473 = vld [vmem:[%s4439 + $0x94] sm:$0xf]
        %v4474 = vld [vmem:[%s4439 + $0x98] sm:$0xf]
        %v4475 = vld [vmem:[%s4439 + $0x9c] sm:$0xf]
        %v4476 = vld [vmem:[%s4439 + $0xa0] sm:$0xf]
        %v4477 = vld [vmem:[%s4439 + $0xa4] sm:$0xf]
        %v4478 = vld [vmem:[%s4439 + $0xa8] sm:$0xf]
        %v4479 = vld [vmem:[%s4439 + $0xac] sm:$0xf]
        %v4480 = vld [vmem:[%s4439 + $0xb0] sm:$0xf]
        %v4481 = vld [vmem:[%s4439 + $0xb4] sm:$0xf]
        %v4482 = vld [vmem:[%s4439 + $0xb8] sm:$0xf]
        %v4483 = vld [vmem:[%s4439 + $0xbc] sm:$0xf]
        %v4484 = vld [vmem:[%s4439 + $0xc0] sm:$0xf]
        %v4485 = vld [vmem:[%s4439 + $0xc4] sm:$0xf]
        %v4486 = vld [vmem:[%s4439 + $0xc8] sm:$0xf]
        %v4487 = vld [vmem:[%s4439 + $0xcc] sm:$0xf]
        %v4488 = vld [vmem:[%s4439 + $0xd8] sm:$0xf]
        %v4489 = vld [vmem:[%s4439 + $0xdc] sm:$0xf]
        %v4490 = vld [vmem:[%s4439 + $0xe0] sm:$0xf]
        %v4491 = vld [vmem:[%s4439 + $0xe4] sm:$0xf]
        %v4492 = vld [vmem:[%s4439 + $0xe8] sm:$0xf]
        %v4493 = vld [vmem:[%s4439 + $0xec] sm:$0xf]
        %v4494 = vld [vmem:[%s4439 + $0xf0] sm:$0xf]
        %v4495 = vld [vmem:[%s4439 + $0xf4] sm:$0xf]
        %v4496 = vld [vmem:[%s4439 + $0xf8] sm:$0xf]
        %v4497 = vld [vmem:[%s4439 + $0xfc] sm:$0xf]
        %v4498 = vld [vmem:[%s4439 + $0x100] sm:$0xf]
        %v4499 = vld [vmem:[%s4439 + $0x104] sm:$0xf]
        %v4500 = vld [vmem:[%s4439 + $0x108] sm:$0xf]
        %v4501 = vld [vmem:[%s4439 + $0x10c] sm:$0xf]
        %v4502 = vld [vmem:[%s4439 + $0x110] sm:$0xf]
        %v4503 = vld [vmem:[%s4439 + $0x114] sm:$0xf]
        %v4504 = vld [vmem:[%s4439 + $0x120] sm:$0xf]
        %v4505 = vld [vmem:[%s4439 + $0x124] sm:$0xf]
        %v4506 = vld [vmem:[%s4439 + $0x128] sm:$0xf]
        %v4507 = vld [vmem:[%s4439 + $0x12c] sm:$0xf]
        %v4508 = vld [vmem:[%s4439 + $0x130] sm:$0xf]
        %v4509 = vld [vmem:[%s4439 + $0x134] sm:$0xf]
        %v4510 = vld [vmem:[%s4439 + $0x138] sm:$0xf]
        %v4511 = vld [vmem:[%s4439 + $0x13c] sm:$0xf]
        %v4512 = vld [vmem:[%s4439 + $0x140] sm:$0xf]
        %v4513 = vld [vmem:[%s4439 + $0x144] sm:$0xf]
        %v4514 = vld [vmem:[%s4439 + $0x148] sm:$0xf]
        %v4515 = vld [vmem:[%s4439 + $0x14c] sm:$0xf]
        %v4516 = vld [vmem:[%s4439 + $0x150] sm:$0xf]
        %v4517 = vld [vmem:[%s4439 + $0x154] sm:$0xf]
        %v4518 = vld [vmem:[%s4439 + $0x158] sm:$0xf]
        %v4519 = vld [vmem:[%s4439 + $0x15c] sm:$0xf]
        %v4520 = vld [vmem:[%s4439 + $0x168] sm:$0xf]
        %v4521 = vld [vmem:[%s4439 + $0x16c] sm:$0xf]
        %v4522 = vld [vmem:[%s4439 + $0x170] sm:$0xf]
        %v4523 = vld [vmem:[%s4439 + $0x174] sm:$0xf]
        %v4524 = vld [vmem:[%s4439 + $0x178] sm:$0xf]
        %v4525 = vld [vmem:[%s4439 + $0x17c] sm:$0xf]
        %v4526 = vld [vmem:[%s4439 + $0x180] sm:$0xf]
        %v4527 = vld [vmem:[%s4439 + $0x184] sm:$0xf]
        %v4528 = vld [vmem:[%s4439 + $0x188] sm:$0xf]
        %v4529 = vld [vmem:[%s4439 + $0x18c] sm:$0xf]
        %v4530 = vld [vmem:[%s4439 + $0x190] sm:$0xf]
        %v4531 = vld [vmem:[%s4439 + $0x194] sm:$0xf]
        %v4532 = vld [vmem:[%s4439 + $0x198] sm:$0xf]
        %v4533 = vld [vmem:[%s4439 + $0x19c] sm:$0xf]
        %v4534 = vld [vmem:[%s4439 + $0x1a0] sm:$0xf]
        %v4535 = vld [vmem:[%s4439 + $0x1a4] sm:$0xf]
        %v4536 = vld [vmem:[%s4439 + $0x1b0] sm:$0xf]
        %v4537 = vld [vmem:[%s4439 + $0x1b4] sm:$0xf]
        %v4538 = vld [vmem:[%s4439 + $0x1b8] sm:$0xf]
        %v4539 = vld [vmem:[%s4439 + $0x1bc] sm:$0xf]
        %v4540 = vld [vmem:[%s4439 + $0x1c0] sm:$0xf]
        %v4541 = vld [vmem:[%s4439 + $0x1c4] sm:$0xf]
        %v4542 = vld [vmem:[%s4439 + $0x1c8] sm:$0xf]
        %v4543 = vld [vmem:[%s4439 + $0x1cc] sm:$0xf]
        %v4544 = vld [vmem:[%s4439 + $0x1d0] sm:$0xf]
        %v4545 = vld [vmem:[%s4439 + $0x1d4] sm:$0xf]
        %v4546 = vld [vmem:[%s4439 + $0x1d8] sm:$0xf]
        %v4547 = vld [vmem:[%s4439 + $0x1dc] sm:$0xf]
        %v4548 = vld [vmem:[%s4439 + $0x1e0] sm:$0xf]
        %v4549 = vld [vmem:[%s4439 + $0x1e4] sm:$0xf]
        %v4550 = vld [vmem:[%s4439 + $0x1e8] sm:$0xf]
        %v4551 = vld [vmem:[%s4439 + $0x1ec] sm:$0xf]
        %v4552 = vld [vmem:[%s4439 + $0x1f8] sm:$0xf]
        %v4553 = vld [vmem:[%s4439 + $0x1fc] sm:$0xf]
        %v4554 = vld [vmem:[%s4439 + $0x200] sm:$0xf]
        %v4555 = vld [vmem:[%s4439 + $0x204] sm:$0xf]
        %v4556 = vld [vmem:[%s4439 + $0x208] sm:$0xf]
        %v4557 = vld [vmem:[%s4439 + $0x20c] sm:$0xf]
        %v4558 = vld [vmem:[%s4439 + $0x210] sm:$0xf]
        %v4559 = vld [vmem:[%s4439 + $0x214] sm:$0xf]
        %v4560 = vld [vmem:[%s4439 + $0x218] sm:$0xf]
        %v4561 = vld [vmem:[%s4439 + $0x21c] sm:$0xf]
        %v4562 = vld [vmem:[%s4439 + $0x220] sm:$0xf]
        %v4563 = vld [vmem:[%s4439 + $0x224] sm:$0xf]
        %v4564 = vld [vmem:[%s4439 + $0x228] sm:$0xf]
        %v4565 = vld [vmem:[%s4439 + $0x22c] sm:$0xf]
        %v4566 = vld [vmem:[%s4439 + $0x230] sm:$0xf]
        %v4567 = vld [vmem:[%s4439 + $0x234] sm:$0xf]
        %s4568 = scalar_lea.vmem %s2, 96
        %v4569 = vld [vmem:[%s4568] sm:$0xf]
        %v4570 = vld [vmem:[%s4568 + $0x4] sm:$0xf]
        %v4571 = vld [vmem:[%s4568 + $0x8] sm:$0xf]
        %v4572 = vld [vmem:[%s4568 + $0xc] sm:$0xf]
        %v4573 = vld [vmem:[%s4568 + $0x10] sm:$0xf]
        %v4574 = vld [vmem:[%s4568 + $0x14] sm:$0xf]
        %v4575 = vld [vmem:[%s4568 + $0x18] sm:$0xf]
        %v4576 = vld [vmem:[%s4568 + $0x1c] sm:$0xf]
        %v4705 = vunpack.c.l.b16 %v4440
        %v4706 = vunpack.c.l.b16 %v4441
        %v4707 = vunpack.c.l.b16 %v4442
        %v4708 = vunpack.c.l.b16 %v4443
        %v4709 = vunpack.c.l.b16 %v4444
        %v4710 = vunpack.c.l.b16 %v4445
        %v4711 = vunpack.c.l.b16 %v4446
        %v4712 = vunpack.c.l.b16 %v4447
        %v4713 = vunpack.c.l.b16 %v4448
        %v4714 = vunpack.c.l.b16 %v4449
        %v4715 = vunpack.c.l.b16 %v4450
        %v4716 = vunpack.c.l.b16 %v4451
        %v4717 = vunpack.c.l.b16 %v4452
        %v4718 = vunpack.c.l.b16 %v4453
        %v4719 = vunpack.c.l.b16 %v4454
        %v4720 = vunpack.c.l.b16 %v4455
        %v4721 = vunpack.c.l.b16 %v4456
        %v4722 = vunpack.c.l.b16 %v4457
        %v4723 = vunpack.c.l.b16 %v4458
        %v4724 = vunpack.c.l.b16 %v4459
        %v4725 = vunpack.c.l.b16 %v4460
        %v4726 = vunpack.c.l.b16 %v4461
        %v4727 = vunpack.c.l.b16 %v4462
        %v4728 = vunpack.c.l.b16 %v4463
        %v4729 = vunpack.c.l.b16 %v4464
        %v4730 = vunpack.c.l.b16 %v4465
        %v4731 = vunpack.c.l.b16 %v4466
        %v4732 = vunpack.c.l.b16 %v4467
        %v4733 = vunpack.c.l.b16 %v4468
        %v4734 = vunpack.c.l.b16 %v4469
        %v4735 = vunpack.c.l.b16 %v4470
        %v4736 = vunpack.c.l.b16 %v4471
        %v4737 = vunpack.c.l.b16 %v4472
        %v4738 = vunpack.c.l.b16 %v4473
        %v4739 = vunpack.c.l.b16 %v4474
        %v4740 = vunpack.c.l.b16 %v4475
        %v4741 = vunpack.c.l.b16 %v4476
        %v4742 = vunpack.c.l.b16 %v4477
        %v4743 = vunpack.c.l.b16 %v4478
        %v4744 = vunpack.c.l.b16 %v4479
        %v4745 = vunpack.c.l.b16 %v4480
        %v4746 = vunpack.c.l.b16 %v4481
        %v4747 = vunpack.c.l.b16 %v4482
        %v4748 = vunpack.c.l.b16 %v4483
        %v4749 = vunpack.c.l.b16 %v4484
        %v4750 = vunpack.c.l.b16 %v4485
        %v4751 = vunpack.c.l.b16 %v4486
        %v4752 = vunpack.c.l.b16 %v4487
        %v4753 = vunpack.c.l.b16 %v4488
        %v4754 = vunpack.c.l.b16 %v4489
        %v4755 = vunpack.c.l.b16 %v4490
        %v4756 = vunpack.c.l.b16 %v4491
        %v4757 = vunpack.c.l.b16 %v4492
        %v4758 = vunpack.c.l.b16 %v4493
        %v4759 = vunpack.c.l.b16 %v4494
        %v4760 = vunpack.c.l.b16 %v4495
        %v4761 = vunpack.c.l.b16 %v4496
        %v4762 = vunpack.c.l.b16 %v4497
        %v4763 = vunpack.c.l.b16 %v4498
        %v4764 = vunpack.c.l.b16 %v4499
        %v4765 = vunpack.c.l.b16 %v4500
        %v4766 = vunpack.c.l.b16 %v4501
        %v4767 = vunpack.c.l.b16 %v4502
        %v4768 = vunpack.c.l.b16 %v4503
        %v4769 = vunpack.c.l.b16 %v4504
        %v4770 = vunpack.c.l.b16 %v4505
        %v4771 = vunpack.c.l.b16 %v4506
        %v4772 = vunpack.c.l.b16 %v4507
        %v4773 = vunpack.c.l.b16 %v4508
        %v4774 = vunpack.c.l.b16 %v4509
        %v4775 = vunpack.c.l.b16 %v4510
        %v4776 = vunpack.c.l.b16 %v4511
        %v4777 = vunpack.c.l.b16 %v4512
        %v4778 = vunpack.c.l.b16 %v4513
        %v4779 = vunpack.c.l.b16 %v4514
        %v4780 = vunpack.c.l.b16 %v4515
        %v4781 = vunpack.c.l.b16 %v4516
        %v4782 = vunpack.c.l.b16 %v4517
        %v4783 = vunpack.c.l.b16 %v4518
        %v4784 = vunpack.c.l.b16 %v4519
        %v4785 = vunpack.c.l.b16 %v4520
        %v4786 = vunpack.c.l.b16 %v4521
        %v4787 = vunpack.c.l.b16 %v4522
        %v4788 = vunpack.c.l.b16 %v4523
        %v4789 = vunpack.c.l.b16 %v4524
        %v4790 = vunpack.c.l.b16 %v4525
        %v4791 = vunpack.c.l.b16 %v4526
        %v4792 = vunpack.c.l.b16 %v4527
        %v4793 = vunpack.c.l.b16 %v4528
        %v4794 = vunpack.c.l.b16 %v4529
        %v4795 = vunpack.c.l.b16 %v4530
        %v4796 = vunpack.c.l.b16 %v4531
        %v4797 = vunpack.c.l.b16 %v4532
        %v4798 = vunpack.c.l.b16 %v4533
        %v4799 = vunpack.c.l.b16 %v4534
        %v4800 = vunpack.c.l.b16 %v4535
        %v4801 = vunpack.c.l.b16 %v4536
        %v4802 = vunpack.c.l.b16 %v4537
        %v4803 = vunpack.c.l.b16 %v4538
        %v4804 = vunpack.c.l.b16 %v4539
        %v4805 = vunpack.c.l.b16 %v4540
        %v4806 = vunpack.c.l.b16 %v4541
        %v4807 = vunpack.c.l.b16 %v4542
        %v4808 = vunpack.c.l.b16 %v4543
        %v4809 = vunpack.c.l.b16 %v4544
        %v4810 = vunpack.c.l.b16 %v4545
        %v4811 = vunpack.c.l.b16 %v4546
        %v4812 = vunpack.c.l.b16 %v4547
        %v4813 = vunpack.c.l.b16 %v4548
        %v4814 = vunpack.c.l.b16 %v4549
        %v4815 = vunpack.c.l.b16 %v4550
        %v4816 = vunpack.c.l.b16 %v4551
        %v4817 = vunpack.c.l.b16 %v4552
        %v4818 = vunpack.c.l.b16 %v4553
        %v4819 = vunpack.c.l.b16 %v4554
        %v4820 = vunpack.c.l.b16 %v4555
        %v4821 = vunpack.c.l.b16 %v4556
        %v4822 = vunpack.c.l.b16 %v4557
        %v4823 = vunpack.c.l.b16 %v4558
        %v4824 = vunpack.c.l.b16 %v4559
        %v4825 = vunpack.c.l.b16 %v4560
        %v4826 = vunpack.c.l.b16 %v4561
        %v4827 = vunpack.c.l.b16 %v4562
        %v4828 = vunpack.c.l.b16 %v4563
        %v4829 = vunpack.c.l.b16 %v4564
        %v4830 = vunpack.c.l.b16 %v4565
        %v4831 = vunpack.c.l.b16 %v4566
        %v4832 = vunpack.c.l.b16 %v4567
        %v4833 = vpack.c.b16 %v4706, %v4705
        %v4834 = vpack.c.b16 %v4708, %v4707
        %v4835 = vpack.c.b16 %v4710, %v4709
        %v4836 = vpack.c.b16 %v4712, %v4711
        %v4837 = vpack.c.b16 %v4714, %v4713
        %v4838 = vpack.c.b16 %v4716, %v4715
        %v4839 = vpack.c.b16 %v4718, %v4717
        %v4840 = vpack.c.b16 %v4720, %v4719
        %v4841 = vpack.c.b16 %v4722, %v4721
        %v4842 = vpack.c.b16 %v4724, %v4723
        %v4843 = vpack.c.b16 %v4726, %v4725
        %v4844 = vpack.c.b16 %v4728, %v4727
        %v4845 = vpack.c.b16 %v4730, %v4729
        %v4846 = vpack.c.b16 %v4732, %v4731
        %v4847 = vpack.c.b16 %v4734, %v4733
        %v4848 = vpack.c.b16 %v4736, %v4735
        %v4849 = vpack.c.b16 %v4738, %v4737
        %v4850 = vpack.c.b16 %v4740, %v4739
        %v4851 = vpack.c.b16 %v4742, %v4741
        %v4852 = vpack.c.b16 %v4744, %v4743
        %v4853 = vpack.c.b16 %v4746, %v4745
        %v4854 = vpack.c.b16 %v4748, %v4747
        %v4855 = vpack.c.b16 %v4750, %v4749
        %v4856 = vpack.c.b16 %v4752, %v4751
        %v4857 = vpack.c.b16 %v4754, %v4753
        %v4858 = vpack.c.b16 %v4756, %v4755
        %v4859 = vpack.c.b16 %v4758, %v4757
        %v4860 = vpack.c.b16 %v4760, %v4759
        %v4861 = vpack.c.b16 %v4762, %v4761
        %v4862 = vpack.c.b16 %v4764, %v4763
        %v4863 = vpack.c.b16 %v4766, %v4765
        %v4864 = vpack.c.b16 %v4768, %v4767
        %v4865 = vpack.c.b16 %v4770, %v4769
        %v4866 = vpack.c.b16 %v4772, %v4771
        %v4867 = vpack.c.b16 %v4774, %v4773
        %v4868 = vpack.c.b16 %v4776, %v4775
        %v4869 = vpack.c.b16 %v4778, %v4777
        %v4870 = vpack.c.b16 %v4780, %v4779
        %v4871 = vpack.c.b16 %v4782, %v4781
        %v4872 = vpack.c.b16 %v4784, %v4783
        %v4873 = vpack.c.b16 %v4786, %v4785
        %v4874 = vpack.c.b16 %v4788, %v4787
        %v4875 = vpack.c.b16 %v4790, %v4789
        %v4876 = vpack.c.b16 %v4792, %v4791
        %v4877 = vpack.c.b16 %v4794, %v4793
        %v4878 = vpack.c.b16 %v4796, %v4795
        %v4879 = vpack.c.b16 %v4798, %v4797
        %v4880 = vpack.c.b16 %v4800, %v4799
        %v4881 = vpack.c.b16 %v4802, %v4801
        %v4882 = vpack.c.b16 %v4804, %v4803
        %v4883 = vpack.c.b16 %v4806, %v4805
        %v4884 = vpack.c.b16 %v4808, %v4807
        %v4885 = vpack.c.b16 %v4810, %v4809
        %v4886 = vpack.c.b16 %v4812, %v4811
        %v4887 = vpack.c.b16 %v4814, %v4813
        %v4888 = vpack.c.b16 %v4816, %v4815
        %v4889 = vpack.c.b16 %v4818, %v4817
        %v4890 = vpack.c.b16 %v4820, %v4819
        %v4891 = vpack.c.b16 %v4822, %v4821
        %v4892 = vpack.c.b16 %v4824, %v4823
        %v4893 = vpack.c.b16 %v4826, %v4825
        %v4894 = vpack.c.b16 %v4828, %v4827
        %v4895 = vpack.c.b16 %v4830, %v4829
        %v4896 = vpack.c.b16 %v4832, %v4831
        %v4905 = vunpack.c.l.b16 %v4569
        %v4906 = vunpack.c.l.b16 %v4570
        %v4907 = vunpack.c.l.b16 %v4571
        %v4908 = vunpack.c.l.b16 %v4572
        %v4909 = vunpack.c.l.b16 %v4573
        %v4910 = vunpack.c.l.b16 %v4574
        %v4911 = vunpack.c.l.b16 %v4575
        %v4912 = vunpack.c.l.b16 %v4576
        %v4913 = vpack.c.b16 %v4906, %v4905
        %v4914 = vpack.c.b16 %v4908, %v4907
        %v4915 = vpack.c.b16 %v4910, %v4909
        %v4916 = vpack.c.b16 %v4912, %v4911
        %v4922 = vsel %vm1273, %v4833, 0
        %v4925 = vsel %vm1273, %v4834, 0
        %v4928 = vsel %vm1273, %v4835, 0
        %v4931 = vsel %vm1273, %v4836, 0
        %v4934 = vsel %vm1273, %v4837, 0
        %v4937 = vsel %vm1273, %v4838, 0
        %v4940 = vsel %vm1273, %v4839, 0
        %v4943 = vsel %vm1273, %v4840, 0
        %v4946 = vsel %vm1273, %v4841, 0
        %v4949 = vsel %vm1273, %v4842, 0
        %v4952 = vsel %vm1273, %v4843, 0
        %v4955 = vsel %vm1273, %v4844, 0
        %v4958 = vsel %vm1273, %v4845, 0
        %v4961 = vsel %vm1273, %v4846, 0
        %v4964 = vsel %vm1273, %v4847, 0
        %v4967 = vsel %vm1273, %v4848, 0
        %v4970 = vsel %vm1273, %v4849, 0
        %v4973 = vsel %vm1273, %v4850, 0
        %v4976 = vsel %vm1273, %v4851, 0
        %v4979 = vsel %vm1273, %v4852, 0
        %v4982 = vsel %vm1273, %v4853, 0
        %v4985 = vsel %vm1273, %v4854, 0
        %v4988 = vsel %vm1273, %v4855, 0
        %v4991 = vsel %vm1273, %v4856, 0
        %v4994 = vsel %vm1273, %v4857, 0
        %v4997 = vsel %vm1273, %v4858, 0
        %v5000 = vsel %vm1273, %v4859, 0
        %v5003 = vsel %vm1273, %v4860, 0
        %v5006 = vsel %vm1273, %v4861, 0
        %v5009 = vsel %vm1273, %v4862, 0
        %v5012 = vsel %vm1273, %v4863, 0
        %v5015 = vsel %vm1273, %v4864, 0
        %v5018 = vsel %vm1273, %v4865, 0
        %v5021 = vsel %vm1273, %v4866, 0
        %v5024 = vsel %vm1273, %v4867, 0
        %v5027 = vsel %vm1273, %v4868, 0
        %v5030 = vsel %vm1273, %v4869, 0
        %v5033 = vsel %vm1273, %v4870, 0
        %v5036 = vsel %vm1273, %v4871, 0
        %v5039 = vsel %vm1273, %v4872, 0
        %v5042 = vsel %vm1273, %v4873, 0
        %v5045 = vsel %vm1273, %v4874, 0
        %v5048 = vsel %vm1273, %v4875, 0
        %v5051 = vsel %vm1273, %v4876, 0
        %v5054 = vsel %vm1273, %v4877, 0
        %v5057 = vsel %vm1273, %v4878, 0
        %v5060 = vsel %vm1273, %v4879, 0
        %v5063 = vsel %vm1273, %v4880, 0
        %v5066 = vsel %vm1273, %v4881, 0
        %v5069 = vsel %vm1273, %v4882, 0
        %v5072 = vsel %vm1273, %v4883, 0
        %v5075 = vsel %vm1273, %v4884, 0
        %v5078 = vsel %vm1273, %v4885, 0
        %v5081 = vsel %vm1273, %v4886, 0
        %v5084 = vsel %vm1273, %v4887, 0
        %v5087 = vsel %vm1273, %v4888, 0
        %v5090 = vsel %vm1273, %v4889, 0
        %v5093 = vsel %vm1273, %v4890, 0
        %v5096 = vsel %vm1273, %v4891, 0
        %v5099 = vsel %vm1273, %v4892, 0
        %v5102 = vsel %vm1273, %v4893, 0
        %v5105 = vsel %vm1273, %v4894, 0
        %v5108 = vsel %vm1273, %v4895, 0
        %v5111 = vsel %vm1273, %v4896, 0
        %5113 = vmatprep.subr.bf16.mxu0 0
        %5114 = vmatpush1.bf16.msra.mxu0 %v4913
        %5115 = vmatprep.subr.bf16.mxu0 0
        %5116 = vmatpush1.bf16.msra.mxu0 %v4914
        %5117 = vmatprep.subr.bf16.mxu0 0
        %5118 = vmatpush1.bf16.msra.mxu0 %v4915
        %5119 = vmatprep.subr.bf16.mxu0 0
        %5120 = vmatpush1.bf16.msra.mxu0 %v4916
        %5121 = vmatprep.subr.bf16.mxu0 0
        %5122 = vmatpush1.bf16.msra.mxu0 0
        %5123 = vmatprep.subr.bf16.mxu0 0
        %5124 = vmatpush1.bf16.msra.mxu0 0
        %5125 = vmatprep.subr.bf16.mxu0 0
        %5126 = vmatpush1.bf16.msra.mxu0 0
        %5127 = vmatprep.subr.bf16.mxu0 0
        %5128 = vmatpush1.bf16.msra.mxu0 0
        %5129 = vmatprep.subr.bf16.mxu0 0
        %5130 = vmatpush1.bf16.msra.mxu0 0
        %5131 = vmatprep.subr.bf16.mxu0 0
        %5132 = vmatpush1.bf16.msra.mxu0 0
        %5133 = vmatprep.subr.bf16.mxu0 0
        %5134 = vmatpush1.bf16.msra.mxu0 0
        %5135 = vmatprep.subr.bf16.mxu0 0
        %5136 = vmatpush1.bf16.msra.mxu0 0
        %5137 = vmatprep.subr.bf16.mxu0 0
        %5138 = vmatpush1.bf16.msra.mxu0 0
        %5139 = vmatprep.subr.bf16.mxu0 0
        %5140 = vmatpush1.bf16.msra.mxu0 0
        %5141 = vmatprep.subr.bf16.mxu0 0
        %5142 = vmatpush1.bf16.msra.mxu0 0
        %5143 = vmatprep.subr.bf16.mxu0 0
        %5144 = vmatpush1.bf16.msra.mxu0 0
        %5145 = vmatprep.mubr.bf16.mxu0 0
        %5146 = vmatmul.mubr.bf16.gmra.mrb[0].mxu0 %v4922
        %v5147 = vpop.f32.mrb[0].mxu0
        %v5148 = vadd.f32 0.0, %v5147
        %v5149 = vpop.f32.mrb[0].mxu0
        %v5150 = vpop.f32.mrb[0].mxu0
        %v5151 = vadd.f32 0.0, %v5150
        %v5152 = vpop.f32.mrb[0].mxu0
        %5153 = vmatprep.mubr.bf16.mxu0 0
        %5154 = vmatmul.mubr.bf16.gmra.mrb[0].mxu0 %v4925
        %v5155 = vpop.f32.mrb[0].mxu0
        %v5156 = vadd.f32 0.0, %v5155
        %v5157 = vpop.f32.mrb[0].mxu0
        %v5158 = vpop.f32.mrb[0].mxu0
        %v5159 = vadd.f32 0.0, %v5158
        %v5160 = vpop.f32.mrb[0].mxu0
        %5161 = vmatprep.mubr.bf16.mxu0 0
        %5162 = vmatmul.mubr.bf16.gmra.mrb[0].mxu0 %v4928
        %v5163 = vpop.f32.mrb[0].mxu0
        %v5164 = vadd.f32 0.0, %v5163
        %v5165 = vpop.f32.mrb[0].mxu0
        %v5166 = vpop.f32.mrb[0].mxu0
        %v5167 = vadd.f32 0.0, %v5166
        %v5168 = vpop.f32.mrb[0].mxu0
        %5169 = vmatprep.mubr.bf16.mxu0 0
        %5170 = vmatmul.mubr.bf16.gmra.mrb[0].mxu0 %v4931
        %v5171 = vpop.f32.mrb[0].mxu0
        %v5172 = vadd.f32 0.0, %v5171
        %v5173 = vpop.f32.mrb[0].mxu0
        %v5174 = vpop.f32.mrb[0].mxu0
        %v5175 = vadd.f32 0.0, %v5174
        %v5176 = vpop.f32.mrb[0].mxu0
        %5177 = vmatprep.mubr.bf16.mxu0 0
        %5178 = vmatmul.mubr.bf16.gmra.mrb[0].mxu0 %v4934
        %v5179 = vpop.f32.mrb[0].mxu0
        %v5180 = vadd.f32 0.0, %v5179
        %v5181 = vpop.f32.mrb[0].mxu0
        %v5182 = vpop.f32.mrb[0].mxu0
        %v5183 = vadd.f32 0.0, %v5182
        %v5184 = vpop.f32.mrb[0].mxu0
        %5185 = vmatprep.mubr.bf16.mxu0 0
        %5186 = vmatmul.mubr.bf16.gmra.mrb[0].mxu0 %v4937
        %v5187 = vpop.f32.mrb[0].mxu0
        %v5188 = vadd.f32 0.0, %v5187
        %v5189 = vpop.f32.mrb[0].mxu0
        %v5190 = vpop.f32.mrb[0].mxu0
        %v5191 = vadd.f32 0.0, %v5190
        %v5192 = vpop.f32.mrb[0].mxu0
        %5193 = vmatprep.mubr.bf16.mxu0 0
        %5194 = vmatmul.mubr.bf16.gmra.mrb[0].mxu0 %v4940
        %v5195 = vpop.f32.mrb[0].mxu0
        %v5196 = vadd.f32 0.0, %v5195
        %v5197 = vpop.f32.mrb[0].mxu0
        %v5198 = vpop.f32.mrb[0].mxu0
        %v5199 = vadd.f32 0.0, %v5198
        %v5200 = vpop.f32.mrb[0].mxu0
        %5201 = vmatprep.mubr.bf16.mxu0 0
        %5202 = vmatmul.mubr.bf16.gmra.mrb[0].mxu0 %v4943
        %v5203 = vpop.f32.mrb[0].mxu0
        %v5204 = vadd.f32 0.0, %v5203
        %v5205 = vpop.f32.mrb[0].mxu0
        %v5206 = vpop.f32.mrb[0].mxu0
        %v5207 = vadd.f32 0.0, %v5206
        %v5208 = vpop.f32.mrb[0].mxu0
        %5209 = vmatprep.mubr.bf16.mxu0 0
        %5210 = vmatmul.mubr.bf16.gmra.mrb[0].mxu0 %v4946
        %v5211 = vpop.f32.mrb[0].mxu0
        %v5212 = vadd.f32 0.0, %v5211
        %v5213 = vpop.f32.mrb[0].mxu0
        %v5214 = vpop.f32.mrb[0].mxu0
        %v5215 = vadd.f32 0.0, %v5214
        %v5216 = vpop.f32.mrb[0].mxu0
        %5217 = vmatprep.mubr.bf16.mxu0 0
        %5218 = vmatmul.mubr.bf16.gmra.mrb[0].mxu0 %v4949
        %v5219 = vpop.f32.mrb[0].mxu0
        %v5220 = vadd.f32 0.0, %v5219
        %v5221 = vpop.f32.mrb[0].mxu0
        %v5222 = vpop.f32.mrb[0].mxu0
        %v5223 = vadd.f32 0.0, %v5222
        %v5224 = vpop.f32.mrb[0].mxu0
        %5225 = vmatprep.mubr.bf16.mxu0 0
        %5226 = vmatmul.mubr.bf16.gmra.mrb[0].mxu0 %v4952
        %v5227 = vpop.f32.mrb[0].mxu0
        %v5228 = vadd.f32 0.0, %v5227
        %v5229 = vpop.f32.mrb[0].mxu0
        %v5230 = vpop.f32.mrb[0].mxu0
        %v5231 = vadd.f32 0.0, %v5230
        %v5232 = vpop.f32.mrb[0].mxu0
        %5233 = vmatprep.mubr.bf16.mxu0 0
        %5234 = vmatmul.mubr.bf16.gmra.mrb[0].mxu0 %v4955
        %v5235 = vpop.f32.mrb[0].mxu0
        %v5236 = vadd.f32 0.0, %v5235
        %v5237 = vpop.f32.mrb[0].mxu0
        %v5238 = vpop.f32.mrb[0].mxu0
        %v5239 = vadd.f32 0.0, %v5238
        %v5240 = vpop.f32.mrb[0].mxu0
        %5241 = vmatprep.mubr.bf16.mxu0 0
        %5242 = vmatmul.mubr.bf16.gmra.mrb[0].mxu0 %v4958
        %v5243 = vpop.f32.mrb[0].mxu0
        %v5244 = vadd.f32 0.0, %v5243
        %v5245 = vpop.f32.mrb[0].mxu0
        %v5246 = vpop.f32.mrb[0].mxu0
        %v5247 = vadd.f32 0.0, %v5246
        %v5248 = vpop.f32.mrb[0].mxu0
        %5249 = vmatprep.mubr.bf16.mxu0 0
        %5250 = vmatmul.mubr.bf16.gmra.mrb[0].mxu0 %v4961
        %v5251 = vpop.f32.mrb[0].mxu0
        %v5252 = vadd.f32 0.0, %v5251
        %v5253 = vpop.f32.mrb[0].mxu0
        %v5254 = vpop.f32.mrb[0].mxu0
        %v5255 = vadd.f32 0.0, %v5254
        %v5256 = vpop.f32.mrb[0].mxu0
        %5257 = vmatprep.mubr.bf16.mxu0 0
        %5258 = vmatmul.mubr.bf16.gmra.mrb[0].mxu0 %v4964
        %v5259 = vpop.f32.mrb[0].mxu0
        %v5260 = vadd.f32 0.0, %v5259
        %v5261 = vpop.f32.mrb[0].mxu0
        %v5262 = vpop.f32.mrb[0].mxu0
        %v5263 = vadd.f32 0.0, %v5262
        %v5264 = vpop.f32.mrb[0].mxu0
        %5265 = vmatprep.mubr.bf16.mxu0 0
        %5266 = vmatmul.mubr.bf16.gmra.mrb[0].mxu0 %v4967
        %v5267 = vpop.f32.mrb[0].mxu0
        %v5268 = vadd.f32 0.0, %v5267
        %v5269 = vpop.f32.mrb[0].mxu0
        %v5270 = vpop.f32.mrb[0].mxu0
        %v5271 = vadd.f32 0.0, %v5270
        %v5272 = vpop.f32.mrb[0].mxu0
        %5273 = vmatprep.mubr.bf16.mxu0 0
        %5274 = vmatmul.mubr.bf16.gmra.mrb[0].mxu0 %v4970
        %v5275 = vpop.f32.mrb[0].mxu0
        %v5276 = vadd.f32 0.0, %v5275
        %v5277 = vpop.f32.mrb[0].mxu0
        %v5278 = vpop.f32.mrb[0].mxu0
        %v5279 = vadd.f32 0.0, %v5278
        %v5280 = vpop.f32.mrb[0].mxu0
        %5281 = vmatprep.mubr.bf16.mxu0 0
        %5282 = vmatmul.mubr.bf16.gmra.mrb[0].mxu0 %v4973
        %v5283 = vpop.f32.mrb[0].mxu0
        %v5284 = vadd.f32 0.0, %v5283
        %v5285 = vpop.f32.mrb[0].mxu0
        %v5286 = vpop.f32.mrb[0].mxu0
        %v5287 = vadd.f32 0.0, %v5286
        %v5288 = vpop.f32.mrb[0].mxu0
        %5289 = vmatprep.mubr.bf16.mxu0 0
        %5290 = vmatmul.mubr.bf16.gmra.mrb[0].mxu0 %v4976
        %v5291 = vpop.f32.mrb[0].mxu0
        %v5292 = vadd.f32 0.0, %v5291
        %v5293 = vpop.f32.mrb[0].mxu0
        %v5294 = vpop.f32.mrb[0].mxu0
        %v5295 = vadd.f32 0.0, %v5294
        %v5296 = vpop.f32.mrb[0].mxu0
        %5297 = vmatprep.mubr.bf16.mxu0 0
        %5298 = vmatmul.mubr.bf16.gmra.mrb[0].mxu0 %v4979
        %v5299 = vpop.f32.mrb[0].mxu0
        %v5300 = vadd.f32 0.0, %v5299
        %v5301 = vpop.f32.mrb[0].mxu0
        %v5302 = vpop.f32.mrb[0].mxu0
        %v5303 = vadd.f32 0.0, %v5302
        %v5304 = vpop.f32.mrb[0].mxu0
        %5305 = vmatprep.mubr.bf16.mxu0 0
        %5306 = vmatmul.mubr.bf16.gmra.mrb[0].mxu0 %v4982
        %v5307 = vpop.f32.mrb[0].mxu0
        %v5308 = vadd.f32 0.0, %v5307
        %v5309 = vpop.f32.mrb[0].mxu0
        %v5310 = vpop.f32.mrb[0].mxu0
        %v5311 = vadd.f32 0.0, %v5310
        %v5312 = vpop.f32.mrb[0].mxu0
        %5313 = vmatprep.mubr.bf16.mxu0 0
        %5314 = vmatmul.mubr.bf16.gmra.mrb[0].mxu0 %v4985
        %v5315 = vpop.f32.mrb[0].mxu0
        %v5316 = vadd.f32 0.0, %v5315
        %v5317 = vpop.f32.mrb[0].mxu0
        %v5318 = vpop.f32.mrb[0].mxu0
        %v5319 = vadd.f32 0.0, %v5318
        %v5320 = vpop.f32.mrb[0].mxu0
        %5321 = vmatprep.mubr.bf16.mxu0 0
        %5322 = vmatmul.mubr.bf16.gmra.mrb[0].mxu0 %v4988
        %v5323 = vpop.f32.mrb[0].mxu0
        %v5324 = vadd.f32 0.0, %v5323
        %v5325 = vpop.f32.mrb[0].mxu0
        %v5326 = vpop.f32.mrb[0].mxu0
        %v5327 = vadd.f32 0.0, %v5326
        %v5328 = vpop.f32.mrb[0].mxu0
        %5329 = vmatprep.mubr.bf16.mxu0 0
        %5330 = vmatmul.mubr.bf16.gmra.mrb[0].mxu0 %v4991
        %v5331 = vpop.f32.mrb[0].mxu0
        %v5332 = vadd.f32 0.0, %v5331
        %v5333 = vpop.f32.mrb[0].mxu0
        %v5334 = vpop.f32.mrb[0].mxu0
        %v5335 = vadd.f32 0.0, %v5334
        %v5336 = vpop.f32.mrb[0].mxu0
        %5337 = vmatprep.mubr.bf16.mxu0 0
        %5338 = vmatmul.mubr.bf16.gmra.mrb[0].mxu0 %v4994
        %v5339 = vpop.f32.mrb[0].mxu0
        %v5340 = vadd.f32 0.0, %v5339
        %v5341 = vpop.f32.mrb[0].mxu0
        %v5342 = vpop.f32.mrb[0].mxu0
        %v5343 = vadd.f32 0.0, %v5342
        %v5344 = vpop.f32.mrb[0].mxu0
        %5345 = vmatprep.mubr.bf16.mxu0 0
        %5346 = vmatmul.mubr.bf16.gmra.mrb[0].mxu0 %v4997
        %v5347 = vpop.f32.mrb[0].mxu0
        %v5348 = vadd.f32 0.0, %v5347
        %v5349 = vpop.f32.mrb[0].mxu0
        %v5350 = vpop.f32.mrb[0].mxu0
        %v5351 = vadd.f32 0.0, %v5350
        %v5352 = vpop.f32.mrb[0].mxu0
        %5353 = vmatprep.mubr.bf16.mxu0 0
        %5354 = vmatmul.mubr.bf16.gmra.mrb[0].mxu0 %v5000
        %v5355 = vpop.f32.mrb[0].mxu0
        %v5356 = vadd.f32 0.0, %v5355
        %v5357 = vpop.f32.mrb[0].mxu0
        %v5358 = vpop.f32.mrb[0].mxu0
        %v5359 = vadd.f32 0.0, %v5358
        %v5360 = vpop.f32.mrb[0].mxu0
        %5361 = vmatprep.mubr.bf16.mxu0 0
        %5362 = vmatmul.mubr.bf16.gmra.mrb[0].mxu0 %v5003
        %v5363 = vpop.f32.mrb[0].mxu0
        %v5364 = vadd.f32 0.0, %v5363
        %v5365 = vpop.f32.mrb[0].mxu0
        %v5366 = vpop.f32.mrb[0].mxu0
        %v5367 = vadd.f32 0.0, %v5366
        %v5368 = vpop.f32.mrb[0].mxu0
        %5369 = vmatprep.mubr.bf16.mxu0 0
        %5370 = vmatmul.mubr.bf16.gmra.mrb[0].mxu0 %v5006
        %v5371 = vpop.f32.mrb[0].mxu0
        %v5372 = vadd.f32 0.0, %v5371
        %v5373 = vpop.f32.mrb[0].mxu0
        %v5374 = vpop.f32.mrb[0].mxu0
        %v5375 = vadd.f32 0.0, %v5374
        %v5376 = vpop.f32.mrb[0].mxu0
        %5377 = vmatprep.mubr.bf16.mxu0 0
        %5378 = vmatmul.mubr.bf16.gmra.mrb[0].mxu0 %v5009
        %v5379 = vpop.f32.mrb[0].mxu0
        %v5380 = vadd.f32 0.0, %v5379
        %v5381 = vpop.f32.mrb[0].mxu0
        %v5382 = vpop.f32.mrb[0].mxu0
        %v5383 = vadd.f32 0.0, %v5382
        %v5384 = vpop.f32.mrb[0].mxu0
        %5385 = vmatprep.mubr.bf16.mxu0 0
        %5386 = vmatmul.mubr.bf16.gmra.mrb[0].mxu0 %v5012
        %v5387 = vpop.f32.mrb[0].mxu0
        %v5388 = vadd.f32 0.0, %v5387
        %v5389 = vpop.f32.mrb[0].mxu0
        %v5390 = vpop.f32.mrb[0].mxu0
        %v5391 = vadd.f32 0.0, %v5390
        %v5392 = vpop.f32.mrb[0].mxu0
        %5393 = vmatprep.mubr.bf16.mxu0 0
        %5394 = vmatmul.mubr.bf16.gmra.mrb[0].mxu0 %v5015
        %v5395 = vpop.f32.mrb[0].mxu0
        %v5396 = vadd.f32 0.0, %v5395
        %v5397 = vpop.f32.mrb[0].mxu0
        %v5398 = vpop.f32.mrb[0].mxu0
        %v5399 = vadd.f32 0.0, %v5398
        %v5400 = vpop.f32.mrb[0].mxu0
        %5401 = vmatprep.mubr.bf16.mxu0 0
        %5402 = vmatmul.mubr.bf16.gmra.mrb[0].mxu0 %v5018
        %v5403 = vpop.f32.mrb[0].mxu0
        %v5404 = vadd.f32 0.0, %v5403
        %v5405 = vpop.f32.mrb[0].mxu0
        %v5406 = vpop.f32.mrb[0].mxu0
        %v5407 = vadd.f32 0.0, %v5406
        %v5408 = vpop.f32.mrb[0].mxu0
        %5409 = vmatprep.mubr.bf16.mxu0 0
        %5410 = vmatmul.mubr.bf16.gmra.mrb[0].mxu0 %v5021
        %v5411 = vpop.f32.mrb[0].mxu0
        %v5412 = vadd.f32 0.0, %v5411
        %v5413 = vpop.f32.mrb[0].mxu0
        %v5414 = vpop.f32.mrb[0].mxu0
        %v5415 = vadd.f32 0.0, %v5414
        %v5416 = vpop.f32.mrb[0].mxu0
        %5417 = vmatprep.mubr.bf16.mxu0 0
        %5418 = vmatmul.mubr.bf16.gmra.mrb[0].mxu0 %v5024
        %v5419 = vpop.f32.mrb[0].mxu0
        %v5420 = vadd.f32 0.0, %v5419
        %v5421 = vpop.f32.mrb[0].mxu0
        %v5422 = vpop.f32.mrb[0].mxu0
        %v5423 = vadd.f32 0.0, %v5422
        %v5424 = vpop.f32.mrb[0].mxu0
        %5425 = vmatprep.mubr.bf16.mxu0 0
        %5426 = vmatmul.mubr.bf16.gmra.mrb[0].mxu0 %v5027
        %v5427 = vpop.f32.mrb[0].mxu0
        %v5428 = vadd.f32 0.0, %v5427
        %v5429 = vpop.f32.mrb[0].mxu0
        %v5430 = vpop.f32.mrb[0].mxu0
        %v5431 = vadd.f32 0.0, %v5430
        %v5432 = vpop.f32.mrb[0].mxu0
        %5433 = vmatprep.mubr.bf16.mxu0 0
        %5434 = vmatmul.mubr.bf16.gmra.mrb[0].mxu0 %v5030
        %v5435 = vpop.f32.mrb[0].mxu0
        %v5436 = vadd.f32 0.0, %v5435
        %v5437 = vpop.f32.mrb[0].mxu0
        %v5438 = vpop.f32.mrb[0].mxu0
        %v5439 = vadd.f32 0.0, %v5438
        %v5440 = vpop.f32.mrb[0].mxu0
        %5441 = vmatprep.mubr.bf16.mxu0 0
        %5442 = vmatmul.mubr.bf16.gmra.mrb[0].mxu0 %v5033
        %v5443 = vpop.f32.mrb[0].mxu0
        %v5444 = vadd.f32 0.0, %v5443
        %v5445 = vpop.f32.mrb[0].mxu0
        %v5446 = vpop.f32.mrb[0].mxu0
        %v5447 = vadd.f32 0.0, %v5446
        %v5448 = vpop.f32.mrb[0].mxu0
        %5449 = vmatprep.mubr.bf16.mxu0 0
        %5450 = vmatmul.mubr.bf16.gmra.mrb[0].mxu0 %v5036
        %v5451 = vpop.f32.mrb[0].mxu0
        %v5452 = vadd.f32 0.0, %v5451
        %v5453 = vpop.f32.mrb[0].mxu0
        %v5454 = vpop.f32.mrb[0].mxu0
        %v5455 = vadd.f32 0.0, %v5454
        %v5456 = vpop.f32.mrb[0].mxu0
        %5457 = vmatprep.mubr.bf16.mxu0 0
        %5458 = vmatmul.mubr.bf16.gmra.mrb[0].mxu0 %v5039
        %v5459 = vpop.f32.mrb[0].mxu0
        %v5460 = vadd.f32 0.0, %v5459
        %v5461 = vpop.f32.mrb[0].mxu0
        %v5462 = vpop.f32.mrb[0].mxu0
        %v5463 = vadd.f32 0.0, %v5462
        %v5464 = vpop.f32.mrb[0].mxu0
        %5465 = vmatprep.mubr.bf16.mxu0 0
        %5466 = vmatmul.mubr.bf16.gmra.mrb[0].mxu0 %v5042
        %v5467 = vpop.f32.mrb[0].mxu0
        %v5468 = vadd.f32 0.0, %v5467
        %v5469 = vpop.f32.mrb[0].mxu0
        %v5470 = vpop.f32.mrb[0].mxu0
        %v5471 = vadd.f32 0.0, %v5470
        %v5472 = vpop.f32.mrb[0].mxu0
        %5473 = vmatprep.mubr.bf16.mxu0 0
        %5474 = vmatmul.mubr.bf16.gmra.mrb[0].mxu0 %v5045
        %v5475 = vpop.f32.mrb[0].mxu0
        %v5476 = vadd.f32 0.0, %v5475
        %v5477 = vpop.f32.mrb[0].mxu0
        %v5478 = vpop.f32.mrb[0].mxu0
        %v5479 = vadd.f32 0.0, %v5478
        %v5480 = vpop.f32.mrb[0].mxu0
        %5481 = vmatprep.mubr.bf16.mxu0 0
        %5482 = vmatmul.mubr.bf16.gmra.mrb[0].mxu0 %v5048
        %v5483 = vpop.f32.mrb[0].mxu0
        %v5484 = vadd.f32 0.0, %v5483
        %v5485 = vpop.f32.mrb[0].mxu0
        %v5486 = vpop.f32.mrb[0].mxu0
        %v5487 = vadd.f32 0.0, %v5486
        %v5488 = vpop.f32.mrb[0].mxu0
        %5489 = vmatprep.mubr.bf16.mxu0 0
        %5490 = vmatmul.mubr.bf16.gmra.mrb[0].mxu0 %v5051
        %v5491 = vpop.f32.mrb[0].mxu0
        %v5492 = vadd.f32 0.0, %v5491
        %v5493 = vpop.f32.mrb[0].mxu0
        %v5494 = vpop.f32.mrb[0].mxu0
        %v5495 = vadd.f32 0.0, %v5494
        %v5496 = vpop.f32.mrb[0].mxu0
        %5497 = vmatprep.mubr.bf16.mxu0 0
        %5498 = vmatmul.mubr.bf16.gmra.mrb[0].mxu0 %v5054
        %v5499 = vpop.f32.mrb[0].mxu0
        %v5500 = vadd.f32 0.0, %v5499
        %v5501 = vpop.f32.mrb[0].mxu0
        %v5502 = vpop.f32.mrb[0].mxu0
        %v5503 = vadd.f32 0.0, %v5502
        %v5504 = vpop.f32.mrb[0].mxu0
        %5505 = vmatprep.mubr.bf16.mxu0 0
        %5506 = vmatmul.mubr.bf16.gmra.mrb[0].mxu0 %v5057
        %v5507 = vpop.f32.mrb[0].mxu0
        %v5508 = vadd.f32 0.0, %v5507
        %v5509 = vpop.f32.mrb[0].mxu0
        %v5510 = vpop.f32.mrb[0].mxu0
        %v5511 = vadd.f32 0.0, %v5510
        %v5512 = vpop.f32.mrb[0].mxu0
        %5513 = vmatprep.mubr.bf16.mxu0 0
        %5514 = vmatmul.mubr.bf16.gmra.mrb[0].mxu0 %v5060
        %v5515 = vpop.f32.mrb[0].mxu0
        %v5516 = vadd.f32 0.0, %v5515
        %v5517 = vpop.f32.mrb[0].mxu0
        %v5518 = vpop.f32.mrb[0].mxu0
        %v5519 = vadd.f32 0.0, %v5518
        %v5520 = vpop.f32.mrb[0].mxu0
        %5521 = vmatprep.mubr.bf16.mxu0 0
        %5522 = vmatmul.mubr.bf16.gmra.mrb[0].mxu0 %v5063
        %v5523 = vpop.f32.mrb[0].mxu0
        %v5524 = vadd.f32 0.0, %v5523
        %v5525 = vpop.f32.mrb[0].mxu0
        %v5526 = vpop.f32.mrb[0].mxu0
        %v5527 = vadd.f32 0.0, %v5526
        %v5528 = vpop.f32.mrb[0].mxu0
        %5529 = vmatprep.mubr.bf16.mxu0 0
        %5530 = vmatmul.mubr.bf16.gmra.mrb[0].mxu0 %v5066
        %v5531 = vpop.f32.mrb[0].mxu0
        %v5532 = vadd.f32 0.0, %v5531
        %v5533 = vpop.f32.mrb[0].mxu0
        %v5534 = vpop.f32.mrb[0].mxu0
        %v5535 = vadd.f32 0.0, %v5534
        %v5536 = vpop.f32.mrb[0].mxu0
        %5537 = vmatprep.mubr.bf16.mxu0 0
        %5538 = vmatmul.mubr.bf16.gmra.mrb[0].mxu0 %v5069
        %v5539 = vpop.f32.mrb[0].mxu0
        %v5540 = vadd.f32 0.0, %v5539
        %v5541 = vpop.f32.mrb[0].mxu0
        %v5542 = vpop.f32.mrb[0].mxu0
        %v5543 = vadd.f32 0.0, %v5542
        %v5544 = vpop.f32.mrb[0].mxu0
        %5545 = vmatprep.mubr.bf16.mxu0 0
        %5546 = vmatmul.mubr.bf16.gmra.mrb[0].mxu0 %v5072
        %v5547 = vpop.f32.mrb[0].mxu0
        %v5548 = vadd.f32 0.0, %v5547
        %v5549 = vpop.f32.mrb[0].mxu0
        %v5550 = vpop.f32.mrb[0].mxu0
        %v5551 = vadd.f32 0.0, %v5550
        %v5552 = vpop.f32.mrb[0].mxu0
        %5553 = vmatprep.mubr.bf16.mxu0 0
        %5554 = vmatmul.mubr.bf16.gmra.mrb[0].mxu0 %v5075
        %v5555 = vpop.f32.mrb[0].mxu0
        %v5556 = vadd.f32 0.0, %v5555
        %v5557 = vpop.f32.mrb[0].mxu0
        %v5558 = vpop.f32.mrb[0].mxu0
        %v5559 = vadd.f32 0.0, %v5558
        %v5560 = vpop.f32.mrb[0].mxu0
        %5561 = vmatprep.mubr.bf16.mxu0 0
        %5562 = vmatmul.mubr.bf16.gmra.mrb[0].mxu0 %v5078
        %v5563 = vpop.f32.mrb[0].mxu0
        %v5564 = vadd.f32 0.0, %v5563
        %v5565 = vpop.f32.mrb[0].mxu0
        %v5566 = vpop.f32.mrb[0].mxu0
        %v5567 = vadd.f32 0.0, %v5566
        %v5568 = vpop.f32.mrb[0].mxu0
        %5569 = vmatprep.mubr.bf16.mxu0 0
        %5570 = vmatmul.mubr.bf16.gmra.mrb[0].mxu0 %v5081
        %v5571 = vpop.f32.mrb[0].mxu0
        %v5572 = vadd.f32 0.0, %v5571
        %v5573 = vpop.f32.mrb[0].mxu0
        %v5574 = vpop.f32.mrb[0].mxu0
        %v5575 = vadd.f32 0.0, %v5574
        %v5576 = vpop.f32.mrb[0].mxu0
        %5577 = vmatprep.mubr.bf16.mxu0 0
        %5578 = vmatmul.mubr.bf16.gmra.mrb[0].mxu0 %v5084
        %v5579 = vpop.f32.mrb[0].mxu0
        %v5580 = vadd.f32 0.0, %v5579
        %v5581 = vpop.f32.mrb[0].mxu0
        %v5582 = vpop.f32.mrb[0].mxu0
        %v5583 = vadd.f32 0.0, %v5582
        %v5584 = vpop.f32.mrb[0].mxu0
        %5585 = vmatprep.mubr.bf16.mxu0 0
        %5586 = vmatmul.mubr.bf16.gmra.mrb[0].mxu0 %v5087
        %v5587 = vpop.f32.mrb[0].mxu0
        %v5588 = vadd.f32 0.0, %v5587
        %v5589 = vpop.f32.mrb[0].mxu0
        %v5590 = vpop.f32.mrb[0].mxu0
        %v5591 = vadd.f32 0.0, %v5590
        %v5592 = vpop.f32.mrb[0].mxu0
        %5593 = vmatprep.mubr.bf16.mxu0 0
        %5594 = vmatmul.mubr.bf16.gmra.mrb[0].mxu0 %v5090
        %v5595 = vpop.f32.mrb[0].mxu0
        %v5596 = vadd.f32 0.0, %v5595
        %v5597 = vpop.f32.mrb[0].mxu0
        %v5598 = vpop.f32.mrb[0].mxu0
        %v5599 = vadd.f32 0.0, %v5598
        %v5600 = vpop.f32.mrb[0].mxu0
        %5601 = vmatprep.mubr.bf16.mxu0 0
        %5602 = vmatmul.mubr.bf16.gmra.mrb[0].mxu0 %v5093
        %v5603 = vpop.f32.mrb[0].mxu0
        %v5604 = vadd.f32 0.0, %v5603
        %v5605 = vpop.f32.mrb[0].mxu0
        %v5606 = vpop.f32.mrb[0].mxu0
        %v5607 = vadd.f32 0.0, %v5606
        %v5608 = vpop.f32.mrb[0].mxu0
        %5609 = vmatprep.mubr.bf16.mxu0 0
        %5610 = vmatmul.mubr.bf16.gmra.mrb[0].mxu0 %v5096
        %v5611 = vpop.f32.mrb[0].mxu0
        %v5612 = vadd.f32 0.0, %v5611
        %v5613 = vpop.f32.mrb[0].mxu0
        %v5614 = vpop.f32.mrb[0].mxu0
        %v5615 = vadd.f32 0.0, %v5614
        %v5616 = vpop.f32.mrb[0].mxu0
        %5617 = vmatprep.mubr.bf16.mxu0 0
        %5618 = vmatmul.mubr.bf16.gmra.mrb[0].mxu0 %v5099
        %v5619 = vpop.f32.mrb[0].mxu0
        %v5620 = vadd.f32 0.0, %v5619
        %v5621 = vpop.f32.mrb[0].mxu0
        %v5622 = vpop.f32.mrb[0].mxu0
        %v5623 = vadd.f32 0.0, %v5622
        %v5624 = vpop.f32.mrb[0].mxu0
        %5625 = vmatprep.mubr.bf16.mxu0 0
        %5626 = vmatmul.mubr.bf16.gmra.mrb[0].mxu0 %v5102
        %v5627 = vpop.f32.mrb[0].mxu0
        %v5628 = vadd.f32 0.0, %v5627
        %v5629 = vpop.f32.mrb[0].mxu0
        %v5630 = vpop.f32.mrb[0].mxu0
        %v5631 = vadd.f32 0.0, %v5630
        %v5632 = vpop.f32.mrb[0].mxu0
        %5633 = vmatprep.mubr.bf16.mxu0 0
        %5634 = vmatmul.mubr.bf16.gmra.mrb[0].mxu0 %v5105
        %v5635 = vpop.f32.mrb[0].mxu0
        %v5636 = vadd.f32 0.0, %v5635
        %v5637 = vpop.f32.mrb[0].mxu0
        %v5638 = vpop.f32.mrb[0].mxu0
        %v5639 = vadd.f32 0.0, %v5638
        %v5640 = vpop.f32.mrb[0].mxu0
        %5641 = vmatprep.mubr.bf16.mxu0 0
        %5642 = vmatmul.mubr.bf16.gmra.mrb[0].mxu0 %v5108
        %v5643 = vpop.f32.mrb[0].mxu0
        %v5644 = vadd.f32 0.0, %v5643
        %v5645 = vpop.f32.mrb[0].mxu0
        %v5646 = vpop.f32.mrb[0].mxu0
        %v5647 = vadd.f32 0.0, %v5646
        %v5648 = vpop.f32.mrb[0].mxu0
        %5649 = vmatprep.mubr.bf16.mxu0 0
        %5650 = vmatmul.mubr.bf16.gmra.mrb[0].mxu0 %v5111
        %v5651 = vpop.f32.mrb[0].mxu0
        %v5652 = vadd.f32 0.0, %v5651
        %v5653 = vpop.f32.mrb[0].mxu0
        %v5654 = vpop.f32.mrb[0].mxu0
        %v5655 = vadd.f32 0.0, %v5654
        %v5656 = vpop.f32.mrb[0].mxu0
        %5657 = vdwg.mxu0
        %v5658 = vadd.f32 %v4311, %v5148
        %v5659 = vadd.f32 %v4312, %v5151
        %v5660 = vadd.f32 %v4313, %v5156
        %v5661 = vadd.f32 %v4314, %v5159
        %v5662 = vadd.f32 %v4315, %v5164
        %v5663 = vadd.f32 %v4316, %v5167
        %v5664 = vadd.f32 %v4317, %v5172
        %v5665 = vadd.f32 %v4318, %v5175
        %v5666 = vadd.f32 %v4319, %v5180
        %v5667 = vadd.f32 %v4320, %v5183
        %v5668 = vadd.f32 %v4321, %v5188
        %v5669 = vadd.f32 %v4322, %v5191
        %v5670 = vadd.f32 %v4323, %v5196
        %v5671 = vadd.f32 %v4324, %v5199
        %v5672 = vadd.f32 %v4325, %v5204
        %v5673 = vadd.f32 %v4326, %v5207
        %v5674 = vadd.f32 %v4327, %v5212
        %v5675 = vadd.f32 %v4328, %v5215
        %v5676 = vadd.f32 %v4329, %v5220
        %v5677 = vadd.f32 %v4330, %v5223
        %v5678 = vadd.f32 %v4331, %v5228
        %v5679 = vadd.f32 %v4332, %v5231
        %v5680 = vadd.f32 %v4333, %v5236
        %v5681 = vadd.f32 %v4334, %v5239
        %v5682 = vadd.f32 %v4335, %v5244
        %v5683 = vadd.f32 %v4336, %v5247
        %v5684 = vadd.f32 %v4337, %v5252
        %v5685 = vadd.f32 %v4338, %v5255
        %v5686 = vadd.f32 %v4339, %v5260
        %v5687 = vadd.f32 %v4340, %v5263
        %v5688 = vadd.f32 %v4341, %v5268
        %v5689 = vadd.f32 %v4342, %v5271
        %v5690 = vadd.f32 %v4343, %v5276
        %v5691 = vadd.f32 %v4344, %v5279
        %v5692 = vadd.f32 %v4345, %v5284
        %v5693 = vadd.f32 %v4346, %v5287
        %v5694 = vadd.f32 %v4347, %v5292
        %v5695 = vadd.f32 %v4348, %v5295
        %v5696 = vadd.f32 %v4349, %v5300
        %v5697 = vadd.f32 %v4350, %v5303
        %v5698 = vadd.f32 %v4351, %v5308
        %v5699 = vadd.f32 %v4352, %v5311
        %v5700 = vadd.f32 %v4353, %v5316
        %v5701 = vadd.f32 %v4354, %v5319
        %v5702 = vadd.f32 %v4355, %v5324
        %v5703 = vadd.f32 %v4356, %v5327
        %v5704 = vadd.f32 %v4357, %v5332
        %v5705 = vadd.f32 %v4358, %v5335
        %v5706 = vadd.f32 %v4359, %v5340
        %v5707 = vadd.f32 %v4360, %v5343
        %v5708 = vadd.f32 %v4361, %v5348
        %v5709 = vadd.f32 %v4362, %v5351
        %v5710 = vadd.f32 %v4363, %v5356
        %v5711 = vadd.f32 %v4364, %v5359
        %v5712 = vadd.f32 %v4365, %v5364
        %v5713 = vadd.f32 %v4366, %v5367
        %v5714 = vadd.f32 %v4367, %v5372
        %v5715 = vadd.f32 %v4368, %v5375
        %v5716 = vadd.f32 %v4369, %v5380
        %v5717 = vadd.f32 %v4370, %v5383
        %v5718 = vadd.f32 %v4371, %v5388
        %v5719 = vadd.f32 %v4372, %v5391
        %v5720 = vadd.f32 %v4373, %v5396
        %v5721 = vadd.f32 %v4374, %v5399
        %v5722 = vadd.f32 %v4375, %v5404
        %v5723 = vadd.f32 %v4376, %v5407
        %v5724 = vadd.f32 %v4377, %v5412
        %v5725 = vadd.f32 %v4378, %v5415
        %v5726 = vadd.f32 %v4379, %v5420
        %v5727 = vadd.f32 %v4380, %v5423
        %v5728 = vadd.f32 %v4381, %v5428
        %v5729 = vadd.f32 %v4382, %v5431
        %v5730 = vadd.f32 %v4383, %v5436
        %v5731 = vadd.f32 %v4384, %v5439
        %v5732 = vadd.f32 %v4385, %v5444
        %v5733 = vadd.f32 %v4386, %v5447
        %v5734 = vadd.f32 %v4387, %v5452
        %v5735 = vadd.f32 %v4388, %v5455
        %v5736 = vadd.f32 %v4389, %v5460
        %v5737 = vadd.f32 %v4390, %v5463
        %v5738 = vadd.f32 %v4391, %v5468
        %v5739 = vadd.f32 %v4392, %v5471
        %v5740 = vadd.f32 %v4393, %v5476
        %v5741 = vadd.f32 %v4394, %v5479
        %v5742 = vadd.f32 %v4395, %v5484
        %v5743 = vadd.f32 %v4396, %v5487
        %v5744 = vadd.f32 %v4397, %v5492
        %v5745 = vadd.f32 %v4398, %v5495
        %v5746 = vadd.f32 %v4399, %v5500
        %v5747 = vadd.f32 %v4400, %v5503
        %v5748 = vadd.f32 %v4401, %v5508
        %v5749 = vadd.f32 %v4402, %v5511
        %v5750 = vadd.f32 %v4403, %v5516
        %v5751 = vadd.f32 %v4404, %v5519
        %v5752 = vadd.f32 %v4405, %v5524
        %v5753 = vadd.f32 %v4406, %v5527
        %v5754 = vadd.f32 %v4407, %v5532
        %v5755 = vadd.f32 %v4408, %v5535
        %v5756 = vadd.f32 %v4409, %v5540
        %v5757 = vadd.f32 %v4410, %v5543
        %v5758 = vadd.f32 %v4411, %v5548
        %v5759 = vadd.f32 %v4412, %v5551
        %v5760 = vadd.f32 %v4413, %v5556
        %v5761 = vadd.f32 %v4414, %v5559
        %v5762 = vadd.f32 %v4415, %v5564
        %v5763 = vadd.f32 %v4416, %v5567
        %v5764 = vadd.f32 %v4417, %v5572
        %v5765 = vadd.f32 %v4418, %v5575
        %v5766 = vadd.f32 %v4419, %v5580
        %v5767 = vadd.f32 %v4420, %v5583
        %v5768 = vadd.f32 %v4421, %v5588
        %v5769 = vadd.f32 %v4422, %v5591
        %v5770 = vadd.f32 %v4423, %v5596
        %v5771 = vadd.f32 %v4424, %v5599
        %v5772 = vadd.f32 %v4425, %v5604
        %v5773 = vadd.f32 %v4426, %v5607
        %v5774 = vadd.f32 %v4427, %v5612
        %v5775 = vadd.f32 %v4428, %v5615
        %v5776 = vadd.f32 %v4429, %v5620
        %v5777 = vadd.f32 %v4430, %v5623
        %v5778 = vadd.f32 %v4431, %v5628
        %v5779 = vadd.f32 %v4432, %v5631
        %v5780 = vadd.f32 %v4433, %v5636
        %v5781 = vadd.f32 %v4434, %v5639
        %v5782 = vadd.f32 %v4435, %v5644
        %v5783 = vadd.f32 %v4436, %v5647
        %v5784 = vadd.f32 %v4437, %v5652
        %v5785 = vadd.f32 %v4438, %v5655
        %v5786 = vld [vmem:[%s3] sm:$0x1]
        %v5788 = vlaneseq
        %v5789 = vshrl.u32 %v5788, 7
        %v5790 = vsub.s32 0, %v5789
        %v5791 = vrot.slane %v5786, %v5790
        %v5793 = vadd.f32 %v5658, %v5791
        %v5794 = vadd.f32 %v5659, %v5791
        %v5795 = vadd.f32 %v5660, %v5791
        %v5796 = vadd.f32 %v5661, %v5791
        %v5797 = vadd.f32 %v5662, %v5791
        %v5798 = vadd.f32 %v5663, %v5791
        %v5799 = vadd.f32 %v5664, %v5791
        %v5800 = vadd.f32 %v5665, %v5791
        %v5801 = vadd.f32 %v5666, %v5791
        %v5802 = vadd.f32 %v5667, %v5791
        %v5803 = vadd.f32 %v5668, %v5791
        %v5804 = vadd.f32 %v5669, %v5791
        %v5805 = vadd.f32 %v5670, %v5791
        %v5806 = vadd.f32 %v5671, %v5791
        %v5807 = vadd.f32 %v5672, %v5791
        %v5808 = vadd.f32 %v5673, %v5791
        %v5809 = vadd.f32 %v5674, %v5791
        %v5810 = vadd.f32 %v5675, %v5791
        %v5811 = vadd.f32 %v5676, %v5791
        %v5812 = vadd.f32 %v5677, %v5791
        %v5813 = vadd.f32 %v5678, %v5791
        %v5814 = vadd.f32 %v5679, %v5791
        %v5815 = vadd.f32 %v5680, %v5791
        %v5816 = vadd.f32 %v5681, %v5791
        %v5817 = vadd.f32 %v5682, %v5791
        %v5818 = vadd.f32 %v5683, %v5791
        %v5819 = vadd.f32 %v5684, %v5791
        %v5820 = vadd.f32 %v5685, %v5791
        %v5821 = vadd.f32 %v5686, %v5791
        %v5822 = vadd.f32 %v5687, %v5791
        %v5823 = vadd.f32 %v5688, %v5791
        %v5824 = vadd.f32 %v5689, %v5791
        %v5825 = vadd.f32 %v5690, %v5791
        %v5826 = vadd.f32 %v5691, %v5791
        %v5827 = vadd.f32 %v5692, %v5791
        %v5828 = vadd.f32 %v5693, %v5791
        %v5829 = vadd.f32 %v5694, %v5791
        %v5830 = vadd.f32 %v5695, %v5791
        %v5831 = vadd.f32 %v5696, %v5791
        %v5832 = vadd.f32 %v5697, %v5791
        %v5833 = vadd.f32 %v5698, %v5791
        %v5834 = vadd.f32 %v5699, %v5791
        %v5835 = vadd.f32 %v5700, %v5791
        %v5836 = vadd.f32 %v5701, %v5791
        %v5837 = vadd.f32 %v5702, %v5791
        %v5838 = vadd.f32 %v5703, %v5791
        %v5839 = vadd.f32 %v5704, %v5791
        %v5840 = vadd.f32 %v5705, %v5791
        %v5841 = vadd.f32 %v5706, %v5791
        %v5842 = vadd.f32 %v5707, %v5791
        %v5843 = vadd.f32 %v5708, %v5791
        %v5844 = vadd.f32 %v5709, %v5791
        %v5845 = vadd.f32 %v5710, %v5791
        %v5846 = vadd.f32 %v5711, %v5791
        %v5847 = vadd.f32 %v5712, %v5791
        %v5848 = vadd.f32 %v5713, %v5791
        %v5849 = vadd.f32 %v5714, %v5791
        %v5850 = vadd.f32 %v5715, %v5791
        %v5851 = vadd.f32 %v5716, %v5791
        %v5852 = vadd.f32 %v5717, %v5791
        %v5853 = vadd.f32 %v5718, %v5791
        %v5854 = vadd.f32 %v5719, %v5791
        %v5855 = vadd.f32 %v5720, %v5791
        %v5856 = vadd.f32 %v5721, %v5791
        %v5857 = vadd.f32 %v5722, %v5791
        %v5858 = vadd.f32 %v5723, %v5791
        %v5859 = vadd.f32 %v5724, %v5791
        %v5860 = vadd.f32 %v5725, %v5791
        %v5861 = vadd.f32 %v5726, %v5791
        %v5862 = vadd.f32 %v5727, %v5791
        %v5863 = vadd.f32 %v5728, %v5791
        %v5864 = vadd.f32 %v5729, %v5791
        %v5865 = vadd.f32 %v5730, %v5791
        %v5866 = vadd.f32 %v5731, %v5791
        %v5867 = vadd.f32 %v5732, %v5791
        %v5868 = vadd.f32 %v5733, %v5791
        %v5869 = vadd.f32 %v5734, %v5791
        %v5870 = vadd.f32 %v5735, %v5791
        %v5871 = vadd.f32 %v5736, %v5791
        %v5872 = vadd.f32 %v5737, %v5791
        %v5873 = vadd.f32 %v5738, %v5791
        %v5874 = vadd.f32 %v5739, %v5791
        %v5875 = vadd.f32 %v5740, %v5791
        %v5876 = vadd.f32 %v5741, %v5791
        %v5877 = vadd.f32 %v5742, %v5791
        %v5878 = vadd.f32 %v5743, %v5791
        %v5879 = vadd.f32 %v5744, %v5791
        %v5880 = vadd.f32 %v5745, %v5791
        %v5881 = vadd.f32 %v5746, %v5791
        %v5882 = vadd.f32 %v5747, %v5791
        %v5883 = vadd.f32 %v5748, %v5791
        %v5884 = vadd.f32 %v5749, %v5791
        %v5885 = vadd.f32 %v5750, %v5791
        %v5886 = vadd.f32 %v5751, %v5791
        %v5887 = vadd.f32 %v5752, %v5791
        %v5888 = vadd.f32 %v5753, %v5791
        %v5889 = vadd.f32 %v5754, %v5791
        %v5890 = vadd.f32 %v5755, %v5791
        %v5891 = vadd.f32 %v5756, %v5791
        %v5892 = vadd.f32 %v5757, %v5791
        %v5893 = vadd.f32 %v5758, %v5791
        %v5894 = vadd.f32 %v5759, %v5791
        %v5895 = vadd.f32 %v5760, %v5791
        %v5896 = vadd.f32 %v5761, %v5791
        %v5897 = vadd.f32 %v5762, %v5791
        %v5898 = vadd.f32 %v5763, %v5791
        %v5899 = vadd.f32 %v5764, %v5791
        %v5900 = vadd.f32 %v5765, %v5791
        %v5901 = vadd.f32 %v5766, %v5791
        %v5902 = vadd.f32 %v5767, %v5791
        %v5903 = vadd.f32 %v5768, %v5791
        %v5904 = vadd.f32 %v5769, %v5791
        %v5905 = vadd.f32 %v5770, %v5791
        %v5906 = vadd.f32 %v5771, %v5791
        %v5907 = vadd.f32 %v5772, %v5791
        %v5908 = vadd.f32 %v5773, %v5791
        %v5909 = vadd.f32 %v5774, %v5791
        %v5910 = vadd.f32 %v5775, %v5791
        %v5911 = vadd.f32 %v5776, %v5791
        %v5912 = vadd.f32 %v5777, %v5791
        %v5913 = vadd.f32 %v5778, %v5791
        %v5914 = vadd.f32 %v5779, %v5791
        %v5915 = vadd.f32 %v5780, %v5791
        %v5916 = vadd.f32 %v5781, %v5791
        %v5917 = vadd.f32 %v5782, %v5791
        %v5918 = vadd.f32 %v5783, %v5791
        %v5919 = vadd.f32 %v5784, %v5791
        %v5920 = vadd.f32 %v5785, %v5791
        %v5921 = vmax.f32 %v5793, 0.0
        %v5922 = vmax.f32 %v5794, 0.0
        %v5923 = vmax.f32 %v5795, 0.0
        %v5924 = vmax.f32 %v5796, 0.0
        %v5925 = vmax.f32 %v5797, 0.0
        %v5926 = vmax.f32 %v5798, 0.0
        %v5927 = vmax.f32 %v5799, 0.0
        %v5928 = vmax.f32 %v5800, 0.0
        %v5929 = vmax.f32 %v5801, 0.0
        %v5930 = vmax.f32 %v5802, 0.0
        %v5931 = vmax.f32 %v5803, 0.0
        %v5932 = vmax.f32 %v5804, 0.0
        %v5933 = vmax.f32 %v5805, 0.0
        %v5934 = vmax.f32 %v5806, 0.0
        %v5935 = vmax.f32 %v5807, 0.0
        %v5936 = vmax.f32 %v5808, 0.0
        %v5937 = vmax.f32 %v5809, 0.0
        %v5938 = vmax.f32 %v5810, 0.0
        %v5939 = vmax.f32 %v5811, 0.0
        %v5940 = vmax.f32 %v5812, 0.0
        %v5941 = vmax.f32 %v5813, 0.0
        %v5942 = vmax.f32 %v5814, 0.0
        %v5943 = vmax.f32 %v5815, 0.0
        %v5944 = vmax.f32 %v5816, 0.0
        %v5945 = vmax.f32 %v5817, 0.0
        %v5946 = vmax.f32 %v5818, 0.0
        %v5947 = vmax.f32 %v5819, 0.0
        %v5948 = vmax.f32 %v5820, 0.0
        %v5949 = vmax.f32 %v5821, 0.0
        %v5950 = vmax.f32 %v5822, 0.0
        %v5951 = vmax.f32 %v5823, 0.0
        %v5952 = vmax.f32 %v5824, 0.0
        %v5953 = vmax.f32 %v5825, 0.0
        %v5954 = vmax.f32 %v5826, 0.0
        %v5955 = vmax.f32 %v5827, 0.0
        %v5956 = vmax.f32 %v5828, 0.0
        %v5957 = vmax.f32 %v5829, 0.0
        %v5958 = vmax.f32 %v5830, 0.0
        %v5959 = vmax.f32 %v5831, 0.0
        %v5960 = vmax.f32 %v5832, 0.0
        %v5961 = vmax.f32 %v5833, 0.0
        %v5962 = vmax.f32 %v5834, 0.0
        %v5963 = vmax.f32 %v5835, 0.0
        %v5964 = vmax.f32 %v5836, 0.0
        %v5965 = vmax.f32 %v5837, 0.0
        %v5966 = vmax.f32 %v5838, 0.0
        %v5967 = vmax.f32 %v5839, 0.0
        %v5968 = vmax.f32 %v5840, 0.0
        %v5969 = vmax.f32 %v5841, 0.0
        %v5970 = vmax.f32 %v5842, 0.0
        %v5971 = vmax.f32 %v5843, 0.0
        %v5972 = vmax.f32 %v5844, 0.0
        %v5973 = vmax.f32 %v5845, 0.0
        %v5974 = vmax.f32 %v5846, 0.0
        %v5975 = vmax.f32 %v5847, 0.0
        %v5976 = vmax.f32 %v5848, 0.0
        %v5977 = vmax.f32 %v5849, 0.0
        %v5978 = vmax.f32 %v5850, 0.0
        %v5979 = vmax.f32 %v5851, 0.0
        %v5980 = vmax.f32 %v5852, 0.0
        %v5981 = vmax.f32 %v5853, 0.0
        %v5982 = vmax.f32 %v5854, 0.0
        %v5983 = vmax.f32 %v5855, 0.0
        %v5984 = vmax.f32 %v5856, 0.0
        %v5985 = vmax.f32 %v5857, 0.0
        %v5986 = vmax.f32 %v5858, 0.0
        %v5987 = vmax.f32 %v5859, 0.0
        %v5988 = vmax.f32 %v5860, 0.0
        %v5989 = vmax.f32 %v5861, 0.0
        %v5990 = vmax.f32 %v5862, 0.0
        %v5991 = vmax.f32 %v5863, 0.0
        %v5992 = vmax.f32 %v5864, 0.0
        %v5993 = vmax.f32 %v5865, 0.0
        %v5994 = vmax.f32 %v5866, 0.0
        %v5995 = vmax.f32 %v5867, 0.0
        %v5996 = vmax.f32 %v5868, 0.0
        %v5997 = vmax.f32 %v5869, 0.0
        %v5998 = vmax.f32 %v5870, 0.0
        %v5999 = vmax.f32 %v5871, 0.0
        %v6000 = vmax.f32 %v5872, 0.0
        %v6001 = vmax.f32 %v5873, 0.0
        %v6002 = vmax.f32 %v5874, 0.0
        %v6003 = vmax.f32 %v5875, 0.0
        %v6004 = vmax.f32 %v5876, 0.0
        %v6005 = vmax.f32 %v5877, 0.0
        %v6006 = vmax.f32 %v5878, 0.0
        %v6007 = vmax.f32 %v5879, 0.0
        %v6008 = vmax.f32 %v5880, 0.0
        %v6009 = vmax.f32 %v5881, 0.0
        %v6010 = vmax.f32 %v5882, 0.0
        %v6011 = vmax.f32 %v5883, 0.0
        %v6012 = vmax.f32 %v5884, 0.0
        %v6013 = vmax.f32 %v5885, 0.0
        %v6014 = vmax.f32 %v5886, 0.0
        %v6015 = vmax.f32 %v5887, 0.0
        %v6016 = vmax.f32 %v5888, 0.0
        %v6017 = vmax.f32 %v5889, 0.0
        %v6018 = vmax.f32 %v5890, 0.0
        %v6019 = vmax.f32 %v5891, 0.0
        %v6020 = vmax.f32 %v5892, 0.0
        %v6021 = vmax.f32 %v5893, 0.0
        %v6022 = vmax.f32 %v5894, 0.0
        %v6023 = vmax.f32 %v5895, 0.0
        %v6024 = vmax.f32 %v5896, 0.0
        %v6025 = vmax.f32 %v5897, 0.0
        %v6026 = vmax.f32 %v5898, 0.0
        %v6027 = vmax.f32 %v5899, 0.0
        %v6028 = vmax.f32 %v5900, 0.0
        %v6029 = vmax.f32 %v5901, 0.0
        %v6030 = vmax.f32 %v5902, 0.0
        %v6031 = vmax.f32 %v5903, 0.0
        %v6032 = vmax.f32 %v5904, 0.0
        %v6033 = vmax.f32 %v5905, 0.0
        %v6034 = vmax.f32 %v5906, 0.0
        %v6035 = vmax.f32 %v5907, 0.0
        %v6036 = vmax.f32 %v5908, 0.0
        %v6037 = vmax.f32 %v5909, 0.0
        %v6038 = vmax.f32 %v5910, 0.0
        %v6039 = vmax.f32 %v5911, 0.0
        %v6040 = vmax.f32 %v5912, 0.0
        %v6041 = vmax.f32 %v5913, 0.0
        %v6042 = vmax.f32 %v5914, 0.0
        %v6043 = vmax.f32 %v5915, 0.0
        %v6044 = vmax.f32 %v5916, 0.0
        %v6045 = vmax.f32 %v5917, 0.0
        %v6046 = vmax.f32 %v5918, 0.0
        %v6047 = vmax.f32 %v5919, 0.0
        %v6048 = vmax.f32 %v5920, 0.0
        %v6049 = vpack.c.bf16 %v5922, %v5921
        %v6050 = vpack.c.bf16 %v5924, %v5923
        %v6051 = vpack.c.bf16 %v5926, %v5925
        %v6052 = vpack.c.bf16 %v5928, %v5927
        %v6053 = vpack.c.bf16 %v5930, %v5929
        %v6054 = vpack.c.bf16 %v5932, %v5931
        %v6055 = vpack.c.bf16 %v5934, %v5933
        %v6056 = vpack.c.bf16 %v5936, %v5935
        %v6057 = vpack.c.bf16 %v5938, %v5937
        %v6058 = vpack.c.bf16 %v5940, %v5939
        %v6059 = vpack.c.bf16 %v5942, %v5941
        %v6060 = vpack.c.bf16 %v5944, %v5943
        %v6061 = vpack.c.bf16 %v5946, %v5945
        %v6062 = vpack.c.bf16 %v5948, %v5947
        %v6063 = vpack.c.bf16 %v5950, %v5949
        %v6064 = vpack.c.bf16 %v5952, %v5951
        %v6065 = vpack.c.bf16 %v5954, %v5953
        %v6066 = vpack.c.bf16 %v5956, %v5955
        %v6067 = vpack.c.bf16 %v5958, %v5957
        %v6068 = vpack.c.bf16 %v5960, %v5959
        %v6069 = vpack.c.bf16 %v5962, %v5961
        %v6070 = vpack.c.bf16 %v5964, %v5963
        %v6071 = vpack.c.bf16 %v5966, %v5965
        %v6072 = vpack.c.bf16 %v5968, %v5967
        %v6073 = vpack.c.bf16 %v5970, %v5969
        %v6074 = vpack.c.bf16 %v5972, %v5971
        %v6075 = vpack.c.bf16 %v5974, %v5973
        %v6076 = vpack.c.bf16 %v5976, %v5975
        %v6077 = vpack.c.bf16 %v5978, %v5977
        %v6078 = vpack.c.bf16 %v5980, %v5979
        %v6079 = vpack.c.bf16 %v5982, %v5981
        %v6080 = vpack.c.bf16 %v5984, %v5983
        %v6081 = vpack.c.bf16 %v5986, %v5985
        %v6082 = vpack.c.bf16 %v5988, %v5987
        %v6083 = vpack.c.bf16 %v5990, %v5989
        %v6084 = vpack.c.bf16 %v5992, %v5991
        %v6085 = vpack.c.bf16 %v5994, %v5993
        %v6086 = vpack.c.bf16 %v5996, %v5995
        %v6087 = vpack.c.bf16 %v5998, %v5997
        %v6088 = vpack.c.bf16 %v6000, %v5999
        %v6089 = vpack.c.bf16 %v6002, %v6001
        %v6090 = vpack.c.bf16 %v6004, %v6003
        %v6091 = vpack.c.bf16 %v6006, %v6005
        %v6092 = vpack.c.bf16 %v6008, %v6007
        %v6093 = vpack.c.bf16 %v6010, %v6009
        %v6094 = vpack.c.bf16 %v6012, %v6011
        %v6095 = vpack.c.bf16 %v6014, %v6013
        %v6096 = vpack.c.bf16 %v6016, %v6015
        %v6097 = vpack.c.bf16 %v6018, %v6017
        %v6098 = vpack.c.bf16 %v6020, %v6019
        %v6099 = vpack.c.bf16 %v6022, %v6021
        %v6100 = vpack.c.bf16 %v6024, %v6023
        %v6101 = vpack.c.bf16 %v6026, %v6025
        %v6102 = vpack.c.bf16 %v6028, %v6027
        %v6103 = vpack.c.bf16 %v6030, %v6029
        %v6104 = vpack.c.bf16 %v6032, %v6031
        %v6105 = vpack.c.bf16 %v6034, %v6033
        %v6106 = vpack.c.bf16 %v6036, %v6035
        %v6107 = vpack.c.bf16 %v6038, %v6037
        %v6108 = vpack.c.bf16 %v6040, %v6039
        %v6109 = vpack.c.bf16 %v6042, %v6041
        %v6110 = vpack.c.bf16 %v6044, %v6043
        %v6111 = vpack.c.bf16 %v6046, %v6045
        %v6112 = vpack.c.bf16 %v6048, %v6047
        %6122 = vrot.lane.b32.xlu0 %v6051, 32
        %v6123 = vpop.permute.xlu0 %6122
        %6124 = vrot.lane.b32.xlu0 %v6053, 32
        %v6125 = vpop.permute.xlu0 %6124
        %6126 = vrot.lane.b32.xlu0 %v6055, 32
        %v6127 = vpop.permute.xlu0 %6126
        %6128 = vrot.lane.b32.xlu0 %v6067, 32
        %v6129 = vpop.permute.xlu0 %6128
        %6130 = vrot.lane.b32.xlu0 %v6069, 32
        %v6131 = vpop.permute.xlu0 %6130
        %6132 = vrot.lane.b32.xlu0 %v6071, 32
        %v6133 = vpop.permute.xlu0 %6132
        %6134 = vrot.lane.b32.xlu0 %v6083, 32
        %v6135 = vpop.permute.xlu0 %6134
        %6136 = vrot.lane.b32.xlu0 %v6085, 32
        %v6137 = vpop.permute.xlu0 %6136
        %6138 = vrot.lane.b32.xlu0 %v6087, 32
        %v6139 = vpop.permute.xlu0 %6138
        %6145 = vrot.lane.b32.xlu0 %v6065, 64
        %v6146 = vpop.permute.xlu0 %6145
        %6147 = vrot.lane.b32.xlu0 %v6067, 64
        %v6148 = vpop.permute.xlu0 %6147
        %6149 = vrot.lane.b32.xlu0 %v6069, 64
        %v6150 = vpop.permute.xlu0 %6149
        %6151 = vrot.lane.b32.xlu0 %v6081, 64
        %v6152 = vpop.permute.xlu0 %6151
        %6153 = vrot.lane.b32.xlu0 %v6083, 64
        %v6154 = vpop.permute.xlu0 %6153
        %6155 = vrot.lane.b32.xlu0 %v6085, 64
        %v6156 = vpop.permute.xlu0 %6155
        %6157 = vrot.lane.b32.xlu0 %v6097, 64
        %v6158 = vpop.permute.xlu0 %6157
        %6159 = vrot.lane.b32.xlu0 %v6099, 64
        %v6160 = vpop.permute.xlu0 %6159
        %6161 = vrot.lane.b32.xlu0 %v6101, 64
        %v6162 = vpop.permute.xlu0 %6161
        %6164 = vrot.lane.b32.xlu0 %v6067, 96
        %v6165 = vpop.permute.xlu0 %6164
        %6166 = vrot.lane.b32.xlu0 %v6069, 96
        %v6167 = vpop.permute.xlu0 %6166
        %6168 = vrot.lane.b32.xlu0 %v6071, 96
        %v6169 = vpop.permute.xlu0 %6168
        %6170 = vrot.lane.b32.xlu0 %v6083, 96
        %v6171 = vpop.permute.xlu0 %6170
        %6172 = vrot.lane.b32.xlu0 %v6085, 96
        %v6173 = vpop.permute.xlu0 %6172
        %6174 = vrot.lane.b32.xlu0 %v6087, 96
        %v6175 = vpop.permute.xlu0 %6174
        %6176 = vrot.lane.b32.xlu0 %v6099, 96
        %v6177 = vpop.permute.xlu0 %6176
        %6178 = vrot.lane.b32.xlu0 %v6101, 96
        %v6179 = vpop.permute.xlu0 %6178
        %6180 = vrot.lane.b32.xlu0 %v6103, 96
        %v6181 = vpop.permute.xlu0 %6180
        %vm6182 = vcmask 261120
        %v6185 = vsel %vm6182, %v6049, %v6123
        %v6188 = vsel %vm6182, %v6051, %v6125
        %v6191 = vsel %vm6182, %v6053, %v6127
        %v6194 = vsel %vm6182, %v6065, %v6129
        %v6197 = vsel %vm6182, %v6067, %v6131
        %v6200 = vsel %vm6182, %v6069, %v6133
        %v6203 = vsel %vm6182, %v6081, %v6135
        %v6206 = vsel %vm6182, %v6083, %v6137
        %v6209 = vsel %vm6182, %v6085, %v6139
        %v6211 = vsel %vm1273, %v6185, %v6146
        %v6213 = vsel %vm1273, %v6188, %v6148
        %v6215 = vsel %vm1273, %v6191, %v6150
        %v6217 = vsel %vm1273, %v6194, %v6152
        %v6219 = vsel %vm1273, %v6197, %v6154
        %v6221 = vsel %vm1273, %v6200, %v6156
        %v6223 = vsel %vm1273, %v6203, %v6158
        %v6225 = vsel %vm1273, %v6206, %v6160
        %v6227 = vsel %vm1273, %v6209, %v6162
        %vm6228 = vcmask 785408
        %v6230 = vsel %vm6228, %v6211, %v6165
        %v6233 = vsel %vm6228, %v6213, %v6167
        %v6236 = vsel %vm6228, %v6215, %v6169
        %v6239 = vsel %vm6228, %v6217, %v6171
        %v6242 = vsel %vm6228, %v6219, %v6173
        %v6245 = vsel %vm6228, %v6221, %v6175
        %v6248 = vsel %vm6228, %v6223, %v6177
        %v6251 = vsel %vm6228, %v6225, %v6179
        %v6254 = vsel %vm6228, %v6227, %v6181
        %v6256 = vld [vmem:[%s4] sm:$0xf]
        %v6257 = vld [vmem:[%s4 + $0x4] sm:$0xf]
        %v6258 = vld [vmem:[%s4 + $0x8] sm:$0xf]
        %v6259 = vld [vmem:[%s4 + $0xc] sm:$0xf]
        %v6260 = vld [vmem:[%s4 + $0x10] sm:$0xf]
        %v6261 = vld [vmem:[%s4 + $0x14] sm:$0xf]
        %v6262 = vld [vmem:[%s4 + $0x18] sm:$0xf]
        %v6263 = vld [vmem:[%s4 + $0x1c] sm:$0xf]
        %v6264 = vld [vmem:[%s4 + $0x20] sm:$0xf]
        %v6265 = vld [vmem:[%s4 + $0x24] sm:$0xf]
        %v6266 = vld [vmem:[%s4 + $0x28] sm:$0xf]
        %v6267 = vld [vmem:[%s4 + $0x2c] sm:$0xf]
        %v6268 = vld [vmem:[%s4 + $0x30] sm:$0xf]
        %v6269 = vld [vmem:[%s4 + $0x34] sm:$0xf]
        %v6270 = vld [vmem:[%s4 + $0x38] sm:$0xf]
        %v6271 = vld [vmem:[%s4 + $0x3c] sm:$0xf]
        %6281 = vrot.lane.b32.xlu0 %v6052, 32
        %v6282 = vpop.permute.xlu0 %6281
        %6283 = vrot.lane.b32.xlu0 %v6054, 32
        %v6284 = vpop.permute.xlu0 %6283
        %6285 = vrot.lane.b32.xlu0 %v6056, 32
        %v6286 = vpop.permute.xlu0 %6285
        %6287 = vrot.lane.b32.xlu0 %v6068, 32
        %v6288 = vpop.permute.xlu0 %6287
        %6289 = vrot.lane.b32.xlu0 %v6070, 32
        %v6290 = vpop.permute.xlu0 %6289
        %6291 = vrot.lane.b32.xlu0 %v6072, 32
        %v6292 = vpop.permute.xlu0 %6291
        %6293 = vrot.lane.b32.xlu0 %v6084, 32
        %v6294 = vpop.permute.xlu0 %6293
        %6295 = vrot.lane.b32.xlu0 %v6086, 32
        %v6296 = vpop.permute.xlu0 %6295
        %6297 = vrot.lane.b32.xlu0 %v6088, 32
        %v6298 = vpop.permute.xlu0 %6297
        %6304 = vrot.lane.b32.xlu0 %v6066, 64
        %v6305 = vpop.permute.xlu0 %6304
        %6306 = vrot.lane.b32.xlu0 %v6068, 64
        %v6307 = vpop.permute.xlu0 %6306
        %6308 = vrot.lane.b32.xlu0 %v6070, 64
        %v6309 = vpop.permute.xlu0 %6308
        %6310 = vrot.lane.b32.xlu0 %v6082, 64
        %v6311 = vpop.permute.xlu0 %6310
        %6312 = vrot.lane.b32.xlu0 %v6084, 64
        %v6313 = vpop.permute.xlu0 %6312
        %6314 = vrot.lane.b32.xlu0 %v6086, 64
        %v6315 = vpop.permute.xlu0 %6314
        %6316 = vrot.lane.b32.xlu0 %v6098, 64
        %v6317 = vpop.permute.xlu0 %6316
        %6318 = vrot.lane.b32.xlu0 %v6100, 64
        %v6319 = vpop.permute.xlu0 %6318
        %6320 = vrot.lane.b32.xlu0 %v6102, 64
        %v6321 = vpop.permute.xlu0 %6320
        %6323 = vrot.lane.b32.xlu0 %v6068, 96
        %v6324 = vpop.permute.xlu0 %6323
        %6325 = vrot.lane.b32.xlu0 %v6070, 96
        %v6326 = vpop.permute.xlu0 %6325
        %6327 = vrot.lane.b32.xlu0 %v6072, 96
        %v6328 = vpop.permute.xlu0 %6327
        %6329 = vrot.lane.b32.xlu0 %v6084, 96
        %v6330 = vpop.permute.xlu0 %6329
        %6331 = vrot.lane.b32.xlu0 %v6086, 96
        %v6332 = vpop.permute.xlu0 %6331
        %6333 = vrot.lane.b32.xlu0 %v6088, 96
        %v6334 = vpop.permute.xlu0 %6333
        %6335 = vrot.lane.b32.xlu0 %v6100, 96
        %v6336 = vpop.permute.xlu0 %6335
        %6337 = vrot.lane.b32.xlu0 %v6102, 96
        %v6338 = vpop.permute.xlu0 %6337
        %6339 = vrot.lane.b32.xlu0 %v6104, 96
        %v6340 = vpop.permute.xlu0 %6339
        %v6343 = vsel %vm6182, %v6050, %v6282
        %v6346 = vsel %vm6182, %v6052, %v6284
        %v6349 = vsel %vm6182, %v6054, %v6286
        %v6352 = vsel %vm6182, %v6066, %v6288
        %v6355 = vsel %vm6182, %v6068, %v6290
        %v6358 = vsel %vm6182, %v6070, %v6292
        %v6361 = vsel %vm6182, %v6082, %v6294
        %v6364 = vsel %vm6182, %v6084, %v6296
        %v6367 = vsel %vm6182, %v6086, %v6298
        %v6369 = vsel %vm1273, %v6343, %v6305
        %v6371 = vsel %vm1273, %v6346, %v6307
        %v6373 = vsel %vm1273, %v6349, %v6309
        %v6375 = vsel %vm1273, %v6352, %v6311
        %v6377 = vsel %vm1273, %v6355, %v6313
        %v6379 = vsel %vm1273, %v6358, %v6315
        %v6381 = vsel %vm1273, %v6361, %v6317
        %v6383 = vsel %vm1273, %v6364, %v6319
        %v6385 = vsel %vm1273, %v6367, %v6321
        %v6387 = vsel %vm6228, %v6369, %v6324
        %v6390 = vsel %vm6228, %v6371, %v6326
        %v6393 = vsel %vm6228, %v6373, %v6328
        %v6396 = vsel %vm6228, %v6375, %v6330
        %v6399 = vsel %vm6228, %v6377, %v6332
        %v6402 = vsel %vm6228, %v6379, %v6334
        %v6405 = vsel %vm6228, %v6381, %v6336
        %v6408 = vsel %vm6228, %v6383, %v6338
        %v6411 = vsel %vm6228, %v6385, %v6340
        %s6413 = scalar_lea.vmem %s4, 64
        %v6414 = vld [vmem:[%s6413] sm:$0xf]
        %v6415 = vld [vmem:[%s6413 + $0x4] sm:$0xf]
        %v6416 = vld [vmem:[%s6413 + $0x8] sm:$0xf]
        %v6417 = vld [vmem:[%s6413 + $0xc] sm:$0xf]
        %v6418 = vld [vmem:[%s6413 + $0x10] sm:$0xf]
        %v6419 = vld [vmem:[%s6413 + $0x14] sm:$0xf]
        %v6420 = vld [vmem:[%s6413 + $0x18] sm:$0xf]
        %v6421 = vld [vmem:[%s6413 + $0x1c] sm:$0xf]
        %v6422 = vld [vmem:[%s6413 + $0x20] sm:$0xf]
        %v6423 = vld [vmem:[%s6413 + $0x24] sm:$0xf]
        %v6424 = vld [vmem:[%s6413 + $0x28] sm:$0xf]
        %v6425 = vld [vmem:[%s6413 + $0x2c] sm:$0xf]
        %v6426 = vld [vmem:[%s6413 + $0x30] sm:$0xf]
        %v6427 = vld [vmem:[%s6413 + $0x34] sm:$0xf]
        %v6428 = vld [vmem:[%s6413 + $0x38] sm:$0xf]
        %v6429 = vld [vmem:[%s6413 + $0x3c] sm:$0xf]
        %v6446 = vunpack.c.l.b16 %v6414
        %v6447 = vunpack.c.l.b16 %v6415
        %v6448 = vunpack.c.l.b16 %v6416
        %v6449 = vunpack.c.l.b16 %v6417
        %v6450 = vunpack.c.l.b16 %v6418
        %v6451 = vunpack.c.l.b16 %v6419
        %v6452 = vunpack.c.l.b16 %v6420
        %v6453 = vunpack.c.l.b16 %v6421
        %v6454 = vunpack.c.l.b16 %v6422
        %v6455 = vunpack.c.l.b16 %v6423
        %v6456 = vunpack.c.l.b16 %v6424
        %v6457 = vunpack.c.l.b16 %v6425
        %v6458 = vunpack.c.l.b16 %v6426
        %v6459 = vunpack.c.l.b16 %v6427
        %v6460 = vunpack.c.l.b16 %v6428
        %v6461 = vunpack.c.l.b16 %v6429
        %v6462 = vpack.c.b16 %v6447, %v6446
        %v6463 = vpack.c.b16 %v6449, %v6448
        %v6464 = vpack.c.b16 %v6451, %v6450
        %v6465 = vpack.c.b16 %v6453, %v6452
        %v6466 = vpack.c.b16 %v6455, %v6454
        %v6467 = vpack.c.b16 %v6457, %v6456
        %v6468 = vpack.c.b16 %v6459, %v6458
        %v6469 = vpack.c.b16 %v6461, %v6460
        %6478 = vmatprep.subr.bf16.mxu0 0
        %6479 = vmatpush1.bf16.msra.mxu0 %v6462
        %6480 = vmatprep.subr.bf16.mxu0 0
        %6481 = vmatpush1.bf16.msra.mxu0 %v6463
        %6482 = vmatprep.subr.bf16.mxu0 0
        %6483 = vmatpush1.bf16.msra.mxu0 %v6464
        %6484 = vmatprep.subr.bf16.mxu0 0
        %6485 = vmatpush1.bf16.msra.mxu0 %v6465
        %6486 = vmatprep.subr.bf16.mxu0 0
        %6487 = vmatpush1.bf16.msra.mxu0 %v6466
        %6488 = vmatprep.subr.bf16.mxu0 0
        %6489 = vmatpush1.bf16.msra.mxu0 %v6467
        %6490 = vmatprep.subr.bf16.mxu0 0
        %6491 = vmatpush1.bf16.msra.mxu0 %v6468
        %6492 = vmatprep.subr.bf16.mxu0 0
        %6493 = vmatpush1.bf16.msra.mxu0 %v6469
        %6494 = vmatprep.subr.bf16.mxu0 0
        %6495 = vmatpush1.bf16.msra.mxu0 0
        %6496 = vmatprep.subr.bf16.mxu0 0
        %6497 = vmatpush1.bf16.msra.mxu0 0
        %6498 = vmatprep.subr.bf16.mxu0 0
        %6499 = vmatpush1.bf16.msra.mxu0 0
        %6500 = vmatprep.subr.bf16.mxu0 0
        %6501 = vmatpush1.bf16.msra.mxu0 0
        %6502 = vmatprep.subr.bf16.mxu0 0
        %6503 = vmatpush1.bf16.msra.mxu0 0
        %6504 = vmatprep.subr.bf16.mxu0 0
        %6505 = vmatpush1.bf16.msra.mxu0 0
        %6506 = vmatprep.subr.bf16.mxu0 0
        %6507 = vmatpush1.bf16.msra.mxu0 0
        %6508 = vmatprep.subr.bf16.mxu0 0
        %6509 = vmatpush1.bf16.msra.mxu0 0
        %6510 = vmatprep.mubr.bf16.mxu0 0
        %6511 = vmatmul.mubr.bf16.gmra.mrb[0].mxu0 %v6387
        %v6512 = vpop.f32.mrb[0].mxu0
        %v6513 = vadd.f32 0.0, %v6512
        %v6514 = vpop.f32.mrb[0].mxu0
        %v6515 = vpop.f32.mrb[0].mxu0
        %v6516 = vadd.f32 0.0, %v6515
        %v6517 = vpop.f32.mrb[0].mxu0
        %6518 = vmatprep.mubr.bf16.mxu0 0
        %6519 = vmatmul.mubr.bf16.gmra.mrb[0].mxu0 %v6390
        %v6520 = vpop.f32.mrb[0].mxu0
        %v6521 = vadd.f32 0.0, %v6520
        %v6522 = vpop.f32.mrb[0].mxu0
        %v6523 = vpop.f32.mrb[0].mxu0
        %v6524 = vadd.f32 0.0, %v6523
        %v6525 = vpop.f32.mrb[0].mxu0
        %6526 = vmatprep.mubr.bf16.mxu0 0
        %6527 = vmatmul.mubr.bf16.gmra.mrb[0].mxu0 %v6393
        %v6528 = vpop.f32.mrb[0].mxu0
        %v6529 = vadd.f32 0.0, %v6528
        %v6530 = vpop.f32.mrb[0].mxu0
        %v6531 = vpop.f32.mrb[0].mxu0
        %v6532 = vadd.f32 0.0, %v6531
        %v6533 = vpop.f32.mrb[0].mxu0
        %6534 = vmatprep.mubr.bf16.mxu0 0
        %6535 = vmatmul.mubr.bf16.gmra.mrb[0].mxu0 %v6396
        %v6536 = vpop.f32.mrb[0].mxu0
        %v6537 = vadd.f32 0.0, %v6536
        %v6538 = vpop.f32.mrb[0].mxu0
        %v6539 = vpop.f32.mrb[0].mxu0
        %v6540 = vadd.f32 0.0, %v6539
        %v6541 = vpop.f32.mrb[0].mxu0
        %6542 = vmatprep.mubr.bf16.mxu0 0
        %6543 = vmatmul.mubr.bf16.gmra.mrb[0].mxu0 %v6399
        %v6544 = vpop.f32.mrb[0].mxu0
        %v6545 = vadd.f32 0.0, %v6544
        %v6546 = vpop.f32.mrb[0].mxu0
        %v6547 = vpop.f32.mrb[0].mxu0
        %v6548 = vadd.f32 0.0, %v6547
        %v6549 = vpop.f32.mrb[0].mxu0
        %6550 = vmatprep.mubr.bf16.mxu0 0
        %6551 = vmatmul.mubr.bf16.gmra.mrb[0].mxu0 %v6402
        %v6552 = vpop.f32.mrb[0].mxu0
        %v6553 = vadd.f32 0.0, %v6552
        %v6554 = vpop.f32.mrb[0].mxu0
        %v6555 = vpop.f32.mrb[0].mxu0
        %v6556 = vadd.f32 0.0, %v6555
        %v6557 = vpop.f32.mrb[0].mxu0
        %6558 = vmatprep.mubr.bf16.mxu0 0
        %6559 = vmatmul.mubr.bf16.gmra.mrb[0].mxu0 %v6405
        %v6560 = vpop.f32.mrb[0].mxu0
        %v6561 = vadd.f32 0.0, %v6560
        %v6562 = vpop.f32.mrb[0].mxu0
        %v6563 = vpop.f32.mrb[0].mxu0
        %v6564 = vadd.f32 0.0, %v6563
        %v6565 = vpop.f32.mrb[0].mxu0
        %6566 = vmatprep.mubr.bf16.mxu0 0
        %6567 = vmatmul.mubr.bf16.gmra.mrb[0].mxu0 %v6408
        %v6568 = vpop.f32.mrb[0].mxu0
        %v6569 = vadd.f32 0.0, %v6568
        %v6570 = vpop.f32.mrb[0].mxu0
        %v6571 = vpop.f32.mrb[0].mxu0
        %v6572 = vadd.f32 0.0, %v6571
        %v6573 = vpop.f32.mrb[0].mxu0
        %6574 = vmatprep.mubr.bf16.mxu0 0
        %6575 = vmatmul.mubr.bf16.gmra.mrb[0].mxu0 %v6411
        %v6576 = vpop.f32.mrb[0].mxu0
        %v6577 = vadd.f32 0.0, %v6576
        %v6578 = vpop.f32.mrb[0].mxu0
        %v6579 = vpop.f32.mrb[0].mxu0
        %v6580 = vadd.f32 0.0, %v6579
        %v6581 = vpop.f32.mrb[0].mxu0
        %6582 = vdwg.mxu0
        %v6599 = vunpack.c.l.b16 %v6256
        %v6600 = vunpack.c.l.b16 %v6257
        %v6601 = vunpack.c.l.b16 %v6258
        %v6602 = vunpack.c.l.b16 %v6259
        %v6603 = vunpack.c.l.b16 %v6260
        %v6604 = vunpack.c.l.b16 %v6261
        %v6605 = vunpack.c.l.b16 %v6262
        %v6606 = vunpack.c.l.b16 %v6263
        %v6607 = vunpack.c.l.b16 %v6264
        %v6608 = vunpack.c.l.b16 %v6265
        %v6609 = vunpack.c.l.b16 %v6266
        %v6610 = vunpack.c.l.b16 %v6267
        %v6611 = vunpack.c.l.b16 %v6268
        %v6612 = vunpack.c.l.b16 %v6269
        %v6613 = vunpack.c.l.b16 %v6270
        %v6614 = vunpack.c.l.b16 %v6271
        %v6615 = vpack.c.b16 %v6600, %v6599
        %v6616 = vpack.c.b16 %v6602, %v6601
        %v6617 = vpack.c.b16 %v6604, %v6603
        %v6618 = vpack.c.b16 %v6606, %v6605
        %v6619 = vpack.c.b16 %v6608, %v6607
        %v6620 = vpack.c.b16 %v6610, %v6609
        %v6621 = vpack.c.b16 %v6612, %v6611
        %v6622 = vpack.c.b16 %v6614, %v6613
        %6631 = vmatprep.subr.bf16.mxu0 0
        %6632 = vmatpush1.bf16.msra.mxu0 %v6615
        %6633 = vmatprep.subr.bf16.mxu0 0
        %6634 = vmatpush1.bf16.msra.mxu0 %v6616
        %6635 = vmatprep.subr.bf16.mxu0 0
        %6636 = vmatpush1.bf16.msra.mxu0 %v6617
        %6637 = vmatprep.subr.bf16.mxu0 0
        %6638 = vmatpush1.bf16.msra.mxu0 %v6618
        %6639 = vmatprep.subr.bf16.mxu0 0
        %6640 = vmatpush1.bf16.msra.mxu0 %v6619
        %6641 = vmatprep.subr.bf16.mxu0 0
        %6642 = vmatpush1.bf16.msra.mxu0 %v6620
        %6643 = vmatprep.subr.bf16.mxu0 0
        %6644 = vmatpush1.bf16.msra.mxu0 %v6621
        %6645 = vmatprep.subr.bf16.mxu0 0
        %6646 = vmatpush1.bf16.msra.mxu0 %v6622
        %6647 = vmatprep.subr.bf16.mxu0 0
        %6648 = vmatpush1.bf16.msra.mxu0 0
        %6649 = vmatprep.subr.bf16.mxu0 0
        %6650 = vmatpush1.bf16.msra.mxu0 0
        %6651 = vmatprep.subr.bf16.mxu0 0
        %6652 = vmatpush1.bf16.msra.mxu0 0
        %6653 = vmatprep.subr.bf16.mxu0 0
        %6654 = vmatpush1.bf16.msra.mxu0 0
        %6655 = vmatprep.subr.bf16.mxu0 0
        %6656 = vmatpush1.bf16.msra.mxu0 0
        %6657 = vmatprep.subr.bf16.mxu0 0
        %6658 = vmatpush1.bf16.msra.mxu0 0
        %6659 = vmatprep.subr.bf16.mxu0 0
        %6660 = vmatpush1.bf16.msra.mxu0 0
        %6661 = vmatprep.subr.bf16.mxu0 0
        %6662 = vmatpush1.bf16.msra.mxu0 0
        %6663 = vmatprep.mubr.bf16.mxu0 0
        %6664 = vmatmul.mubr.bf16.gmra.mrb[0].mxu0 %v6230
        %v6665 = vpop.f32.mrb[0].mxu0
        %v6666 = vadd.f32 %v6513, %v6665
        %v6667 = vpop.f32.mrb[0].mxu0
        %v6668 = vpop.f32.mrb[0].mxu0
        %v6669 = vadd.f32 %v6516, %v6668
        %v6670 = vpop.f32.mrb[0].mxu0
        %6671 = vmatprep.mubr.bf16.mxu0 0
        %6672 = vmatmul.mubr.bf16.gmra.mrb[0].mxu0 %v6233
        %v6673 = vpop.f32.mrb[0].mxu0
        %v6674 = vadd.f32 %v6521, %v6673
        %v6675 = vpop.f32.mrb[0].mxu0
        %v6676 = vpop.f32.mrb[0].mxu0
        %v6677 = vadd.f32 %v6524, %v6676
        %v6678 = vpop.f32.mrb[0].mxu0
        %6679 = vmatprep.mubr.bf16.mxu0 0
        %6680 = vmatmul.mubr.bf16.gmra.mrb[0].mxu0 %v6236
        %v6681 = vpop.f32.mrb[0].mxu0
        %v6682 = vadd.f32 %v6529, %v6681
        %v6683 = vpop.f32.mrb[0].mxu0
        %v6684 = vpop.f32.mrb[0].mxu0
        %v6685 = vadd.f32 %v6532, %v6684
        %v6686 = vpop.f32.mrb[0].mxu0
        %6687 = vmatprep.mubr.bf16.mxu0 0
        %6688 = vmatmul.mubr.bf16.gmra.mrb[0].mxu0 %v6239
        %v6689 = vpop.f32.mrb[0].mxu0
        %v6690 = vadd.f32 %v6537, %v6689
        %v6691 = vpop.f32.mrb[0].mxu0
        %v6692 = vpop.f32.mrb[0].mxu0
        %v6693 = vadd.f32 %v6540, %v6692
        %v6694 = vpop.f32.mrb[0].mxu0
        %6695 = vmatprep.mubr.bf16.mxu0 0
        %6696 = vmatmul.mubr.bf16.gmra.mrb[0].mxu0 %v6242
        %v6697 = vpop.f32.mrb[0].mxu0
        %v6698 = vadd.f32 %v6545, %v6697
        %v6699 = vpop.f32.mrb[0].mxu0
        %v6700 = vpop.f32.mrb[0].mxu0
        %v6701 = vadd.f32 %v6548, %v6700
        %v6702 = vpop.f32.mrb[0].mxu0
        %6703 = vmatprep.mubr.bf16.mxu0 0
        %6704 = vmatmul.mubr.bf16.gmra.mrb[0].mxu0 %v6245
        %v6705 = vpop.f32.mrb[0].mxu0
        %v6706 = vadd.f32 %v6553, %v6705
        %v6707 = vpop.f32.mrb[0].mxu0
        %v6708 = vpop.f32.mrb[0].mxu0
        %v6709 = vadd.f32 %v6556, %v6708
        %v6710 = vpop.f32.mrb[0].mxu0
        %6711 = vmatprep.mubr.bf16.mxu0 0
        %6712 = vmatmul.mubr.bf16.gmra.mrb[0].mxu0 %v6248
        %v6713 = vpop.f32.mrb[0].mxu0
        %v6714 = vadd.f32 %v6561, %v6713
        %v6715 = vpop.f32.mrb[0].mxu0
        %v6716 = vpop.f32.mrb[0].mxu0
        %v6717 = vadd.f32 %v6564, %v6716
        %v6718 = vpop.f32.mrb[0].mxu0
        %6719 = vmatprep.mubr.bf16.mxu0 0
        %6720 = vmatmul.mubr.bf16.gmra.mrb[0].mxu0 %v6251
        %v6721 = vpop.f32.mrb[0].mxu0
        %v6722 = vadd.f32 %v6569, %v6721
        %v6723 = vpop.f32.mrb[0].mxu0
        %v6724 = vpop.f32.mrb[0].mxu0
        %v6725 = vadd.f32 %v6572, %v6724
        %v6726 = vpop.f32.mrb[0].mxu0
        %6727 = vmatprep.mubr.bf16.mxu0 0
        %6728 = vmatmul.mubr.bf16.gmra.mrb[0].mxu0 %v6254
        %v6729 = vpop.f32.mrb[0].mxu0
        %v6730 = vadd.f32 %v6577, %v6729
        %v6731 = vpop.f32.mrb[0].mxu0
        %v6732 = vpop.f32.mrb[0].mxu0
        %v6733 = vadd.f32 %v6580, %v6732
        %v6734 = vpop.f32.mrb[0].mxu0
        %6735 = vdwg.mxu0
        %6745 = vrot.lane.b32.xlu0 %v6059, 32
        %v6746 = vpop.permute.xlu0 %6745
        %6747 = vrot.lane.b32.xlu0 %v6061, 32
        %v6748 = vpop.permute.xlu0 %6747
        %6749 = vrot.lane.b32.xlu0 %v6063, 32
        %v6750 = vpop.permute.xlu0 %6749
        %6751 = vrot.lane.b32.xlu0 %v6075, 32
        %v6752 = vpop.permute.xlu0 %6751
        %6753 = vrot.lane.b32.xlu0 %v6077, 32
        %v6754 = vpop.permute.xlu0 %6753
        %6755 = vrot.lane.b32.xlu0 %v6079, 32
        %v6756 = vpop.permute.xlu0 %6755
        %6757 = vrot.lane.b32.xlu0 %v6091, 32
        %v6758 = vpop.permute.xlu0 %6757
        %6759 = vrot.lane.b32.xlu0 %v6093, 32
        %v6760 = vpop.permute.xlu0 %6759
        %6761 = vrot.lane.b32.xlu0 %v6095, 32
        %v6762 = vpop.permute.xlu0 %6761
        %6768 = vrot.lane.b32.xlu0 %v6073, 64
        %v6769 = vpop.permute.xlu0 %6768
        %6770 = vrot.lane.b32.xlu0 %v6075, 64
        %v6771 = vpop.permute.xlu0 %6770
        %6772 = vrot.lane.b32.xlu0 %v6077, 64
        %v6773 = vpop.permute.xlu0 %6772
        %6774 = vrot.lane.b32.xlu0 %v6089, 64
        %v6775 = vpop.permute.xlu0 %6774
        %6776 = vrot.lane.b32.xlu0 %v6091, 64
        %v6777 = vpop.permute.xlu0 %6776
        %6778 = vrot.lane.b32.xlu0 %v6093, 64
        %v6779 = vpop.permute.xlu0 %6778
        %6780 = vrot.lane.b32.xlu0 %v6105, 64
        %v6781 = vpop.permute.xlu0 %6780
        %6782 = vrot.lane.b32.xlu0 %v6107, 64
        %v6783 = vpop.permute.xlu0 %6782
        %6784 = vrot.lane.b32.xlu0 %v6109, 64
        %v6785 = vpop.permute.xlu0 %6784
        %6787 = vrot.lane.b32.xlu0 %v6075, 96
        %v6788 = vpop.permute.xlu0 %6787
        %6789 = vrot.lane.b32.xlu0 %v6077, 96
        %v6790 = vpop.permute.xlu0 %6789
        %6791 = vrot.lane.b32.xlu0 %v6079, 96
        %v6792 = vpop.permute.xlu0 %6791
        %6793 = vrot.lane.b32.xlu0 %v6091, 96
        %v6794 = vpop.permute.xlu0 %6793
        %6795 = vrot.lane.b32.xlu0 %v6093, 96
        %v6796 = vpop.permute.xlu0 %6795
        %6797 = vrot.lane.b32.xlu0 %v6095, 96
        %v6798 = vpop.permute.xlu0 %6797
        %6799 = vrot.lane.b32.xlu0 %v6107, 96
        %v6800 = vpop.permute.xlu0 %6799
        %6801 = vrot.lane.b32.xlu0 %v6109, 96
        %v6802 = vpop.permute.xlu0 %6801
        %6803 = vrot.lane.b32.xlu0 %v6111, 96
        %v6804 = vpop.permute.xlu0 %6803
        %v6807 = vsel %vm6182, %v6057, %v6746
        %v6810 = vsel %vm6182, %v6059, %v6748
        %v6813 = vsel %vm6182, %v6061, %v6750
        %v6816 = vsel %vm6182, %v6073, %v6752
        %v6819 = vsel %vm6182, %v6075, %v6754
        %v6822 = vsel %vm6182, %v6077, %v6756
        %v6825 = vsel %vm6182, %v6089, %v6758
        %v6828 = vsel %vm6182, %v6091, %v6760
        %v6831 = vsel %vm6182, %v6093, %v6762
        %v6833 = vsel %vm1273, %v6807, %v6769
        %v6835 = vsel %vm1273, %v6810, %v6771
        %v6837 = vsel %vm1273, %v6813, %v6773
        %v6839 = vsel %vm1273, %v6816, %v6775
        %v6841 = vsel %vm1273, %v6819, %v6777
        %v6843 = vsel %vm1273, %v6822, %v6779
        %v6845 = vsel %vm1273, %v6825, %v6781
        %v6847 = vsel %vm1273, %v6828, %v6783
        %v6849 = vsel %vm1273, %v6831, %v6785
        %v6851 = vsel %vm6228, %v6833, %v6788
        %v6854 = vsel %vm6228, %v6835, %v6790
        %v6857 = vsel %vm6228, %v6837, %v6792
        %v6860 = vsel %vm6228, %v6839, %v6794
        %v6863 = vsel %vm6228, %v6841, %v6796
        %v6866 = vsel %vm6228, %v6843, %v6798
        %v6869 = vsel %vm6228, %v6845, %v6800
        %v6872 = vsel %vm6228, %v6847, %v6802
        %v6875 = vsel %vm6228, %v6849, %v6804
        %s6877 = scalar_lea.vmem %s4, 128
        %v6878 = vld [vmem:[%s6877] sm:$0xf]
        %v6879 = vld [vmem:[%s6877 + $0x4] sm:$0xf]
        %v6880 = vld [vmem:[%s6877 + $0x8] sm:$0xf]
        %v6881 = vld [vmem:[%s6877 + $0xc] sm:$0xf]
        %v6882 = vld [vmem:[%s6877 + $0x10] sm:$0xf]
        %v6883 = vld [vmem:[%s6877 + $0x14] sm:$0xf]
        %v6884 = vld [vmem:[%s6877 + $0x18] sm:$0xf]
        %v6885 = vld [vmem:[%s6877 + $0x1c] sm:$0xf]
        %v6886 = vld [vmem:[%s6877 + $0x20] sm:$0xf]
        %v6887 = vld [vmem:[%s6877 + $0x24] sm:$0xf]
        %v6888 = vld [vmem:[%s6877 + $0x28] sm:$0xf]
        %v6889 = vld [vmem:[%s6877 + $0x2c] sm:$0xf]
        %v6890 = vld [vmem:[%s6877 + $0x30] sm:$0xf]
        %v6891 = vld [vmem:[%s6877 + $0x34] sm:$0xf]
        %v6892 = vld [vmem:[%s6877 + $0x38] sm:$0xf]
        %v6893 = vld [vmem:[%s6877 + $0x3c] sm:$0xf]
        %v6910 = vunpack.c.l.b16 %v6878
        %v6911 = vunpack.c.l.b16 %v6879
        %v6912 = vunpack.c.l.b16 %v6880
        %v6913 = vunpack.c.l.b16 %v6881
        %v6914 = vunpack.c.l.b16 %v6882
        %v6915 = vunpack.c.l.b16 %v6883
        %v6916 = vunpack.c.l.b16 %v6884
        %v6917 = vunpack.c.l.b16 %v6885
        %v6918 = vunpack.c.l.b16 %v6886
        %v6919 = vunpack.c.l.b16 %v6887
        %v6920 = vunpack.c.l.b16 %v6888
        %v6921 = vunpack.c.l.b16 %v6889
        %v6922 = vunpack.c.l.b16 %v6890
        %v6923 = vunpack.c.l.b16 %v6891
        %v6924 = vunpack.c.l.b16 %v6892
        %v6925 = vunpack.c.l.b16 %v6893
        %v6926 = vpack.c.b16 %v6911, %v6910
        %v6927 = vpack.c.b16 %v6913, %v6912
        %v6928 = vpack.c.b16 %v6915, %v6914
        %v6929 = vpack.c.b16 %v6917, %v6916
        %v6930 = vpack.c.b16 %v6919, %v6918
        %v6931 = vpack.c.b16 %v6921, %v6920
        %v6932 = vpack.c.b16 %v6923, %v6922
        %v6933 = vpack.c.b16 %v6925, %v6924
        %6942 = vmatprep.subr.bf16.mxu0 0
        %6943 = vmatpush1.bf16.msra.mxu0 %v6926
        %6944 = vmatprep.subr.bf16.mxu0 0
        %6945 = vmatpush1.bf16.msra.mxu0 %v6927
        %6946 = vmatprep.subr.bf16.mxu0 0
        %6947 = vmatpush1.bf16.msra.mxu0 %v6928
        %6948 = vmatprep.subr.bf16.mxu0 0
        %6949 = vmatpush1.bf16.msra.mxu0 %v6929
        %6950 = vmatprep.subr.bf16.mxu0 0
        %6951 = vmatpush1.bf16.msra.mxu0 %v6930
        %6952 = vmatprep.subr.bf16.mxu0 0
        %6953 = vmatpush1.bf16.msra.mxu0 %v6931
        %6954 = vmatprep.subr.bf16.mxu0 0
        %6955 = vmatpush1.bf16.msra.mxu0 %v6932
        %6956 = vmatprep.subr.bf16.mxu0 0
        %6957 = vmatpush1.bf16.msra.mxu0 %v6933
        %6958 = vmatprep.subr.bf16.mxu0 0
        %6959 = vmatpush1.bf16.msra.mxu0 0
        %6960 = vmatprep.subr.bf16.mxu0 0
        %6961 = vmatpush1.bf16.msra.mxu0 0
        %6962 = vmatprep.subr.bf16.mxu0 0
        %6963 = vmatpush1.bf16.msra.mxu0 0
        %6964 = vmatprep.subr.bf16.mxu0 0
        %6965 = vmatpush1.bf16.msra.mxu0 0
        %6966 = vmatprep.subr.bf16.mxu0 0
        %6967 = vmatpush1.bf16.msra.mxu0 0
        %6968 = vmatprep.subr.bf16.mxu0 0
        %6969 = vmatpush1.bf16.msra.mxu0 0
        %6970 = vmatprep.subr.bf16.mxu0 0
        %6971 = vmatpush1.bf16.msra.mxu0 0
        %6972 = vmatprep.subr.bf16.mxu0 0
        %6973 = vmatpush1.bf16.msra.mxu0 0
        %6974 = vmatprep.mubr.bf16.mxu0 0
        %6975 = vmatmul.mubr.bf16.gmra.mrb[0].mxu0 %v6851
        %v6976 = vpop.f32.mrb[0].mxu0
        %v6977 = vadd.f32 0.0, %v6976
        %v6978 = vpop.f32.mrb[0].mxu0
        %v6979 = vpop.f32.mrb[0].mxu0
        %v6980 = vadd.f32 0.0, %v6979
        %v6981 = vpop.f32.mrb[0].mxu0
        %6982 = vmatprep.mubr.bf16.mxu0 0
        %6983 = vmatmul.mubr.bf16.gmra.mrb[0].mxu0 %v6854
        %v6984 = vpop.f32.mrb[0].mxu0
        %v6985 = vadd.f32 0.0, %v6984
        %v6986 = vpop.f32.mrb[0].mxu0
        %v6987 = vpop.f32.mrb[0].mxu0
        %v6988 = vadd.f32 0.0, %v6987
        %v6989 = vpop.f32.mrb[0].mxu0
        %6990 = vmatprep.mubr.bf16.mxu0 0
        %6991 = vmatmul.mubr.bf16.gmra.mrb[0].mxu0 %v6857
        %v6992 = vpop.f32.mrb[0].mxu0
        %v6993 = vadd.f32 0.0, %v6992
        %v6994 = vpop.f32.mrb[0].mxu0
        %v6995 = vpop.f32.mrb[0].mxu0
        %v6996 = vadd.f32 0.0, %v6995
        %v6997 = vpop.f32.mrb[0].mxu0
        %6998 = vmatprep.mubr.bf16.mxu0 0
        %6999 = vmatmul.mubr.bf16.gmra.mrb[0].mxu0 %v6860
        %v7000 = vpop.f32.mrb[0].mxu0
        %v7001 = vadd.f32 0.0, %v7000
        %v7002 = vpop.f32.mrb[0].mxu0
        %v7003 = vpop.f32.mrb[0].mxu0
        %v7004 = vadd.f32 0.0, %v7003
        %v7005 = vpop.f32.mrb[0].mxu0
        %7006 = vmatprep.mubr.bf16.mxu0 0
        %7007 = vmatmul.mubr.bf16.gmra.mrb[0].mxu0 %v6863
        %v7008 = vpop.f32.mrb[0].mxu0
        %v7009 = vadd.f32 0.0, %v7008
        %v7010 = vpop.f32.mrb[0].mxu0
        %v7011 = vpop.f32.mrb[0].mxu0
        %v7012 = vadd.f32 0.0, %v7011
        %v7013 = vpop.f32.mrb[0].mxu0
        %7014 = vmatprep.mubr.bf16.mxu0 0
        %7015 = vmatmul.mubr.bf16.gmra.mrb[0].mxu0 %v6866
        %v7016 = vpop.f32.mrb[0].mxu0
        %v7017 = vadd.f32 0.0, %v7016
        %v7018 = vpop.f32.mrb[0].mxu0
        %v7019 = vpop.f32.mrb[0].mxu0
        %v7020 = vadd.f32 0.0, %v7019
        %v7021 = vpop.f32.mrb[0].mxu0
        %7022 = vmatprep.mubr.bf16.mxu0 0
        %7023 = vmatmul.mubr.bf16.gmra.mrb[0].mxu0 %v6869
        %v7024 = vpop.f32.mrb[0].mxu0
        %v7025 = vadd.f32 0.0, %v7024
        %v7026 = vpop.f32.mrb[0].mxu0
        %v7027 = vpop.f32.mrb[0].mxu0
        %v7028 = vadd.f32 0.0, %v7027
        %v7029 = vpop.f32.mrb[0].mxu0
        %7030 = vmatprep.mubr.bf16.mxu0 0
        %7031 = vmatmul.mubr.bf16.gmra.mrb[0].mxu0 %v6872
        %v7032 = vpop.f32.mrb[0].mxu0
        %v7033 = vadd.f32 0.0, %v7032
        %v7034 = vpop.f32.mrb[0].mxu0
        %v7035 = vpop.f32.mrb[0].mxu0
        %v7036 = vadd.f32 0.0, %v7035
        %v7037 = vpop.f32.mrb[0].mxu0
        %7038 = vmatprep.mubr.bf16.mxu0 0
        %7039 = vmatmul.mubr.bf16.gmra.mrb[0].mxu0 %v6875
        %v7040 = vpop.f32.mrb[0].mxu0
        %v7041 = vadd.f32 0.0, %v7040
        %v7042 = vpop.f32.mrb[0].mxu0
        %v7043 = vpop.f32.mrb[0].mxu0
        %v7044 = vadd.f32 0.0, %v7043
        %v7045 = vpop.f32.mrb[0].mxu0
        %7046 = vdwg.mxu0
        %v7047 = vadd.f32 %v6666, %v6977
        %v7048 = vadd.f32 %v6669, %v6980
        %v7049 = vadd.f32 %v6674, %v6985
        %v7050 = vadd.f32 %v6677, %v6988
        %v7051 = vadd.f32 %v6682, %v6993
        %v7052 = vadd.f32 %v6685, %v6996
        %v7053 = vadd.f32 %v6690, %v7001
        %v7054 = vadd.f32 %v6693, %v7004
        %v7055 = vadd.f32 %v6698, %v7009
        %v7056 = vadd.f32 %v6701, %v7012
        %v7057 = vadd.f32 %v6706, %v7017
        %v7058 = vadd.f32 %v6709, %v7020
        %v7059 = vadd.f32 %v6714, %v7025
        %v7060 = vadd.f32 %v6717, %v7028
        %v7061 = vadd.f32 %v6722, %v7033
        %v7062 = vadd.f32 %v6725, %v7036
        %v7063 = vadd.f32 %v6730, %v7041
        %v7064 = vadd.f32 %v6733, %v7044
        %7074 = vrot.lane.b32.xlu0 %v6060, 32
        %v7075 = vpop.permute.xlu0 %7074
        %7076 = vrot.lane.b32.xlu0 %v6062, 32
        %v7077 = vpop.permute.xlu0 %7076
        %7078 = vrot.lane.b32.xlu0 %v6064, 32
        %v7079 = vpop.permute.xlu0 %7078
        %7080 = vrot.lane.b32.xlu0 %v6076, 32
        %v7081 = vpop.permute.xlu0 %7080
        %7082 = vrot.lane.b32.xlu0 %v6078, 32
        %v7083 = vpop.permute.xlu0 %7082
        %7084 = vrot.lane.b32.xlu0 %v6080, 32
        %v7085 = vpop.permute.xlu0 %7084
        %7086 = vrot.lane.b32.xlu0 %v6092, 32
        %v7087 = vpop.permute.xlu0 %7086
        %7088 = vrot.lane.b32.xlu0 %v6094, 32
        %v7089 = vpop.permute.xlu0 %7088
        %7090 = vrot.lane.b32.xlu0 %v6096, 32
        %v7091 = vpop.permute.xlu0 %7090
        %7097 = vrot.lane.b32.xlu0 %v6074, 64
        %v7098 = vpop.permute.xlu0 %7097
        %7099 = vrot.lane.b32.xlu0 %v6076, 64
        %v7100 = vpop.permute.xlu0 %7099
        %7101 = vrot.lane.b32.xlu0 %v6078, 64
        %v7102 = vpop.permute.xlu0 %7101
        %7103 = vrot.lane.b32.xlu0 %v6090, 64
        %v7104 = vpop.permute.xlu0 %7103
        %7105 = vrot.lane.b32.xlu0 %v6092, 64
        %v7106 = vpop.permute.xlu0 %7105
        %7107 = vrot.lane.b32.xlu0 %v6094, 64
        %v7108 = vpop.permute.xlu0 %7107
        %7109 = vrot.lane.b32.xlu0 %v6106, 64
        %v7110 = vpop.permute.xlu0 %7109
        %7111 = vrot.lane.b32.xlu0 %v6108, 64
        %v7112 = vpop.permute.xlu0 %7111
        %7113 = vrot.lane.b32.xlu0 %v6110, 64
        %v7114 = vpop.permute.xlu0 %7113
        %7116 = vrot.lane.b32.xlu0 %v6076, 96
        %v7117 = vpop.permute.xlu0 %7116
        %7118 = vrot.lane.b32.xlu0 %v6078, 96
        %v7119 = vpop.permute.xlu0 %7118
        %7120 = vrot.lane.b32.xlu0 %v6080, 96
        %v7121 = vpop.permute.xlu0 %7120
        %7122 = vrot.lane.b32.xlu0 %v6092, 96
        %v7123 = vpop.permute.xlu0 %7122
        %7124 = vrot.lane.b32.xlu0 %v6094, 96
        %v7125 = vpop.permute.xlu0 %7124
        %7126 = vrot.lane.b32.xlu0 %v6096, 96
        %v7127 = vpop.permute.xlu0 %7126
        %7128 = vrot.lane.b32.xlu0 %v6108, 96
        %v7129 = vpop.permute.xlu0 %7128
        %7130 = vrot.lane.b32.xlu0 %v6110, 96
        %v7131 = vpop.permute.xlu0 %7130
        %7132 = vrot.lane.b32.xlu0 %v6112, 96
        %v7133 = vpop.permute.xlu0 %7132
        %v7136 = vsel %vm6182, %v6058, %v7075
        %v7139 = vsel %vm6182, %v6060, %v7077
        %v7142 = vsel %vm6182, %v6062, %v7079
        %v7145 = vsel %vm6182, %v6074, %v7081
        %v7148 = vsel %vm6182, %v6076, %v7083
        %v7151 = vsel %vm6182, %v6078, %v7085
        %v7154 = vsel %vm6182, %v6090, %v7087
        %v7157 = vsel %vm6182, %v6092, %v7089
        %v7160 = vsel %vm6182, %v6094, %v7091
        %v7162 = vsel %vm1273, %v7136, %v7098
        %v7164 = vsel %vm1273, %v7139, %v7100
        %v7166 = vsel %vm1273, %v7142, %v7102
        %v7168 = vsel %vm1273, %v7145, %v7104
        %v7170 = vsel %vm1273, %v7148, %v7106
        %v7172 = vsel %vm1273, %v7151, %v7108
        %v7174 = vsel %vm1273, %v7154, %v7110
        %v7176 = vsel %vm1273, %v7157, %v7112
        %v7178 = vsel %vm1273, %v7160, %v7114
        %v7180 = vsel %vm6228, %v7162, %v7117
        %v7183 = vsel %vm6228, %v7164, %v7119
        %v7186 = vsel %vm6228, %v7166, %v7121
        %v7189 = vsel %vm6228, %v7168, %v7123
        %v7192 = vsel %vm6228, %v7170, %v7125
        %v7195 = vsel %vm6228, %v7172, %v7127
        %v7198 = vsel %vm6228, %v7174, %v7129
        %v7201 = vsel %vm6228, %v7176, %v7131
        %v7204 = vsel %vm6228, %v7178, %v7133
        %s7206 = scalar_lea.vmem %s4, 192
        %v7207 = vld [vmem:[%s7206] sm:$0xf]
        %v7208 = vld [vmem:[%s7206 + $0x4] sm:$0xf]
        %v7209 = vld [vmem:[%s7206 + $0x8] sm:$0xf]
        %v7210 = vld [vmem:[%s7206 + $0xc] sm:$0xf]
        %v7211 = vld [vmem:[%s7206 + $0x10] sm:$0xf]
        %v7212 = vld [vmem:[%s7206 + $0x14] sm:$0xf]
        %v7213 = vld [vmem:[%s7206 + $0x18] sm:$0xf]
        %v7214 = vld [vmem:[%s7206 + $0x1c] sm:$0xf]
        %v7215 = vld [vmem:[%s7206 + $0x20] sm:$0xf]
        %v7216 = vld [vmem:[%s7206 + $0x24] sm:$0xf]
        %v7217 = vld [vmem:[%s7206 + $0x28] sm:$0xf]
        %v7218 = vld [vmem:[%s7206 + $0x2c] sm:$0xf]
        %v7219 = vld [vmem:[%s7206 + $0x30] sm:$0xf]
        %v7220 = vld [vmem:[%s7206 + $0x34] sm:$0xf]
        %v7221 = vld [vmem:[%s7206 + $0x38] sm:$0xf]
        %v7222 = vld [vmem:[%s7206 + $0x3c] sm:$0xf]
        %v7239 = vunpack.c.l.b16 %v7207
        %v7240 = vunpack.c.l.b16 %v7208
        %v7241 = vunpack.c.l.b16 %v7209
        %v7242 = vunpack.c.l.b16 %v7210
        %v7243 = vunpack.c.l.b16 %v7211
        %v7244 = vunpack.c.l.b16 %v7212
        %v7245 = vunpack.c.l.b16 %v7213
        %v7246 = vunpack.c.l.b16 %v7214
        %v7247 = vunpack.c.l.b16 %v7215
        %v7248 = vunpack.c.l.b16 %v7216
        %v7249 = vunpack.c.l.b16 %v7217
        %v7250 = vunpack.c.l.b16 %v7218
        %v7251 = vunpack.c.l.b16 %v7219
        %v7252 = vunpack.c.l.b16 %v7220
        %v7253 = vunpack.c.l.b16 %v7221
        %v7254 = vunpack.c.l.b16 %v7222
        %v7255 = vpack.c.b16 %v7240, %v7239
        %v7256 = vpack.c.b16 %v7242, %v7241
        %v7257 = vpack.c.b16 %v7244, %v7243
        %v7258 = vpack.c.b16 %v7246, %v7245
        %v7259 = vpack.c.b16 %v7248, %v7247
        %v7260 = vpack.c.b16 %v7250, %v7249
        %v7261 = vpack.c.b16 %v7252, %v7251
        %v7262 = vpack.c.b16 %v7254, %v7253
        %7271 = vmatprep.subr.bf16.mxu0 0
        %7272 = vmatpush1.bf16.msra.mxu0 %v7255
        %7273 = vmatprep.subr.bf16.mxu0 0
        %7274 = vmatpush1.bf16.msra.mxu0 %v7256
        %7275 = vmatprep.subr.bf16.mxu0 0
        %7276 = vmatpush1.bf16.msra.mxu0 %v7257
        %7277 = vmatprep.subr.bf16.mxu0 0
        %7278 = vmatpush1.bf16.msra.mxu0 %v7258
        %7279 = vmatprep.subr.bf16.mxu0 0
        %7280 = vmatpush1.bf16.msra.mxu0 %v7259
        %7281 = vmatprep.subr.bf16.mxu0 0
        %7282 = vmatpush1.bf16.msra.mxu0 %v7260
        %7283 = vmatprep.subr.bf16.mxu0 0
        %7284 = vmatpush1.bf16.msra.mxu0 %v7261
        %7285 = vmatprep.subr.bf16.mxu0 0
        %7286 = vmatpush1.bf16.msra.mxu0 %v7262
        %7287 = vmatprep.subr.bf16.mxu0 0
        %7288 = vmatpush1.bf16.msra.mxu0 0
        %7289 = vmatprep.subr.bf16.mxu0 0
        %7290 = vmatpush1.bf16.msra.mxu0 0
        %7291 = vmatprep.subr.bf16.mxu0 0
        %7292 = vmatpush1.bf16.msra.mxu0 0
        %7293 = vmatprep.subr.bf16.mxu0 0
        %7294 = vmatpush1.bf16.msra.mxu0 0
        %7295 = vmatprep.subr.bf16.mxu0 0
        %7296 = vmatpush1.bf16.msra.mxu0 0
        %7297 = vmatprep.subr.bf16.mxu0 0
        %7298 = vmatpush1.bf16.msra.mxu0 0
        %7299 = vmatprep.subr.bf16.mxu0 0
        %7300 = vmatpush1.bf16.msra.mxu0 0
        %7301 = vmatprep.subr.bf16.mxu0 0
        %7302 = vmatpush1.bf16.msra.mxu0 0
        %7303 = vmatprep.mubr.bf16.mxu0 0
        %7304 = vmatmul.mubr.bf16.gmra.mrb[0].mxu0 %v7180
        %v7305 = vpop.f32.mrb[0].mxu0
        %v7306 = vadd.f32 0.0, %v7305
        %v7307 = vpop.f32.mrb[0].mxu0
        %v7308 = vpop.f32.mrb[0].mxu0
        %v7309 = vadd.f32 0.0, %v7308
        %v7310 = vpop.f32.mrb[0].mxu0
        %7311 = vmatprep.mubr.bf16.mxu0 0
        %7312 = vmatmul.mubr.bf16.gmra.mrb[0].mxu0 %v7183
        %v7313 = vpop.f32.mrb[0].mxu0
        %v7314 = vadd.f32 0.0, %v7313
        %v7315 = vpop.f32.mrb[0].mxu0
        %v7316 = vpop.f32.mrb[0].mxu0
        %v7317 = vadd.f32 0.0, %v7316
        %v7318 = vpop.f32.mrb[0].mxu0
        %7319 = vmatprep.mubr.bf16.mxu0 0
        %7320 = vmatmul.mubr.bf16.gmra.mrb[0].mxu0 %v7186
        %v7321 = vpop.f32.mrb[0].mxu0
        %v7322 = vadd.f32 0.0, %v7321
        %v7323 = vpop.f32.mrb[0].mxu0
        %v7324 = vpop.f32.mrb[0].mxu0
        %v7325 = vadd.f32 0.0, %v7324
        %v7326 = vpop.f32.mrb[0].mxu0
        %7327 = vmatprep.mubr.bf16.mxu0 0
        %7328 = vmatmul.mubr.bf16.gmra.mrb[0].mxu0 %v7189
        %v7329 = vpop.f32.mrb[0].mxu0
        %v7330 = vadd.f32 0.0, %v7329
        %v7331 = vpop.f32.mrb[0].mxu0
        %v7332 = vpop.f32.mrb[0].mxu0
        %v7333 = vadd.f32 0.0, %v7332
        %v7334 = vpop.f32.mrb[0].mxu0
        %7335 = vmatprep.mubr.bf16.mxu0 0
        %7336 = vmatmul.mubr.bf16.gmra.mrb[0].mxu0 %v7192
        %v7337 = vpop.f32.mrb[0].mxu0
        %v7338 = vadd.f32 0.0, %v7337
        %v7339 = vpop.f32.mrb[0].mxu0
        %v7340 = vpop.f32.mrb[0].mxu0
        %v7341 = vadd.f32 0.0, %v7340
        %v7342 = vpop.f32.mrb[0].mxu0
        %7343 = vmatprep.mubr.bf16.mxu0 0
        %7344 = vmatmul.mubr.bf16.gmra.mrb[0].mxu0 %v7195
        %v7345 = vpop.f32.mrb[0].mxu0
        %v7346 = vadd.f32 0.0, %v7345
        %v7347 = vpop.f32.mrb[0].mxu0
        %v7348 = vpop.f32.mrb[0].mxu0
        %v7349 = vadd.f32 0.0, %v7348
        %v7350 = vpop.f32.mrb[0].mxu0
        %7351 = vmatprep.mubr.bf16.mxu0 0
        %7352 = vmatmul.mubr.bf16.gmra.mrb[0].mxu0 %v7198
        %v7353 = vpop.f32.mrb[0].mxu0
        %v7354 = vadd.f32 0.0, %v7353
        %v7355 = vpop.f32.mrb[0].mxu0
        %v7356 = vpop.f32.mrb[0].mxu0
        %v7357 = vadd.f32 0.0, %v7356
        %v7358 = vpop.f32.mrb[0].mxu0
        %7359 = vmatprep.mubr.bf16.mxu0 0
        %7360 = vmatmul.mubr.bf16.gmra.mrb[0].mxu0 %v7201
        %v7361 = vpop.f32.mrb[0].mxu0
        %v7362 = vadd.f32 0.0, %v7361
        %v7363 = vpop.f32.mrb[0].mxu0
        %v7364 = vpop.f32.mrb[0].mxu0
        %v7365 = vadd.f32 0.0, %v7364
        %v7366 = vpop.f32.mrb[0].mxu0
        %7367 = vmatprep.mubr.bf16.mxu0 0
        %7368 = vmatmul.mubr.bf16.gmra.mrb[0].mxu0 %v7204
        %v7369 = vpop.f32.mrb[0].mxu0
        %v7370 = vadd.f32 0.0, %v7369
        %v7371 = vpop.f32.mrb[0].mxu0
        %v7372 = vpop.f32.mrb[0].mxu0
        %v7373 = vadd.f32 0.0, %v7372
        %v7374 = vpop.f32.mrb[0].mxu0
        %7375 = vdwg.mxu0
        %v7376 = vadd.f32 %v7047, %v7306
        %v7377 = vadd.f32 %v7048, %v7309
        %v7378 = vadd.f32 %v7049, %v7314
        %v7379 = vadd.f32 %v7050, %v7317
        %v7380 = vadd.f32 %v7051, %v7322
        %v7381 = vadd.f32 %v7052, %v7325
        %v7382 = vadd.f32 %v7053, %v7330
        %v7383 = vadd.f32 %v7054, %v7333
        %v7384 = vadd.f32 %v7055, %v7338
        %v7385 = vadd.f32 %v7056, %v7341
        %v7386 = vadd.f32 %v7057, %v7346
        %v7387 = vadd.f32 %v7058, %v7349
        %v7388 = vadd.f32 %v7059, %v7354
        %v7389 = vadd.f32 %v7060, %v7357
        %v7390 = vadd.f32 %v7061, %v7362
        %v7391 = vadd.f32 %v7062, %v7365
        %v7392 = vadd.f32 %v7063, %v7370
        %v7393 = vadd.f32 %v7064, %v7373
        %v7394 = vld [vmem:[#allocation5] sm:$0x1]
        %v7396 = vlaneseq
        %v7397 = vshrl.u32 %v7396, 7
        %v7398 = vsub.s32 0, %v7397
        %v7399 = vrot.slane %v7394, %v7398
        %v7401 = vadd.f32 %v7376, %v7399
        %v7402 = vadd.f32 %v7377, %v7399
        %v7403 = vadd.f32 %v7378, %v7399
        %v7404 = vadd.f32 %v7379, %v7399
        %v7405 = vadd.f32 %v7380, %v7399
        %v7406 = vadd.f32 %v7381, %v7399
        %v7407 = vadd.f32 %v7382, %v7399
        %v7408 = vadd.f32 %v7383, %v7399
        %v7409 = vadd.f32 %v7384, %v7399
        %v7410 = vadd.f32 %v7385, %v7399
        %v7411 = vadd.f32 %v7386, %v7399
        %v7412 = vadd.f32 %v7387, %v7399
        %v7413 = vadd.f32 %v7388, %v7399
        %v7414 = vadd.f32 %v7389, %v7399
        %v7415 = vadd.f32 %v7390, %v7399
        %v7416 = vadd.f32 %v7391, %v7399
        %v7417 = vadd.f32 %v7392, %v7399
        %v7418 = vadd.f32 %v7393, %v7399
        %v7419 = vmax.f32 %v7401, 0.0
        %v7420 = vmax.f32 %v7402, 0.0
        %v7421 = vmax.f32 %v7403, 0.0
        %v7422 = vmax.f32 %v7404, 0.0
        %v7423 = vmax.f32 %v7405, 0.0
        %v7424 = vmax.f32 %v7406, 0.0
        %v7425 = vmax.f32 %v7407, 0.0
        %v7426 = vmax.f32 %v7408, 0.0
        %v7427 = vmax.f32 %v7409, 0.0
        %v7428 = vmax.f32 %v7410, 0.0
        %v7429 = vmax.f32 %v7411, 0.0
        %v7430 = vmax.f32 %v7412, 0.0
        %v7431 = vmax.f32 %v7413, 0.0
        %v7432 = vmax.f32 %v7414, 0.0
        %v7433 = vmax.f32 %v7415, 0.0
        %v7434 = vmax.f32 %v7416, 0.0
        %v7435 = vmax.f32 %v7417, 0.0
        %v7436 = vmax.f32 %v7418, 0.0
        %v7437 = vpack.c.bf16 %v7420, %v7419
        %v7438 = vpack.c.bf16 %v7422, %v7421
        %v7439 = vpack.c.bf16 %v7424, %v7423
        %v7440 = vpack.c.bf16 %v7426, %v7425
        %v7441 = vpack.c.bf16 %v7428, %v7427
        %v7442 = vpack.c.bf16 %v7430, %v7429
        %v7443 = vpack.c.bf16 %v7432, %v7431
        %v7444 = vpack.c.bf16 %v7434, %v7433
        %v7445 = vpack.c.bf16 %v7436, %v7435
        %v7446 = vld [vmem:[#allocation7] sm:$0xf]
        %v7447 = vld [vmem:[#allocation7 + $0x4] sm:$0xf]
        %v7448 = vld [vmem:[#allocation7 + $0x8] sm:$0xf]
        %v7449 = vld [vmem:[#allocation7 + $0xc] sm:$0xf]
        %v7450 = vld [vmem:[#allocation7 + $0x10] sm:$0xf]
        %v7451 = vld [vmem:[#allocation7 + $0x14] sm:$0xf]
        %v7452 = vld [vmem:[#allocation7 + $0x18] sm:$0xf]
        %v7453 = vld [vmem:[#allocation7 + $0x1c] sm:$0xf]
        %s7454 = scalar_lea.vmem [#allocation7], 32
        %v7455 = vld [vmem:[%s7454] sm:$0xf]
        %v7456 = vld [vmem:[%s7454 + $0x4] sm:$0xf]
        %v7457 = vld [vmem:[%s7454 + $0x8] sm:$0xf]
        %v7458 = vld [vmem:[%s7454 + $0xc] sm:$0xf]
        %v7459 = vld [vmem:[%s7454 + $0x10] sm:$0xf]
        %v7460 = vld [vmem:[%s7454 + $0x14] sm:$0xf]
        %v7461 = vld [vmem:[%s7454 + $0x18] sm:$0xf]
        %v7462 = vld [vmem:[%s7454 + $0x1c] sm:$0xf]
        %v7471 = vunpack.c.l.b16 %v7455
        %v7472 = vunpack.c.l.b16 %v7456
        %v7473 = vunpack.c.l.b16 %v7457
        %v7474 = vunpack.c.l.b16 %v7458
        %v7475 = vunpack.c.l.b16 %v7459
        %v7476 = vunpack.c.l.b16 %v7460
        %v7477 = vunpack.c.l.b16 %v7461
        %v7478 = vunpack.c.l.b16 %v7462
        %v7479 = vpack.c.b16 %v7472, %v7471
        %v7480 = vpack.c.b16 %v7474, %v7473
        %v7481 = vpack.c.b16 %v7476, %v7475
        %v7482 = vpack.c.b16 %v7478, %v7477
        %v7488 = vsel %vm1273, %v7438, 0
        %7490 = vmatprep.subr.bf16.mxu0 0
        %7491 = vmatpush1.bf16.msra.mxu0 %v7479
        %7492 = vmatprep.subr.bf16.mxu0 0
        %7493 = vmatpush1.bf16.msra.mxu0 %v7480
        %7494 = vmatprep.subr.bf16.mxu0 0
        %7495 = vmatpush1.bf16.msra.mxu0 %v7481
        %7496 = vmatprep.subr.bf16.mxu0 0
        %7497 = vmatpush1.bf16.msra.mxu0 %v7482
        %7498 = vmatprep.subr.bf16.mxu0 0
        %7499 = vmatpush1.bf16.msra.mxu0 0
        %7500 = vmatprep.subr.bf16.mxu0 0
        %7501 = vmatpush1.bf16.msra.mxu0 0
        %7502 = vmatprep.subr.bf16.mxu0 0
        %7503 = vmatpush1.bf16.msra.mxu0 0
        %7504 = vmatprep.subr.bf16.mxu0 0
        %7505 = vmatpush1.bf16.msra.mxu0 0
        %7506 = vmatprep.subr.bf16.mxu0 0
        %7507 = vmatpush1.bf16.msra.mxu0 0
        %7508 = vmatprep.subr.bf16.mxu0 0
        %7509 = vmatpush1.bf16.msra.mxu0 0
        %7510 = vmatprep.subr.bf16.mxu0 0
        %7511 = vmatpush1.bf16.msra.mxu0 0
        %7512 = vmatprep.subr.bf16.mxu0 0
        %7513 = vmatpush1.bf16.msra.mxu0 0
        %7514 = vmatprep.subr.bf16.mxu0 0
        %7515 = vmatpush1.bf16.msra.mxu0 0
        %7516 = vmatprep.subr.bf16.mxu0 0
        %7517 = vmatpush1.bf16.msra.mxu0 0
        %7518 = vmatprep.subr.bf16.mxu0 0
        %7519 = vmatpush1.bf16.msra.mxu0 0
        %7520 = vmatprep.subr.bf16.mxu0 0
        %7521 = vmatpush1.bf16.msra.mxu0 0
        %7522 = vmatprep.mubr.bf16.mxu0 0
        %7523 = vmatmul.mubr.bf16.gmra.mrb[0].mxu0 %v7488
        %v7524 = vpop.f32.mrb[0].mxu0
        %v7525 = vadd.f32 0.0, %v7524
        %v7526 = vpop.f32.mrb[0].mxu0
        %v7527 = vpop.f32.mrb[0].mxu0
        %v7528 = vadd.f32 0.0, %v7527
        %v7529 = vpop.f32.mrb[0].mxu0
        %7530 = vdwg.mxu0
        %v7539 = vunpack.c.l.b16 %v7446
        %v7540 = vunpack.c.l.b16 %v7447
        %v7541 = vunpack.c.l.b16 %v7448
        %v7542 = vunpack.c.l.b16 %v7449
        %v7543 = vunpack.c.l.b16 %v7450
        %v7544 = vunpack.c.l.b16 %v7451
        %v7545 = vunpack.c.l.b16 %v7452
        %v7546 = vunpack.c.l.b16 %v7453
        %v7547 = vpack.c.b16 %v7540, %v7539
        %v7548 = vpack.c.b16 %v7542, %v7541
        %v7549 = vpack.c.b16 %v7544, %v7543
        %v7550 = vpack.c.b16 %v7546, %v7545
        %v7556 = vsel %vm1273, %v7437, 0
        %7558 = vmatprep.subr.bf16.mxu0 0
        %7559 = vmatpush1.bf16.msra.mxu0 %v7547
        %7560 = vmatprep.subr.bf16.mxu0 0
        %7561 = vmatpush1.bf16.msra.mxu0 %v7548
        %7562 = vmatprep.subr.bf16.mxu0 0
        %7563 = vmatpush1.bf16.msra.mxu0 %v7549
        %7564 = vmatprep.subr.bf16.mxu0 0
        %7565 = vmatpush1.bf16.msra.mxu0 %v7550
        %7566 = vmatprep.subr.bf16.mxu0 0
        %7567 = vmatpush1.bf16.msra.mxu0 0
        %7568 = vmatprep.subr.bf16.mxu0 0
        %7569 = vmatpush1.bf16.msra.mxu0 0
        %7570 = vmatprep.subr.bf16.mxu0 0
        %7571 = vmatpush1.bf16.msra.mxu0 0
        %7572 = vmatprep.subr.bf16.mxu0 0
        %7573 = vmatpush1.bf16.msra.mxu0 0
        %7574 = vmatprep.subr.bf16.mxu0 0
        %7575 = vmatpush1.bf16.msra.mxu0 0
        %7576 = vmatprep.subr.bf16.mxu0 0
        %7577 = vmatpush1.bf16.msra.mxu0 0
        %7578 = vmatprep.subr.bf16.mxu0 0
        %7579 = vmatpush1.bf16.msra.mxu0 0
        %7580 = vmatprep.subr.bf16.mxu0 0
        %7581 = vmatpush1.bf16.msra.mxu0 0
        %7582 = vmatprep.subr.bf16.mxu0 0
        %7583 = vmatpush1.bf16.msra.mxu0 0
        %7584 = vmatprep.subr.bf16.mxu0 0
        %7585 = vmatpush1.bf16.msra.mxu0 0
        %7586 = vmatprep.subr.bf16.mxu0 0
        %7587 = vmatpush1.bf16.msra.mxu0 0
        %7588 = vmatprep.subr.bf16.mxu0 0
        %7589 = vmatpush1.bf16.msra.mxu0 0
        %7590 = vmatprep.mubr.bf16.mxu0 0
        %7591 = vmatmul.mubr.bf16.gmra.mrb[0].mxu0 %v7556
        %v7592 = vpop.f32.mrb[0].mxu0
        %v7593 = vadd.f32 %v7525, %v7592
        %v7594 = vpop.f32.mrb[0].mxu0
        %v7595 = vpop.f32.mrb[0].mxu0
        %v7596 = vadd.f32 %v7528, %v7595
        %v7597 = vpop.f32.mrb[0].mxu0
        %7598 = vdwg.mxu0
        %s7599 = scalar_lea.vmem [#allocation7], 64
        %v7600 = vld [vmem:[%s7599] sm:$0xf]
        %v7601 = vld [vmem:[%s7599 + $0x4] sm:$0xf]
        %v7602 = vld [vmem:[%s7599 + $0x8] sm:$0xf]
        %v7603 = vld [vmem:[%s7599 + $0xc] sm:$0xf]
        %v7604 = vld [vmem:[%s7599 + $0x10] sm:$0xf]
        %v7605 = vld [vmem:[%s7599 + $0x14] sm:$0xf]
        %v7606 = vld [vmem:[%s7599 + $0x18] sm:$0xf]
        %v7607 = vld [vmem:[%s7599 + $0x1c] sm:$0xf]
        %v7616 = vunpack.c.l.b16 %v7600
        %v7617 = vunpack.c.l.b16 %v7601
        %v7618 = vunpack.c.l.b16 %v7602
        %v7619 = vunpack.c.l.b16 %v7603
        %v7620 = vunpack.c.l.b16 %v7604
        %v7621 = vunpack.c.l.b16 %v7605
        %v7622 = vunpack.c.l.b16 %v7606
        %v7623 = vunpack.c.l.b16 %v7607
        %v7624 = vpack.c.b16 %v7617, %v7616
        %v7625 = vpack.c.b16 %v7619, %v7618
        %v7626 = vpack.c.b16 %v7621, %v7620
        %v7627 = vpack.c.b16 %v7623, %v7622
        %v7633 = vsel %vm1273, %v7439, 0
        %7635 = vmatprep.subr.bf16.mxu0 0
        %7636 = vmatpush1.bf16.msra.mxu0 %v7624
        %7637 = vmatprep.subr.bf16.mxu0 0
        %7638 = vmatpush1.bf16.msra.mxu0 %v7625
        %7639 = vmatprep.subr.bf16.mxu0 0
        %7640 = vmatpush1.bf16.msra.mxu0 %v7626
        %7641 = vmatprep.subr.bf16.mxu0 0
        %7642 = vmatpush1.bf16.msra.mxu0 %v7627
        %7643 = vmatprep.subr.bf16.mxu0 0
        %7644 = vmatpush1.bf16.msra.mxu0 0
        %7645 = vmatprep.subr.bf16.mxu0 0
        %7646 = vmatpush1.bf16.msra.mxu0 0
        %7647 = vmatprep.subr.bf16.mxu0 0
        %7648 = vmatpush1.bf16.msra.mxu0 0
        %7649 = vmatprep.subr.bf16.mxu0 0
        %7650 = vmatpush1.bf16.msra.mxu0 0
        %7651 = vmatprep.subr.bf16.mxu0 0
        %7652 = vmatpush1.bf16.msra.mxu0 0
        %7653 = vmatprep.subr.bf16.mxu0 0
        %7654 = vmatpush1.bf16.msra.mxu0 0
        %7655 = vmatprep.subr.bf16.mxu0 0
        %7656 = vmatpush1.bf16.msra.mxu0 0
        %7657 = vmatprep.subr.bf16.mxu0 0
        %7658 = vmatpush1.bf16.msra.mxu0 0
        %7659 = vmatprep.subr.bf16.mxu0 0
        %7660 = vmatpush1.bf16.msra.mxu0 0
        %7661 = vmatprep.subr.bf16.mxu0 0
        %7662 = vmatpush1.bf16.msra.mxu0 0
        %7663 = vmatprep.subr.bf16.mxu0 0
        %7664 = vmatpush1.bf16.msra.mxu0 0
        %7665 = vmatprep.subr.bf16.mxu0 0
        %7666 = vmatpush1.bf16.msra.mxu0 0
        %7667 = vmatprep.mubr.bf16.mxu0 0
        %7668 = vmatmul.mubr.bf16.gmra.mrb[0].mxu0 %v7633
        %v7669 = vpop.f32.mrb[0].mxu0
        %v7670 = vadd.f32 0.0, %v7669
        %v7671 = vpop.f32.mrb[0].mxu0
        %v7672 = vpop.f32.mrb[0].mxu0
        %v7673 = vadd.f32 0.0, %v7672
        %v7674 = vpop.f32.mrb[0].mxu0
        %7675 = vdwg.mxu0
        %v7676 = vadd.f32 %v7593, %v7670
        %v7677 = vadd.f32 %v7596, %v7673
        %s7678 = scalar_lea.vmem [#allocation7], 96
        %v7679 = vld [vmem:[%s7678] sm:$0xf]
        %v7680 = vld [vmem:[%s7678 + $0x4] sm:$0xf]
        %v7681 = vld [vmem:[%s7678 + $0x8] sm:$0xf]
        %v7682 = vld [vmem:[%s7678 + $0xc] sm:$0xf]
        %v7683 = vld [vmem:[%s7678 + $0x10] sm:$0xf]
        %v7684 = vld [vmem:[%s7678 + $0x14] sm:$0xf]
        %v7685 = vld [vmem:[%s7678 + $0x18] sm:$0xf]
        %v7686 = vld [vmem:[%s7678 + $0x1c] sm:$0xf]
        %v7695 = vunpack.c.l.b16 %v7679
        %v7696 = vunpack.c.l.b16 %v7680
        %v7697 = vunpack.c.l.b16 %v7681
        %v7698 = vunpack.c.l.b16 %v7682
        %v7699 = vunpack.c.l.b16 %v7683
        %v7700 = vunpack.c.l.b16 %v7684
        %v7701 = vunpack.c.l.b16 %v7685
        %v7702 = vunpack.c.l.b16 %v7686
        %v7703 = vpack.c.b16 %v7696, %v7695
        %v7704 = vpack.c.b16 %v7698, %v7697
        %v7705 = vpack.c.b16 %v7700, %v7699
        %v7706 = vpack.c.b16 %v7702, %v7701
        %v7712 = vsel %vm1273, %v7440, 0
        %7714 = vmatprep.subr.bf16.mxu0 0
        %7715 = vmatpush1.bf16.msra.mxu0 %v7703
        %7716 = vmatprep.subr.bf16.mxu0 0
        %7717 = vmatpush1.bf16.msra.mxu0 %v7704
        %7718 = vmatprep.subr.bf16.mxu0 0
        %7719 = vmatpush1.bf16.msra.mxu0 %v7705
        %7720 = vmatprep.subr.bf16.mxu0 0
        %7721 = vmatpush1.bf16.msra.mxu0 %v7706
        %7722 = vmatprep.subr.bf16.mxu0 0
        %7723 = vmatpush1.bf16.msra.mxu0 0
        %7724 = vmatprep.subr.bf16.mxu0 0
        %7725 = vmatpush1.bf16.msra.mxu0 0
        %7726 = vmatprep.subr.bf16.mxu0 0
        %7727 = vmatpush1.bf16.msra.mxu0 0
        %7728 = vmatprep.subr.bf16.mxu0 0
        %7729 = vmatpush1.bf16.msra.mxu0 0
        %7730 = vmatprep.subr.bf16.mxu0 0
        %7731 = vmatpush1.bf16.msra.mxu0 0
        %7732 = vmatprep.subr.bf16.mxu0 0
        %7733 = vmatpush1.bf16.msra.mxu0 0
        %7734 = vmatprep.subr.bf16.mxu0 0
        %7735 = vmatpush1.bf16.msra.mxu0 0
        %7736 = vmatprep.subr.bf16.mxu0 0
        %7737 = vmatpush1.bf16.msra.mxu0 0
        %7738 = vmatprep.subr.bf16.mxu0 0
        %7739 = vmatpush1.bf16.msra.mxu0 0
        %7740 = vmatprep.subr.bf16.mxu0 0
        %7741 = vmatpush1.bf16.msra.mxu0 0
        %7742 = vmatprep.subr.bf16.mxu0 0
        %7743 = vmatpush1.bf16.msra.mxu0 0
        %7744 = vmatprep.subr.bf16.mxu0 0
        %7745 = vmatpush1.bf16.msra.mxu0 0
        %7746 = vmatprep.mubr.bf16.mxu0 0
        %7747 = vmatmul.mubr.bf16.gmra.mrb[0].mxu0 %v7712
        %v7748 = vpop.f32.mrb[0].mxu0
        %v7749 = vadd.f32 0.0, %v7748
        %v7750 = vpop.f32.mrb[0].mxu0
        %v7751 = vpop.f32.mrb[0].mxu0
        %v7752 = vadd.f32 0.0, %v7751
        %v7753 = vpop.f32.mrb[0].mxu0
        %7754 = vdwg.mxu0
        %v7755 = vadd.f32 %v7676, %v7749
        %v7756 = vadd.f32 %v7677, %v7752
        %s7757 = scalar_lea.vmem [#allocation7], 128
        %v7758 = vld [vmem:[%s7757] sm:$0xf]
        %v7759 = vld [vmem:[%s7757 + $0x4] sm:$0xf]
        %v7760 = vld [vmem:[%s7757 + $0x8] sm:$0xf]
        %v7761 = vld [vmem:[%s7757 + $0xc] sm:$0xf]
        %v7762 = vld [vmem:[%s7757 + $0x10] sm:$0xf]
        %v7763 = vld [vmem:[%s7757 + $0x14] sm:$0xf]
        %v7764 = vld [vmem:[%s7757 + $0x18] sm:$0xf]
        %v7765 = vld [vmem:[%s7757 + $0x1c] sm:$0xf]
        %v7774 = vunpack.c.l.b16 %v7758
        %v7775 = vunpack.c.l.b16 %v7759
        %v7776 = vunpack.c.l.b16 %v7760
        %v7777 = vunpack.c.l.b16 %v7761
        %v7778 = vunpack.c.l.b16 %v7762
        %v7779 = vunpack.c.l.b16 %v7763
        %v7780 = vunpack.c.l.b16 %v7764
        %v7781 = vunpack.c.l.b16 %v7765
        %v7782 = vpack.c.b16 %v7775, %v7774
        %v7783 = vpack.c.b16 %v7777, %v7776
        %v7784 = vpack.c.b16 %v7779, %v7778
        %v7785 = vpack.c.b16 %v7781, %v7780
        %v7791 = vsel %vm1273, %v7441, 0
        %7793 = vmatprep.subr.bf16.mxu0 0
        %7794 = vmatpush1.bf16.msra.mxu0 %v7782
        %7795 = vmatprep.subr.bf16.mxu0 0
        %7796 = vmatpush1.bf16.msra.mxu0 %v7783
        %7797 = vmatprep.subr.bf16.mxu0 0
        %7798 = vmatpush1.bf16.msra.mxu0 %v7784
        %7799 = vmatprep.subr.bf16.mxu0 0
        %7800 = vmatpush1.bf16.msra.mxu0 %v7785
        %7801 = vmatprep.subr.bf16.mxu0 0
        %7802 = vmatpush1.bf16.msra.mxu0 0
        %7803 = vmatprep.subr.bf16.mxu0 0
        %7804 = vmatpush1.bf16.msra.mxu0 0
        %7805 = vmatprep.subr.bf16.mxu0 0
        %7806 = vmatpush1.bf16.msra.mxu0 0
        %7807 = vmatprep.subr.bf16.mxu0 0
        %7808 = vmatpush1.bf16.msra.mxu0 0
        %7809 = vmatprep.subr.bf16.mxu0 0
        %7810 = vmatpush1.bf16.msra.mxu0 0
        %7811 = vmatprep.subr.bf16.mxu0 0
        %7812 = vmatpush1.bf16.msra.mxu0 0
        %7813 = vmatprep.subr.bf16.mxu0 0
        %7814 = vmatpush1.bf16.msra.mxu0 0
        %7815 = vmatprep.subr.bf16.mxu0 0
        %7816 = vmatpush1.bf16.msra.mxu0 0
        %7817 = vmatprep.subr.bf16.mxu0 0
        %7818 = vmatpush1.bf16.msra.mxu0 0
        %7819 = vmatprep.subr.bf16.mxu0 0
        %7820 = vmatpush1.bf16.msra.mxu0 0
        %7821 = vmatprep.subr.bf16.mxu0 0
        %7822 = vmatpush1.bf16.msra.mxu0 0
        %7823 = vmatprep.subr.bf16.mxu0 0
        %7824 = vmatpush1.bf16.msra.mxu0 0
        %7825 = vmatprep.mubr.bf16.mxu0 0
        %7826 = vmatmul.mubr.bf16.gmra.mrb[0].mxu0 %v7791
        %v7827 = vpop.f32.mrb[0].mxu0
        %v7828 = vadd.f32 0.0, %v7827
        %v7829 = vpop.f32.mrb[0].mxu0
        %v7830 = vpop.f32.mrb[0].mxu0
        %v7831 = vadd.f32 0.0, %v7830
        %v7832 = vpop.f32.mrb[0].mxu0
        %7833 = vdwg.mxu0
        %v7834 = vadd.f32 %v7755, %v7828
        %v7835 = vadd.f32 %v7756, %v7831
        %s7836 = scalar_lea.vmem [#allocation7], 160
        %v7837 = vld [vmem:[%s7836] sm:$0xf]
        %v7838 = vld [vmem:[%s7836 + $0x4] sm:$0xf]
        %v7839 = vld [vmem:[%s7836 + $0x8] sm:$0xf]
        %v7840 = vld [vmem:[%s7836 + $0xc] sm:$0xf]
        %v7841 = vld [vmem:[%s7836 + $0x10] sm:$0xf]
        %v7842 = vld [vmem:[%s7836 + $0x14] sm:$0xf]
        %v7843 = vld [vmem:[%s7836 + $0x18] sm:$0xf]
        %v7844 = vld [vmem:[%s7836 + $0x1c] sm:$0xf]
        %v7853 = vunpack.c.l.b16 %v7837
        %v7854 = vunpack.c.l.b16 %v7838
        %v7855 = vunpack.c.l.b16 %v7839
        %v7856 = vunpack.c.l.b16 %v7840
        %v7857 = vunpack.c.l.b16 %v7841
        %v7858 = vunpack.c.l.b16 %v7842
        %v7859 = vunpack.c.l.b16 %v7843
        %v7860 = vunpack.c.l.b16 %v7844
        %v7861 = vpack.c.b16 %v7854, %v7853
        %v7862 = vpack.c.b16 %v7856, %v7855
        %v7863 = vpack.c.b16 %v7858, %v7857
        %v7864 = vpack.c.b16 %v7860, %v7859
        %v7870 = vsel %vm1273, %v7442, 0
        %7872 = vmatprep.subr.bf16.mxu0 0
        %7873 = vmatpush1.bf16.msra.mxu0 %v7861
        %7874 = vmatprep.subr.bf16.mxu0 0
        %7875 = vmatpush1.bf16.msra.mxu0 %v7862
        %7876 = vmatprep.subr.bf16.mxu0 0
        %7877 = vmatpush1.bf16.msra.mxu0 %v7863
        %7878 = vmatprep.subr.bf16.mxu0 0
        %7879 = vmatpush1.bf16.msra.mxu0 %v7864
        %7880 = vmatprep.subr.bf16.mxu0 0
        %7881 = vmatpush1.bf16.msra.mxu0 0
        %7882 = vmatprep.subr.bf16.mxu0 0
        %7883 = vmatpush1.bf16.msra.mxu0 0
        %7884 = vmatprep.subr.bf16.mxu0 0
        %7885 = vmatpush1.bf16.msra.mxu0 0
        %7886 = vmatprep.subr.bf16.mxu0 0
        %7887 = vmatpush1.bf16.msra.mxu0 0
        %7888 = vmatprep.subr.bf16.mxu0 0
        %7889 = vmatpush1.bf16.msra.mxu0 0
        %7890 = vmatprep.subr.bf16.mxu0 0
        %7891 = vmatpush1.bf16.msra.mxu0 0
        %7892 = vmatprep.subr.bf16.mxu0 0
        %7893 = vmatpush1.bf16.msra.mxu0 0
        %7894 = vmatprep.subr.bf16.mxu0 0
        %7895 = vmatpush1.bf16.msra.mxu0 0
        %7896 = vmatprep.subr.bf16.mxu0 0
        %7897 = vmatpush1.bf16.msra.mxu0 0
        %7898 = vmatprep.subr.bf16.mxu0 0
        %7899 = vmatpush1.bf16.msra.mxu0 0
        %7900 = vmatprep.subr.bf16.mxu0 0
        %7901 = vmatpush1.bf16.msra.mxu0 0
        %7902 = vmatprep.subr.bf16.mxu0 0
        %7903 = vmatpush1.bf16.msra.mxu0 0
        %7904 = vmatprep.mubr.bf16.mxu0 0
        %7905 = vmatmul.mubr.bf16.gmra.mrb[0].mxu0 %v7870
        %v7906 = vpop.f32.mrb[0].mxu0
        %v7907 = vadd.f32 0.0, %v7906
        %v7908 = vpop.f32.mrb[0].mxu0
        %v7909 = vpop.f32.mrb[0].mxu0
        %v7910 = vadd.f32 0.0, %v7909
        %v7911 = vpop.f32.mrb[0].mxu0
        %7912 = vdwg.mxu0
        %v7913 = vadd.f32 %v7834, %v7907
        %v7914 = vadd.f32 %v7835, %v7910
        %s7915 = scalar_lea.vmem [#allocation7], 192
        %v7916 = vld [vmem:[%s7915] sm:$0xf]
        %v7917 = vld [vmem:[%s7915 + $0x4] sm:$0xf]
        %v7918 = vld [vmem:[%s7915 + $0x8] sm:$0xf]
        %v7919 = vld [vmem:[%s7915 + $0xc] sm:$0xf]
        %v7920 = vld [vmem:[%s7915 + $0x10] sm:$0xf]
        %v7921 = vld [vmem:[%s7915 + $0x14] sm:$0xf]
        %v7922 = vld [vmem:[%s7915 + $0x18] sm:$0xf]
        %v7923 = vld [vmem:[%s7915 + $0x1c] sm:$0xf]
        %v7932 = vunpack.c.l.b16 %v7916
        %v7933 = vunpack.c.l.b16 %v7917
        %v7934 = vunpack.c.l.b16 %v7918
        %v7935 = vunpack.c.l.b16 %v7919
        %v7936 = vunpack.c.l.b16 %v7920
        %v7937 = vunpack.c.l.b16 %v7921
        %v7938 = vunpack.c.l.b16 %v7922
        %v7939 = vunpack.c.l.b16 %v7923
        %v7940 = vpack.c.b16 %v7933, %v7932
        %v7941 = vpack.c.b16 %v7935, %v7934
        %v7942 = vpack.c.b16 %v7937, %v7936
        %v7943 = vpack.c.b16 %v7939, %v7938
        %v7949 = vsel %vm1273, %v7443, 0
        %7951 = vmatprep.subr.bf16.mxu0 0
        %7952 = vmatpush1.bf16.msra.mxu0 %v7940
        %7953 = vmatprep.subr.bf16.mxu0 0
        %7954 = vmatpush1.bf16.msra.mxu0 %v7941
        %7955 = vmatprep.subr.bf16.mxu0 0
        %7956 = vmatpush1.bf16.msra.mxu0 %v7942
        %7957 = vmatprep.subr.bf16.mxu0 0
        %7958 = vmatpush1.bf16.msra.mxu0 %v7943
        %7959 = vmatprep.subr.bf16.mxu0 0
        %7960 = vmatpush1.bf16.msra.mxu0 0
        %7961 = vmatprep.subr.bf16.mxu0 0
        %7962 = vmatpush1.bf16.msra.mxu0 0
        %7963 = vmatprep.subr.bf16.mxu0 0
        %7964 = vmatpush1.bf16.msra.mxu0 0
        %7965 = vmatprep.subr.bf16.mxu0 0
        %7966 = vmatpush1.bf16.msra.mxu0 0
        %7967 = vmatprep.subr.bf16.mxu0 0
        %7968 = vmatpush1.bf16.msra.mxu0 0
        %7969 = vmatprep.subr.bf16.mxu0 0
        %7970 = vmatpush1.bf16.msra.mxu0 0
        %7971 = vmatprep.subr.bf16.mxu0 0
        %7972 = vmatpush1.bf16.msra.mxu0 0
        %7973 = vmatprep.subr.bf16.mxu0 0
        %7974 = vmatpush1.bf16.msra.mxu0 0
        %7975 = vmatprep.subr.bf16.mxu0 0
        %7976 = vmatpush1.bf16.msra.mxu0 0
        %7977 = vmatprep.subr.bf16.mxu0 0
        %7978 = vmatpush1.bf16.msra.mxu0 0
        %7979 = vmatprep.subr.bf16.mxu0 0
        %7980 = vmatpush1.bf16.msra.mxu0 0
        %7981 = vmatprep.subr.bf16.mxu0 0
        %7982 = vmatpush1.bf16.msra.mxu0 0
        %7983 = vmatprep.mubr.bf16.mxu0 0
        %7984 = vmatmul.mubr.bf16.gmra.mrb[0].mxu0 %v7949
        %v7985 = vpop.f32.mrb[0].mxu0
        %v7986 = vadd.f32 0.0, %v7985
        %v7987 = vpop.f32.mrb[0].mxu0
        %v7988 = vpop.f32.mrb[0].mxu0
        %v7989 = vadd.f32 0.0, %v7988
        %v7990 = vpop.f32.mrb[0].mxu0
        %7991 = vdwg.mxu0
        %v7992 = vadd.f32 %v7913, %v7986
        %v7993 = vadd.f32 %v7914, %v7989
        %s7994 = scalar_lea.vmem [#allocation7], 224
        %v7995 = vld [vmem:[%s7994] sm:$0xf]
        %v7996 = vld [vmem:[%s7994 + $0x4] sm:$0xf]
        %v7997 = vld [vmem:[%s7994 + $0x8] sm:$0xf]
        %v7998 = vld [vmem:[%s7994 + $0xc] sm:$0xf]
        %v7999 = vld [vmem:[%s7994 + $0x10] sm:$0xf]
        %v8000 = vld [vmem:[%s7994 + $0x14] sm:$0xf]
        %v8001 = vld [vmem:[%s7994 + $0x18] sm:$0xf]
        %v8002 = vld [vmem:[%s7994 + $0x1c] sm:$0xf]
        %v8011 = vunpack.c.l.b16 %v7995
        %v8012 = vunpack.c.l.b16 %v7996
        %v8013 = vunpack.c.l.b16 %v7997
        %v8014 = vunpack.c.l.b16 %v7998
        %v8015 = vunpack.c.l.b16 %v7999
        %v8016 = vunpack.c.l.b16 %v8000
        %v8017 = vunpack.c.l.b16 %v8001
        %v8018 = vunpack.c.l.b16 %v8002
        %v8019 = vpack.c.b16 %v8012, %v8011
        %v8020 = vpack.c.b16 %v8014, %v8013
        %v8021 = vpack.c.b16 %v8016, %v8015
        %v8022 = vpack.c.b16 %v8018, %v8017
        %v8028 = vsel %vm1273, %v7444, 0
        %8030 = vmatprep.subr.bf16.mxu0 0
        %8031 = vmatpush1.bf16.msra.mxu0 %v8019
        %8032 = vmatprep.subr.bf16.mxu0 0
        %8033 = vmatpush1.bf16.msra.mxu0 %v8020
        %8034 = vmatprep.subr.bf16.mxu0 0
        %8035 = vmatpush1.bf16.msra.mxu0 %v8021
        %8036 = vmatprep.subr.bf16.mxu0 0
        %8037 = vmatpush1.bf16.msra.mxu0 %v8022
        %8038 = vmatprep.subr.bf16.mxu0 0
        %8039 = vmatpush1.bf16.msra.mxu0 0
        %8040 = vmatprep.subr.bf16.mxu0 0
        %8041 = vmatpush1.bf16.msra.mxu0 0
        %8042 = vmatprep.subr.bf16.mxu0 0
        %8043 = vmatpush1.bf16.msra.mxu0 0
        %8044 = vmatprep.subr.bf16.mxu0 0
        %8045 = vmatpush1.bf16.msra.mxu0 0
        %8046 = vmatprep.subr.bf16.mxu0 0
        %8047 = vmatpush1.bf16.msra.mxu0 0
        %8048 = vmatprep.subr.bf16.mxu0 0
        %8049 = vmatpush1.bf16.msra.mxu0 0
        %8050 = vmatprep.subr.bf16.mxu0 0
        %8051 = vmatpush1.bf16.msra.mxu0 0
        %8052 = vmatprep.subr.bf16.mxu0 0
        %8053 = vmatpush1.bf16.msra.mxu0 0
        %8054 = vmatprep.subr.bf16.mxu0 0
        %8055 = vmatpush1.bf16.msra.mxu0 0
        %8056 = vmatprep.subr.bf16.mxu0 0
        %8057 = vmatpush1.bf16.msra.mxu0 0
        %8058 = vmatprep.subr.bf16.mxu0 0
        %8059 = vmatpush1.bf16.msra.mxu0 0
        %8060 = vmatprep.subr.bf16.mxu0 0
        %8061 = vmatpush1.bf16.msra.mxu0 0
        %8062 = vmatprep.mubr.bf16.mxu0 0
        %8063 = vmatmul.mubr.bf16.gmra.mrb[0].mxu0 %v8028
        %v8064 = vpop.f32.mrb[0].mxu0
        %v8065 = vadd.f32 0.0, %v8064
        %v8066 = vpop.f32.mrb[0].mxu0
        %v8067 = vpop.f32.mrb[0].mxu0
        %v8068 = vadd.f32 0.0, %v8067
        %v8069 = vpop.f32.mrb[0].mxu0
        %8070 = vdwg.mxu0
        %v8071 = vadd.f32 %v7992, %v8065
        %v8072 = vadd.f32 %v7993, %v8068
        %s8073 = scalar_lea.vmem [#allocation7], 256
        %v8074 = vld [vmem:[%s8073] sm:$0xf]
        %v8075 = vld [vmem:[%s8073 + $0x4] sm:$0xf]
        %v8076 = vld [vmem:[%s8073 + $0x8] sm:$0xf]
        %v8077 = vld [vmem:[%s8073 + $0xc] sm:$0xf]
        %v8078 = vld [vmem:[%s8073 + $0x10] sm:$0xf]
        %v8079 = vld [vmem:[%s8073 + $0x14] sm:$0xf]
        %v8080 = vld [vmem:[%s8073 + $0x18] sm:$0xf]
        %v8081 = vld [vmem:[%s8073 + $0x1c] sm:$0xf]
        %v8090 = vunpack.c.l.b16 %v8074
        %v8091 = vunpack.c.l.b16 %v8075
        %v8092 = vunpack.c.l.b16 %v8076
        %v8093 = vunpack.c.l.b16 %v8077
        %v8094 = vunpack.c.l.b16 %v8078
        %v8095 = vunpack.c.l.b16 %v8079
        %v8096 = vunpack.c.l.b16 %v8080
        %v8097 = vunpack.c.l.b16 %v8081
        %v8098 = vpack.c.b16 %v8091, %v8090
        %v8099 = vpack.c.b16 %v8093, %v8092
        %v8100 = vpack.c.b16 %v8095, %v8094
        %v8101 = vpack.c.b16 %v8097, %v8096
        %v8107 = vsel %vm1273, %v7445, 0
        %8109 = vmatprep.subr.bf16.mxu0 0
        %8110 = vmatpush1.bf16.msra.mxu0 %v8098
        %8111 = vmatprep.subr.bf16.mxu0 0
        %8112 = vmatpush1.bf16.msra.mxu0 %v8099
        %8113 = vmatprep.subr.bf16.mxu0 0
        %8114 = vmatpush1.bf16.msra.mxu0 %v8100
        %8115 = vmatprep.subr.bf16.mxu0 0
        %8116 = vmatpush1.bf16.msra.mxu0 %v8101
        %8117 = vmatprep.subr.bf16.mxu0 0
        %8118 = vmatpush1.bf16.msra.mxu0 0
        %8119 = vmatprep.subr.bf16.mxu0 0
        %8120 = vmatpush1.bf16.msra.mxu0 0
        %8121 = vmatprep.subr.bf16.mxu0 0
        %8122 = vmatpush1.bf16.msra.mxu0 0
        %8123 = vmatprep.subr.bf16.mxu0 0
        %8124 = vmatpush1.bf16.msra.mxu0 0
        %8125 = vmatprep.subr.bf16.mxu0 0
        %8126 = vmatpush1.bf16.msra.mxu0 0
        %8127 = vmatprep.subr.bf16.mxu0 0
        %8128 = vmatpush1.bf16.msra.mxu0 0
        %8129 = vmatprep.subr.bf16.mxu0 0
        %8130 = vmatpush1.bf16.msra.mxu0 0
        %8131 = vmatprep.subr.bf16.mxu0 0
        %8132 = vmatpush1.bf16.msra.mxu0 0
        %8133 = vmatprep.subr.bf16.mxu0 0
        %8134 = vmatpush1.bf16.msra.mxu0 0
        %8135 = vmatprep.subr.bf16.mxu0 0
        %8136 = vmatpush1.bf16.msra.mxu0 0
        %8137 = vmatprep.subr.bf16.mxu0 0
        %8138 = vmatpush1.bf16.msra.mxu0 0
        %8139 = vmatprep.subr.bf16.mxu0 0
        %8140 = vmatpush1.bf16.msra.mxu0 0
        %8141 = vmatprep.mubr.bf16.mxu0 0
        %8142 = vmatmul.mubr.bf16.gmra.mrb[0].mxu0 %v8107
        %v8143 = vpop.f32.mrb[0].mxu0
        %v8144 = vadd.f32 0.0, %v8143
        %v8145 = vpop.f32.mrb[0].mxu0
        %v8146 = vpop.f32.mrb[0].mxu0
        %v8147 = vadd.f32 0.0, %v8146
        %v8148 = vpop.f32.mrb[0].mxu0
        %8149 = vdwg.mxu0
        %v8150 = vadd.f32 %v8071, %v8144
        %v8151 = vadd.f32 %v8072, %v8147
        %v8152 = vld [vmem:[#allocation8] sm:$0x1]
        %v8154 = vlaneseq
        %v8155 = vshrl.u32 %v8154, 7
        %v8156 = vsub.s32 0, %v8155
        %v8157 = vrot.slane %v8152, %v8156
        %v8159 = vadd.f32 %v8150, %v8157
        %v8160 = vadd.f32 %v8151, %v8157
        %v8161 = vmax.f32 %v8159, 0.0
        %v8162 = vmax.f32 %v8160, 0.0
        %v8163 = vpack.c.bf16 %v8162, %v8161
        %v8164 = vld [vmem:[#allocation10] sm:$0xff]
        %v8165 = vld [vmem:[#allocation10 + $0x8] sm:$0xff]
        %v8166 = vld [vmem:[#allocation10 + $0x10] sm:$0xff]
        %v8167 = vld [vmem:[#allocation10 + $0x18] sm:$0xff]
        %v8168 = vld [vmem:[#allocation10 + $0x20] sm:$0xff]
        %v8169 = vld [vmem:[#allocation10 + $0x28] sm:$0xff]
        %v8170 = vld [vmem:[#allocation10 + $0x30] sm:$0xff]
        %v8171 = vld [vmem:[#allocation10 + $0x38] sm:$0xff]
        %v8172 = vld [vmem:[#allocation10 + $0x40] sm:$0xff]
        %v8173 = vld [vmem:[#allocation10 + $0x48] sm:$0xff]
        %v8174 = vld [vmem:[#allocation10 + $0x50] sm:$0xff]
        %v8175 = vld [vmem:[#allocation10 + $0x58] sm:$0xff]
        %v8176 = vld [vmem:[#allocation10 + $0x60] sm:$0xff]
        %v8177 = vld [vmem:[#allocation10 + $0x68] sm:$0xff]
        %v8178 = vld [vmem:[#allocation10 + $0x70] sm:$0xff]
        %v8179 = vld [vmem:[#allocation10 + $0x78] sm:$0xff]
        %v8180 = vld [vmem:[%s651] sm:$0xf]
        %v8181 = vld [vmem:[%s651 + $0x4] sm:$0xf]
        %v8182 = vld [vmem:[#allocation11] sm:$0xff]
        %v8183 = vld [vmem:[#allocation11 + $0x8] sm:$0xff]
        %v8186 = vunpack.c.l.b16 %v8180
        %v8187 = vunpack.c.l.b16 %v8181
        %v8188 = vpack.c.b16 %v8187, %v8186
        %v8191 = vunpack.c.l.b16 %v8182
        %v8192 = vunpack.c.h.b16 %v8182
        %v8193 = vunpack.c.l.b16 %v8183
        %v8194 = vunpack.c.h.b16 %v8183
        %v8195 = vpack.c.b16 %v8191, %v8191
        %v8196 = vpack.c.b16 %v8192, %v8192
        %v8197 = vpack.c.b16 %v8193, %v8193
        %v8198 = vpack.c.b16 %v8194, %v8194
        %vm8199 = vcmask 64512
        %v8201 = vsel %vm8199, %v8188, 0
        %vm8203 = vcmask 1043456
        %v8205 = vsel %vm8203, %v8195, 0
        %v8208 = vsel %vm8203, %v8196, 0
        %v8211 = vsel %vm8203, %v8197, 0
        %v8214 = vsel %vm8203, %v8198, 0
        %8216 = vmatprep.subr.bf16.mxu0 %v8208
        %8217 = vmatpush1.bf16.msra.mxu0 %v8205
        %8218 = vmatprep.subr.bf16.mxu0 0
        %8219 = vmatpush1.bf16.msra.mxu0 0
        %8220 = vmatprep.subr.bf16.mxu0 0
        %8221 = vmatpush1.bf16.msra.mxu0 0
        %8222 = vmatprep.subr.bf16.mxu0 0
        %8223 = vmatpush1.bf16.msra.mxu0 0
        %8224 = vmatprep.subr.bf16.mxu0 0
        %8225 = vmatpush1.bf16.msra.mxu0 0
        %8226 = vmatprep.subr.bf16.mxu0 0
        %8227 = vmatpush1.bf16.msra.mxu0 0
        %8228 = vmatprep.subr.bf16.mxu0 0
        %8229 = vmatpush1.bf16.msra.mxu0 0
        %8230 = vmatprep.subr.bf16.mxu0 0
        %8231 = vmatpush1.bf16.msra.mxu0 0
        %8232 = vmatprep.subr.bf16.mxu0 0
        %8233 = vmatpush1.bf16.msra.mxu0 0
        %8234 = vmatprep.subr.bf16.mxu0 0
        %8235 = vmatpush1.bf16.msra.mxu0 0
        %8236 = vmatprep.subr.bf16.mxu0 0
        %8237 = vmatpush1.bf16.msra.mxu0 0
        %8238 = vmatprep.subr.bf16.mxu0 0
        %8239 = vmatpush1.bf16.msra.mxu0 0
        %8240 = vmatprep.subr.bf16.mxu0 0
        %8241 = vmatpush1.bf16.msra.mxu0 0
        %8242 = vmatprep.subr.bf16.mxu0 0
        %8243 = vmatpush1.bf16.msra.mxu0 0
        %8244 = vmatprep.subr.bf16.mxu0 0
        %8245 = vmatpush1.bf16.msra.mxu0 0
        %8246 = vmatprep.subr.bf16.mxu0 0
        %8247 = vmatpush1.bf16.msra.mxu0 0
        %8248 = vmatprep.mubr.bf16.mxu0 0
        %8249 = vmatmul.mubr.bf16.gmra.mrb[0].mxu0 %v8201
        %v8250 = vpop.f32.mrb[0].mxu0
        %v8251 = vadd.f32 0.0, %v8250
        %v8252 = vpop.f32.mrb[0].mxu0
        %v8253 = vadd.f32 0.0, %v8252
        %v8254 = vpop.f32.mrb[0].mxu0
        %v8255 = vadd.f32 0.0, %v8254
        %v8256 = vpop.f32.mrb[0].mxu0
        %v8257 = vadd.f32 0.0, %v8256
        %8258 = vdwg.mxu0
        %8259 = vmatprep.subr.bf16.mxu0 %v8214
        %8260 = vmatpush1.bf16.msra.mxu0 %v8211
        %8261 = vmatprep.subr.bf16.mxu0 0
        %8262 = vmatpush1.bf16.msra.mxu0 0
        %8263 = vmatprep.subr.bf16.mxu0 0
        %8264 = vmatpush1.bf16.msra.mxu0 0
        %8265 = vmatprep.subr.bf16.mxu0 0
        %8266 = vmatpush1.bf16.msra.mxu0 0
        %8267 = vmatprep.subr.bf16.mxu0 0
        %8268 = vmatpush1.bf16.msra.mxu0 0
        %8269 = vmatprep.subr.bf16.mxu0 0
        %8270 = vmatpush1.bf16.msra.mxu0 0
        %8271 = vmatprep.subr.bf16.mxu0 0
        %8272 = vmatpush1.bf16.msra.mxu0 0
        %8273 = vmatprep.subr.bf16.mxu0 0
        %8274 = vmatpush1.bf16.msra.mxu0 0
        %8275 = vmatprep.subr.bf16.mxu0 0
        %8276 = vmatpush1.bf16.msra.mxu0 0
        %8277 = vmatprep.subr.bf16.mxu0 0
        %8278 = vmatpush1.bf16.msra.mxu0 0
        %8279 = vmatprep.subr.bf16.mxu0 0
        %8280 = vmatpush1.bf16.msra.mxu0 0
        %8281 = vmatprep.subr.bf16.mxu0 0
        %8282 = vmatpush1.bf16.msra.mxu0 0
        %8283 = vmatprep.subr.bf16.mxu0 0
        %8284 = vmatpush1.bf16.msra.mxu0 0
        %8285 = vmatprep.subr.bf16.mxu0 0
        %8286 = vmatpush1.bf16.msra.mxu0 0
        %8287 = vmatprep.subr.bf16.mxu0 0
        %8288 = vmatpush1.bf16.msra.mxu0 0
        %8289 = vmatprep.subr.bf16.mxu0 0
        %8290 = vmatpush1.bf16.msra.mxu0 0
        %8291 = vmatprep.mubr.bf16.mxu0 0
        %8292 = vmatmul.mubr.bf16.gmra.mrb[0].mxu0 %v8201
        %v8293 = vpop.f32.mrb[0].mxu0
        %v8294 = vadd.f32 0.0, %v8293
        %v8295 = vpop.f32.mrb[0].mxu0
        %v8296 = vadd.f32 0.0, %v8295
        %v8297 = vpop.f32.mrb[0].mxu0
        %v8298 = vadd.f32 0.0, %v8297
        %v8299 = vpop.f32.mrb[0].mxu0
        %v8300 = vadd.f32 0.0, %v8299
        %8301 = vdwg.mxu0
        %v8318 = vunpack.c.l.b16 %v8164
        %v8319 = vunpack.c.h.b16 %v8164
        %v8320 = vunpack.c.l.b16 %v8165
        %v8321 = vunpack.c.h.b16 %v8165
        %v8322 = vunpack.c.l.b16 %v8166
        %v8323 = vunpack.c.h.b16 %v8166
        %v8324 = vunpack.c.l.b16 %v8167
        %v8325 = vunpack.c.h.b16 %v8167
        %v8326 = vunpack.c.l.b16 %v8168
        %v8327 = vunpack.c.h.b16 %v8168
        %v8328 = vunpack.c.l.b16 %v8169
        %v8329 = vunpack.c.h.b16 %v8169
        %v8330 = vunpack.c.l.b16 %v8170
        %v8331 = vunpack.c.h.b16 %v8170
        %v8332 = vunpack.c.l.b16 %v8171
        %v8333 = vunpack.c.h.b16 %v8171
        %v8334 = vunpack.c.l.b16 %v8172
        %v8335 = vunpack.c.h.b16 %v8172
        %v8336 = vunpack.c.l.b16 %v8173
        %v8337 = vunpack.c.h.b16 %v8173
        %v8338 = vunpack.c.l.b16 %v8174
        %v8339 = vunpack.c.h.b16 %v8174
        %v8340 = vunpack.c.l.b16 %v8175
        %v8341 = vunpack.c.h.b16 %v8175
        %v8342 = vunpack.c.l.b16 %v8176
        %v8343 = vunpack.c.h.b16 %v8176
        %v8344 = vunpack.c.l.b16 %v8177
        %v8345 = vunpack.c.h.b16 %v8177
        %v8346 = vunpack.c.l.b16 %v8178
        %v8347 = vunpack.c.h.b16 %v8178
        %v8348 = vunpack.c.l.b16 %v8179
        %v8349 = vunpack.c.h.b16 %v8179
        %v8350 = vpack.c.b16 %v8322, %v8318
        %v8351 = vpack.c.b16 %v8323, %v8319
        %v8352 = vpack.c.b16 %v8324, %v8320
        %v8353 = vpack.c.b16 %v8325, %v8321
        %v8354 = vpack.c.b16 %v8330, %v8326
        %v8355 = vpack.c.b16 %v8331, %v8327
        %v8356 = vpack.c.b16 %v8332, %v8328
        %v8357 = vpack.c.b16 %v8333, %v8329
        %v8358 = vpack.c.b16 %v8338, %v8334
        %v8359 = vpack.c.b16 %v8339, %v8335
        %v8360 = vpack.c.b16 %v8340, %v8336
        %v8361 = vpack.c.b16 %v8341, %v8337
        %v8362 = vpack.c.b16 %v8346, %v8342
        %v8363 = vpack.c.b16 %v8347, %v8343
        %v8364 = vpack.c.b16 %v8348, %v8344
        %v8365 = vpack.c.b16 %v8349, %v8345
        %v8383 = vsel %vm1273, %v8163, 0
        %8385 = vmatprep.subr.bf16.mxu0 %v8351
        %8386 = vmatpush1.bf16.msra.mxu0 %v8350
        %8387 = vmatprep.subr.bf16.mxu0 %v8355
        %8388 = vmatpush1.bf16.msra.mxu0 %v8354
        %8389 = vmatprep.subr.bf16.mxu0 %v8359
        %8390 = vmatpush1.bf16.msra.mxu0 %v8358
        %8391 = vmatprep.subr.bf16.mxu0 %v8363
        %8392 = vmatpush1.bf16.msra.mxu0 %v8362
        %8393 = vmatprep.subr.bf16.mxu0 0
        %8394 = vmatpush1.bf16.msra.mxu0 0
        %8395 = vmatprep.subr.bf16.mxu0 0
        %8396 = vmatpush1.bf16.msra.mxu0 0
        %8397 = vmatprep.subr.bf16.mxu0 0
        %8398 = vmatpush1.bf16.msra.mxu0 0
        %8399 = vmatprep.subr.bf16.mxu0 0
        %8400 = vmatpush1.bf16.msra.mxu0 0
        %8401 = vmatprep.subr.bf16.mxu0 0
        %8402 = vmatpush1.bf16.msra.mxu0 0
        %8403 = vmatprep.subr.bf16.mxu0 0
        %8404 = vmatpush1.bf16.msra.mxu0 0
        %8405 = vmatprep.subr.bf16.mxu0 0
        %8406 = vmatpush1.bf16.msra.mxu0 0
        %8407 = vmatprep.subr.bf16.mxu0 0
        %8408 = vmatpush1.bf16.msra.mxu0 0
        %8409 = vmatprep.subr.bf16.mxu0 0
        %8410 = vmatpush1.bf16.msra.mxu0 0
        %8411 = vmatprep.subr.bf16.mxu0 0
        %8412 = vmatpush1.bf16.msra.mxu0 0
        %8413 = vmatprep.subr.bf16.mxu0 0
        %8414 = vmatpush1.bf16.msra.mxu0 0
        %8415 = vmatprep.subr.bf16.mxu0 0
        %8416 = vmatpush1.bf16.msra.mxu0 0
        %8417 = vmatprep.mubr.bf16.mxu0 0
        %8418 = vmatmul.mubr.bf16.gmra.mrb[0].mxu0 %v8383
        %v8419 = vpop.f32.mrb[0].mxu0
        %v8420 = vadd.f32 %v8251, %v8419
        %v8421 = vpop.f32.mrb[0].mxu0
        %v8422 = vadd.f32 %v8253, %v8421
        %v8423 = vpop.f32.mrb[0].mxu0
        %v8424 = vadd.f32 %v8255, %v8423
        %v8425 = vpop.f32.mrb[0].mxu0
        %v8426 = vadd.f32 %v8257, %v8425
        %8427 = vdwg.mxu0
        %8428 = vmatprep.subr.bf16.mxu0 %v8353
        %8429 = vmatpush1.bf16.msra.mxu0 %v8352
        %8430 = vmatprep.subr.bf16.mxu0 %v8357
        %8431 = vmatpush1.bf16.msra.mxu0 %v8356
        %8432 = vmatprep.subr.bf16.mxu0 %v8361
        %8433 = vmatpush1.bf16.msra.mxu0 %v8360
        %8434 = vmatprep.subr.bf16.mxu0 %v8365
        %8435 = vmatpush1.bf16.msra.mxu0 %v8364
        %8436 = vmatprep.subr.bf16.mxu0 0
        %8437 = vmatpush1.bf16.msra.mxu0 0
        %8438 = vmatprep.subr.bf16.mxu0 0
        %8439 = vmatpush1.bf16.msra.mxu0 0
        %8440 = vmatprep.subr.bf16.mxu0 0
        %8441 = vmatpush1.bf16.msra.mxu0 0
        %8442 = vmatprep.subr.bf16.mxu0 0
        %8443 = vmatpush1.bf16.msra.mxu0 0
        %8444 = vmatprep.subr.bf16.mxu0 0
        %8445 = vmatpush1.bf16.msra.mxu0 0
        %8446 = vmatprep.subr.bf16.mxu0 0
        %8447 = vmatpush1.bf16.msra.mxu0 0
        %8448 = vmatprep.subr.bf16.mxu0 0
        %8449 = vmatpush1.bf16.msra.mxu0 0
        %8450 = vmatprep.subr.bf16.mxu0 0
        %8451 = vmatpush1.bf16.msra.mxu0 0
        %8452 = vmatprep.subr.bf16.mxu0 0
        %8453 = vmatpush1.bf16.msra.mxu0 0
        %8454 = vmatprep.subr.bf16.mxu0 0
        %8455 = vmatpush1.bf16.msra.mxu0 0
        %8456 = vmatprep.subr.bf16.mxu0 0
        %8457 = vmatpush1.bf16.msra.mxu0 0
        %8458 = vmatprep.subr.bf16.mxu0 0
        %8459 = vmatpush1.bf16.msra.mxu0 0
        %8460 = vmatprep.mubr.bf16.mxu0 0
        %8461 = vmatmul.mubr.bf16.gmra.mrb[0].mxu0 %v8383
        %v8462 = vpop.f32.mrb[0].mxu0
        %v8463 = vadd.f32 %v8294, %v8462
        %v8464 = vpop.f32.mrb[0].mxu0
        %v8465 = vadd.f32 %v8296, %v8464
        %v8466 = vpop.f32.mrb[0].mxu0
        %v8467 = vadd.f32 %v8298, %v8466
        %v8468 = vpop.f32.mrb[0].mxu0
        %v8469 = vadd.f32 %v8300, %v8468
        %8470 = vdwg.mxu0
        %v8471 = vld [vmem:[#allocation13] sm:$0xf]
        %v8473 = vlaneseq
        %v8474 = vshrl.u32 %v8473, 7
        %v8475 = vsub.s32 0, %v8474
        %v8476 = vrot.slane %v8471, %v8475
        %v8477 = vlaneseq
        %v8478 = vshrl.u32 %v8477, 7
        %v8479 = vsub.s32 1, %v8478
        %v8480 = vrot.slane %v8471, %v8479
        %v8481 = vlaneseq
        %v8482 = vshrl.u32 %v8481, 7
        %v8483 = vsub.s32 2, %v8482
        %v8484 = vrot.slane %v8471, %v8483
        %v8485 = vlaneseq
        %v8486 = vshrl.u32 %v8485, 7
        %v8487 = vsub.s32 3, %v8486
        %v8488 = vrot.slane %v8471, %v8487
        %v8493 = vadd.f32 %v8420, %v8476
        %v8494 = vadd.f32 %v8422, %v8480
        %v8495 = vadd.f32 %v8463, %v8484
        %v8496 = vadd.f32 %v8465, %v8488
        %v8497 = vadd.f32 %v8424, %v8476
        %v8498 = vadd.f32 %v8426, %v8480
        %v8499 = vadd.f32 %v8467, %v8484
        %v8500 = vadd.f32 %v8469, %v8488
        %v8501 = vmax.f32 %v8493, 0.0
        %v8502 = vmax.f32 %v8494, 0.0
        %v8503 = vmax.f32 %v8495, 0.0
        %v8504 = vmax.f32 %v8496, 0.0
        %v8505 = vmax.f32 %v8497, 0.0
        %v8506 = vmax.f32 %v8498, 0.0
        %v8507 = vmax.f32 %v8499, 0.0
        %v8508 = vmax.f32 %v8500, 0.0
        %v8509 = vpack.c.bf16 %v8505, %v8501
        %v8510 = vpack.c.bf16 %v8506, %v8502
        %v8511 = vpack.c.bf16 %v8507, %v8503
        %v8512 = vpack.c.bf16 %v8508, %v8504
        %v8513 = vld [vmem:[%s11] sm:$0xff]
        %v8514 = vld [vmem:[%s11 + $0x8] sm:$0xff]
        %v8515 = vld [vmem:[%s11 + $0x10] sm:$0xff]
        %v8516 = vld [vmem:[%s11 + $0x18] sm:$0xff]
        %v8517 = vld [vmem:[%s11 + $0x20] sm:$0xff]
        %v8518 = vld [vmem:[%s11 + $0x28] sm:$0xff]
        %v8519 = vld [vmem:[%s11 + $0x30] sm:$0xff]
        %v8520 = vld [vmem:[%s11 + $0x38] sm:$0xff]
        %v8521 = vld [vmem:[%s11 + $0x40] sm:$0xff]
        %v8522 = vld [vmem:[%s11 + $0x48] sm:$0xff]
        %v8523 = vld [vmem:[%s11 + $0x50] sm:$0xff]
        %v8524 = vld [vmem:[%s11 + $0x58] sm:$0xff]
        %v8525 = vld [vmem:[%s11 + $0x60] sm:$0xff]
        %v8526 = vld [vmem:[%s11 + $0x68] sm:$0xff]
        %v8527 = vld [vmem:[%s11 + $0x70] sm:$0xff]
        %v8528 = vld [vmem:[%s11 + $0x78] sm:$0xff]
        %v8529 = vld [vmem:[%s11 + $0x80] sm:$0xff]
        %v8530 = vld [vmem:[%s11 + $0x88] sm:$0xff]
        %v8531 = vld [vmem:[%s11 + $0x90] sm:$0xff]
        %v8532 = vld [vmem:[%s11 + $0x98] sm:$0xff]
        %v8533 = vld [vmem:[%s11 + $0xa0] sm:$0xff]
        %v8534 = vld [vmem:[%s11 + $0xa8] sm:$0xff]
        %v8535 = vld [vmem:[%s11 + $0xb0] sm:$0xff]
        %v8536 = vld [vmem:[%s11 + $0xb8] sm:$0xff]
        %v8537 = vld [vmem:[%s11 + $0xc0] sm:$0xff]
        %v8538 = vld [vmem:[%s11 + $0xc8] sm:$0xff]
        %v8539 = vld [vmem:[%s11 + $0xd0] sm:$0xff]
        %v8540 = vld [vmem:[%s11 + $0xd8] sm:$0xff]
        %v8541 = vld [vmem:[%s11 + $0xe0] sm:$0xff]
        %v8542 = vld [vmem:[%s11 + $0xe8] sm:$0xff]
        %v8543 = vld [vmem:[%s11 + $0xf0] sm:$0xff]
        %v8544 = vld [vmem:[%s11 + $0xf8] sm:$0xff]
        %v8545 = vld [vmem:[%s11 + $0x100] sm:$0xff]
        %v8546 = vld [vmem:[%s11 + $0x108] sm:$0xff]
        %v8547 = vld [vmem:[%s11 + $0x110] sm:$0xff]
        %v8548 = vld [vmem:[%s11 + $0x118] sm:$0xff]
        %v8549 = vld [vmem:[%s11 + $0x120] sm:$0xff]
        %v8550 = vld [vmem:[%s11 + $0x128] sm:$0xff]
        %v8551 = vld [vmem:[%s11 + $0x130] sm:$0xff]
        %v8552 = vld [vmem:[%s11 + $0x138] sm:$0xff]
        %v8553 = vld [vmem:[%s11 + $0x140] sm:$0xff]
        %v8554 = vld [vmem:[%s11 + $0x148] sm:$0xff]
        %v8555 = vld [vmem:[%s11 + $0x150] sm:$0xff]
        %v8556 = vld [vmem:[%s11 + $0x158] sm:$0xff]
        %v8557 = vld [vmem:[%s11 + $0x160] sm:$0xff]
        %v8558 = vld [vmem:[%s11 + $0x168] sm:$0xff]
        %v8559 = vld [vmem:[%s11 + $0x170] sm:$0xff]
        %v8560 = vld [vmem:[%s11 + $0x178] sm:$0xff]
        %v8561 = vld [vmem:[%s11 + $0x180] sm:$0xff]
        %v8562 = vld [vmem:[%s11 + $0x188] sm:$0xff]
        %v8563 = vld [vmem:[%s11 + $0x190] sm:$0xff]
        %v8564 = vld [vmem:[%s11 + $0x198] sm:$0xff]
        %v8565 = vld [vmem:[%s11 + $0x1a0] sm:$0xff]
        %v8566 = vld [vmem:[%s11 + $0x1a8] sm:$0xff]
        %v8567 = vld [vmem:[%s11 + $0x1b0] sm:$0xff]
        %v8568 = vld [vmem:[%s11 + $0x1b8] sm:$0xff]
        %v8569 = vld [vmem:[%s11 + $0x1c0] sm:$0xff]
        %v8570 = vld [vmem:[%s11 + $0x1c8] sm:$0xff]
        %v8571 = vld [vmem:[%s11 + $0x1d0] sm:$0xff]
        %v8572 = vld [vmem:[%s11 + $0x1d8] sm:$0xff]
        %v8573 = vld [vmem:[%s11 + $0x1e0] sm:$0xff]
        %v8574 = vld [vmem:[%s11 + $0x1e8] sm:$0xff]
        %v8575 = vld [vmem:[%s11 + $0x1f0] sm:$0xff]
        %v8576 = vld [vmem:[%s11 + $0x1f8] sm:$0xff]
        %v8577 = vld [vmem:[#allocation14] sm:$0x3]
        %v8579 = vlaneseq
        %v8580 = vshrl.u32 %v8579, 7
        %v8581 = vsub.s32 0, %v8580
        %v8582 = vrot.slane %v8577, %v8581
        %v8583 = vlaneseq
        %v8584 = vshrl.u32 %v8583, 7
        %v8585 = vsub.s32 1, %v8584
        %v8586 = vrot.slane %v8577, %v8585
        %v8653 = vunpack.c.l.b16 %v8513
        %v8654 = vunpack.c.h.b16 %v8513
        %v8655 = vunpack.c.l.b16 %v8514
        %v8656 = vunpack.c.h.b16 %v8514
        %v8657 = vunpack.c.l.b16 %v8515
        %v8658 = vunpack.c.h.b16 %v8515
        %v8659 = vunpack.c.l.b16 %v8516
        %v8660 = vunpack.c.h.b16 %v8516
        %v8661 = vunpack.c.l.b16 %v8517
        %v8662 = vunpack.c.h.b16 %v8517
        %v8663 = vunpack.c.l.b16 %v8518
        %v8664 = vunpack.c.h.b16 %v8518
        %v8665 = vunpack.c.l.b16 %v8519
        %v8666 = vunpack.c.h.b16 %v8519
        %v8667 = vunpack.c.l.b16 %v8520
        %v8668 = vunpack.c.h.b16 %v8520
        %v8669 = vunpack.c.l.b16 %v8521
        %v8670 = vunpack.c.h.b16 %v8521
        %v8671 = vunpack.c.l.b16 %v8522
        %v8672 = vunpack.c.h.b16 %v8522
        %v8673 = vunpack.c.l.b16 %v8523
        %v8674 = vunpack.c.h.b16 %v8523
        %v8675 = vunpack.c.l.b16 %v8524
        %v8676 = vunpack.c.h.b16 %v8524
        %v8677 = vunpack.c.l.b16 %v8525
        %v8678 = vunpack.c.h.b16 %v8525
        %v8679 = vunpack.c.l.b16 %v8526
        %v8680 = vunpack.c.h.b16 %v8526
        %v8681 = vunpack.c.l.b16 %v8527
        %v8682 = vunpack.c.h.b16 %v8527
        %v8683 = vunpack.c.l.b16 %v8528
        %v8684 = vunpack.c.h.b16 %v8528
        %v8685 = vunpack.c.l.b16 %v8529
        %v8686 = vunpack.c.h.b16 %v8529
        %v8687 = vunpack.c.l.b16 %v8530
        %v8688 = vunpack.c.h.b16 %v8530
        %v8689 = vunpack.c.l.b16 %v8531
        %v8690 = vunpack.c.h.b16 %v8531
        %v8691 = vunpack.c.l.b16 %v8532
        %v8692 = vunpack.c.h.b16 %v8532
        %v8693 = vunpack.c.l.b16 %v8533
        %v8694 = vunpack.c.h.b16 %v8533
        %v8695 = vunpack.c.l.b16 %v8534
        %v8696 = vunpack.c.h.b16 %v8534
        %v8697 = vunpack.c.l.b16 %v8535
        %v8698 = vunpack.c.h.b16 %v8535
        %v8699 = vunpack.c.l.b16 %v8536
        %v8700 = vunpack.c.h.b16 %v8536
        %v8701 = vunpack.c.l.b16 %v8537
        %v8702 = vunpack.c.h.b16 %v8537
        %v8703 = vunpack.c.l.b16 %v8538
        %v8704 = vunpack.c.h.b16 %v8538
        %v8705 = vunpack.c.l.b16 %v8539
        %v8706 = vunpack.c.h.b16 %v8539
        %v8707 = vunpack.c.l.b16 %v8540
        %v8708 = vunpack.c.h.b16 %v8540
        %v8709 = vunpack.c.l.b16 %v8541
        %v8710 = vunpack.c.h.b16 %v8541
        %v8711 = vunpack.c.l.b16 %v8542
        %v8712 = vunpack.c.h.b16 %v8542
        %v8713 = vunpack.c.l.b16 %v8543
        %v8714 = vunpack.c.h.b16 %v8543
        %v8715 = vunpack.c.l.b16 %v8544
        %v8716 = vunpack.c.h.b16 %v8544
        %v8717 = vunpack.c.l.b16 %v8545
        %v8718 = vunpack.c.h.b16 %v8545
        %v8719 = vunpack.c.l.b16 %v8546
        %v8720 = vunpack.c.h.b16 %v8546
        %v8721 = vunpack.c.l.b16 %v8547
        %v8722 = vunpack.c.h.b16 %v8547
        %v8723 = vunpack.c.l.b16 %v8548
        %v8724 = vunpack.c.h.b16 %v8548
        %v8725 = vunpack.c.l.b16 %v8549
        %v8726 = vunpack.c.h.b16 %v8549
        %v8727 = vunpack.c.l.b16 %v8550
        %v8728 = vunpack.c.h.b16 %v8550
        %v8729 = vunpack.c.l.b16 %v8551
        %v8730 = vunpack.c.h.b16 %v8551
        %v8731 = vunpack.c.l.b16 %v8552
        %v8732 = vunpack.c.h.b16 %v8552
        %v8733 = vunpack.c.l.b16 %v8553
        %v8734 = vunpack.c.h.b16 %v8553
        %v8735 = vunpack.c.l.b16 %v8554
        %v8736 = vunpack.c.h.b16 %v8554
        %v8737 = vunpack.c.l.b16 %v8555
        %v8738 = vunpack.c.h.b16 %v8555
        %v8739 = vunpack.c.l.b16 %v8556
        %v8740 = vunpack.c.h.b16 %v8556
        %v8741 = vunpack.c.l.b16 %v8557
        %v8742 = vunpack.c.h.b16 %v8557
        %v8743 = vunpack.c.l.b16 %v8558
        %v8744 = vunpack.c.h.b16 %v8558
        %v8745 = vunpack.c.l.b16 %v8559
        %v8746 = vunpack.c.h.b16 %v8559
        %v8747 = vunpack.c.l.b16 %v8560
        %v8748 = vunpack.c.h.b16 %v8560
        %v8749 = vunpack.c.l.b16 %v8561
        %v8750 = vunpack.c.h.b16 %v8561
        %v8751 = vunpack.c.l.b16 %v8562
        %v8752 = vunpack.c.h.b16 %v8562
        %v8753 = vunpack.c.l.b16 %v8563
        %v8754 = vunpack.c.h.b16 %v8563
        %v8755 = vunpack.c.l.b16 %v8564
        %v8756 = vunpack.c.h.b16 %v8564
        %v8757 = vunpack.c.l.b16 %v8565
        %v8758 = vunpack.c.h.b16 %v8565
        %v8759 = vunpack.c.l.b16 %v8566
        %v8760 = vunpack.c.h.b16 %v8566
        %v8761 = vunpack.c.l.b16 %v8567
        %v8762 = vunpack.c.h.b16 %v8567
        %v8763 = vunpack.c.l.b16 %v8568
        %v8764 = vunpack.c.h.b16 %v8568
        %v8765 = vunpack.c.l.b16 %v8569
        %v8766 = vunpack.c.h.b16 %v8569
        %v8767 = vunpack.c.l.b16 %v8570
        %v8768 = vunpack.c.h.b16 %v8570
        %v8769 = vunpack.c.l.b16 %v8571
        %v8770 = vunpack.c.h.b16 %v8571
        %v8771 = vunpack.c.l.b16 %v8572
        %v8772 = vunpack.c.h.b16 %v8572
        %v8773 = vunpack.c.l.b16 %v8573
        %v8774 = vunpack.c.h.b16 %v8573
        %v8775 = vunpack.c.l.b16 %v8574
        %v8776 = vunpack.c.h.b16 %v8574
        %v8777 = vunpack.c.l.b16 %v8575
        %v8778 = vunpack.c.h.b16 %v8575
        %v8779 = vunpack.c.l.b16 %v8576
        %v8780 = vunpack.c.h.b16 %v8576
        %v8781 = vpack.c.b16 %v8655, %v8653
        %v8782 = vpack.c.b16 %v8656, %v8654
        %v8783 = vpack.c.b16 %v8659, %v8657
        %v8784 = vpack.c.b16 %v8660, %v8658
        %v8785 = vpack.c.b16 %v8663, %v8661
        %v8786 = vpack.c.b16 %v8664, %v8662
        %v8787 = vpack.c.b16 %v8667, %v8665
        %v8788 = vpack.c.b16 %v8668, %v8666
        %v8789 = vpack.c.b16 %v8671, %v8669
        %v8790 = vpack.c.b16 %v8672, %v8670
        %v8791 = vpack.c.b16 %v8675, %v8673
        %v8792 = vpack.c.b16 %v8676, %v8674
        %v8793 = vpack.c.b16 %v8679, %v8677
        %v8794 = vpack.c.b16 %v8680, %v8678
        %v8795 = vpack.c.b16 %v8683, %v8681
        %v8796 = vpack.c.b16 %v8684, %v8682
        %v8797 = vpack.c.b16 %v8687, %v8685
        %v8798 = vpack.c.b16 %v8688, %v8686
        %v8799 = vpack.c.b16 %v8691, %v8689
        %v8800 = vpack.c.b16 %v8692, %v8690
        %v8801 = vpack.c.b16 %v8695, %v8693
        %v8802 = vpack.c.b16 %v8696, %v8694
        %v8803 = vpack.c.b16 %v8699, %v8697
        %v8804 = vpack.c.b16 %v8700, %v8698
        %v8805 = vpack.c.b16 %v8703, %v8701
        %v8806 = vpack.c.b16 %v8704, %v8702
        %v8807 = vpack.c.b16 %v8707, %v8705
        %v8808 = vpack.c.b16 %v8708, %v8706
        %v8809 = vpack.c.b16 %v8711, %v8709
        %v8810 = vpack.c.b16 %v8712, %v8710
        %v8811 = vpack.c.b16 %v8715, %v8713
        %v8812 = vpack.c.b16 %v8716, %v8714
        %v8813 = vpack.c.b16 %v8719, %v8717
        %v8814 = vpack.c.b16 %v8720, %v8718
        %v8815 = vpack.c.b16 %v8723, %v8721
        %v8816 = vpack.c.b16 %v8724, %v8722
        %v8817 = vpack.c.b16 %v8727, %v8725
        %v8818 = vpack.c.b16 %v8728, %v8726
        %v8819 = vpack.c.b16 %v8731, %v8729
        %v8820 = vpack.c.b16 %v8732, %v8730
        %v8821 = vpack.c.b16 %v8735, %v8733
        %v8822 = vpack.c.b16 %v8736, %v8734
        %v8823 = vpack.c.b16 %v8739, %v8737
        %v8824 = vpack.c.b16 %v8740, %v8738
        %v8825 = vpack.c.b16 %v8743, %v8741
        %v8826 = vpack.c.b16 %v8744, %v8742
        %v8827 = vpack.c.b16 %v8747, %v8745
        %v8828 = vpack.c.b16 %v8748, %v8746
        %v8829 = vpack.c.b16 %v8751, %v8749
        %v8830 = vpack.c.b16 %v8752, %v8750
        %v8831 = vpack.c.b16 %v8755, %v8753
        %v8832 = vpack.c.b16 %v8756, %v8754
        %v8833 = vpack.c.b16 %v8759, %v8757
        %v8834 = vpack.c.b16 %v8760, %v8758
        %v8835 = vpack.c.b16 %v8763, %v8761
        %v8836 = vpack.c.b16 %v8764, %v8762
        %v8837 = vpack.c.b16 %v8767, %v8765
        %v8838 = vpack.c.b16 %v8768, %v8766
        %v8839 = vpack.c.b16 %v8771, %v8769
        %v8840 = vpack.c.b16 %v8772, %v8770
        %v8841 = vpack.c.b16 %v8775, %v8773
        %v8842 = vpack.c.b16 %v8776, %v8774
        %v8843 = vpack.c.b16 %v8779, %v8777
        %v8844 = vpack.c.b16 %v8780, %v8778
        %8909 = vmatprep.subr.bf16.mxu0 %v8782
        %8910 = vmatpush1.bf16.msra.mxu0 %v8781
        %8911 = vmatprep.subr.bf16.mxu0 %v8784
        %8912 = vmatpush1.bf16.msra.mxu0 %v8783
        %8913 = vmatprep.subr.bf16.mxu0 %v8786
        %8914 = vmatpush1.bf16.msra.mxu0 %v8785
        %8915 = vmatprep.subr.bf16.mxu0 %v8788
        %8916 = vmatpush1.bf16.msra.mxu0 %v8787
        %8917 = vmatprep.subr.bf16.mxu0 %v8790
        %8918 = vmatpush1.bf16.msra.mxu0 %v8789
        %8919 = vmatprep.subr.bf16.mxu0 %v8792
        %8920 = vmatpush1.bf16.msra.mxu0 %v8791
        %8921 = vmatprep.subr.bf16.mxu0 %v8794
        %8922 = vmatpush1.bf16.msra.mxu0 %v8793
        %8923 = vmatprep.subr.bf16.mxu0 %v8796
        %8924 = vmatpush1.bf16.msra.mxu0 %v8795
        %8925 = vmatprep.subr.bf16.mxu0 %v8798
        %8926 = vmatpush1.bf16.msra.mxu0 %v8797
        %8927 = vmatprep.subr.bf16.mxu0 %v8800
        %8928 = vmatpush1.bf16.msra.mxu0 %v8799
        %8929 = vmatprep.subr.bf16.mxu0 %v8802
        %8930 = vmatpush1.bf16.msra.mxu0 %v8801
        %8931 = vmatprep.subr.bf16.mxu0 %v8804
        %8932 = vmatpush1.bf16.msra.mxu0 %v8803
        %8933 = vmatprep.subr.bf16.mxu0 %v8806
        %8934 = vmatpush1.bf16.msra.mxu0 %v8805
        %8935 = vmatprep.subr.bf16.mxu0 %v8808
        %8936 = vmatpush1.bf16.msra.mxu0 %v8807
        %8937 = vmatprep.subr.bf16.mxu0 %v8810
        %8938 = vmatpush1.bf16.msra.mxu0 %v8809
        %8939 = vmatprep.subr.bf16.mxu0 %v8812
        %8940 = vmatpush1.bf16.msra.mxu0 %v8811
        %8941 = vmatprep.mubr.bf16.mxu0 %v8510
        %8942 = vmatmul.mubr.bf16.gmra.mrb[0].mxu0 %v8509
        %v8943 = vpop.f32.mrb[0].mxu0
        %v8944 = vadd.f32 %v8582, %v8943
        %v8945 = vpop.f32.mrb[0].mxu0
        %v8946 = vadd.f32 %v8586, %v8945
        %v8947 = vpop.f32.mrb[0].mxu0
        %v8948 = vadd.f32 %v8582, %v8947
        %v8949 = vpop.f32.mrb[0].mxu0
        %v8950 = vadd.f32 %v8586, %v8949
        %8951 = vdwg.mxu0
        %8952 = vmatprep.subr.bf16.mxu0 %v8814
        %8953 = vmatpush1.bf16.msra.mxu0 %v8813
        %8954 = vmatprep.subr.bf16.mxu0 %v8816
        %8955 = vmatpush1.bf16.msra.mxu0 %v8815
        %8956 = vmatprep.subr.bf16.mxu0 %v8818
        %8957 = vmatpush1.bf16.msra.mxu0 %v8817
        %8958 = vmatprep.subr.bf16.mxu0 %v8820
        %8959 = vmatpush1.bf16.msra.mxu0 %v8819
        %8960 = vmatprep.subr.bf16.mxu0 %v8822
        %8961 = vmatpush1.bf16.msra.mxu0 %v8821
        %8962 = vmatprep.subr.bf16.mxu0 %v8824
        %8963 = vmatpush1.bf16.msra.mxu0 %v8823
        %8964 = vmatprep.subr.bf16.mxu0 %v8826
        %8965 = vmatpush1.bf16.msra.mxu0 %v8825
        %8966 = vmatprep.subr.bf16.mxu0 %v8828
        %8967 = vmatpush1.bf16.msra.mxu0 %v8827
        %8968 = vmatprep.subr.bf16.mxu0 %v8830
        %8969 = vmatpush1.bf16.msra.mxu0 %v8829
        %8970 = vmatprep.subr.bf16.mxu0 %v8832
        %8971 = vmatpush1.bf16.msra.mxu0 %v8831
        %8972 = vmatprep.subr.bf16.mxu0 %v8834
        %8973 = vmatpush1.bf16.msra.mxu0 %v8833
        %8974 = vmatprep.subr.bf16.mxu0 %v8836
        %8975 = vmatpush1.bf16.msra.mxu0 %v8835
        %8976 = vmatprep.subr.bf16.mxu0 %v8838
        %8977 = vmatpush1.bf16.msra.mxu0 %v8837
        %8978 = vmatprep.subr.bf16.mxu0 %v8840
        %8979 = vmatpush1.bf16.msra.mxu0 %v8839
        %8980 = vmatprep.subr.bf16.mxu0 %v8842
        %8981 = vmatpush1.bf16.msra.mxu0 %v8841
        %8982 = vmatprep.subr.bf16.mxu0 %v8844
        %8983 = vmatpush1.bf16.msra.mxu0 %v8843
        %8984 = vmatprep.mubr.bf16.mxu0 %v8512
        %8985 = vmatmul.mubr.bf16.gmra.mrb[0].mxu0 %v8511
        %v8986 = vpop.f32.mrb[0].mxu0
        %v8987 = vadd.f32 %v8944, %v8986
        %v8988 = vpop.f32.mrb[0].mxu0
        %v8989 = vadd.f32 %v8946, %v8988
        %v8990 = vpop.f32.mrb[0].mxu0
        %v8991 = vadd.f32 %v8948, %v8990
        %v8992 = vpop.f32.mrb[0].mxu0
        %v8993 = vadd.f32 %v8950, %v8992
        %8994 = vdwg.mxu0
        %v8995 = vmax.f32 %v8987, 0.0
        %v8996 = vmax.f32 %v8989, 0.0
        %v8997 = vmax.f32 %v8991, 0.0
        %v8998 = vmax.f32 %v8993, 0.0
        %v8999 = vpack.c.bf16 %v8997, %v8995
        %v9000 = vpack.c.bf16 %v8998, %v8996
        %v9001 = vld [vmem:[%s13] sm:$0xf]
        %v9002 = vld [vmem:[%s13 + $0x4] sm:$0xf]
        %v9003 = vld [vmem:[%s13 + $0x8] sm:$0xf]
        %v9004 = vld [vmem:[%s13 + $0xc] sm:$0xf]
        %v9005 = vld [vmem:[%s13 + $0x10] sm:$0xf]
        %v9006 = vld [vmem:[%s13 + $0x14] sm:$0xf]
        %v9007 = vld [vmem:[%s13 + $0x18] sm:$0xf]
        %v9008 = vld [vmem:[%s13 + $0x1c] sm:$0xf]
        %v9009 = vld [vmem:[%s13 + $0x20] sm:$0xf]
        %v9010 = vld [vmem:[%s13 + $0x24] sm:$0xf]
        %v9011 = vld [vmem:[%s13 + $0x28] sm:$0xf]
        %v9012 = vld [vmem:[%s13 + $0x2c] sm:$0xf]
        %v9013 = vld [vmem:[%s13 + $0x30] sm:$0xf]
        %v9014 = vld [vmem:[%s13 + $0x34] sm:$0xf]
        %v9015 = vld [vmem:[%s13 + $0x38] sm:$0xf]
        %v9016 = vld [vmem:[%s13 + $0x3c] sm:$0xf]
        %v9017 = vld [vmem:[%s13 + $0x40] sm:$0xf]
        %v9018 = vld [vmem:[%s13 + $0x44] sm:$0xf]
        %v9019 = vld [vmem:[%s13 + $0x48] sm:$0xf]
        %v9020 = vld [vmem:[%s13 + $0x4c] sm:$0xf]
        %v9021 = vld [vmem:[%s13 + $0x50] sm:$0xf]
        %v9022 = vld [vmem:[%s13 + $0x54] sm:$0xf]
        %v9023 = vld [vmem:[%s13 + $0x58] sm:$0xf]
        %v9024 = vld [vmem:[%s13 + $0x5c] sm:$0xf]
        %v9025 = vld [vmem:[%s13 + $0x60] sm:$0xf]
        %v9026 = vld [vmem:[%s13 + $0x64] sm:$0xf]
        %v9027 = vld [vmem:[%s13 + $0x68] sm:$0xf]
        %v9028 = vld [vmem:[%s13 + $0x6c] sm:$0xf]
        %v9029 = vld [vmem:[%s13 + $0x70] sm:$0xf]
        %v9030 = vld [vmem:[%s13 + $0x74] sm:$0xf]
        %v9031 = vld [vmem:[%s13 + $0x78] sm:$0xf]
        %v9032 = vld [vmem:[%s13 + $0x7c] sm:$0xf]
        %v9033 = vld [vmem:[%s14] sm:$0x1]
        %v9035 = vlaneseq
        %v9036 = vshrl.u32 %v9035, 7
        %v9037 = vsub.s32 0, %v9036
        %v9038 = vrot.slane %v9033, %v9037
        %v9072 = vunpack.c.l.b16 %v9001
        %v9073 = vunpack.c.l.b16 %v9002
        %v9074 = vunpack.c.l.b16 %v9003
        %v9075 = vunpack.c.l.b16 %v9004
        %v9076 = vunpack.c.l.b16 %v9005
        %v9077 = vunpack.c.l.b16 %v9006
        %v9078 = vunpack.c.l.b16 %v9007
        %v9079 = vunpack.c.l.b16 %v9008
        %v9080 = vunpack.c.l.b16 %v9009
        %v9081 = vunpack.c.l.b16 %v9010
        %v9082 = vunpack.c.l.b16 %v9011
        %v9083 = vunpack.c.l.b16 %v9012
        %v9084 = vunpack.c.l.b16 %v9013
        %v9085 = vunpack.c.l.b16 %v9014
        %v9086 = vunpack.c.l.b16 %v9015
        %v9087 = vunpack.c.l.b16 %v9016
        %v9088 = vunpack.c.l.b16 %v9017
        %v9089 = vunpack.c.l.b16 %v9018
        %v9090 = vunpack.c.l.b16 %v9019
        %v9091 = vunpack.c.l.b16 %v9020
        %v9092 = vunpack.c.l.b16 %v9021
        %v9093 = vunpack.c.l.b16 %v9022
        %v9094 = vunpack.c.l.b16 %v9023
        %v9095 = vunpack.c.l.b16 %v9024
        %v9096 = vunpack.c.l.b16 %v9025
        %v9097 = vunpack.c.l.b16 %v9026
        %v9098 = vunpack.c.l.b16 %v9027
        %v9099 = vunpack.c.l.b16 %v9028
        %v9100 = vunpack.c.l.b16 %v9029
        %v9101 = vunpack.c.l.b16 %v9030
        %v9102 = vunpack.c.l.b16 %v9031
        %v9103 = vunpack.c.l.b16 %v9032
        %v9104 = vpack.c.b16 %v9073, %v9072
        %v9105 = vpack.c.b16 %v9075, %v9074
        %v9106 = vpack.c.b16 %v9077, %v9076
        %v9107 = vpack.c.b16 %v9079, %v9078
        %v9108 = vpack.c.b16 %v9081, %v9080
        %v9109 = vpack.c.b16 %v9083, %v9082
        %v9110 = vpack.c.b16 %v9085, %v9084
        %v9111 = vpack.c.b16 %v9087, %v9086
        %v9112 = vpack.c.b16 %v9089, %v9088
        %v9113 = vpack.c.b16 %v9091, %v9090
        %v9114 = vpack.c.b16 %v9093, %v9092
        %v9115 = vpack.c.b16 %v9095, %v9094
        %v9116 = vpack.c.b16 %v9097, %v9096
        %v9117 = vpack.c.b16 %v9099, %v9098
        %v9118 = vpack.c.b16 %v9101, %v9100
        %v9119 = vpack.c.b16 %v9103, %v9102
        %9136 = vmatprep.subr.bf16.mxu0 0
        %9137 = vmatpush1.bf16.msra.mxu0 %v9104
        %9138 = vmatprep.subr.bf16.mxu0 0
        %9139 = vmatpush1.bf16.msra.mxu0 %v9105
        %9140 = vmatprep.subr.bf16.mxu0 0
        %9141 = vmatpush1.bf16.msra.mxu0 %v9106
        %9142 = vmatprep.subr.bf16.mxu0 0
        %9143 = vmatpush1.bf16.msra.mxu0 %v9107
        %9144 = vmatprep.subr.bf16.mxu0 0
        %9145 = vmatpush1.bf16.msra.mxu0 %v9108
        %9146 = vmatprep.subr.bf16.mxu0 0
        %9147 = vmatpush1.bf16.msra.mxu0 %v9109
        %9148 = vmatprep.subr.bf16.mxu0 0
        %9149 = vmatpush1.bf16.msra.mxu0 %v9110
        %9150 = vmatprep.subr.bf16.mxu0 0
        %9151 = vmatpush1.bf16.msra.mxu0 %v9111
        %9152 = vmatprep.subr.bf16.mxu0 0
        %9153 = vmatpush1.bf16.msra.mxu0 %v9112
        %9154 = vmatprep.subr.bf16.mxu0 0
        %9155 = vmatpush1.bf16.msra.mxu0 %v9113
        %9156 = vmatprep.subr.bf16.mxu0 0
        %9157 = vmatpush1.bf16.msra.mxu0 %v9114
        %9158 = vmatprep.subr.bf16.mxu0 0
        %9159 = vmatpush1.bf16.msra.mxu0 %v9115
        %9160 = vmatprep.subr.bf16.mxu0 0
        %9161 = vmatpush1.bf16.msra.mxu0 %v9116
        %9162 = vmatprep.subr.bf16.mxu0 0
        %9163 = vmatpush1.bf16.msra.mxu0 %v9117
        %9164 = vmatprep.subr.bf16.mxu0 0
        %9165 = vmatpush1.bf16.msra.mxu0 %v9118
        %9166 = vmatprep.subr.bf16.mxu0 0
        %9167 = vmatpush1.bf16.msra.mxu0 %v9119
        %9168 = vmatprep.mubr.bf16.mxu0 %v9000
        %9169 = vmatmul.mubr.bf16.gmra.mrb[0].mxu0 %v8999
        %v9170 = vpop.f32.mrb[0].mxu0
        %v9171 = vadd.f32 %v9038, %v9170
        %v9172 = vpop.f32.mrb[0].mxu0
        %v9173 = vpop.f32.mrb[0].mxu0
        %v9174 = vadd.f32 %v9038, %v9173
        %v9175 = vpop.f32.mrb[0].mxu0
        %9176 = vdwg.mxu0
        %9177 = vst [vmem:[%s645] sm:$0xff] %v9171
        %9178 = vst [vmem:[%s645 + $0x8] sm:$0xff] %v9174
        %s9179 = sand.u32 %s369, 1
        %s9180 = scalar_lea.sflag [#allocation4], %s9179
        %s9181 = sand.u32 %s369, 1
        %s9182 = smul.addr %s9181, 16
        %s9183 = scalar_lea.vmem [#allocation16], %s9182
        // Predicated region
        $region113: #{tpu_custom_call.1} parent=79 // pred_check
          %p9184 = pneg %p379
        $region114: #{tpu_custom_call.1} parent=79 // pred_check_branch
          %9186 = sbr.rel (%p9184) target = $region116
        $region115: #{tpu_custom_call.1} parent=79 // pred_region
          %s9187 = smul.u32 2, %s36
          %s9189 = ssub.s32 256, 256
          %9190 = vsyncadd %s9180, %s9189
          %s9191 = smul.addr %s9187, 128
          %s9192 = scalar_lea.hbm %s15, %s9191
          %s9193 = sshll.u32 %s9183, 4
          %s9194 = int_to_ptr.vmem [resolvable:$true] %s9193
          %9199 = dma.vmem_to_hbm [thread:$0]  %s9194, 256, %s9192, %s9180, 128, 128, 8
        $region116: #{tpu_custom_call.1} parent=79 // pred_fallthru
          _
      $region80: #{tpu_custom_call.1} parent=5 // pred_fallthru
        _
      %p9200 = scmp.le.s32.totalorder 2, %s31
      // Predicated region
      $region117: #{tpu_custom_call.1} parent=5 // pred_check
        %p9201 = pneg %p9200
      $region118: #{tpu_custom_call.1} parent=5 // pred_check_branch
        %9203 = sbr.rel (%p9201) target = $region120
      $region119: #{tpu_custom_call.1} parent=5 // pred_region
        %s9204 = ssub.s32 %s31, 2
        // Predicated region
        $region121: #{tpu_custom_call.1} parent=119 // pred_check
          %p9205 = pneg %p385
        $region122: #{tpu_custom_call.1} parent=119 // pred_check_branch
          %9207 = sbr.rel (%p9205) target = $region124
        $region123: #{tpu_custom_call.1} parent=119 // pred_region
          %s9208 = sand.u32 %s370, 1
          %s9209 = scalar_lea.sflag [#allocation4], %s9208
          %s9210 = sand.u32 %s370, 1
          %s9211 = smul.addr %s9210, 16
          %s9212 = scalar_lea.vmem [#allocation16], %s9211
          %9213 = dma.done %s9209, 256
        $region124: #{tpu_custom_call.1} parent=119 // pred_fallthru
          _
      $region120: #{tpu_custom_call.1} parent=5 // pred_fallthru
        _
    $region6: #{tpu_custom_call.1} parent=1 // loop_footer
      %s35 = sadd.s32 1, %s31
    $region7: #{tpu_custom_call.1} parent=1 // loop_footer_branch
      %30 = sbr.rel target = $region3
    $region8: #{tpu_custom_call.1} parent=1 // loop_exit
      _
    %9214 = vsyncpa [#allocation3], 1
    %s9215 = scalar_lea.sflag [#allocation3], 1
    %9216 = vsyncpa %s9215, 1
    %9217 = vsyncpa [#allocation6], 1
    %9218 = vsyncpa [#allocation9], 1
    %9219 = vsyncpa [#allocation12], 1
    %9220 = vsyncpa [#allocation15], 1
    %9221 = vsyncpa [#allocation4], 1
    %s9222 = scalar_lea.sflag [#allocation4], 1
    %9223 = vsyncpa %s9222, 1

</llo_original>
